<compile_context>
chip_gen: v5e
topology: v5e:2x2
jax: 0.10.0
libtpu: 0.0.40
codegen_flags: <defaults>
</compile_context>

<pallas_src>
import math
from functools import partial

import jax
import jax.numpy as jnp
from jax.experimental import pallas as pl
from jax.experimental.pallas import tpu as pltpu

CLAMP_MIN = -1.5   # self.min
CLAMP_MAX = -2.2   # self.max

_TARGET_TILE_BYTES = 4 * 1024 * 1024     # per operand, per pipeline buffer
_VMEM_LIMIT_BYTES = 32 * 1024 * 1024     # 3 operands x 2 buffers x 4 MiB + headroom
_SMALL_FALLBACK_ELEMS = 256 * 1024       # below this, fused XLA is already at roofline
_LANE_CHOICES = (512, 256, 128)          # lane-dense output widths (multiples of 128)


def _round_up(a, m):
    return ((a + m - 1) // m) * m


def _sublane_multiple(dtype):
    # 8 rows/vreg for 32-bit, 16 for 16-bit, 32 for 8-bit dtypes.
    itemsize = jnp.dtype(dtype).itemsize
    return 8 * max(1, 4 // itemsize)


def _add_clamp_kernel(x1_ref, x2_ref, o_ref, *, clamp_min, clamp_max):
    v1 = x1_ref[...] + x2_ref[...]
    lo = jnp.asarray(clamp_min, dtype=v1.dtype)   # dtype-matched constants
    hi = jnp.asarray(clamp_max, dtype=v1.dtype)
    v2 = jnp.maximum(v1, lo)                      # torch.clamp_min
    v3 = jnp.minimum(v2, hi)                      # torch.clamp_max
    o_ref[...] = v3.astype(o_ref.dtype)


def _jnp_add_clamp(x1, x2, clamp_min, clamp_max):
    v1 = x1 + x2
    v2 = jnp.maximum(v1, jnp.asarray(clamp_min, v1.dtype))
    return jnp.minimum(v2, jnp.asarray(clamp_max, v1.dtype))


def add_clamp(x1, x2, clamp_min=CLAMP_MIN, clamp_max=CLAMP_MAX):
    """Elementwise (x1 + x2) -> clamp_min -> clamp_max. x1, x2 same shape/dtype."""
    assert x1.shape == x2.shape, "elementwise add requires matching shapes"
    assert x1.dtype == x2.dtype, "elementwise add requires matching dtypes"
    shape = x1.shape
    dtype = x1.dtype
    total = math.prod(shape)

    # Fast path (the module's actual constants: -1.5 > -2.2): clamp_min applied
    # before clamp_max with min >= max saturates everything at clamp_max, so the
    # output is a constant fill and we never read x1/x2 (~3x less HBM traffic).
    # (Only divergence from torch would be NaN inputs, which torch propagates.)
    if clamp_min >= clamp_max:
        return jnp.full(shape, clamp_max, dtype=dtype)

    # Tiny tensors: pallas_call launch + single-step pipeline overhead dominates;
    # XLA fuses add+clamp at the HBM roofline already.
    if total < _SMALL_FALLBACK_ELEMS:
        return _jnp_add_clamp(x1, x2, clamp_min, clamp_max)

    # Pick the widest lane count that divides the element count exactly, so the
    # flatten->2-D reshape is a zero-copy contiguous reshape (no padding passes).
    lanes = next((l for l in _LANE_CHOICES if total % l == 0), None)
    if lanes is None:
        # Ragged (<128-aligned) total: still HBM-bound, let XLA handle it.
        return _jnp_add_clamp(x1, x2, clamp_min, clamp_max)

    itemsize = jnp.dtype(dtype).itemsize
    sub = _sublane_multiple(dtype)
    rows = total // lanes

    target_rows = max(sub, (_TARGET_TILE_BYTES // (lanes * itemsize)) // sub * sub)
    block_rows = min(target_rows, _round_up(rows, sub))
    grid = (pl.cdiv(rows, block_rows),)   # partial last block is masked by Pallas

    a2 = x1.reshape(rows, lanes)          # contiguous reshape -> no copy
    b2 = x2.reshape(rows, lanes)

    spec = pl.BlockSpec((block_rows, lanes), lambda i: (i, 0))

    out2d = pl.pallas_call(
        partial(_add_clamp_kernel, clamp_min=clamp_min, clamp_max=clamp_max),
        out_shape=jax.ShapeDtypeStruct((rows, lanes), dtype),
        grid_spec=pltpu.PrefetchScalarGridSpec(
            num_scalar_prefetch=0,
            grid=grid,
            in_specs=[spec, spec],
            out_specs=spec,
        ),
        compiler_params=pltpu.CompilerParams(
            dimension_semantics=("parallel",),   # megacore sharding where available
            vmem_limit_bytes=_VMEM_LIMIT_BYTES,
        ),
        cost_estimate=pl.CostEstimate(
            flops=3 * total,
            transcendentals=0,
            bytes_accessed=3 * total * itemsize,
        ),
    )(a2, b2)

    return out2d.reshape(shape)


def reference(x1, x2, clamp_min=CLAMP_MIN, clamp_max=CLAMP_MAX):
    return _jnp_add_clamp(x1, x2, clamp_min, clamp_max)


if __name__ == "__main__":
    key = jax.random.PRNGKey(0)
    k1, k2, k3, k4, k5, k6 = jax.random.split(key, 6)

    # Small shape consistent with the elementwise forward pass. (The original
    # script's x1/x2 shapes (1,64,64,32) vs (1,32,32,32) do not broadcast, so we
    # use matching shapes, which is what the add requires anyway.)
    shape = (2, 4, 16, 16)
    x1 = jax.random.normal(k1, shape, dtype=jnp.float32)
    x2 = jax.random.normal(k2, shape, dtype=jnp.float32)

    # 1) Module constants (min > max -> constant-fill fast path, exactly like torch).
    out = add_clamp(x1, x2)
    jax.block_until_ready(out)
    ref = reference(x1, x2)
    assert out.shape == ref.shape
    assert jnp.allclose(out, ref, atol=1e-6), "mismatch (module constants fast path)"

    # 2) min < max on the tiny shape -> small-input fallback path.
    out2 = add_clamp(x1, x2, clamp_min=-0.5, clamp_max=0.5)
    jax.block_until_ready(out2)
    ref2 = reference(x1, x2, clamp_min=-0.5, clamp_max=0.5)
    assert jnp.allclose(out2, ref2, atol=1e-6), "mismatch (small-input fallback)"

    # 3) Pallas path, exact blocking (rows % block_rows == 0).
    shape3 = (1, 8, 256, 512)   # 1,048,576 elems -> rows=2048, single full block
    a3 = jax.random.normal(k3, shape3, dtype=jnp.float32)
    b3 = jax.random.normal(k4, shape3, dtype=jnp.float32)
    out3 = add_clamp(a3, b3, clamp_min=-0.5, clamp_max=0.5)
    jax.block_until_ready(out3)
    ref3 = reference(a3, b3, clamp_min=-0.5, clamp_max=0.5)
    assert jnp.allclose(out3, ref3, atol=1e-6), "mismatch (pallas, full blocks)"

    # 4) Pallas path, partial (masked) last block: rows=2056, block_rows=2048, grid=2.
    shape4 = (1, 8, 257, 512)
    a4 = jax.random.normal(k5, shape4, dtype=jnp.float32)
    b4 = jax.random.normal(k6, shape4, dtype=jnp.float32)
    out4 = add_clamp(a4, b4, clamp_min=-0.5, clamp_max=0.5)
    jax.block_until_ready(out4)
    ref4 = reference(a4, b4, clamp_min=-0.5, clamp_max=0.5)
    assert jnp.allclose(out4, ref4, atol=1e-6), "mismatch (pallas, partial last block)"

    print("KERNEL_OK")
</pallas_src>

<mosaic_0001>
module attributes {stable_mosaic.version = 11 : i64} {
  func.func @_add_clamp_kernel(%arg0: i32, %arg1: memref<2048x512xf32, #tpu.memory_space<vmem>>, %arg2: memref<2048x512xf32, #tpu.memory_space<vmem>>, %arg3: memref<2048x512xf32, #tpu.memory_space<vmem>>) attributes {dimension_semantics = [#tpu.dimension_semantics<parallel>], iteration_bounds = array<i64: 1>, scalar_prefetch = 0 : i64, scratch_operands = 0 : i64, tpu.core_type = #tpu.core_type<tc>, window_params = [{transform_indices = @transform_0, window_bounds = array<i64: 2048, 512>}, {transform_indices = @transform_1, window_bounds = array<i64: 2048, 512>}, {transform_indices = @transform_2, window_bounds = array<i64: 2048, 512>}]} {
    %c0 = arith.constant 0 : index
    %c0_0 = arith.constant 0 : index
    %0 = vector.load %arg1[%c0, %c0_0] : memref<2048x512xf32, #tpu.memory_space<vmem>>, vector<2048x512xf32>
    %c0_1 = arith.constant 0 : index
    %c0_2 = arith.constant 0 : index
    %1 = vector.load %arg2[%c0_1, %c0_2] : memref<2048x512xf32, #tpu.memory_space<vmem>>, vector<2048x512xf32>
    %2 = arith.addf %0, %1 : vector<2048x512xf32>
    %cst = arith.constant -5.000000e-01 : f32
    %3 = vector.broadcast %cst : f32 to vector<2048x512xf32>
    %4 = arith.maximumf %2, %3 : vector<2048x512xf32>
    %cst_3 = arith.constant 5.000000e-01 : f32
    %5 = vector.broadcast %cst_3 : f32 to vector<2048x512xf32>
    %6 = arith.minimumf %4, %5 : vector<2048x512xf32>
    %c0_4 = arith.constant 0 : index
    %c0_5 = arith.constant 0 : index
    %7 = vector.load %arg3[%c0_4, %c0_5] : memref<2048x512xf32, #tpu.memory_space<vmem>>, vector<2048x512xf32>
    tpu.vector_store %arg3[%c0_4, %c0_5], %6 {strides = array<i32>} : memref<2048x512xf32, #tpu.memory_space<vmem>>, vector<2048x512xf32>,
    return
  }
  func.func @transform_0(%arg0: i32) -> (i32, i32) {
    %c0_i32 = arith.constant 0 : i32
    %c0_i32_0 = arith.constant 0 : i32
    return %arg0, %c0_i32 : i32, i32
  }
  func.func @transform_1(%arg0: i32) -> (i32, i32) {
    %c0_i32 = arith.constant 0 : i32
    %c0_i32_0 = arith.constant 0 : i32
    return %arg0, %c0_i32 : i32, i32
  }
  func.func @transform_2(%arg0: i32) -> (i32, i32) {
    %c0_i32 = arith.constant 0 : i32
    %c0_i32_0 = arith.constant 0 : i32
    return %arg0, %c0_i32 : i32, i32
  }
}

</mosaic_0001>

<llo_original>
// kernel: tpu_custom_call.1
$region0: #{tpu_custom_call.1}
  #allocation0 [shape = 'u32[]', space=smem, size = 0x4, offset = 0x4, fixed_abs, tag = 'smem constant byte address 0x4 - core index']
  #allocation1 [shape = 'u32[72,128]{1,0:T(1,128)}', space=vmem, size = 0x9000, scoped, tag = 'internal scratch']
  %s0 = inlined_call_operand.hbm [shape: f32[2048,512], index: 0, kind: input, shape index: {}]
  %s1 = inlined_call_operand.hbm [shape: f32[2048,512], index: 1, kind: input, shape index: {}]
  %s2 = inlined_call_operand.hbm [shape: f32[2048,512], index: 2, kind: output, shape index: {}]
  %s3 = sld [smem:[#allocation0]]
  $region26: #{tpu_custom_call.1} parent=0
    _
  %s5 = ssub.s32 1, %s3
  %s6 = scalar_select 0, %s5, %s3
  $region1: #{tpu_custom_call.1} parent=0
    #allocation2 [shape = 'u8[4194304]{0}', space=vmem, size = 0x400000, scoped, tag = 'input window, operand 0, single buffered']
    #allocation3 [shape = 's32[1]{0}', space=sflag, size = 0x4, scoped, tag = 'scoped memory for tpu_custom_call.1']
    #allocation4 [shape = 's32[1]{0}', space=sflag, size = 0x4, scoped, tag = 'scoped memory for tpu_custom_call.1']
    #allocation5 [shape = 'u8[4194304]{0}', space=vmem, size = 0x400000, scoped, tag = 'input window, operand 1, single buffered']
    #allocation6 [shape = 's32[1]{0}', space=sflag, size = 0x4, scoped, tag = 'scoped memory for tpu_custom_call.1']
    #allocation7 [shape = 'u8[4194304]{0}', space=vmem, size = 0x400000, scoped, tag = 'output window, operand 0, single buffered']
    %7 = vsyncpa [#allocation3], 0
    %8 = vsyncpa [#allocation6], 0
    %9 = vsyncpa [#allocation4], 0
    // Predicated region
    $region2: #{tpu_custom_call.1} parent=1 // pred_check
      _
    $region3: #{tpu_custom_call.1} parent=1 // pred_check_branch
      %11 = sbr.rel (0) target = $region5
    $region4: #{tpu_custom_call.1} parent=1 // pred_region
      %13 = vsyncadd [#allocation3], 0
      %s14 = sshll.u32 %s0, 4
      %s15 = int_to_ptr.hbm [resolvable:$true] %s14
      %s16 = sshll.u32 [#allocation2], 4
      %s17 = int_to_ptr.vmem [resolvable:$true] %s16
      %22 = dma.hbm_to_vmem [thread:$0]  %s15, 131072, %s17, [#allocation3], 512, 512, 32
    $region5: #{tpu_custom_call.1} parent=1 // pred_fallthru
      _
    // Predicated region
    $region6: #{tpu_custom_call.1} parent=1 // pred_check
      _
    $region7: #{tpu_custom_call.1} parent=1 // pred_check_branch
      %24 = sbr.rel (0) target = $region9
    $region8: #{tpu_custom_call.1} parent=1 // pred_region
      %26 = vsyncadd [#allocation6], 0
      %s27 = sshll.u32 %s1, 4
      %s28 = int_to_ptr.hbm [resolvable:$true] %s27
      %s29 = sshll.u32 [#allocation5], 4
      %s30 = int_to_ptr.vmem [resolvable:$true] %s29
      %35 = dma.hbm_to_vmem [thread:$0]  %s28, 131072, %s30, [#allocation6], 512, 512, 32
    $region9: #{tpu_custom_call.1} parent=1 // pred_fallthru
      _
    // Predicated region
    $region10: #{tpu_custom_call.1} parent=1 // pred_check
      _
    $region11: #{tpu_custom_call.1} parent=1 // pred_check_branch
      %37 = sbr.rel (0) target = $region13
    $region12: #{tpu_custom_call.1} parent=1 // pred_region
      %39 = dma.done [#allocation3], 131072
    $region13: #{tpu_custom_call.1} parent=1 // pred_fallthru
      _
    // Predicated region
    $region14: #{tpu_custom_call.1} parent=1 // pred_check
      _
    $region15: #{tpu_custom_call.1} parent=1 // pred_check_branch
      %41 = sbr.rel (0) target = $region17
    $region16: #{tpu_custom_call.1} parent=1 // pred_region
      %43 = dma.done [#allocation6], 131072
    $region17: #{tpu_custom_call.1} parent=1 // pred_fallthru
      _
    %v44 = vld [vmem:[#allocation2] sm:$0xff]
    %v45 = vld [vmem:[#allocation2 + $0x8] sm:$0xff]
    %v46 = vld [vmem:[#allocation2 + $0x10] sm:$0xff]
    %v47 = vld [vmem:[#allocation2 + $0x18] sm:$0xff]
    %v48 = vld [vmem:[#allocation2 + $0x20] sm:$0xff]
    %v49 = vld [vmem:[#allocation2 + $0x28] sm:$0xff]
    %v50 = vld [vmem:[#allocation2 + $0x30] sm:$0xff]
    %v51 = vld [vmem:[#allocation2 + $0x38] sm:$0xff]
    %v52 = vld [vmem:[#allocation2 + $0x40] sm:$0xff]
    %v53 = vld [vmem:[#allocation2 + $0x48] sm:$0xff]
    %v54 = vld [vmem:[#allocation2 + $0x50] sm:$0xff]
    %v55 = vld [vmem:[#allocation2 + $0x58] sm:$0xff]
    %v56 = vld [vmem:[#allocation2 + $0x60] sm:$0xff]
    %v57 = vld [vmem:[#allocation2 + $0x68] sm:$0xff]
    %v58 = vld [vmem:[#allocation2 + $0x70] sm:$0xff]
    %v59 = vld [vmem:[#allocation2 + $0x78] sm:$0xff]
    %v60 = vld [vmem:[#allocation2 + $0x80] sm:$0xff]
    %v61 = vld [vmem:[#allocation2 + $0x88] sm:$0xff]
    %v62 = vld [vmem:[#allocation2 + $0x90] sm:$0xff]
    %v63 = vld [vmem:[#allocation2 + $0x98] sm:$0xff]
    %v64 = vld [vmem:[#allocation2 + $0xa0] sm:$0xff]
    %v65 = vld [vmem:[#allocation2 + $0xa8] sm:$0xff]
    %v66 = vld [vmem:[#allocation2 + $0xb0] sm:$0xff]
    %v67 = vld [vmem:[#allocation2 + $0xb8] sm:$0xff]
    %v68 = vld [vmem:[#allocation2 + $0xc0] sm:$0xff]
    %v69 = vld [vmem:[#allocation2 + $0xc8] sm:$0xff]
    %v70 = vld [vmem:[#allocation2 + $0xd0] sm:$0xff]
    %v71 = vld [vmem:[#allocation2 + $0xd8] sm:$0xff]
    %v72 = vld [vmem:[#allocation2 + $0xe0] sm:$0xff]
    %v73 = vld [vmem:[#allocation2 + $0xe8] sm:$0xff]
    %v74 = vld [vmem:[#allocation2 + $0xf0] sm:$0xff]
    %v75 = vld [vmem:[#allocation2 + $0xf8] sm:$0xff]
    %v76 = vld [vmem:[#allocation2 + $0x100] sm:$0xff]
    %v77 = vld [vmem:[#allocation2 + $0x108] sm:$0xff]
    %v78 = vld [vmem:[#allocation2 + $0x110] sm:$0xff]
    %v79 = vld [vmem:[#allocation2 + $0x118] sm:$0xff]
    %v80 = vld [vmem:[#allocation2 + $0x120] sm:$0xff]
    %v81 = vld [vmem:[#allocation2 + $0x128] sm:$0xff]
    %v82 = vld [vmem:[#allocation2 + $0x130] sm:$0xff]
    %v83 = vld [vmem:[#allocation2 + $0x138] sm:$0xff]
    %v84 = vld [vmem:[#allocation2 + $0x140] sm:$0xff]
    %v85 = vld [vmem:[#allocation2 + $0x148] sm:$0xff]
    %v86 = vld [vmem:[#allocation2 + $0x150] sm:$0xff]
    %v87 = vld [vmem:[#allocation2 + $0x158] sm:$0xff]
    %v88 = vld [vmem:[#allocation2 + $0x160] sm:$0xff]
    %v89 = vld [vmem:[#allocation2 + $0x168] sm:$0xff]
    %v90 = vld [vmem:[#allocation2 + $0x170] sm:$0xff]
    %v91 = vld [vmem:[#allocation2 + $0x178] sm:$0xff]
    %v92 = vld [vmem:[#allocation2 + $0x180] sm:$0xff]
    %v93 = vld [vmem:[#allocation2 + $0x188] sm:$0xff]
    %v94 = vld [vmem:[#allocation2 + $0x190] sm:$0xff]
    %v95 = vld [vmem:[#allocation2 + $0x198] sm:$0xff]
    %v96 = vld [vmem:[#allocation2 + $0x1a0] sm:$0xff]
    %v97 = vld [vmem:[#allocation2 + $0x1a8] sm:$0xff]
    %v98 = vld [vmem:[#allocation2 + $0x1b0] sm:$0xff]
    %v99 = vld [vmem:[#allocation2 + $0x1b8] sm:$0xff]
    %v100 = vld [vmem:[#allocation2 + $0x1c0] sm:$0xff]
    %v101 = vld [vmem:[#allocation2 + $0x1c8] sm:$0xff]
    %v102 = vld [vmem:[#allocation2 + $0x1d0] sm:$0xff]
    %v103 = vld [vmem:[#allocation2 + $0x1d8] sm:$0xff]
    %v104 = vld [vmem:[#allocation2 + $0x1e0] sm:$0xff]
    %v105 = vld [vmem:[#allocation2 + $0x1e8] sm:$0xff]
    %v106 = vld [vmem:[#allocation2 + $0x1f0] sm:$0xff]
    %v107 = vld [vmem:[#allocation2 + $0x1f8] sm:$0xff]
    %v108 = vld [vmem:[#allocation2 + $0x200] sm:$0xff]
    %v109 = vld [vmem:[#allocation2 + $0x208] sm:$0xff]
    %v110 = vld [vmem:[#allocation2 + $0x210] sm:$0xff]
    %v111 = vld [vmem:[#allocation2 + $0x218] sm:$0xff]
    %v112 = vld [vmem:[#allocation2 + $0x220] sm:$0xff]
    %v113 = vld [vmem:[#allocation2 + $0x228] sm:$0xff]
    %v114 = vld [vmem:[#allocation2 + $0x230] sm:$0xff]
    %v115 = vld [vmem:[#allocation2 + $0x238] sm:$0xff]
    %v116 = vld [vmem:[#allocation2 + $0x240] sm:$0xff]
    %v117 = vld [vmem:[#allocation2 + $0x248] sm:$0xff]
    %v118 = vld [vmem:[#allocation2 + $0x250] sm:$0xff]
    %v119 = vld [vmem:[#allocation2 + $0x258] sm:$0xff]
    %v120 = vld [vmem:[#allocation2 + $0x260] sm:$0xff]
    %v121 = vld [vmem:[#allocation2 + $0x268] sm:$0xff]
    %v122 = vld [vmem:[#allocation2 + $0x270] sm:$0xff]
    %v123 = vld [vmem:[#allocation2 + $0x278] sm:$0xff]
    %v124 = vld [vmem:[#allocation2 + $0x280] sm:$0xff]
    %v125 = vld [vmem:[#allocation2 + $0x288] sm:$0xff]
    %v126 = vld [vmem:[#allocation2 + $0x290] sm:$0xff]
    %v127 = vld [vmem:[#allocation2 + $0x298] sm:$0xff]
    %v128 = vld [vmem:[#allocation2 + $0x2a0] sm:$0xff]
    %v129 = vld [vmem:[#allocation2 + $0x2a8] sm:$0xff]
    %v130 = vld [vmem:[#allocation2 + $0x2b0] sm:$0xff]
    %v131 = vld [vmem:[#allocation2 + $0x2b8] sm:$0xff]
    %v132 = vld [vmem:[#allocation2 + $0x2c0] sm:$0xff]
    %v133 = vld [vmem:[#allocation2 + $0x2c8] sm:$0xff]
    %v134 = vld [vmem:[#allocation2 + $0x2d0] sm:$0xff]
    %v135 = vld [vmem:[#allocation2 + $0x2d8] sm:$0xff]
    %v136 = vld [vmem:[#allocation2 + $0x2e0] sm:$0xff]
    %v137 = vld [vmem:[#allocation2 + $0x2e8] sm:$0xff]
    %v138 = vld [vmem:[#allocation2 + $0x2f0] sm:$0xff]
    %v139 = vld [vmem:[#allocation2 + $0x2f8] sm:$0xff]
    %v140 = vld [vmem:[#allocation2 + $0x300] sm:$0xff]
    %v141 = vld [vmem:[#allocation2 + $0x308] sm:$0xff]
    %v142 = vld [vmem:[#allocation2 + $0x310] sm:$0xff]
    %v143 = vld [vmem:[#allocation2 + $0x318] sm:$0xff]
    %v144 = vld [vmem:[#allocation2 + $0x320] sm:$0xff]
    %v145 = vld [vmem:[#allocation2 + $0x328] sm:$0xff]
    %v146 = vld [vmem:[#allocation2 + $0x330] sm:$0xff]
    %v147 = vld [vmem:[#allocation2 + $0x338] sm:$0xff]
    %v148 = vld [vmem:[#allocation2 + $0x340] sm:$0xff]
    %v149 = vld [vmem:[#allocation2 + $0x348] sm:$0xff]
    %v150 = vld [vmem:[#allocation2 + $0x350] sm:$0xff]
    %v151 = vld [vmem:[#allocation2 + $0x358] sm:$0xff]
    %v152 = vld [vmem:[#allocation2 + $0x360] sm:$0xff]
    %v153 = vld [vmem:[#allocation2 + $0x368] sm:$0xff]
    %v154 = vld [vmem:[#allocation2 + $0x370] sm:$0xff]
    %v155 = vld [vmem:[#allocation2 + $0x378] sm:$0xff]
    %v156 = vld [vmem:[#allocation2 + $0x380] sm:$0xff]
    %v157 = vld [vmem:[#allocation2 + $0x388] sm:$0xff]
    %v158 = vld [vmem:[#allocation2 + $0x390] sm:$0xff]
    %v159 = vld [vmem:[#allocation2 + $0x398] sm:$0xff]
    %v160 = vld [vmem:[#allocation2 + $0x3a0] sm:$0xff]
    %v161 = vld [vmem:[#allocation2 + $0x3a8] sm:$0xff]
    %v162 = vld [vmem:[#allocation2 + $0x3b0] sm:$0xff]
    %v163 = vld [vmem:[#allocation2 + $0x3b8] sm:$0xff]
    %v164 = vld [vmem:[#allocation2 + $0x3c0] sm:$0xff]
    %v165 = vld [vmem:[#allocation2 + $0x3c8] sm:$0xff]
    %v166 = vld [vmem:[#allocation2 + $0x3d0] sm:$0xff]
    %v167 = vld [vmem:[#allocation2 + $0x3d8] sm:$0xff]
    %v168 = vld [vmem:[#allocation2 + $0x3e0] sm:$0xff]
    %v169 = vld [vmem:[#allocation2 + $0x3e8] sm:$0xff]
    %v170 = vld [vmem:[#allocation2 + $0x3f0] sm:$0xff]
    %v171 = vld [vmem:[#allocation2 + $0x3f8] sm:$0xff]
    %v172 = vld [vmem:[#allocation2 + $0x400] sm:$0xff]
    %v173 = vld [vmem:[#allocation2 + $0x408] sm:$0xff]
    %v174 = vld [vmem:[#allocation2 + $0x410] sm:$0xff]
    %v175 = vld [vmem:[#allocation2 + $0x418] sm:$0xff]
    %v176 = vld [vmem:[#allocation2 + $0x420] sm:$0xff]
    %v177 = vld [vmem:[#allocation2 + $0x428] sm:$0xff]
    %v178 = vld [vmem:[#allocation2 + $0x430] sm:$0xff]
    %v179 = vld [vmem:[#allocation2 + $0x438] sm:$0xff]
    %v180 = vld [vmem:[#allocation2 + $0x440] sm:$0xff]
    %v181 = vld [vmem:[#allocation2 + $0x448] sm:$0xff]
    %v182 = vld [vmem:[#allocation2 + $0x450] sm:$0xff]
    %v183 = vld [vmem:[#allocation2 + $0x458] sm:$0xff]
    %v184 = vld [vmem:[#allocation2 + $0x460] sm:$0xff]
    %v185 = vld [vmem:[#allocation2 + $0x468] sm:$0xff]
    %v186 = vld [vmem:[#allocation2 + $0x470] sm:$0xff]
    %v187 = vld [vmem:[#allocation2 + $0x478] sm:$0xff]
    %v188 = vld [vmem:[#allocation2 + $0x480] sm:$0xff]
    %v189 = vld [vmem:[#allocation2 + $0x488] sm:$0xff]
    %v190 = vld [vmem:[#allocation2 + $0x490] sm:$0xff]
    %v191 = vld [vmem:[#allocation2 + $0x498] sm:$0xff]
    %v192 = vld [vmem:[#allocation2 + $0x4a0] sm:$0xff]
    %v193 = vld [vmem:[#allocation2 + $0x4a8] sm:$0xff]
    %v194 = vld [vmem:[#allocation2 + $0x4b0] sm:$0xff]
    %v195 = vld [vmem:[#allocation2 + $0x4b8] sm:$0xff]
    %v196 = vld [vmem:[#allocation2 + $0x4c0] sm:$0xff]
    %v197 = vld [vmem:[#allocation2 + $0x4c8] sm:$0xff]
    %v198 = vld [vmem:[#allocation2 + $0x4d0] sm:$0xff]
    %v199 = vld [vmem:[#allocation2 + $0x4d8] sm:$0xff]
    %v200 = vld [vmem:[#allocation2 + $0x4e0] sm:$0xff]
    %v201 = vld [vmem:[#allocation2 + $0x4e8] sm:$0xff]
    %v202 = vld [vmem:[#allocation2 + $0x4f0] sm:$0xff]
    %v203 = vld [vmem:[#allocation2 + $0x4f8] sm:$0xff]
    %v204 = vld [vmem:[#allocation2 + $0x500] sm:$0xff]
    %v205 = vld [vmem:[#allocation2 + $0x508] sm:$0xff]
    %v206 = vld [vmem:[#allocation2 + $0x510] sm:$0xff]
    %v207 = vld [vmem:[#allocation2 + $0x518] sm:$0xff]
    %v208 = vld [vmem:[#allocation2 + $0x520] sm:$0xff]
    %v209 = vld [vmem:[#allocation2 + $0x528] sm:$0xff]
    %v210 = vld [vmem:[#allocation2 + $0x530] sm:$0xff]
    %v211 = vld [vmem:[#allocation2 + $0x538] sm:$0xff]
    %v212 = vld [vmem:[#allocation2 + $0x540] sm:$0xff]
    %v213 = vld [vmem:[#allocation2 + $0x548] sm:$0xff]
    %v214 = vld [vmem:[#allocation2 + $0x550] sm:$0xff]
    %v215 = vld [vmem:[#allocation2 + $0x558] sm:$0xff]
    %v216 = vld [vmem:[#allocation2 + $0x560] sm:$0xff]
    %v217 = vld [vmem:[#allocation2 + $0x568] sm:$0xff]
    %v218 = vld [vmem:[#allocation2 + $0x570] sm:$0xff]
    %v219 = vld [vmem:[#allocation2 + $0x578] sm:$0xff]
    %v220 = vld [vmem:[#allocation2 + $0x580] sm:$0xff]
    %v221 = vld [vmem:[#allocation2 + $0x588] sm:$0xff]
    %v222 = vld [vmem:[#allocation2 + $0x590] sm:$0xff]
    %v223 = vld [vmem:[#allocation2 + $0x598] sm:$0xff]
    %v224 = vld [vmem:[#allocation2 + $0x5a0] sm:$0xff]
    %v225 = vld [vmem:[#allocation2 + $0x5a8] sm:$0xff]
    %v226 = vld [vmem:[#allocation2 + $0x5b0] sm:$0xff]
    %v227 = vld [vmem:[#allocation2 + $0x5b8] sm:$0xff]
    %v228 = vld [vmem:[#allocation2 + $0x5c0] sm:$0xff]
    %v229 = vld [vmem:[#allocation2 + $0x5c8] sm:$0xff]
    %v230 = vld [vmem:[#allocation2 + $0x5d0] sm:$0xff]
    %v231 = vld [vmem:[#allocation2 + $0x5d8] sm:$0xff]
    %v232 = vld [vmem:[#allocation2 + $0x5e0] sm:$0xff]
    %v233 = vld [vmem:[#allocation2 + $0x5e8] sm:$0xff]
    %v234 = vld [vmem:[#allocation2 + $0x5f0] sm:$0xff]
    %v235 = vld [vmem:[#allocation2 + $0x5f8] sm:$0xff]
    %v236 = vld [vmem:[#allocation2 + $0x600] sm:$0xff]
    %v237 = vld [vmem:[#allocation2 + $0x608] sm:$0xff]
    %v238 = vld [vmem:[#allocation2 + $0x610] sm:$0xff]
    %v239 = vld [vmem:[#allocation2 + $0x618] sm:$0xff]
    %v240 = vld [vmem:[#allocation2 + $0x620] sm:$0xff]
    %v241 = vld [vmem:[#allocation2 + $0x628] sm:$0xff]
    %v242 = vld [vmem:[#allocation2 + $0x630] sm:$0xff]
    %v243 = vld [vmem:[#allocation2 + $0x638] sm:$0xff]
    %v244 = vld [vmem:[#allocation2 + $0x640] sm:$0xff]
    %v245 = vld [vmem:[#allocation2 + $0x648] sm:$0xff]
    %v246 = vld [vmem:[#allocation2 + $0x650] sm:$0xff]
    %v247 = vld [vmem:[#allocation2 + $0x658] sm:$0xff]
    %v248 = vld [vmem:[#allocation2 + $0x660] sm:$0xff]
    %v249 = vld [vmem:[#allocation2 + $0x668] sm:$0xff]
    %v250 = vld [vmem:[#allocation2 + $0x670] sm:$0xff]
    %v251 = vld [vmem:[#allocation2 + $0x678] sm:$0xff]
    %v252 = vld [vmem:[#allocation2 + $0x680] sm:$0xff]
    %v253 = vld [vmem:[#allocation2 + $0x688] sm:$0xff]
    %v254 = vld [vmem:[#allocation2 + $0x690] sm:$0xff]
    %v255 = vld [vmem:[#allocation2 + $0x698] sm:$0xff]
    %v256 = vld [vmem:[#allocation2 + $0x6a0] sm:$0xff]
    %v257 = vld [vmem:[#allocation2 + $0x6a8] sm:$0xff]
    %v258 = vld [vmem:[#allocation2 + $0x6b0] sm:$0xff]
    %v259 = vld [vmem:[#allocation2 + $0x6b8] sm:$0xff]
    %v260 = vld [vmem:[#allocation2 + $0x6c0] sm:$0xff]
    %v261 = vld [vmem:[#allocation2 + $0x6c8] sm:$0xff]
    %v262 = vld [vmem:[#allocation2 + $0x6d0] sm:$0xff]
    %v263 = vld [vmem:[#allocation2 + $0x6d8] sm:$0xff]
    %v264 = vld [vmem:[#allocation2 + $0x6e0] sm:$0xff]
    %v265 = vld [vmem:[#allocation2 + $0x6e8] sm:$0xff]
    %v266 = vld [vmem:[#allocation2 + $0x6f0] sm:$0xff]
    %v267 = vld [vmem:[#allocation2 + $0x6f8] sm:$0xff]
    %v268 = vld [vmem:[#allocation2 + $0x700] sm:$0xff]
    %v269 = vld [vmem:[#allocation2 + $0x708] sm:$0xff]
    %v270 = vld [vmem:[#allocation2 + $0x710] sm:$0xff]
    %v271 = vld [vmem:[#allocation2 + $0x718] sm:$0xff]
    %v272 = vld [vmem:[#allocation2 + $0x720] sm:$0xff]
    %v273 = vld [vmem:[#allocation2 + $0x728] sm:$0xff]
    %v274 = vld [vmem:[#allocation2 + $0x730] sm:$0xff]
    %v275 = vld [vmem:[#allocation2 + $0x738] sm:$0xff]
    %v276 = vld [vmem:[#allocation2 + $0x740] sm:$0xff]
    %v277 = vld [vmem:[#allocation2 + $0x748] sm:$0xff]
    %v278 = vld [vmem:[#allocation2 + $0x750] sm:$0xff]
    %v279 = vld [vmem:[#allocation2 + $0x758] sm:$0xff]
    %v280 = vld [vmem:[#allocation2 + $0x760] sm:$0xff]
    %v281 = vld [vmem:[#allocation2 + $0x768] sm:$0xff]
    %v282 = vld [vmem:[#allocation2 + $0x770] sm:$0xff]
    %v283 = vld [vmem:[#allocation2 + $0x778] sm:$0xff]
    %v284 = vld [vmem:[#allocation2 + $0x780] sm:$0xff]
    %v285 = vld [vmem:[#allocation2 + $0x788] sm:$0xff]
    %v286 = vld [vmem:[#allocation2 + $0x790] sm:$0xff]
    %v287 = vld [vmem:[#allocation2 + $0x798] sm:$0xff]
    %v288 = vld [vmem:[#allocation2 + $0x7a0] sm:$0xff]
    %v289 = vld [vmem:[#allocation2 + $0x7a8] sm:$0xff]
    %v290 = vld [vmem:[#allocation2 + $0x7b0] sm:$0xff]
    %v291 = vld [vmem:[#allocation2 + $0x7b8] sm:$0xff]
    %v292 = vld [vmem:[#allocation2 + $0x7c0] sm:$0xff]
    %v293 = vld [vmem:[#allocation2 + $0x7c8] sm:$0xff]
    %v294 = vld [vmem:[#allocation2 + $0x7d0] sm:$0xff]
    %v295 = vld [vmem:[#allocation2 + $0x7d8] sm:$0xff]
    %v296 = vld [vmem:[#allocation2 + $0x7e0] sm:$0xff]
    %v297 = vld [vmem:[#allocation2 + $0x7e8] sm:$0xff]
    %v298 = vld [vmem:[#allocation2 + $0x7f0] sm:$0xff]
    %v299 = vld [vmem:[#allocation2 + $0x7f8] sm:$0xff]
    %v300 = vld [vmem:[#allocation2 + $0x800] sm:$0xff]
    %v301 = vld [vmem:[#allocation2 + $0x808] sm:$0xff]
    %v302 = vld [vmem:[#allocation2 + $0x810] sm:$0xff]
    %v303 = vld [vmem:[#allocation2 + $0x818] sm:$0xff]
    %v304 = vld [vmem:[#allocation2 + $0x820] sm:$0xff]
    %v305 = vld [vmem:[#allocation2 + $0x828] sm:$0xff]
    %v306 = vld [vmem:[#allocation2 + $0x830] sm:$0xff]
    %v307 = vld [vmem:[#allocation2 + $0x838] sm:$0xff]
    %v308 = vld [vmem:[#allocation2 + $0x840] sm:$0xff]
    %v309 = vld [vmem:[#allocation2 + $0x848] sm:$0xff]
    %v310 = vld [vmem:[#allocation2 + $0x850] sm:$0xff]
    %v311 = vld [vmem:[#allocation2 + $0x858] sm:$0xff]
    %v312 = vld [vmem:[#allocation2 + $0x860] sm:$0xff]
    %v313 = vld [vmem:[#allocation2 + $0x868] sm:$0xff]
    %v314 = vld [vmem:[#allocation2 + $0x870] sm:$0xff]
    %v315 = vld [vmem:[#allocation2 + $0x878] sm:$0xff]
    %v316 = vld [vmem:[#allocation2 + $0x880] sm:$0xff]
    %v317 = vld [vmem:[#allocation2 + $0x888] sm:$0xff]
    %v318 = vld [vmem:[#allocation2 + $0x890] sm:$0xff]
    %v319 = vld [vmem:[#allocation2 + $0x898] sm:$0xff]
    %v320 = vld [vmem:[#allocation2 + $0x8a0] sm:$0xff]
    %v321 = vld [vmem:[#allocation2 + $0x8a8] sm:$0xff]
    %v322 = vld [vmem:[#allocation2 + $0x8b0] sm:$0xff]
    %v323 = vld [vmem:[#allocation2 + $0x8b8] sm:$0xff]
    %v324 = vld [vmem:[#allocation2 + $0x8c0] sm:$0xff]
    %v325 = vld [vmem:[#allocation2 + $0x8c8] sm:$0xff]
    %v326 = vld [vmem:[#allocation2 + $0x8d0] sm:$0xff]
    %v327 = vld [vmem:[#allocation2 + $0x8d8] sm:$0xff]
    %v328 = vld [vmem:[#allocation2 + $0x8e0] sm:$0xff]
    %v329 = vld [vmem:[#allocation2 + $0x8e8] sm:$0xff]
    %v330 = vld [vmem:[#allocation2 + $0x8f0] sm:$0xff]
    %v331 = vld [vmem:[#allocation2 + $0x8f8] sm:$0xff]
    %v332 = vld [vmem:[#allocation2 + $0x900] sm:$0xff]
    %v333 = vld [vmem:[#allocation2 + $0x908] sm:$0xff]
    %v334 = vld [vmem:[#allocation2 + $0x910] sm:$0xff]
    %v335 = vld [vmem:[#allocation2 + $0x918] sm:$0xff]
    %v336 = vld [vmem:[#allocation2 + $0x920] sm:$0xff]
    %v337 = vld [vmem:[#allocation2 + $0x928] sm:$0xff]
    %v338 = vld [vmem:[#allocation2 + $0x930] sm:$0xff]
    %v339 = vld [vmem:[#allocation2 + $0x938] sm:$0xff]
    %v340 = vld [vmem:[#allocation2 + $0x940] sm:$0xff]
    %v341 = vld [vmem:[#allocation2 + $0x948] sm:$0xff]
    %v342 = vld [vmem:[#allocation2 + $0x950] sm:$0xff]
    %v343 = vld [vmem:[#allocation2 + $0x958] sm:$0xff]
    %v344 = vld [vmem:[#allocation2 + $0x960] sm:$0xff]
    %v345 = vld [vmem:[#allocation2 + $0x968] sm:$0xff]
    %v346 = vld [vmem:[#allocation2 + $0x970] sm:$0xff]
    %v347 = vld [vmem:[#allocation2 + $0x978] sm:$0xff]
    %v348 = vld [vmem:[#allocation2 + $0x980] sm:$0xff]
    %v349 = vld [vmem:[#allocation2 + $0x988] sm:$0xff]
    %v350 = vld [vmem:[#allocation2 + $0x990] sm:$0xff]
    %v351 = vld [vmem:[#allocation2 + $0x998] sm:$0xff]
    %v352 = vld [vmem:[#allocation2 + $0x9a0] sm:$0xff]
    %v353 = vld [vmem:[#allocation2 + $0x9a8] sm:$0xff]
    %v354 = vld [vmem:[#allocation2 + $0x9b0] sm:$0xff]
    %v355 = vld [vmem:[#allocation2 + $0x9b8] sm:$0xff]
    %v356 = vld [vmem:[#allocation2 + $0x9c0] sm:$0xff]
    %v357 = vld [vmem:[#allocation2 + $0x9c8] sm:$0xff]
    %v358 = vld [vmem:[#allocation2 + $0x9d0] sm:$0xff]
    %v359 = vld [vmem:[#allocation2 + $0x9d8] sm:$0xff]
    %v360 = vld [vmem:[#allocation2 + $0x9e0] sm:$0xff]
    %v361 = vld [vmem:[#allocation2 + $0x9e8] sm:$0xff]
    %v362 = vld [vmem:[#allocation2 + $0x9f0] sm:$0xff]
    %v363 = vld [vmem:[#allocation2 + $0x9f8] sm:$0xff]
    %v364 = vld [vmem:[#allocation2 + $0xa00] sm:$0xff]
    %v365 = vld [vmem:[#allocation2 + $0xa08] sm:$0xff]
    %v366 = vld [vmem:[#allocation2 + $0xa10] sm:$0xff]
    %v367 = vld [vmem:[#allocation2 + $0xa18] sm:$0xff]
    %v368 = vld [vmem:[#allocation2 + $0xa20] sm:$0xff]
    %v369 = vld [vmem:[#allocation2 + $0xa28] sm:$0xff]
    %v370 = vld [vmem:[#allocation2 + $0xa30] sm:$0xff]
    %v371 = vld [vmem:[#allocation2 + $0xa38] sm:$0xff]
    %v372 = vld [vmem:[#allocation2 + $0xa40] sm:$0xff]
    %v373 = vld [vmem:[#allocation2 + $0xa48] sm:$0xff]
    %v374 = vld [vmem:[#allocation2 + $0xa50] sm:$0xff]
    %v375 = vld [vmem:[#allocation2 + $0xa58] sm:$0xff]
    %v376 = vld [vmem:[#allocation2 + $0xa60] sm:$0xff]
    %v377 = vld [vmem:[#allocation2 + $0xa68] sm:$0xff]
    %v378 = vld [vmem:[#allocation2 + $0xa70] sm:$0xff]
    %v379 = vld [vmem:[#allocation2 + $0xa78] sm:$0xff]
    %v380 = vld [vmem:[#allocation2 + $0xa80] sm:$0xff]
    %v381 = vld [vmem:[#allocation2 + $0xa88] sm:$0xff]
    %v382 = vld [vmem:[#allocation2 + $0xa90] sm:$0xff]
    %v383 = vld [vmem:[#allocation2 + $0xa98] sm:$0xff]
    %v384 = vld [vmem:[#allocation2 + $0xaa0] sm:$0xff]
    %v385 = vld [vmem:[#allocation2 + $0xaa8] sm:$0xff]
    %v386 = vld [vmem:[#allocation2 + $0xab0] sm:$0xff]
    %v387 = vld [vmem:[#allocation2 + $0xab8] sm:$0xff]
    %v388 = vld [vmem:[#allocation2 + $0xac0] sm:$0xff]
    %v389 = vld [vmem:[#allocation2 + $0xac8] sm:$0xff]
    %v390 = vld [vmem:[#allocation2 + $0xad0] sm:$0xff]
    %v391 = vld [vmem:[#allocation2 + $0xad8] sm:$0xff]
    %v392 = vld [vmem:[#allocation2 + $0xae0] sm:$0xff]
    %v393 = vld [vmem:[#allocation2 + $0xae8] sm:$0xff]
    %v394 = vld [vmem:[#allocation2 + $0xaf0] sm:$0xff]
    %v395 = vld [vmem:[#allocation2 + $0xaf8] sm:$0xff]
    %v396 = vld [vmem:[#allocation2 + $0xb00] sm:$0xff]
    %v397 = vld [vmem:[#allocation2 + $0xb08] sm:$0xff]
    %v398 = vld [vmem:[#allocation2 + $0xb10] sm:$0xff]
    %v399 = vld [vmem:[#allocation2 + $0xb18] sm:$0xff]
    %v400 = vld [vmem:[#allocation2 + $0xb20] sm:$0xff]
    %v401 = vld [vmem:[#allocation2 + $0xb28] sm:$0xff]
    %v402 = vld [vmem:[#allocation2 + $0xb30] sm:$0xff]
    %v403 = vld [vmem:[#allocation2 + $0xb38] sm:$0xff]
    %v404 = vld [vmem:[#allocation2 + $0xb40] sm:$0xff]
    %v405 = vld [vmem:[#allocation2 + $0xb48] sm:$0xff]
    %v406 = vld [vmem:[#allocation2 + $0xb50] sm:$0xff]
    %v407 = vld [vmem:[#allocation2 + $0xb58] sm:$0xff]
    %v408 = vld [vmem:[#allocation2 + $0xb60] sm:$0xff]
    %v409 = vld [vmem:[#allocation2 + $0xb68] sm:$0xff]
    %v410 = vld [vmem:[#allocation2 + $0xb70] sm:$0xff]
    %v411 = vld [vmem:[#allocation2 + $0xb78] sm:$0xff]
    %v412 = vld [vmem:[#allocation2 + $0xb80] sm:$0xff]
    %v413 = vld [vmem:[#allocation2 + $0xb88] sm:$0xff]
    %v414 = vld [vmem:[#allocation2 + $0xb90] sm:$0xff]
    %v415 = vld [vmem:[#allocation2 + $0xb98] sm:$0xff]
    %v416 = vld [vmem:[#allocation2 + $0xba0] sm:$0xff]
    %v417 = vld [vmem:[#allocation2 + $0xba8] sm:$0xff]
    %v418 = vld [vmem:[#allocation2 + $0xbb0] sm:$0xff]
    %v419 = vld [vmem:[#allocation2 + $0xbb8] sm:$0xff]
    %v420 = vld [vmem:[#allocation2 + $0xbc0] sm:$0xff]
    %v421 = vld [vmem:[#allocation2 + $0xbc8] sm:$0xff]
    %v422 = vld [vmem:[#allocation2 + $0xbd0] sm:$0xff]
    %v423 = vld [vmem:[#allocation2 + $0xbd8] sm:$0xff]
    %v424 = vld [vmem:[#allocation2 + $0xbe0] sm:$0xff]
    %v425 = vld [vmem:[#allocation2 + $0xbe8] sm:$0xff]
    %v426 = vld [vmem:[#allocation2 + $0xbf0] sm:$0xff]
    %v427 = vld [vmem:[#allocation2 + $0xbf8] sm:$0xff]
    %v428 = vld [vmem:[#allocation2 + $0xc00] sm:$0xff]
    %v429 = vld [vmem:[#allocation2 + $0xc08] sm:$0xff]
    %v430 = vld [vmem:[#allocation2 + $0xc10] sm:$0xff]
    %v431 = vld [vmem:[#allocation2 + $0xc18] sm:$0xff]
    %v432 = vld [vmem:[#allocation2 + $0xc20] sm:$0xff]
    %v433 = vld [vmem:[#allocation2 + $0xc28] sm:$0xff]
    %v434 = vld [vmem:[#allocation2 + $0xc30] sm:$0xff]
    %v435 = vld [vmem:[#allocation2 + $0xc38] sm:$0xff]
    %v436 = vld [vmem:[#allocation2 + $0xc40] sm:$0xff]
    %v437 = vld [vmem:[#allocation2 + $0xc48] sm:$0xff]
    %v438 = vld [vmem:[#allocation2 + $0xc50] sm:$0xff]
    %v439 = vld [vmem:[#allocation2 + $0xc58] sm:$0xff]
    %v440 = vld [vmem:[#allocation2 + $0xc60] sm:$0xff]
    %v441 = vld [vmem:[#allocation2 + $0xc68] sm:$0xff]
    %v442 = vld [vmem:[#allocation2 + $0xc70] sm:$0xff]
    %v443 = vld [vmem:[#allocation2 + $0xc78] sm:$0xff]
    %v444 = vld [vmem:[#allocation2 + $0xc80] sm:$0xff]
    %v445 = vld [vmem:[#allocation2 + $0xc88] sm:$0xff]
    %v446 = vld [vmem:[#allocation2 + $0xc90] sm:$0xff]
    %v447 = vld [vmem:[#allocation2 + $0xc98] sm:$0xff]
    %v448 = vld [vmem:[#allocation2 + $0xca0] sm:$0xff]
    %v449 = vld [vmem:[#allocation2 + $0xca8] sm:$0xff]
    %v450 = vld [vmem:[#allocation2 + $0xcb0] sm:$0xff]
    %v451 = vld [vmem:[#allocation2 + $0xcb8] sm:$0xff]
    %v452 = vld [vmem:[#allocation2 + $0xcc0] sm:$0xff]
    %v453 = vld [vmem:[#allocation2 + $0xcc8] sm:$0xff]
    %v454 = vld [vmem:[#allocation2 + $0xcd0] sm:$0xff]
    %v455 = vld [vmem:[#allocation2 + $0xcd8] sm:$0xff]
    %v456 = vld [vmem:[#allocation2 + $0xce0] sm:$0xff]
    %v457 = vld [vmem:[#allocation2 + $0xce8] sm:$0xff]
    %v458 = vld [vmem:[#allocation2 + $0xcf0] sm:$0xff]
    %v459 = vld [vmem:[#allocation2 + $0xcf8] sm:$0xff]
    %v460 = vld [vmem:[#allocation2 + $0xd00] sm:$0xff]
    %v461 = vld [vmem:[#allocation2 + $0xd08] sm:$0xff]
    %v462 = vld [vmem:[#allocation2 + $0xd10] sm:$0xff]
    %v463 = vld [vmem:[#allocation2 + $0xd18] sm:$0xff]
    %v464 = vld [vmem:[#allocation2 + $0xd20] sm:$0xff]
    %v465 = vld [vmem:[#allocation2 + $0xd28] sm:$0xff]
    %v466 = vld [vmem:[#allocation2 + $0xd30] sm:$0xff]
    %v467 = vld [vmem:[#allocation2 + $0xd38] sm:$0xff]
    %v468 = vld [vmem:[#allocation2 + $0xd40] sm:$0xff]
    %v469 = vld [vmem:[#allocation2 + $0xd48] sm:$0xff]
    %v470 = vld [vmem:[#allocation2 + $0xd50] sm:$0xff]
    %v471 = vld [vmem:[#allocation2 + $0xd58] sm:$0xff]
    %v472 = vld [vmem:[#allocation2 + $0xd60] sm:$0xff]
    %v473 = vld [vmem:[#allocation2 + $0xd68] sm:$0xff]
    %v474 = vld [vmem:[#allocation2 + $0xd70] sm:$0xff]
    %v475 = vld [vmem:[#allocation2 + $0xd78] sm:$0xff]
    %v476 = vld [vmem:[#allocation2 + $0xd80] sm:$0xff]
    %v477 = vld [vmem:[#allocation2 + $0xd88] sm:$0xff]
    %v478 = vld [vmem:[#allocation2 + $0xd90] sm:$0xff]
    %v479 = vld [vmem:[#allocation2 + $0xd98] sm:$0xff]
    %v480 = vld [vmem:[#allocation2 + $0xda0] sm:$0xff]
    %v481 = vld [vmem:[#allocation2 + $0xda8] sm:$0xff]
    %v482 = vld [vmem:[#allocation2 + $0xdb0] sm:$0xff]
    %v483 = vld [vmem:[#allocation2 + $0xdb8] sm:$0xff]
    %v484 = vld [vmem:[#allocation2 + $0xdc0] sm:$0xff]
    %v485 = vld [vmem:[#allocation2 + $0xdc8] sm:$0xff]
    %v486 = vld [vmem:[#allocation2 + $0xdd0] sm:$0xff]
    %v487 = vld [vmem:[#allocation2 + $0xdd8] sm:$0xff]
    %v488 = vld [vmem:[#allocation2 + $0xde0] sm:$0xff]
    %v489 = vld [vmem:[#allocation2 + $0xde8] sm:$0xff]
    %v490 = vld [vmem:[#allocation2 + $0xdf0] sm:$0xff]
    %v491 = vld [vmem:[#allocation2 + $0xdf8] sm:$0xff]
    %v492 = vld [vmem:[#allocation2 + $0xe00] sm:$0xff]
    %v493 = vld [vmem:[#allocation2 + $0xe08] sm:$0xff]
    %v494 = vld [vmem:[#allocation2 + $0xe10] sm:$0xff]
    %v495 = vld [vmem:[#allocation2 + $0xe18] sm:$0xff]
    %v496 = vld [vmem:[#allocation2 + $0xe20] sm:$0xff]
    %v497 = vld [vmem:[#allocation2 + $0xe28] sm:$0xff]
    %v498 = vld [vmem:[#allocation2 + $0xe30] sm:$0xff]
    %v499 = vld [vmem:[#allocation2 + $0xe38] sm:$0xff]
    %v500 = vld [vmem:[#allocation2 + $0xe40] sm:$0xff]
    %v501 = vld [vmem:[#allocation2 + $0xe48] sm:$0xff]
    %v502 = vld [vmem:[#allocation2 + $0xe50] sm:$0xff]
    %v503 = vld [vmem:[#allocation2 + $0xe58] sm:$0xff]
    %v504 = vld [vmem:[#allocation2 + $0xe60] sm:$0xff]
    %v505 = vld [vmem:[#allocation2 + $0xe68] sm:$0xff]
    %v506 = vld [vmem:[#allocation2 + $0xe70] sm:$0xff]
    %v507 = vld [vmem:[#allocation2 + $0xe78] sm:$0xff]
    %v508 = vld [vmem:[#allocation2 + $0xe80] sm:$0xff]
    %v509 = vld [vmem:[#allocation2 + $0xe88] sm:$0xff]
    %v510 = vld [vmem:[#allocation2 + $0xe90] sm:$0xff]
    %v511 = vld [vmem:[#allocation2 + $0xe98] sm:$0xff]
    %v512 = vld [vmem:[#allocation2 + $0xea0] sm:$0xff]
    %v513 = vld [vmem:[#allocation2 + $0xea8] sm:$0xff]
    %v514 = vld [vmem:[#allocation2 + $0xeb0] sm:$0xff]
    %v515 = vld [vmem:[#allocation2 + $0xeb8] sm:$0xff]
    %v516 = vld [vmem:[#allocation2 + $0xec0] sm:$0xff]
    %v517 = vld [vmem:[#allocation2 + $0xec8] sm:$0xff]
    %v518 = vld [vmem:[#allocation2 + $0xed0] sm:$0xff]
    %v519 = vld [vmem:[#allocation2 + $0xed8] sm:$0xff]
    %v520 = vld [vmem:[#allocation2 + $0xee0] sm:$0xff]
    %v521 = vld [vmem:[#allocation2 + $0xee8] sm:$0xff]
    %v522 = vld [vmem:[#allocation2 + $0xef0] sm:$0xff]
    %v523 = vld [vmem:[#allocation2 + $0xef8] sm:$0xff]
    %v524 = vld [vmem:[#allocation2 + $0xf00] sm:$0xff]
    %v525 = vld [vmem:[#allocation2 + $0xf08] sm:$0xff]
    %v526 = vld [vmem:[#allocation2 + $0xf10] sm:$0xff]
    %v527 = vld [vmem:[#allocation2 + $0xf18] sm:$0xff]
    %v528 = vld [vmem:[#allocation2 + $0xf20] sm:$0xff]
    %v529 = vld [vmem:[#allocation2 + $0xf28] sm:$0xff]
    %v530 = vld [vmem:[#allocation2 + $0xf30] sm:$0xff]
    %v531 = vld [vmem:[#allocation2 + $0xf38] sm:$0xff]
    %v532 = vld [vmem:[#allocation2 + $0xf40] sm:$0xff]
    %v533 = vld [vmem:[#allocation2 + $0xf48] sm:$0xff]
    %v534 = vld [vmem:[#allocation2 + $0xf50] sm:$0xff]
    %v535 = vld [vmem:[#allocation2 + $0xf58] sm:$0xff]
    %v536 = vld [vmem:[#allocation2 + $0xf60] sm:$0xff]
    %v537 = vld [vmem:[#allocation2 + $0xf68] sm:$0xff]
    %v538 = vld [vmem:[#allocation2 + $0xf70] sm:$0xff]
    %v539 = vld [vmem:[#allocation2 + $0xf78] sm:$0xff]
    %v540 = vld [vmem:[#allocation2 + $0xf80] sm:$0xff]
    %v541 = vld [vmem:[#allocation2 + $0xf88] sm:$0xff]
    %v542 = vld [vmem:[#allocation2 + $0xf90] sm:$0xff]
    %v543 = vld [vmem:[#allocation2 + $0xf98] sm:$0xff]
    %v544 = vld [vmem:[#allocation2 + $0xfa0] sm:$0xff]
    %v545 = vld [vmem:[#allocation2 + $0xfa8] sm:$0xff]
    %v546 = vld [vmem:[#allocation2 + $0xfb0] sm:$0xff]
    %v547 = vld [vmem:[#allocation2 + $0xfb8] sm:$0xff]
    %v548 = vld [vmem:[#allocation2 + $0xfc0] sm:$0xff]
    %v549 = vld [vmem:[#allocation2 + $0xfc8] sm:$0xff]
    %v550 = vld [vmem:[#allocation2 + $0xfd0] sm:$0xff]
    %v551 = vld [vmem:[#allocation2 + $0xfd8] sm:$0xff]
    %v552 = vld [vmem:[#allocation2 + $0xfe0] sm:$0xff]
    %v553 = vld [vmem:[#allocation2 + $0xfe8] sm:$0xff]
    %v554 = vld [vmem:[#allocation2 + $0xff0] sm:$0xff]
    %v555 = vld [vmem:[#allocation2 + $0xff8] sm:$0xff]
    %v556 = vld [vmem:[#allocation2 + $0x1000] sm:$0xff]
    %v557 = vld [vmem:[#allocation2 + $0x1008] sm:$0xff]
    %v558 = vld [vmem:[#allocation2 + $0x1010] sm:$0xff]
    %v559 = vld [vmem:[#allocation2 + $0x1018] sm:$0xff]
    %v560 = vld [vmem:[#allocation2 + $0x1020] sm:$0xff]
    %v561 = vld [vmem:[#allocation2 + $0x1028] sm:$0xff]
    %v562 = vld [vmem:[#allocation2 + $0x1030] sm:$0xff]
    %v563 = vld [vmem:[#allocation2 + $0x1038] sm:$0xff]
    %v564 = vld [vmem:[#allocation2 + $0x1040] sm:$0xff]
    %v565 = vld [vmem:[#allocation2 + $0x1048] sm:$0xff]
    %v566 = vld [vmem:[#allocation2 + $0x1050] sm:$0xff]
    %v567 = vld [vmem:[#allocation2 + $0x1058] sm:$0xff]
    %v568 = vld [vmem:[#allocation2 + $0x1060] sm:$0xff]
    %v569 = vld [vmem:[#allocation2 + $0x1068] sm:$0xff]
    %v570 = vld [vmem:[#allocation2 + $0x1070] sm:$0xff]
    %v571 = vld [vmem:[#allocation2 + $0x1078] sm:$0xff]
    %v572 = vld [vmem:[#allocation2 + $0x1080] sm:$0xff]
    %v573 = vld [vmem:[#allocation2 + $0x1088] sm:$0xff]
    %v574 = vld [vmem:[#allocation2 + $0x1090] sm:$0xff]
    %v575 = vld [vmem:[#allocation2 + $0x1098] sm:$0xff]
    %v576 = vld [vmem:[#allocation2 + $0x10a0] sm:$0xff]
    %v577 = vld [vmem:[#allocation2 + $0x10a8] sm:$0xff]
    %v578 = vld [vmem:[#allocation2 + $0x10b0] sm:$0xff]
    %v579 = vld [vmem:[#allocation2 + $0x10b8] sm:$0xff]
    %v580 = vld [vmem:[#allocation2 + $0x10c0] sm:$0xff]
    %v581 = vld [vmem:[#allocation2 + $0x10c8] sm:$0xff]
    %v582 = vld [vmem:[#allocation2 + $0x10d0] sm:$0xff]
    %v583 = vld [vmem:[#allocation2 + $0x10d8] sm:$0xff]
    %v584 = vld [vmem:[#allocation2 + $0x10e0] sm:$0xff]
    %v585 = vld [vmem:[#allocation2 + $0x10e8] sm:$0xff]
    %v586 = vld [vmem:[#allocation2 + $0x10f0] sm:$0xff]
    %v587 = vld [vmem:[#allocation2 + $0x10f8] sm:$0xff]
    %v588 = vld [vmem:[#allocation2 + $0x1100] sm:$0xff]
    %v589 = vld [vmem:[#allocation2 + $0x1108] sm:$0xff]
    %v590 = vld [vmem:[#allocation2 + $0x1110] sm:$0xff]
    %v591 = vld [vmem:[#allocation2 + $0x1118] sm:$0xff]
    %v592 = vld [vmem:[#allocation2 + $0x1120] sm:$0xff]
    %v593 = vld [vmem:[#allocation2 + $0x1128] sm:$0xff]
    %v594 = vld [vmem:[#allocation2 + $0x1130] sm:$0xff]
    %v595 = vld [vmem:[#allocation2 + $0x1138] sm:$0xff]
    %v596 = vld [vmem:[#allocation2 + $0x1140] sm:$0xff]
    %v597 = vld [vmem:[#allocation2 + $0x1148] sm:$0xff]
    %v598 = vld [vmem:[#allocation2 + $0x1150] sm:$0xff]
    %v599 = vld [vmem:[#allocation2 + $0x1158] sm:$0xff]
    %v600 = vld [vmem:[#allocation2 + $0x1160] sm:$0xff]
    %v601 = vld [vmem:[#allocation2 + $0x1168] sm:$0xff]
    %v602 = vld [vmem:[#allocation2 + $0x1170] sm:$0xff]
    %v603 = vld [vmem:[#allocation2 + $0x1178] sm:$0xff]
    %v604 = vld [vmem:[#allocation2 + $0x1180] sm:$0xff]
    %v605 = vld [vmem:[#allocation2 + $0x1188] sm:$0xff]
    %v606 = vld [vmem:[#allocation2 + $0x1190] sm:$0xff]
    %v607 = vld [vmem:[#allocation2 + $0x1198] sm:$0xff]
    %v608 = vld [vmem:[#allocation2 + $0x11a0] sm:$0xff]
    %v609 = vld [vmem:[#allocation2 + $0x11a8] sm:$0xff]
    %v610 = vld [vmem:[#allocation2 + $0x11b0] sm:$0xff]
    %v611 = vld [vmem:[#allocation2 + $0x11b8] sm:$0xff]
    %v612 = vld [vmem:[#allocation2 + $0x11c0] sm:$0xff]
    %v613 = vld [vmem:[#allocation2 + $0x11c8] sm:$0xff]
    %v614 = vld [vmem:[#allocation2 + $0x11d0] sm:$0xff]
    %v615 = vld [vmem:[#allocation2 + $0x11d8] sm:$0xff]
    %v616 = vld [vmem:[#allocation2 + $0x11e0] sm:$0xff]
    %v617 = vld [vmem:[#allocation2 + $0x11e8] sm:$0xff]
    %v618 = vld [vmem:[#allocation2 + $0x11f0] sm:$0xff]
    %v619 = vld [vmem:[#allocation2 + $0x11f8] sm:$0xff]
    %v620 = vld [vmem:[#allocation2 + $0x1200] sm:$0xff]
    %v621 = vld [vmem:[#allocation2 + $0x1208] sm:$0xff]
    %v622 = vld [vmem:[#allocation2 + $0x1210] sm:$0xff]
    %v623 = vld [vmem:[#allocation2 + $0x1218] sm:$0xff]
    %v624 = vld [vmem:[#allocation2 + $0x1220] sm:$0xff]
    %v625 = vld [vmem:[#allocation2 + $0x1228] sm:$0xff]
    %v626 = vld [vmem:[#allocation2 + $0x1230] sm:$0xff]
    %v627 = vld [vmem:[#allocation2 + $0x1238] sm:$0xff]
    %v628 = vld [vmem:[#allocation2 + $0x1240] sm:$0xff]
    %v629 = vld [vmem:[#allocation2 + $0x1248] sm:$0xff]
    %v630 = vld [vmem:[#allocation2 + $0x1250] sm:$0xff]
    %v631 = vld [vmem:[#allocation2 + $0x1258] sm:$0xff]
    %v632 = vld [vmem:[#allocation2 + $0x1260] sm:$0xff]
    %v633 = vld [vmem:[#allocation2 + $0x1268] sm:$0xff]
    %v634 = vld [vmem:[#allocation2 + $0x1270] sm:$0xff]
    %v635 = vld [vmem:[#allocation2 + $0x1278] sm:$0xff]
    %v636 = vld [vmem:[#allocation2 + $0x1280] sm:$0xff]
    %v637 = vld [vmem:[#allocation2 + $0x1288] sm:$0xff]
    %v638 = vld [vmem:[#allocation2 + $0x1290] sm:$0xff]
    %v639 = vld [vmem:[#allocation2 + $0x1298] sm:$0xff]
    %v640 = vld [vmem:[#allocation2 + $0x12a0] sm:$0xff]
    %v641 = vld [vmem:[#allocation2 + $0x12a8] sm:$0xff]
    %v642 = vld [vmem:[#allocation2 + $0x12b0] sm:$0xff]
    %v643 = vld [vmem:[#allocation2 + $0x12b8] sm:$0xff]
    %v644 = vld [vmem:[#allocation2 + $0x12c0] sm:$0xff]
    %v645 = vld [vmem:[#allocation2 + $0x12c8] sm:$0xff]
    %v646 = vld [vmem:[#allocation2 + $0x12d0] sm:$0xff]
    %v647 = vld [vmem:[#allocation2 + $0x12d8] sm:$0xff]
    %v648 = vld [vmem:[#allocation2 + $0x12e0] sm:$0xff]
    %v649 = vld [vmem:[#allocation2 + $0x12e8] sm:$0xff]
    %v650 = vld [vmem:[#allocation2 + $0x12f0] sm:$0xff]
    %v651 = vld [vmem:[#allocation2 + $0x12f8] sm:$0xff]
    %v652 = vld [vmem:[#allocation2 + $0x1300] sm:$0xff]
    %v653 = vld [vmem:[#allocation2 + $0x1308] sm:$0xff]
    %v654 = vld [vmem:[#allocation2 + $0x1310] sm:$0xff]
    %v655 = vld [vmem:[#allocation2 + $0x1318] sm:$0xff]
    %v656 = vld [vmem:[#allocation2 + $0x1320] sm:$0xff]
    %v657 = vld [vmem:[#allocation2 + $0x1328] sm:$0xff]
    %v658 = vld [vmem:[#allocation2 + $0x1330] sm:$0xff]
    %v659 = vld [vmem:[#allocation2 + $0x1338] sm:$0xff]
    %v660 = vld [vmem:[#allocation2 + $0x1340] sm:$0xff]
    %v661 = vld [vmem:[#allocation2 + $0x1348] sm:$0xff]
    %v662 = vld [vmem:[#allocation2 + $0x1350] sm:$0xff]
    %v663 = vld [vmem:[#allocation2 + $0x1358] sm:$0xff]
    %v664 = vld [vmem:[#allocation2 + $0x1360] sm:$0xff]
    %v665 = vld [vmem:[#allocation2 + $0x1368] sm:$0xff]
    %v666 = vld [vmem:[#allocation2 + $0x1370] sm:$0xff]
    %v667 = vld [vmem:[#allocation2 + $0x1378] sm:$0xff]
    %v668 = vld [vmem:[#allocation2 + $0x1380] sm:$0xff]
    %v669 = vld [vmem:[#allocation2 + $0x1388] sm:$0xff]
    %v670 = vld [vmem:[#allocation2 + $0x1390] sm:$0xff]
    %v671 = vld [vmem:[#allocation2 + $0x1398] sm:$0xff]
    %v672 = vld [vmem:[#allocation2 + $0x13a0] sm:$0xff]
    %v673 = vld [vmem:[#allocation2 + $0x13a8] sm:$0xff]
    %v674 = vld [vmem:[#allocation2 + $0x13b0] sm:$0xff]
    %v675 = vld [vmem:[#allocation2 + $0x13b8] sm:$0xff]
    %v676 = vld [vmem:[#allocation2 + $0x13c0] sm:$0xff]
    %v677 = vld [vmem:[#allocation2 + $0x13c8] sm:$0xff]
    %v678 = vld [vmem:[#allocation2 + $0x13d0] sm:$0xff]
    %v679 = vld [vmem:[#allocation2 + $0x13d8] sm:$0xff]
    %v680 = vld [vmem:[#allocation2 + $0x13e0] sm:$0xff]
    %v681 = vld [vmem:[#allocation2 + $0x13e8] sm:$0xff]
    %v682 = vld [vmem:[#allocation2 + $0x13f0] sm:$0xff]
    %v683 = vld [vmem:[#allocation2 + $0x13f8] sm:$0xff]
    %v684 = vld [vmem:[#allocation2 + $0x1400] sm:$0xff]
    %v685 = vld [vmem:[#allocation2 + $0x1408] sm:$0xff]
    %v686 = vld [vmem:[#allocation2 + $0x1410] sm:$0xff]
    %v687 = vld [vmem:[#allocation2 + $0x1418] sm:$0xff]
    %v688 = vld [vmem:[#allocation2 + $0x1420] sm:$0xff]
    %v689 = vld [vmem:[#allocation2 + $0x1428] sm:$0xff]
    %v690 = vld [vmem:[#allocation2 + $0x1430] sm:$0xff]
    %v691 = vld [vmem:[#allocation2 + $0x1438] sm:$0xff]
    %v692 = vld [vmem:[#allocation2 + $0x1440] sm:$0xff]
    %v693 = vld [vmem:[#allocation2 + $0x1448] sm:$0xff]
    %v694 = vld [vmem:[#allocation2 + $0x1450] sm:$0xff]
    %v695 = vld [vmem:[#allocation2 + $0x1458] sm:$0xff]
    %v696 = vld [vmem:[#allocation2 + $0x1460] sm:$0xff]
    %v697 = vld [vmem:[#allocation2 + $0x1468] sm:$0xff]
    %v698 = vld [vmem:[#allocation2 + $0x1470] sm:$0xff]
    %v699 = vld [vmem:[#allocation2 + $0x1478] sm:$0xff]
    %v700 = vld [vmem:[#allocation2 + $0x1480] sm:$0xff]
    %v701 = vld [vmem:[#allocation2 + $0x1488] sm:$0xff]
    %v702 = vld [vmem:[#allocation2 + $0x1490] sm:$0xff]
    %v703 = vld [vmem:[#allocation2 + $0x1498] sm:$0xff]
    %v704 = vld [vmem:[#allocation2 + $0x14a0] sm:$0xff]
    %v705 = vld [vmem:[#allocation2 + $0x14a8] sm:$0xff]
    %v706 = vld [vmem:[#allocation2 + $0x14b0] sm:$0xff]
    %v707 = vld [vmem:[#allocation2 + $0x14b8] sm:$0xff]
    %v708 = vld [vmem:[#allocation2 + $0x14c0] sm:$0xff]
    %v709 = vld [vmem:[#allocation2 + $0x14c8] sm:$0xff]
    %v710 = vld [vmem:[#allocation2 + $0x14d0] sm:$0xff]
    %v711 = vld [vmem:[#allocation2 + $0x14d8] sm:$0xff]
    %v712 = vld [vmem:[#allocation2 + $0x14e0] sm:$0xff]
    %v713 = vld [vmem:[#allocation2 + $0x14e8] sm:$0xff]
    %v714 = vld [vmem:[#allocation2 + $0x14f0] sm:$0xff]
    %v715 = vld [vmem:[#allocation2 + $0x14f8] sm:$0xff]
    %v716 = vld [vmem:[#allocation2 + $0x1500] sm:$0xff]
    %v717 = vld [vmem:[#allocation2 + $0x1508] sm:$0xff]
    %v718 = vld [vmem:[#allocation2 + $0x1510] sm:$0xff]
    %v719 = vld [vmem:[#allocation2 + $0x1518] sm:$0xff]
    %v720 = vld [vmem:[#allocation2 + $0x1520] sm:$0xff]
    %v721 = vld [vmem:[#allocation2 + $0x1528] sm:$0xff]
    %v722 = vld [vmem:[#allocation2 + $0x1530] sm:$0xff]
    %v723 = vld [vmem:[#allocation2 + $0x1538] sm:$0xff]
    %v724 = vld [vmem:[#allocation2 + $0x1540] sm:$0xff]
    %v725 = vld [vmem:[#allocation2 + $0x1548] sm:$0xff]
    %v726 = vld [vmem:[#allocation2 + $0x1550] sm:$0xff]
    %v727 = vld [vmem:[#allocation2 + $0x1558] sm:$0xff]
    %v728 = vld [vmem:[#allocation2 + $0x1560] sm:$0xff]
    %v729 = vld [vmem:[#allocation2 + $0x1568] sm:$0xff]
    %v730 = vld [vmem:[#allocation2 + $0x1570] sm:$0xff]
    %v731 = vld [vmem:[#allocation2 + $0x1578] sm:$0xff]
    %v732 = vld [vmem:[#allocation2 + $0x1580] sm:$0xff]
    %v733 = vld [vmem:[#allocation2 + $0x1588] sm:$0xff]
    %v734 = vld [vmem:[#allocation2 + $0x1590] sm:$0xff]
    %v735 = vld [vmem:[#allocation2 + $0x1598] sm:$0xff]
    %v736 = vld [vmem:[#allocation2 + $0x15a0] sm:$0xff]
    %v737 = vld [vmem:[#allocation2 + $0x15a8] sm:$0xff]
    %v738 = vld [vmem:[#allocation2 + $0x15b0] sm:$0xff]
    %v739 = vld [vmem:[#allocation2 + $0x15b8] sm:$0xff]
    %v740 = vld [vmem:[#allocation2 + $0x15c0] sm:$0xff]
    %v741 = vld [vmem:[#allocation2 + $0x15c8] sm:$0xff]
    %v742 = vld [vmem:[#allocation2 + $0x15d0] sm:$0xff]
    %v743 = vld [vmem:[#allocation2 + $0x15d8] sm:$0xff]
    %v744 = vld [vmem:[#allocation2 + $0x15e0] sm:$0xff]
    %v745 = vld [vmem:[#allocation2 + $0x15e8] sm:$0xff]
    %v746 = vld [vmem:[#allocation2 + $0x15f0] sm:$0xff]
    %v747 = vld [vmem:[#allocation2 + $0x15f8] sm:$0xff]
    %v748 = vld [vmem:[#allocation2 + $0x1600] sm:$0xff]
    %v749 = vld [vmem:[#allocation2 + $0x1608] sm:$0xff]
    %v750 = vld [vmem:[#allocation2 + $0x1610] sm:$0xff]
    %v751 = vld [vmem:[#allocation2 + $0x1618] sm:$0xff]
    %v752 = vld [vmem:[#allocation2 + $0x1620] sm:$0xff]
    %v753 = vld [vmem:[#allocation2 + $0x1628] sm:$0xff]
    %v754 = vld [vmem:[#allocation2 + $0x1630] sm:$0xff]
    %v755 = vld [vmem:[#allocation2 + $0x1638] sm:$0xff]
    %v756 = vld [vmem:[#allocation2 + $0x1640] sm:$0xff]
    %v757 = vld [vmem:[#allocation2 + $0x1648] sm:$0xff]
    %v758 = vld [vmem:[#allocation2 + $0x1650] sm:$0xff]
    %v759 = vld [vmem:[#allocation2 + $0x1658] sm:$0xff]
    %v760 = vld [vmem:[#allocation2 + $0x1660] sm:$0xff]
    %v761 = vld [vmem:[#allocation2 + $0x1668] sm:$0xff]
    %v762 = vld [vmem:[#allocation2 + $0x1670] sm:$0xff]
    %v763 = vld [vmem:[#allocation2 + $0x1678] sm:$0xff]
    %v764 = vld [vmem:[#allocation2 + $0x1680] sm:$0xff]
    %v765 = vld [vmem:[#allocation2 + $0x1688] sm:$0xff]
    %v766 = vld [vmem:[#allocation2 + $0x1690] sm:$0xff]
    %v767 = vld [vmem:[#allocation2 + $0x1698] sm:$0xff]
    %v768 = vld [vmem:[#allocation2 + $0x16a0] sm:$0xff]
    %v769 = vld [vmem:[#allocation2 + $0x16a8] sm:$0xff]
    %v770 = vld [vmem:[#allocation2 + $0x16b0] sm:$0xff]
    %v771 = vld [vmem:[#allocation2 + $0x16b8] sm:$0xff]
    %v772 = vld [vmem:[#allocation2 + $0x16c0] sm:$0xff]
    %v773 = vld [vmem:[#allocation2 + $0x16c8] sm:$0xff]
    %v774 = vld [vmem:[#allocation2 + $0x16d0] sm:$0xff]
    %v775 = vld [vmem:[#allocation2 + $0x16d8] sm:$0xff]
    %v776 = vld [vmem:[#allocation2 + $0x16e0] sm:$0xff]
    %v777 = vld [vmem:[#allocation2 + $0x16e8] sm:$0xff]
    %v778 = vld [vmem:[#allocation2 + $0x16f0] sm:$0xff]
    %v779 = vld [vmem:[#allocation2 + $0x16f8] sm:$0xff]
    %v780 = vld [vmem:[#allocation2 + $0x1700] sm:$0xff]
    %v781 = vld [vmem:[#allocation2 + $0x1708] sm:$0xff]
    %v782 = vld [vmem:[#allocation2 + $0x1710] sm:$0xff]
    %v783 = vld [vmem:[#allocation2 + $0x1718] sm:$0xff]
    %v784 = vld [vmem:[#allocation2 + $0x1720] sm:$0xff]
    %v785 = vld [vmem:[#allocation2 + $0x1728] sm:$0xff]
    %v786 = vld [vmem:[#allocation2 + $0x1730] sm:$0xff]
    %v787 = vld [vmem:[#allocation2 + $0x1738] sm:$0xff]
    %v788 = vld [vmem:[#allocation2 + $0x1740] sm:$0xff]
    %v789 = vld [vmem:[#allocation2 + $0x1748] sm:$0xff]
    %v790 = vld [vmem:[#allocation2 + $0x1750] sm:$0xff]
    %v791 = vld [vmem:[#allocation2 + $0x1758] sm:$0xff]
    %v792 = vld [vmem:[#allocation2 + $0x1760] sm:$0xff]
    %v793 = vld [vmem:[#allocation2 + $0x1768] sm:$0xff]
    %v794 = vld [vmem:[#allocation2 + $0x1770] sm:$0xff]
    %v795 = vld [vmem:[#allocation2 + $0x1778] sm:$0xff]
    %v796 = vld [vmem:[#allocation2 + $0x1780] sm:$0xff]
    %v797 = vld [vmem:[#allocation2 + $0x1788] sm:$0xff]
    %v798 = vld [vmem:[#allocation2 + $0x1790] sm:$0xff]
    %v799 = vld [vmem:[#allocation2 + $0x1798] sm:$0xff]
    %v800 = vld [vmem:[#allocation2 + $0x17a0] sm:$0xff]
    %v801 = vld [vmem:[#allocation2 + $0x17a8] sm:$0xff]
    %v802 = vld [vmem:[#allocation2 + $0x17b0] sm:$0xff]
    %v803 = vld [vmem:[#allocation2 + $0x17b8] sm:$0xff]
    %v804 = vld [vmem:[#allocation2 + $0x17c0] sm:$0xff]
    %v805 = vld [vmem:[#allocation2 + $0x17c8] sm:$0xff]
    %v806 = vld [vmem:[#allocation2 + $0x17d0] sm:$0xff]
    %v807 = vld [vmem:[#allocation2 + $0x17d8] sm:$0xff]
    %v808 = vld [vmem:[#allocation2 + $0x17e0] sm:$0xff]
    %v809 = vld [vmem:[#allocation2 + $0x17e8] sm:$0xff]
    %v810 = vld [vmem:[#allocation2 + $0x17f0] sm:$0xff]
    %v811 = vld [vmem:[#allocation2 + $0x17f8] sm:$0xff]
    %v812 = vld [vmem:[#allocation2 + $0x1800] sm:$0xff]
    %v813 = vld [vmem:[#allocation2 + $0x1808] sm:$0xff]
    %v814 = vld [vmem:[#allocation2 + $0x1810] sm:$0xff]
    %v815 = vld [vmem:[#allocation2 + $0x1818] sm:$0xff]
    %v816 = vld [vmem:[#allocation2 + $0x1820] sm:$0xff]
    %v817 = vld [vmem:[#allocation2 + $0x1828] sm:$0xff]
    %v818 = vld [vmem:[#allocation2 + $0x1830] sm:$0xff]
    %v819 = vld [vmem:[#allocation2 + $0x1838] sm:$0xff]
    %v820 = vld [vmem:[#allocation2 + $0x1840] sm:$0xff]
    %v821 = vld [vmem:[#allocation2 + $0x1848] sm:$0xff]
    %v822 = vld [vmem:[#allocation2 + $0x1850] sm:$0xff]
    %v823 = vld [vmem:[#allocation2 + $0x1858] sm:$0xff]
    %v824 = vld [vmem:[#allocation2 + $0x1860] sm:$0xff]
    %v825 = vld [vmem:[#allocation2 + $0x1868] sm:$0xff]
    %v826 = vld [vmem:[#allocation2 + $0x1870] sm:$0xff]
    %v827 = vld [vmem:[#allocation2 + $0x1878] sm:$0xff]
    %v828 = vld [vmem:[#allocation2 + $0x1880] sm:$0xff]
    %v829 = vld [vmem:[#allocation2 + $0x1888] sm:$0xff]
    %v830 = vld [vmem:[#allocation2 + $0x1890] sm:$0xff]
    %v831 = vld [vmem:[#allocation2 + $0x1898] sm:$0xff]
    %v832 = vld [vmem:[#allocation2 + $0x18a0] sm:$0xff]
    %v833 = vld [vmem:[#allocation2 + $0x18a8] sm:$0xff]
    %v834 = vld [vmem:[#allocation2 + $0x18b0] sm:$0xff]
    %v835 = vld [vmem:[#allocation2 + $0x18b8] sm:$0xff]
    %v836 = vld [vmem:[#allocation2 + $0x18c0] sm:$0xff]
    %v837 = vld [vmem:[#allocation2 + $0x18c8] sm:$0xff]
    %v838 = vld [vmem:[#allocation2 + $0x18d0] sm:$0xff]
    %v839 = vld [vmem:[#allocation2 + $0x18d8] sm:$0xff]
    %v840 = vld [vmem:[#allocation2 + $0x18e0] sm:$0xff]
    %v841 = vld [vmem:[#allocation2 + $0x18e8] sm:$0xff]
    %v842 = vld [vmem:[#allocation2 + $0x18f0] sm:$0xff]
    %v843 = vld [vmem:[#allocation2 + $0x18f8] sm:$0xff]
    %v844 = vld [vmem:[#allocation2 + $0x1900] sm:$0xff]
    %v845 = vld [vmem:[#allocation2 + $0x1908] sm:$0xff]
    %v846 = vld [vmem:[#allocation2 + $0x1910] sm:$0xff]
    %v847 = vld [vmem:[#allocation2 + $0x1918] sm:$0xff]
    %v848 = vld [vmem:[#allocation2 + $0x1920] sm:$0xff]
    %v849 = vld [vmem:[#allocation2 + $0x1928] sm:$0xff]
    %v850 = vld [vmem:[#allocation2 + $0x1930] sm:$0xff]
    %v851 = vld [vmem:[#allocation2 + $0x1938] sm:$0xff]
    %v852 = vld [vmem:[#allocation2 + $0x1940] sm:$0xff]
    %v853 = vld [vmem:[#allocation2 + $0x1948] sm:$0xff]
    %v854 = vld [vmem:[#allocation2 + $0x1950] sm:$0xff]
    %v855 = vld [vmem:[#allocation2 + $0x1958] sm:$0xff]
    %v856 = vld [vmem:[#allocation2 + $0x1960] sm:$0xff]
    %v857 = vld [vmem:[#allocation2 + $0x1968] sm:$0xff]
    %v858 = vld [vmem:[#allocation2 + $0x1970] sm:$0xff]
    %v859 = vld [vmem:[#allocation2 + $0x1978] sm:$0xff]
    %v860 = vld [vmem:[#allocation2 + $0x1980] sm:$0xff]
    %v861 = vld [vmem:[#allocation2 + $0x1988] sm:$0xff]
    %v862 = vld [vmem:[#allocation2 + $0x1990] sm:$0xff]
    %v863 = vld [vmem:[#allocation2 + $0x1998] sm:$0xff]
    %v864 = vld [vmem:[#allocation2 + $0x19a0] sm:$0xff]
    %v865 = vld [vmem:[#allocation2 + $0x19a8] sm:$0xff]
    %v866 = vld [vmem:[#allocation2 + $0x19b0] sm:$0xff]
    %v867 = vld [vmem:[#allocation2 + $0x19b8] sm:$0xff]
    %v868 = vld [vmem:[#allocation2 + $0x19c0] sm:$0xff]
    %v869 = vld [vmem:[#allocation2 + $0x19c8] sm:$0xff]
    %v870 = vld [vmem:[#allocation2 + $0x19d0] sm:$0xff]
    %v871 = vld [vmem:[#allocation2 + $0x19d8] sm:$0xff]
    %v872 = vld [vmem:[#allocation2 + $0x19e0] sm:$0xff]
    %v873 = vld [vmem:[#allocation2 + $0x19e8] sm:$0xff]
    %v874 = vld [vmem:[#allocation2 + $0x19f0] sm:$0xff]
    %v875 = vld [vmem:[#allocation2 + $0x19f8] sm:$0xff]
    %v876 = vld [vmem:[#allocation2 + $0x1a00] sm:$0xff]
    %v877 = vld [vmem:[#allocation2 + $0x1a08] sm:$0xff]
    %v878 = vld [vmem:[#allocation2 + $0x1a10] sm:$0xff]
    %v879 = vld [vmem:[#allocation2 + $0x1a18] sm:$0xff]
    %v880 = vld [vmem:[#allocation2 + $0x1a20] sm:$0xff]
    %v881 = vld [vmem:[#allocation2 + $0x1a28] sm:$0xff]
    %v882 = vld [vmem:[#allocation2 + $0x1a30] sm:$0xff]
    %v883 = vld [vmem:[#allocation2 + $0x1a38] sm:$0xff]
    %v884 = vld [vmem:[#allocation2 + $0x1a40] sm:$0xff]
    %v885 = vld [vmem:[#allocation2 + $0x1a48] sm:$0xff]
    %v886 = vld [vmem:[#allocation2 + $0x1a50] sm:$0xff]
    %v887 = vld [vmem:[#allocation2 + $0x1a58] sm:$0xff]
    %v888 = vld [vmem:[#allocation2 + $0x1a60] sm:$0xff]
    %v889 = vld [vmem:[#allocation2 + $0x1a68] sm:$0xff]
    %v890 = vld [vmem:[#allocation2 + $0x1a70] sm:$0xff]
    %v891 = vld [vmem:[#allocation2 + $0x1a78] sm:$0xff]
    %v892 = vld [vmem:[#allocation2 + $0x1a80] sm:$0xff]
    %v893 = vld [vmem:[#allocation2 + $0x1a88] sm:$0xff]
    %v894 = vld [vmem:[#allocation2 + $0x1a90] sm:$0xff]
    %v895 = vld [vmem:[#allocation2 + $0x1a98] sm:$0xff]
    %v896 = vld [vmem:[#allocation2 + $0x1aa0] sm:$0xff]
    %v897 = vld [vmem:[#allocation2 + $0x1aa8] sm:$0xff]
    %v898 = vld [vmem:[#allocation2 + $0x1ab0] sm:$0xff]
    %v899 = vld [vmem:[#allocation2 + $0x1ab8] sm:$0xff]
    %v900 = vld [vmem:[#allocation2 + $0x1ac0] sm:$0xff]
    %v901 = vld [vmem:[#allocation2 + $0x1ac8] sm:$0xff]
    %v902 = vld [vmem:[#allocation2 + $0x1ad0] sm:$0xff]
    %v903 = vld [vmem:[#allocation2 + $0x1ad8] sm:$0xff]
    %v904 = vld [vmem:[#allocation2 + $0x1ae0] sm:$0xff]
    %v905 = vld [vmem:[#allocation2 + $0x1ae8] sm:$0xff]
    %v906 = vld [vmem:[#allocation2 + $0x1af0] sm:$0xff]
    %v907 = vld [vmem:[#allocation2 + $0x1af8] sm:$0xff]
    %v908 = vld [vmem:[#allocation2 + $0x1b00] sm:$0xff]
    %v909 = vld [vmem:[#allocation2 + $0x1b08] sm:$0xff]
    %v910 = vld [vmem:[#allocation2 + $0x1b10] sm:$0xff]
    %v911 = vld [vmem:[#allocation2 + $0x1b18] sm:$0xff]
    %v912 = vld [vmem:[#allocation2 + $0x1b20] sm:$0xff]
    %v913 = vld [vmem:[#allocation2 + $0x1b28] sm:$0xff]
    %v914 = vld [vmem:[#allocation2 + $0x1b30] sm:$0xff]
    %v915 = vld [vmem:[#allocation2 + $0x1b38] sm:$0xff]
    %v916 = vld [vmem:[#allocation2 + $0x1b40] sm:$0xff]
    %v917 = vld [vmem:[#allocation2 + $0x1b48] sm:$0xff]
    %v918 = vld [vmem:[#allocation2 + $0x1b50] sm:$0xff]
    %v919 = vld [vmem:[#allocation2 + $0x1b58] sm:$0xff]
    %v920 = vld [vmem:[#allocation2 + $0x1b60] sm:$0xff]
    %v921 = vld [vmem:[#allocation2 + $0x1b68] sm:$0xff]
    %v922 = vld [vmem:[#allocation2 + $0x1b70] sm:$0xff]
    %v923 = vld [vmem:[#allocation2 + $0x1b78] sm:$0xff]
    %v924 = vld [vmem:[#allocation2 + $0x1b80] sm:$0xff]
    %v925 = vld [vmem:[#allocation2 + $0x1b88] sm:$0xff]
    %v926 = vld [vmem:[#allocation2 + $0x1b90] sm:$0xff]
    %v927 = vld [vmem:[#allocation2 + $0x1b98] sm:$0xff]
    %v928 = vld [vmem:[#allocation2 + $0x1ba0] sm:$0xff]
    %v929 = vld [vmem:[#allocation2 + $0x1ba8] sm:$0xff]
    %v930 = vld [vmem:[#allocation2 + $0x1bb0] sm:$0xff]
    %v931 = vld [vmem:[#allocation2 + $0x1bb8] sm:$0xff]
    %v932 = vld [vmem:[#allocation2 + $0x1bc0] sm:$0xff]
    %v933 = vld [vmem:[#allocation2 + $0x1bc8] sm:$0xff]
    %v934 = vld [vmem:[#allocation2 + $0x1bd0] sm:$0xff]
    %v935 = vld [vmem:[#allocation2 + $0x1bd8] sm:$0xff]
    %v936 = vld [vmem:[#allocation2 + $0x1be0] sm:$0xff]
    %v937 = vld [vmem:[#allocation2 + $0x1be8] sm:$0xff]
    %v938 = vld [vmem:[#allocation2 + $0x1bf0] sm:$0xff]
    %v939 = vld [vmem:[#allocation2 + $0x1bf8] sm:$0xff]
    %v940 = vld [vmem:[#allocation2 + $0x1c00] sm:$0xff]
    %v941 = vld [vmem:[#allocation2 + $0x1c08] sm:$0xff]
    %v942 = vld [vmem:[#allocation2 + $0x1c10] sm:$0xff]
    %v943 = vld [vmem:[#allocation2 + $0x1c18] sm:$0xff]
    %v944 = vld [vmem:[#allocation2 + $0x1c20] sm:$0xff]
    %v945 = vld [vmem:[#allocation2 + $0x1c28] sm:$0xff]
    %v946 = vld [vmem:[#allocation2 + $0x1c30] sm:$0xff]
    %v947 = vld [vmem:[#allocation2 + $0x1c38] sm:$0xff]
    %v948 = vld [vmem:[#allocation2 + $0x1c40] sm:$0xff]
    %v949 = vld [vmem:[#allocation2 + $0x1c48] sm:$0xff]
    %v950 = vld [vmem:[#allocation2 + $0x1c50] sm:$0xff]
    %v951 = vld [vmem:[#allocation2 + $0x1c58] sm:$0xff]
    %v952 = vld [vmem:[#allocation2 + $0x1c60] sm:$0xff]
    %v953 = vld [vmem:[#allocation2 + $0x1c68] sm:$0xff]
    %v954 = vld [vmem:[#allocation2 + $0x1c70] sm:$0xff]
    %v955 = vld [vmem:[#allocation2 + $0x1c78] sm:$0xff]
    %v956 = vld [vmem:[#allocation2 + $0x1c80] sm:$0xff]
    %v957 = vld [vmem:[#allocation2 + $0x1c88] sm:$0xff]
    %v958 = vld [vmem:[#allocation2 + $0x1c90] sm:$0xff]
    %v959 = vld [vmem:[#allocation2 + $0x1c98] sm:$0xff]
    %v960 = vld [vmem:[#allocation2 + $0x1ca0] sm:$0xff]
    %v961 = vld [vmem:[#allocation2 + $0x1ca8] sm:$0xff]
    %v962 = vld [vmem:[#allocation2 + $0x1cb0] sm:$0xff]
    %v963 = vld [vmem:[#allocation2 + $0x1cb8] sm:$0xff]
    %v964 = vld [vmem:[#allocation2 + $0x1cc0] sm:$0xff]
    %v965 = vld [vmem:[#allocation2 + $0x1cc8] sm:$0xff]
    %v966 = vld [vmem:[#allocation2 + $0x1cd0] sm:$0xff]
    %v967 = vld [vmem:[#allocation2 + $0x1cd8] sm:$0xff]
    %v968 = vld [vmem:[#allocation2 + $0x1ce0] sm:$0xff]
    %v969 = vld [vmem:[#allocation2 + $0x1ce8] sm:$0xff]
    %v970 = vld [vmem:[#allocation2 + $0x1cf0] sm:$0xff]
    %v971 = vld [vmem:[#allocation2 + $0x1cf8] sm:$0xff]
    %v972 = vld [vmem:[#allocation2 + $0x1d00] sm:$0xff]
    %v973 = vld [vmem:[#allocation2 + $0x1d08] sm:$0xff]
    %v974 = vld [vmem:[#allocation2 + $0x1d10] sm:$0xff]
    %v975 = vld [vmem:[#allocation2 + $0x1d18] sm:$0xff]
    %v976 = vld [vmem:[#allocation2 + $0x1d20] sm:$0xff]
    %v977 = vld [vmem:[#allocation2 + $0x1d28] sm:$0xff]
    %v978 = vld [vmem:[#allocation2 + $0x1d30] sm:$0xff]
    %v979 = vld [vmem:[#allocation2 + $0x1d38] sm:$0xff]
    %v980 = vld [vmem:[#allocation2 + $0x1d40] sm:$0xff]
    %v981 = vld [vmem:[#allocation2 + $0x1d48] sm:$0xff]
    %v982 = vld [vmem:[#allocation2 + $0x1d50] sm:$0xff]
    %v983 = vld [vmem:[#allocation2 + $0x1d58] sm:$0xff]
    %v984 = vld [vmem:[#allocation2 + $0x1d60] sm:$0xff]
    %v985 = vld [vmem:[#allocation2 + $0x1d68] sm:$0xff]
    %v986 = vld [vmem:[#allocation2 + $0x1d70] sm:$0xff]
    %v987 = vld [vmem:[#allocation2 + $0x1d78] sm:$0xff]
    %v988 = vld [vmem:[#allocation2 + $0x1d80] sm:$0xff]
    %v989 = vld [vmem:[#allocation2 + $0x1d88] sm:$0xff]
    %v990 = vld [vmem:[#allocation2 + $0x1d90] sm:$0xff]
    %v991 = vld [vmem:[#allocation2 + $0x1d98] sm:$0xff]
    %v992 = vld [vmem:[#allocation2 + $0x1da0] sm:$0xff]
    %v993 = vld [vmem:[#allocation2 + $0x1da8] sm:$0xff]
    %v994 = vld [vmem:[#allocation2 + $0x1db0] sm:$0xff]
    %v995 = vld [vmem:[#allocation2 + $0x1db8] sm:$0xff]
    %v996 = vld [vmem:[#allocation2 + $0x1dc0] sm:$0xff]
    %v997 = vld [vmem:[#allocation2 + $0x1dc8] sm:$0xff]
    %v998 = vld [vmem:[#allocation2 + $0x1dd0] sm:$0xff]
    %v999 = vld [vmem:[#allocation2 + $0x1dd8] sm:$0xff]
    %v1000 = vld [vmem:[#allocation2 + $0x1de0] sm:$0xff]
    %v1001 = vld [vmem:[#allocation2 + $0x1de8] sm:$0xff]
    %v1002 = vld [vmem:[#allocation2 + $0x1df0] sm:$0xff]
    %v1003 = vld [vmem:[#allocation2 + $0x1df8] sm:$0xff]
    %v1004 = vld [vmem:[#allocation2 + $0x1e00] sm:$0xff]
    %v1005 = vld [vmem:[#allocation2 + $0x1e08] sm:$0xff]
    %v1006 = vld [vmem:[#allocation2 + $0x1e10] sm:$0xff]
    %v1007 = vld [vmem:[#allocation2 + $0x1e18] sm:$0xff]
    %v1008 = vld [vmem:[#allocation2 + $0x1e20] sm:$0xff]
    %v1009 = vld [vmem:[#allocation2 + $0x1e28] sm:$0xff]
    %v1010 = vld [vmem:[#allocation2 + $0x1e30] sm:$0xff]
    %v1011 = vld [vmem:[#allocation2 + $0x1e38] sm:$0xff]
    %v1012 = vld [vmem:[#allocation2 + $0x1e40] sm:$0xff]
    %v1013 = vld [vmem:[#allocation2 + $0x1e48] sm:$0xff]
    %v1014 = vld [vmem:[#allocation2 + $0x1e50] sm:$0xff]
    %v1015 = vld [vmem:[#allocation2 + $0x1e58] sm:$0xff]
    %v1016 = vld [vmem:[#allocation2 + $0x1e60] sm:$0xff]
    %v1017 = vld [vmem:[#allocation2 + $0x1e68] sm:$0xff]
    %v1018 = vld [vmem:[#allocation2 + $0x1e70] sm:$0xff]
    %v1019 = vld [vmem:[#allocation2 + $0x1e78] sm:$0xff]
    %v1020 = vld [vmem:[#allocation2 + $0x1e80] sm:$0xff]
    %v1021 = vld [vmem:[#allocation2 + $0x1e88] sm:$0xff]
    %v1022 = vld [vmem:[#allocation2 + $0x1e90] sm:$0xff]
    %v1023 = vld [vmem:[#allocation2 + $0x1e98] sm:$0xff]
    %v1024 = vld [vmem:[#allocation2 + $0x1ea0] sm:$0xff]
    %v1025 = vld [vmem:[#allocation2 + $0x1ea8] sm:$0xff]
    %v1026 = vld [vmem:[#allocation2 + $0x1eb0] sm:$0xff]
    %v1027 = vld [vmem:[#allocation2 + $0x1eb8] sm:$0xff]
    %v1028 = vld [vmem:[#allocation2 + $0x1ec0] sm:$0xff]
    %v1029 = vld [vmem:[#allocation2 + $0x1ec8] sm:$0xff]
    %v1030 = vld [vmem:[#allocation2 + $0x1ed0] sm:$0xff]
    %v1031 = vld [vmem:[#allocation2 + $0x1ed8] sm:$0xff]
    %v1032 = vld [vmem:[#allocation2 + $0x1ee0] sm:$0xff]
    %v1033 = vld [vmem:[#allocation2 + $0x1ee8] sm:$0xff]
    %v1034 = vld [vmem:[#allocation2 + $0x1ef0] sm:$0xff]
    %v1035 = vld [vmem:[#allocation2 + $0x1ef8] sm:$0xff]
    %v1036 = vld [vmem:[#allocation2 + $0x1f00] sm:$0xff]
    %v1037 = vld [vmem:[#allocation2 + $0x1f08] sm:$0xff]
    %v1038 = vld [vmem:[#allocation2 + $0x1f10] sm:$0xff]
    %v1039 = vld [vmem:[#allocation2 + $0x1f18] sm:$0xff]
    %v1040 = vld [vmem:[#allocation2 + $0x1f20] sm:$0xff]
    %v1041 = vld [vmem:[#allocation2 + $0x1f28] sm:$0xff]
    %v1042 = vld [vmem:[#allocation2 + $0x1f30] sm:$0xff]
    %v1043 = vld [vmem:[#allocation2 + $0x1f38] sm:$0xff]
    %v1044 = vld [vmem:[#allocation2 + $0x1f40] sm:$0xff]
    %v1045 = vld [vmem:[#allocation2 + $0x1f48] sm:$0xff]
    %v1046 = vld [vmem:[#allocation2 + $0x1f50] sm:$0xff]
    %v1047 = vld [vmem:[#allocation2 + $0x1f58] sm:$0xff]
    %v1048 = vld [vmem:[#allocation2 + $0x1f60] sm:$0xff]
    %v1049 = vld [vmem:[#allocation2 + $0x1f68] sm:$0xff]
    %v1050 = vld [vmem:[#allocation2 + $0x1f70] sm:$0xff]
    %v1051 = vld [vmem:[#allocation2 + $0x1f78] sm:$0xff]
    %v1052 = vld [vmem:[#allocation2 + $0x1f80] sm:$0xff]
    %v1053 = vld [vmem:[#allocation2 + $0x1f88] sm:$0xff]
    %v1054 = vld [vmem:[#allocation2 + $0x1f90] sm:$0xff]
    %v1055 = vld [vmem:[#allocation2 + $0x1f98] sm:$0xff]
    %v1056 = vld [vmem:[#allocation2 + $0x1fa0] sm:$0xff]
    %v1057 = vld [vmem:[#allocation2 + $0x1fa8] sm:$0xff]
    %v1058 = vld [vmem:[#allocation2 + $0x1fb0] sm:$0xff]
    %v1059 = vld [vmem:[#allocation2 + $0x1fb8] sm:$0xff]
    %v1060 = vld [vmem:[#allocation2 + $0x1fc0] sm:$0xff]
    %v1061 = vld [vmem:[#allocation2 + $0x1fc8] sm:$0xff]
    %v1062 = vld [vmem:[#allocation2 + $0x1fd0] sm:$0xff]
    %v1063 = vld [vmem:[#allocation2 + $0x1fd8] sm:$0xff]
    %v1064 = vld [vmem:[#allocation2 + $0x1fe0] sm:$0xff]
    %v1065 = vld [vmem:[#allocation2 + $0x1fe8] sm:$0xff]
    %v1066 = vld [vmem:[#allocation2 + $0x1ff0] sm:$0xff]
    %v1067 = vld [vmem:[#allocation2 + $0x1ff8] sm:$0xff]
    %v1068 = vld [vmem:[#allocation5] sm:$0xff]
    %v1069 = vld [vmem:[#allocation5 + $0x8] sm:$0xff]
    %v1070 = vld [vmem:[#allocation5 + $0x10] sm:$0xff]
    %v1071 = vld [vmem:[#allocation5 + $0x18] sm:$0xff]
    %v1072 = vld [vmem:[#allocation5 + $0x20] sm:$0xff]
    %v1073 = vld [vmem:[#allocation5 + $0x28] sm:$0xff]
    %v1074 = vld [vmem:[#allocation5 + $0x30] sm:$0xff]
    %v1075 = vld [vmem:[#allocation5 + $0x38] sm:$0xff]
    %v1076 = vld [vmem:[#allocation5 + $0x40] sm:$0xff]
    %v1077 = vld [vmem:[#allocation5 + $0x48] sm:$0xff]
    %v1078 = vld [vmem:[#allocation5 + $0x50] sm:$0xff]
    %v1079 = vld [vmem:[#allocation5 + $0x58] sm:$0xff]
    %v1080 = vld [vmem:[#allocation5 + $0x60] sm:$0xff]
    %v1081 = vld [vmem:[#allocation5 + $0x68] sm:$0xff]
    %v1082 = vld [vmem:[#allocation5 + $0x70] sm:$0xff]
    %v1083 = vld [vmem:[#allocation5 + $0x78] sm:$0xff]
    %v1084 = vld [vmem:[#allocation5 + $0x80] sm:$0xff]
    %v1085 = vld [vmem:[#allocation5 + $0x88] sm:$0xff]
    %v1086 = vld [vmem:[#allocation5 + $0x90] sm:$0xff]
    %v1087 = vld [vmem:[#allocation5 + $0x98] sm:$0xff]
    %v1088 = vld [vmem:[#allocation5 + $0xa0] sm:$0xff]
    %v1089 = vld [vmem:[#allocation5 + $0xa8] sm:$0xff]
    %v1090 = vld [vmem:[#allocation5 + $0xb0] sm:$0xff]
    %v1091 = vld [vmem:[#allocation5 + $0xb8] sm:$0xff]
    %v1092 = vld [vmem:[#allocation5 + $0xc0] sm:$0xff]
    %v1093 = vld [vmem:[#allocation5 + $0xc8] sm:$0xff]
    %v1094 = vld [vmem:[#allocation5 + $0xd0] sm:$0xff]
    %v1095 = vld [vmem:[#allocation5 + $0xd8] sm:$0xff]
    %v1096 = vld [vmem:[#allocation5 + $0xe0] sm:$0xff]
    %v1097 = vld [vmem:[#allocation5 + $0xe8] sm:$0xff]
    %v1098 = vld [vmem:[#allocation5 + $0xf0] sm:$0xff]
    %v1099 = vld [vmem:[#allocation5 + $0xf8] sm:$0xff]
    %v1100 = vld [vmem:[#allocation5 + $0x100] sm:$0xff]
    %v1101 = vld [vmem:[#allocation5 + $0x108] sm:$0xff]
    %v1102 = vld [vmem:[#allocation5 + $0x110] sm:$0xff]
    %v1103 = vld [vmem:[#allocation5 + $0x118] sm:$0xff]
    %v1104 = vld [vmem:[#allocation5 + $0x120] sm:$0xff]
    %v1105 = vld [vmem:[#allocation5 + $0x128] sm:$0xff]
    %v1106 = vld [vmem:[#allocation5 + $0x130] sm:$0xff]
    %v1107 = vld [vmem:[#allocation5 + $0x138] sm:$0xff]
    %v1108 = vld [vmem:[#allocation5 + $0x140] sm:$0xff]
    %v1109 = vld [vmem:[#allocation5 + $0x148] sm:$0xff]
    %v1110 = vld [vmem:[#allocation5 + $0x150] sm:$0xff]
    %v1111 = vld [vmem:[#allocation5 + $0x158] sm:$0xff]
    %v1112 = vld [vmem:[#allocation5 + $0x160] sm:$0xff]
    %v1113 = vld [vmem:[#allocation5 + $0x168] sm:$0xff]
    %v1114 = vld [vmem:[#allocation5 + $0x170] sm:$0xff]
    %v1115 = vld [vmem:[#allocation5 + $0x178] sm:$0xff]
    %v1116 = vld [vmem:[#allocation5 + $0x180] sm:$0xff]
    %v1117 = vld [vmem:[#allocation5 + $0x188] sm:$0xff]
    %v1118 = vld [vmem:[#allocation5 + $0x190] sm:$0xff]
    %v1119 = vld [vmem:[#allocation5 + $0x198] sm:$0xff]
    %v1120 = vld [vmem:[#allocation5 + $0x1a0] sm:$0xff]
    %v1121 = vld [vmem:[#allocation5 + $0x1a8] sm:$0xff]
    %v1122 = vld [vmem:[#allocation5 + $0x1b0] sm:$0xff]
    %v1123 = vld [vmem:[#allocation5 + $0x1b8] sm:$0xff]
    %v1124 = vld [vmem:[#allocation5 + $0x1c0] sm:$0xff]
    %v1125 = vld [vmem:[#allocation5 + $0x1c8] sm:$0xff]
    %v1126 = vld [vmem:[#allocation5 + $0x1d0] sm:$0xff]
    %v1127 = vld [vmem:[#allocation5 + $0x1d8] sm:$0xff]
    %v1128 = vld [vmem:[#allocation5 + $0x1e0] sm:$0xff]
    %v1129 = vld [vmem:[#allocation5 + $0x1e8] sm:$0xff]
    %v1130 = vld [vmem:[#allocation5 + $0x1f0] sm:$0xff]
    %v1131 = vld [vmem:[#allocation5 + $0x1f8] sm:$0xff]
    %v1132 = vld [vmem:[#allocation5 + $0x200] sm:$0xff]
    %v1133 = vld [vmem:[#allocation5 + $0x208] sm:$0xff]
    %v1134 = vld [vmem:[#allocation5 + $0x210] sm:$0xff]
    %v1135 = vld [vmem:[#allocation5 + $0x218] sm:$0xff]
    %v1136 = vld [vmem:[#allocation5 + $0x220] sm:$0xff]
    %v1137 = vld [vmem:[#allocation5 + $0x228] sm:$0xff]
    %v1138 = vld [vmem:[#allocation5 + $0x230] sm:$0xff]
    %v1139 = vld [vmem:[#allocation5 + $0x238] sm:$0xff]
    %v1140 = vld [vmem:[#allocation5 + $0x240] sm:$0xff]
    %v1141 = vld [vmem:[#allocation5 + $0x248] sm:$0xff]
    %v1142 = vld [vmem:[#allocation5 + $0x250] sm:$0xff]
    %v1143 = vld [vmem:[#allocation5 + $0x258] sm:$0xff]
    %v1144 = vld [vmem:[#allocation5 + $0x260] sm:$0xff]
    %v1145 = vld [vmem:[#allocation5 + $0x268] sm:$0xff]
    %v1146 = vld [vmem:[#allocation5 + $0x270] sm:$0xff]
    %v1147 = vld [vmem:[#allocation5 + $0x278] sm:$0xff]
    %v1148 = vld [vmem:[#allocation5 + $0x280] sm:$0xff]
    %v1149 = vld [vmem:[#allocation5 + $0x288] sm:$0xff]
    %v1150 = vld [vmem:[#allocation5 + $0x290] sm:$0xff]
    %v1151 = vld [vmem:[#allocation5 + $0x298] sm:$0xff]
    %v1152 = vld [vmem:[#allocation5 + $0x2a0] sm:$0xff]
    %v1153 = vld [vmem:[#allocation5 + $0x2a8] sm:$0xff]
    %v1154 = vld [vmem:[#allocation5 + $0x2b0] sm:$0xff]
    %v1155 = vld [vmem:[#allocation5 + $0x2b8] sm:$0xff]
    %v1156 = vld [vmem:[#allocation5 + $0x2c0] sm:$0xff]
    %v1157 = vld [vmem:[#allocation5 + $0x2c8] sm:$0xff]
    %v1158 = vld [vmem:[#allocation5 + $0x2d0] sm:$0xff]
    %v1159 = vld [vmem:[#allocation5 + $0x2d8] sm:$0xff]
    %v1160 = vld [vmem:[#allocation5 + $0x2e0] sm:$0xff]
    %v1161 = vld [vmem:[#allocation5 + $0x2e8] sm:$0xff]
    %v1162 = vld [vmem:[#allocation5 + $0x2f0] sm:$0xff]
    %v1163 = vld [vmem:[#allocation5 + $0x2f8] sm:$0xff]
    %v1164 = vld [vmem:[#allocation5 + $0x300] sm:$0xff]
    %v1165 = vld [vmem:[#allocation5 + $0x308] sm:$0xff]
    %v1166 = vld [vmem:[#allocation5 + $0x310] sm:$0xff]
    %v1167 = vld [vmem:[#allocation5 + $0x318] sm:$0xff]
    %v1168 = vld [vmem:[#allocation5 + $0x320] sm:$0xff]
    %v1169 = vld [vmem:[#allocation5 + $0x328] sm:$0xff]
    %v1170 = vld [vmem:[#allocation5 + $0x330] sm:$0xff]
    %v1171 = vld [vmem:[#allocation5 + $0x338] sm:$0xff]
    %v1172 = vld [vmem:[#allocation5 + $0x340] sm:$0xff]
    %v1173 = vld [vmem:[#allocation5 + $0x348] sm:$0xff]
    %v1174 = vld [vmem:[#allocation5 + $0x350] sm:$0xff]
    %v1175 = vld [vmem:[#allocation5 + $0x358] sm:$0xff]
    %v1176 = vld [vmem:[#allocation5 + $0x360] sm:$0xff]
    %v1177 = vld [vmem:[#allocation5 + $0x368] sm:$0xff]
    %v1178 = vld [vmem:[#allocation5 + $0x370] sm:$0xff]
    %v1179 = vld [vmem:[#allocation5 + $0x378] sm:$0xff]
    %v1180 = vld [vmem:[#allocation5 + $0x380] sm:$0xff]
    %v1181 = vld [vmem:[#allocation5 + $0x388] sm:$0xff]
    %v1182 = vld [vmem:[#allocation5 + $0x390] sm:$0xff]
    %v1183 = vld [vmem:[#allocation5 + $0x398] sm:$0xff]
    %v1184 = vld [vmem:[#allocation5 + $0x3a0] sm:$0xff]
    %v1185 = vld [vmem:[#allocation5 + $0x3a8] sm:$0xff]
    %v1186 = vld [vmem:[#allocation5 + $0x3b0] sm:$0xff]
    %v1187 = vld [vmem:[#allocation5 + $0x3b8] sm:$0xff]
    %v1188 = vld [vmem:[#allocation5 + $0x3c0] sm:$0xff]
    %v1189 = vld [vmem:[#allocation5 + $0x3c8] sm:$0xff]
    %v1190 = vld [vmem:[#allocation5 + $0x3d0] sm:$0xff]
    %v1191 = vld [vmem:[#allocation5 + $0x3d8] sm:$0xff]
    %v1192 = vld [vmem:[#allocation5 + $0x3e0] sm:$0xff]
    %v1193 = vld [vmem:[#allocation5 + $0x3e8] sm:$0xff]
    %v1194 = vld [vmem:[#allocation5 + $0x3f0] sm:$0xff]
    %v1195 = vld [vmem:[#allocation5 + $0x3f8] sm:$0xff]
    %v1196 = vld [vmem:[#allocation5 + $0x400] sm:$0xff]
    %v1197 = vld [vmem:[#allocation5 + $0x408] sm:$0xff]
    %v1198 = vld [vmem:[#allocation5 + $0x410] sm:$0xff]
    %v1199 = vld [vmem:[#allocation5 + $0x418] sm:$0xff]
    %v1200 = vld [vmem:[#allocation5 + $0x420] sm:$0xff]
    %v1201 = vld [vmem:[#allocation5 + $0x428] sm:$0xff]
    %v1202 = vld [vmem:[#allocation5 + $0x430] sm:$0xff]
    %v1203 = vld [vmem:[#allocation5 + $0x438] sm:$0xff]
    %v1204 = vld [vmem:[#allocation5 + $0x440] sm:$0xff]
    %v1205 = vld [vmem:[#allocation5 + $0x448] sm:$0xff]
    %v1206 = vld [vmem:[#allocation5 + $0x450] sm:$0xff]
    %v1207 = vld [vmem:[#allocation5 + $0x458] sm:$0xff]
    %v1208 = vld [vmem:[#allocation5 + $0x460] sm:$0xff]
    %v1209 = vld [vmem:[#allocation5 + $0x468] sm:$0xff]
    %v1210 = vld [vmem:[#allocation5 + $0x470] sm:$0xff]
    %v1211 = vld [vmem:[#allocation5 + $0x478] sm:$0xff]
    %v1212 = vld [vmem:[#allocation5 + $0x480] sm:$0xff]
    %v1213 = vld [vmem:[#allocation5 + $0x488] sm:$0xff]
    %v1214 = vld [vmem:[#allocation5 + $0x490] sm:$0xff]
    %v1215 = vld [vmem:[#allocation5 + $0x498] sm:$0xff]
    %v1216 = vld [vmem:[#allocation5 + $0x4a0] sm:$0xff]
    %v1217 = vld [vmem:[#allocation5 + $0x4a8] sm:$0xff]
    %v1218 = vld [vmem:[#allocation5 + $0x4b0] sm:$0xff]
    %v1219 = vld [vmem:[#allocation5 + $0x4b8] sm:$0xff]
    %v1220 = vld [vmem:[#allocation5 + $0x4c0] sm:$0xff]
    %v1221 = vld [vmem:[#allocation5 + $0x4c8] sm:$0xff]
    %v1222 = vld [vmem:[#allocation5 + $0x4d0] sm:$0xff]
    %v1223 = vld [vmem:[#allocation5 + $0x4d8] sm:$0xff]
    %v1224 = vld [vmem:[#allocation5 + $0x4e0] sm:$0xff]
    %v1225 = vld [vmem:[#allocation5 + $0x4e8] sm:$0xff]
    %v1226 = vld [vmem:[#allocation5 + $0x4f0] sm:$0xff]
    %v1227 = vld [vmem:[#allocation5 + $0x4f8] sm:$0xff]
    %v1228 = vld [vmem:[#allocation5 + $0x500] sm:$0xff]
    %v1229 = vld [vmem:[#allocation5 + $0x508] sm:$0xff]
    %v1230 = vld [vmem:[#allocation5 + $0x510] sm:$0xff]
    %v1231 = vld [vmem:[#allocation5 + $0x518] sm:$0xff]
    %v1232 = vld [vmem:[#allocation5 + $0x520] sm:$0xff]
    %v1233 = vld [vmem:[#allocation5 + $0x528] sm:$0xff]
    %v1234 = vld [vmem:[#allocation5 + $0x530] sm:$0xff]
    %v1235 = vld [vmem:[#allocation5 + $0x538] sm:$0xff]
    %v1236 = vld [vmem:[#allocation5 + $0x540] sm:$0xff]
    %v1237 = vld [vmem:[#allocation5 + $0x548] sm:$0xff]
    %v1238 = vld [vmem:[#allocation5 + $0x550] sm:$0xff]
    %v1239 = vld [vmem:[#allocation5 + $0x558] sm:$0xff]
    %v1240 = vld [vmem:[#allocation5 + $0x560] sm:$0xff]
    %v1241 = vld [vmem:[#allocation5 + $0x568] sm:$0xff]
    %v1242 = vld [vmem:[#allocation5 + $0x570] sm:$0xff]
    %v1243 = vld [vmem:[#allocation5 + $0x578] sm:$0xff]
    %v1244 = vld [vmem:[#allocation5 + $0x580] sm:$0xff]
    %v1245 = vld [vmem:[#allocation5 + $0x588] sm:$0xff]
    %v1246 = vld [vmem:[#allocation5 + $0x590] sm:$0xff]
    %v1247 = vld [vmem:[#allocation5 + $0x598] sm:$0xff]
    %v1248 = vld [vmem:[#allocation5 + $0x5a0] sm:$0xff]
    %v1249 = vld [vmem:[#allocation5 + $0x5a8] sm:$0xff]
    %v1250 = vld [vmem:[#allocation5 + $0x5b0] sm:$0xff]
    %v1251 = vld [vmem:[#allocation5 + $0x5b8] sm:$0xff]
    %v1252 = vld [vmem:[#allocation5 + $0x5c0] sm:$0xff]
    %v1253 = vld [vmem:[#allocation5 + $0x5c8] sm:$0xff]
    %v1254 = vld [vmem:[#allocation5 + $0x5d0] sm:$0xff]
    %v1255 = vld [vmem:[#allocation5 + $0x5d8] sm:$0xff]
    %v1256 = vld [vmem:[#allocation5 + $0x5e0] sm:$0xff]
    %v1257 = vld [vmem:[#allocation5 + $0x5e8] sm:$0xff]
    %v1258 = vld [vmem:[#allocation5 + $0x5f0] sm:$0xff]
    %v1259 = vld [vmem:[#allocation5 + $0x5f8] sm:$0xff]
    %v1260 = vld [vmem:[#allocation5 + $0x600] sm:$0xff]
    %v1261 = vld [vmem:[#allocation5 + $0x608] sm:$0xff]
    %v1262 = vld [vmem:[#allocation5 + $0x610] sm:$0xff]
    %v1263 = vld [vmem:[#allocation5 + $0x618] sm:$0xff]
    %v1264 = vld [vmem:[#allocation5 + $0x620] sm:$0xff]
    %v1265 = vld [vmem:[#allocation5 + $0x628] sm:$0xff]
    %v1266 = vld [vmem:[#allocation5 + $0x630] sm:$0xff]
    %v1267 = vld [vmem:[#allocation5 + $0x638] sm:$0xff]
    %v1268 = vld [vmem:[#allocation5 + $0x640] sm:$0xff]
    %v1269 = vld [vmem:[#allocation5 + $0x648] sm:$0xff]
    %v1270 = vld [vmem:[#allocation5 + $0x650] sm:$0xff]
    %v1271 = vld [vmem:[#allocation5 + $0x658] sm:$0xff]
    %v1272 = vld [vmem:[#allocation5 + $0x660] sm:$0xff]
    %v1273 = vld [vmem:[#allocation5 + $0x668] sm:$0xff]
    %v1274 = vld [vmem:[#allocation5 + $0x670] sm:$0xff]
    %v1275 = vld [vmem:[#allocation5 + $0x678] sm:$0xff]
    %v1276 = vld [vmem:[#allocation5 + $0x680] sm:$0xff]
    %v1277 = vld [vmem:[#allocation5 + $0x688] sm:$0xff]
    %v1278 = vld [vmem:[#allocation5 + $0x690] sm:$0xff]
    %v1279 = vld [vmem:[#allocation5 + $0x698] sm:$0xff]
    %v1280 = vld [vmem:[#allocation5 + $0x6a0] sm:$0xff]
    %v1281 = vld [vmem:[#allocation5 + $0x6a8] sm:$0xff]
    %v1282 = vld [vmem:[#allocation5 + $0x6b0] sm:$0xff]
    %v1283 = vld [vmem:[#allocation5 + $0x6b8] sm:$0xff]
    %v1284 = vld [vmem:[#allocation5 + $0x6c0] sm:$0xff]
    %v1285 = vld [vmem:[#allocation5 + $0x6c8] sm:$0xff]
    %v1286 = vld [vmem:[#allocation5 + $0x6d0] sm:$0xff]
    %v1287 = vld [vmem:[#allocation5 + $0x6d8] sm:$0xff]
    %v1288 = vld [vmem:[#allocation5 + $0x6e0] sm:$0xff]
    %v1289 = vld [vmem:[#allocation5 + $0x6e8] sm:$0xff]
    %v1290 = vld [vmem:[#allocation5 + $0x6f0] sm:$0xff]
    %v1291 = vld [vmem:[#allocation5 + $0x6f8] sm:$0xff]
    %v1292 = vld [vmem:[#allocation5 + $0x700] sm:$0xff]
    %v1293 = vld [vmem:[#allocation5 + $0x708] sm:$0xff]
    %v1294 = vld [vmem:[#allocation5 + $0x710] sm:$0xff]
    %v1295 = vld [vmem:[#allocation5 + $0x718] sm:$0xff]
    %v1296 = vld [vmem:[#allocation5 + $0x720] sm:$0xff]
    %v1297 = vld [vmem:[#allocation5 + $0x728] sm:$0xff]
    %v1298 = vld [vmem:[#allocation5 + $0x730] sm:$0xff]
    %v1299 = vld [vmem:[#allocation5 + $0x738] sm:$0xff]
    %v1300 = vld [vmem:[#allocation5 + $0x740] sm:$0xff]
    %v1301 = vld [vmem:[#allocation5 + $0x748] sm:$0xff]
    %v1302 = vld [vmem:[#allocation5 + $0x750] sm:$0xff]
    %v1303 = vld [vmem:[#allocation5 + $0x758] sm:$0xff]
    %v1304 = vld [vmem:[#allocation5 + $0x760] sm:$0xff]
    %v1305 = vld [vmem:[#allocation5 + $0x768] sm:$0xff]
    %v1306 = vld [vmem:[#allocation5 + $0x770] sm:$0xff]
    %v1307 = vld [vmem:[#allocation5 + $0x778] sm:$0xff]
    %v1308 = vld [vmem:[#allocation5 + $0x780] sm:$0xff]
    %v1309 = vld [vmem:[#allocation5 + $0x788] sm:$0xff]
    %v1310 = vld [vmem:[#allocation5 + $0x790] sm:$0xff]
    %v1311 = vld [vmem:[#allocation5 + $0x798] sm:$0xff]
    %v1312 = vld [vmem:[#allocation5 + $0x7a0] sm:$0xff]
    %v1313 = vld [vmem:[#allocation5 + $0x7a8] sm:$0xff]
    %v1314 = vld [vmem:[#allocation5 + $0x7b0] sm:$0xff]
    %v1315 = vld [vmem:[#allocation5 + $0x7b8] sm:$0xff]
    %v1316 = vld [vmem:[#allocation5 + $0x7c0] sm:$0xff]
    %v1317 = vld [vmem:[#allocation5 + $0x7c8] sm:$0xff]
    %v1318 = vld [vmem:[#allocation5 + $0x7d0] sm:$0xff]
    %v1319 = vld [vmem:[#allocation5 + $0x7d8] sm:$0xff]
    %v1320 = vld [vmem:[#allocation5 + $0x7e0] sm:$0xff]
    %v1321 = vld [vmem:[#allocation5 + $0x7e8] sm:$0xff]
    %v1322 = vld [vmem:[#allocation5 + $0x7f0] sm:$0xff]
    %v1323 = vld [vmem:[#allocation5 + $0x7f8] sm:$0xff]
    %v1324 = vld [vmem:[#allocation5 + $0x800] sm:$0xff]
    %v1325 = vld [vmem:[#allocation5 + $0x808] sm:$0xff]
    %v1326 = vld [vmem:[#allocation5 + $0x810] sm:$0xff]
    %v1327 = vld [vmem:[#allocation5 + $0x818] sm:$0xff]
    %v1328 = vld [vmem:[#allocation5 + $0x820] sm:$0xff]
    %v1329 = vld [vmem:[#allocation5 + $0x828] sm:$0xff]
    %v1330 = vld [vmem:[#allocation5 + $0x830] sm:$0xff]
    %v1331 = vld [vmem:[#allocation5 + $0x838] sm:$0xff]
    %v1332 = vld [vmem:[#allocation5 + $0x840] sm:$0xff]
    %v1333 = vld [vmem:[#allocation5 + $0x848] sm:$0xff]
    %v1334 = vld [vmem:[#allocation5 + $0x850] sm:$0xff]
    %v1335 = vld [vmem:[#allocation5 + $0x858] sm:$0xff]
    %v1336 = vld [vmem:[#allocation5 + $0x860] sm:$0xff]
    %v1337 = vld [vmem:[#allocation5 + $0x868] sm:$0xff]
    %v1338 = vld [vmem:[#allocation5 + $0x870] sm:$0xff]
    %v1339 = vld [vmem:[#allocation5 + $0x878] sm:$0xff]
    %v1340 = vld [vmem:[#allocation5 + $0x880] sm:$0xff]
    %v1341 = vld [vmem:[#allocation5 + $0x888] sm:$0xff]
    %v1342 = vld [vmem:[#allocation5 + $0x890] sm:$0xff]
    %v1343 = vld [vmem:[#allocation5 + $0x898] sm:$0xff]
    %v1344 = vld [vmem:[#allocation5 + $0x8a0] sm:$0xff]
    %v1345 = vld [vmem:[#allocation5 + $0x8a8] sm:$0xff]
    %v1346 = vld [vmem:[#allocation5 + $0x8b0] sm:$0xff]
    %v1347 = vld [vmem:[#allocation5 + $0x8b8] sm:$0xff]
    %v1348 = vld [vmem:[#allocation5 + $0x8c0] sm:$0xff]
    %v1349 = vld [vmem:[#allocation5 + $0x8c8] sm:$0xff]
    %v1350 = vld [vmem:[#allocation5 + $0x8d0] sm:$0xff]
    %v1351 = vld [vmem:[#allocation5 + $0x8d8] sm:$0xff]
    %v1352 = vld [vmem:[#allocation5 + $0x8e0] sm:$0xff]
    %v1353 = vld [vmem:[#allocation5 + $0x8e8] sm:$0xff]
    %v1354 = vld [vmem:[#allocation5 + $0x8f0] sm:$0xff]
    %v1355 = vld [vmem:[#allocation5 + $0x8f8] sm:$0xff]
    %v1356 = vld [vmem:[#allocation5 + $0x900] sm:$0xff]
    %v1357 = vld [vmem:[#allocation5 + $0x908] sm:$0xff]
    %v1358 = vld [vmem:[#allocation5 + $0x910] sm:$0xff]
    %v1359 = vld [vmem:[#allocation5 + $0x918] sm:$0xff]
    %v1360 = vld [vmem:[#allocation5 + $0x920] sm:$0xff]
    %v1361 = vld [vmem:[#allocation5 + $0x928] sm:$0xff]
    %v1362 = vld [vmem:[#allocation5 + $0x930] sm:$0xff]
    %v1363 = vld [vmem:[#allocation5 + $0x938] sm:$0xff]
    %v1364 = vld [vmem:[#allocation5 + $0x940] sm:$0xff]
    %v1365 = vld [vmem:[#allocation5 + $0x948] sm:$0xff]
    %v1366 = vld [vmem:[#allocation5 + $0x950] sm:$0xff]
    %v1367 = vld [vmem:[#allocation5 + $0x958] sm:$0xff]
    %v1368 = vld [vmem:[#allocation5 + $0x960] sm:$0xff]
    %v1369 = vld [vmem:[#allocation5 + $0x968] sm:$0xff]
    %v1370 = vld [vmem:[#allocation5 + $0x970] sm:$0xff]
    %v1371 = vld [vmem:[#allocation5 + $0x978] sm:$0xff]
    %v1372 = vld [vmem:[#allocation5 + $0x980] sm:$0xff]
    %v1373 = vld [vmem:[#allocation5 + $0x988] sm:$0xff]
    %v1374 = vld [vmem:[#allocation5 + $0x990] sm:$0xff]
    %v1375 = vld [vmem:[#allocation5 + $0x998] sm:$0xff]
    %v1376 = vld [vmem:[#allocation5 + $0x9a0] sm:$0xff]
    %v1377 = vld [vmem:[#allocation5 + $0x9a8] sm:$0xff]
    %v1378 = vld [vmem:[#allocation5 + $0x9b0] sm:$0xff]
    %v1379 = vld [vmem:[#allocation5 + $0x9b8] sm:$0xff]
    %v1380 = vld [vmem:[#allocation5 + $0x9c0] sm:$0xff]
    %v1381 = vld [vmem:[#allocation5 + $0x9c8] sm:$0xff]
    %v1382 = vld [vmem:[#allocation5 + $0x9d0] sm:$0xff]
    %v1383 = vld [vmem:[#allocation5 + $0x9d8] sm:$0xff]
    %v1384 = vld [vmem:[#allocation5 + $0x9e0] sm:$0xff]
    %v1385 = vld [vmem:[#allocation5 + $0x9e8] sm:$0xff]
    %v1386 = vld [vmem:[#allocation5 + $0x9f0] sm:$0xff]
    %v1387 = vld [vmem:[#allocation5 + $0x9f8] sm:$0xff]
    %v1388 = vld [vmem:[#allocation5 + $0xa00] sm:$0xff]
    %v1389 = vld [vmem:[#allocation5 + $0xa08] sm:$0xff]
    %v1390 = vld [vmem:[#allocation5 + $0xa10] sm:$0xff]
    %v1391 = vld [vmem:[#allocation5 + $0xa18] sm:$0xff]
    %v1392 = vld [vmem:[#allocation5 + $0xa20] sm:$0xff]
    %v1393 = vld [vmem:[#allocation5 + $0xa28] sm:$0xff]
    %v1394 = vld [vmem:[#allocation5 + $0xa30] sm:$0xff]
    %v1395 = vld [vmem:[#allocation5 + $0xa38] sm:$0xff]
    %v1396 = vld [vmem:[#allocation5 + $0xa40] sm:$0xff]
    %v1397 = vld [vmem:[#allocation5 + $0xa48] sm:$0xff]
    %v1398 = vld [vmem:[#allocation5 + $0xa50] sm:$0xff]
    %v1399 = vld [vmem:[#allocation5 + $0xa58] sm:$0xff]
    %v1400 = vld [vmem:[#allocation5 + $0xa60] sm:$0xff]
    %v1401 = vld [vmem:[#allocation5 + $0xa68] sm:$0xff]
    %v1402 = vld [vmem:[#allocation5 + $0xa70] sm:$0xff]
    %v1403 = vld [vmem:[#allocation5 + $0xa78] sm:$0xff]
    %v1404 = vld [vmem:[#allocation5 + $0xa80] sm:$0xff]
    %v1405 = vld [vmem:[#allocation5 + $0xa88] sm:$0xff]
    %v1406 = vld [vmem:[#allocation5 + $0xa90] sm:$0xff]
    %v1407 = vld [vmem:[#allocation5 + $0xa98] sm:$0xff]
    %v1408 = vld [vmem:[#allocation5 + $0xaa0] sm:$0xff]
    %v1409 = vld [vmem:[#allocation5 + $0xaa8] sm:$0xff]
    %v1410 = vld [vmem:[#allocation5 + $0xab0] sm:$0xff]
    %v1411 = vld [vmem:[#allocation5 + $0xab8] sm:$0xff]
    %v1412 = vld [vmem:[#allocation5 + $0xac0] sm:$0xff]
    %v1413 = vld [vmem:[#allocation5 + $0xac8] sm:$0xff]
    %v1414 = vld [vmem:[#allocation5 + $0xad0] sm:$0xff]
    %v1415 = vld [vmem:[#allocation5 + $0xad8] sm:$0xff]
    %v1416 = vld [vmem:[#allocation5 + $0xae0] sm:$0xff]
    %v1417 = vld [vmem:[#allocation5 + $0xae8] sm:$0xff]
    %v1418 = vld [vmem:[#allocation5 + $0xaf0] sm:$0xff]
    %v1419 = vld [vmem:[#allocation5 + $0xaf8] sm:$0xff]
    %v1420 = vld [vmem:[#allocation5 + $0xb00] sm:$0xff]
    %v1421 = vld [vmem:[#allocation5 + $0xb08] sm:$0xff]
    %v1422 = vld [vmem:[#allocation5 + $0xb10] sm:$0xff]
    %v1423 = vld [vmem:[#allocation5 + $0xb18] sm:$0xff]
    %v1424 = vld [vmem:[#allocation5 + $0xb20] sm:$0xff]
    %v1425 = vld [vmem:[#allocation5 + $0xb28] sm:$0xff]
    %v1426 = vld [vmem:[#allocation5 + $0xb30] sm:$0xff]
    %v1427 = vld [vmem:[#allocation5 + $0xb38] sm:$0xff]
    %v1428 = vld [vmem:[#allocation5 + $0xb40] sm:$0xff]
    %v1429 = vld [vmem:[#allocation5 + $0xb48] sm:$0xff]
    %v1430 = vld [vmem:[#allocation5 + $0xb50] sm:$0xff]
    %v1431 = vld [vmem:[#allocation5 + $0xb58] sm:$0xff]
    %v1432 = vld [vmem:[#allocation5 + $0xb60] sm:$0xff]
    %v1433 = vld [vmem:[#allocation5 + $0xb68] sm:$0xff]
    %v1434 = vld [vmem:[#allocation5 + $0xb70] sm:$0xff]
    %v1435 = vld [vmem:[#allocation5 + $0xb78] sm:$0xff]
    %v1436 = vld [vmem:[#allocation5 + $0xb80] sm:$0xff]
    %v1437 = vld [vmem:[#allocation5 + $0xb88] sm:$0xff]
    %v1438 = vld [vmem:[#allocation5 + $0xb90] sm:$0xff]
    %v1439 = vld [vmem:[#allocation5 + $0xb98] sm:$0xff]
    %v1440 = vld [vmem:[#allocation5 + $0xba0] sm:$0xff]
    %v1441 = vld [vmem:[#allocation5 + $0xba8] sm:$0xff]
    %v1442 = vld [vmem:[#allocation5 + $0xbb0] sm:$0xff]
    %v1443 = vld [vmem:[#allocation5 + $0xbb8] sm:$0xff]
    %v1444 = vld [vmem:[#allocation5 + $0xbc0] sm:$0xff]
    %v1445 = vld [vmem:[#allocation5 + $0xbc8] sm:$0xff]
    %v1446 = vld [vmem:[#allocation5 + $0xbd0] sm:$0xff]
    %v1447 = vld [vmem:[#allocation5 + $0xbd8] sm:$0xff]
    %v1448 = vld [vmem:[#allocation5 + $0xbe0] sm:$0xff]
    %v1449 = vld [vmem:[#allocation5 + $0xbe8] sm:$0xff]
    %v1450 = vld [vmem:[#allocation5 + $0xbf0] sm:$0xff]
    %v1451 = vld [vmem:[#allocation5 + $0xbf8] sm:$0xff]
    %v1452 = vld [vmem:[#allocation5 + $0xc00] sm:$0xff]
    %v1453 = vld [vmem:[#allocation5 + $0xc08] sm:$0xff]
    %v1454 = vld [vmem:[#allocation5 + $0xc10] sm:$0xff]
    %v1455 = vld [vmem:[#allocation5 + $0xc18] sm:$0xff]
    %v1456 = vld [vmem:[#allocation5 + $0xc20] sm:$0xff]
    %v1457 = vld [vmem:[#allocation5 + $0xc28] sm:$0xff]
    %v1458 = vld [vmem:[#allocation5 + $0xc30] sm:$0xff]
    %v1459 = vld [vmem:[#allocation5 + $0xc38] sm:$0xff]
    %v1460 = vld [vmem:[#allocation5 + $0xc40] sm:$0xff]
    %v1461 = vld [vmem:[#allocation5 + $0xc48] sm:$0xff]
    %v1462 = vld [vmem:[#allocation5 + $0xc50] sm:$0xff]
    %v1463 = vld [vmem:[#allocation5 + $0xc58] sm:$0xff]
    %v1464 = vld [vmem:[#allocation5 + $0xc60] sm:$0xff]
    %v1465 = vld [vmem:[#allocation5 + $0xc68] sm:$0xff]
    %v1466 = vld [vmem:[#allocation5 + $0xc70] sm:$0xff]
    %v1467 = vld [vmem:[#allocation5 + $0xc78] sm:$0xff]
    %v1468 = vld [vmem:[#allocation5 + $0xc80] sm:$0xff]
    %v1469 = vld [vmem:[#allocation5 + $0xc88] sm:$0xff]
    %v1470 = vld [vmem:[#allocation5 + $0xc90] sm:$0xff]
    %v1471 = vld [vmem:[#allocation5 + $0xc98] sm:$0xff]
    %v1472 = vld [vmem:[#allocation5 + $0xca0] sm:$0xff]
    %v1473 = vld [vmem:[#allocation5 + $0xca8] sm:$0xff]
    %v1474 = vld [vmem:[#allocation5 + $0xcb0] sm:$0xff]
    %v1475 = vld [vmem:[#allocation5 + $0xcb8] sm:$0xff]
    %v1476 = vld [vmem:[#allocation5 + $0xcc0] sm:$0xff]
    %v1477 = vld [vmem:[#allocation5 + $0xcc8] sm:$0xff]
    %v1478 = vld [vmem:[#allocation5 + $0xcd0] sm:$0xff]
    %v1479 = vld [vmem:[#allocation5 + $0xcd8] sm:$0xff]
    %v1480 = vld [vmem:[#allocation5 + $0xce0] sm:$0xff]
    %v1481 = vld [vmem:[#allocation5 + $0xce8] sm:$0xff]
    %v1482 = vld [vmem:[#allocation5 + $0xcf0] sm:$0xff]
    %v1483 = vld [vmem:[#allocation5 + $0xcf8] sm:$0xff]
    %v1484 = vld [vmem:[#allocation5 + $0xd00] sm:$0xff]
    %v1485 = vld [vmem:[#allocation5 + $0xd08] sm:$0xff]
    %v1486 = vld [vmem:[#allocation5 + $0xd10] sm:$0xff]
    %v1487 = vld [vmem:[#allocation5 + $0xd18] sm:$0xff]
    %v1488 = vld [vmem:[#allocation5 + $0xd20] sm:$0xff]
    %v1489 = vld [vmem:[#allocation5 + $0xd28] sm:$0xff]
    %v1490 = vld [vmem:[#allocation5 + $0xd30] sm:$0xff]
    %v1491 = vld [vmem:[#allocation5 + $0xd38] sm:$0xff]
    %v1492 = vld [vmem:[#allocation5 + $0xd40] sm:$0xff]
    %v1493 = vld [vmem:[#allocation5 + $0xd48] sm:$0xff]
    %v1494 = vld [vmem:[#allocation5 + $0xd50] sm:$0xff]
    %v1495 = vld [vmem:[#allocation5 + $0xd58] sm:$0xff]
    %v1496 = vld [vmem:[#allocation5 + $0xd60] sm:$0xff]
    %v1497 = vld [vmem:[#allocation5 + $0xd68] sm:$0xff]
    %v1498 = vld [vmem:[#allocation5 + $0xd70] sm:$0xff]
    %v1499 = vld [vmem:[#allocation5 + $0xd78] sm:$0xff]
    %v1500 = vld [vmem:[#allocation5 + $0xd80] sm:$0xff]
    %v1501 = vld [vmem:[#allocation5 + $0xd88] sm:$0xff]
    %v1502 = vld [vmem:[#allocation5 + $0xd90] sm:$0xff]
    %v1503 = vld [vmem:[#allocation5 + $0xd98] sm:$0xff]
    %v1504 = vld [vmem:[#allocation5 + $0xda0] sm:$0xff]
    %v1505 = vld [vmem:[#allocation5 + $0xda8] sm:$0xff]
    %v1506 = vld [vmem:[#allocation5 + $0xdb0] sm:$0xff]
    %v1507 = vld [vmem:[#allocation5 + $0xdb8] sm:$0xff]
    %v1508 = vld [vmem:[#allocation5 + $0xdc0] sm:$0xff]
    %v1509 = vld [vmem:[#allocation5 + $0xdc8] sm:$0xff]
    %v1510 = vld [vmem:[#allocation5 + $0xdd0] sm:$0xff]
    %v1511 = vld [vmem:[#allocation5 + $0xdd8] sm:$0xff]
    %v1512 = vld [vmem:[#allocation5 + $0xde0] sm:$0xff]
    %v1513 = vld [vmem:[#allocation5 + $0xde8] sm:$0xff]
    %v1514 = vld [vmem:[#allocation5 + $0xdf0] sm:$0xff]
    %v1515 = vld [vmem:[#allocation5 + $0xdf8] sm:$0xff]
    %v1516 = vld [vmem:[#allocation5 + $0xe00] sm:$0xff]
    %v1517 = vld [vmem:[#allocation5 + $0xe08] sm:$0xff]
    %v1518 = vld [vmem:[#allocation5 + $0xe10] sm:$0xff]
    %v1519 = vld [vmem:[#allocation5 + $0xe18] sm:$0xff]
    %v1520 = vld [vmem:[#allocation5 + $0xe20] sm:$0xff]
    %v1521 = vld [vmem:[#allocation5 + $0xe28] sm:$0xff]
    %v1522 = vld [vmem:[#allocation5 + $0xe30] sm:$0xff]
    %v1523 = vld [vmem:[#allocation5 + $0xe38] sm:$0xff]
    %v1524 = vld [vmem:[#allocation5 + $0xe40] sm:$0xff]
    %v1525 = vld [vmem:[#allocation5 + $0xe48] sm:$0xff]
    %v1526 = vld [vmem:[#allocation5 + $0xe50] sm:$0xff]
    %v1527 = vld [vmem:[#allocation5 + $0xe58] sm:$0xff]
    %v1528 = vld [vmem:[#allocation5 + $0xe60] sm:$0xff]
    %v1529 = vld [vmem:[#allocation5 + $0xe68] sm:$0xff]
    %v1530 = vld [vmem:[#allocation5 + $0xe70] sm:$0xff]
    %v1531 = vld [vmem:[#allocation5 + $0xe78] sm:$0xff]
    %v1532 = vld [vmem:[#allocation5 + $0xe80] sm:$0xff]
    %v1533 = vld [vmem:[#allocation5 + $0xe88] sm:$0xff]
    %v1534 = vld [vmem:[#allocation5 + $0xe90] sm:$0xff]
    %v1535 = vld [vmem:[#allocation5 + $0xe98] sm:$0xff]
    %v1536 = vld [vmem:[#allocation5 + $0xea0] sm:$0xff]
    %v1537 = vld [vmem:[#allocation5 + $0xea8] sm:$0xff]
    %v1538 = vld [vmem:[#allocation5 + $0xeb0] sm:$0xff]
    %v1539 = vld [vmem:[#allocation5 + $0xeb8] sm:$0xff]
    %v1540 = vld [vmem:[#allocation5 + $0xec0] sm:$0xff]
    %v1541 = vld [vmem:[#allocation5 + $0xec8] sm:$0xff]
    %v1542 = vld [vmem:[#allocation5 + $0xed0] sm:$0xff]
    %v1543 = vld [vmem:[#allocation5 + $0xed8] sm:$0xff]
    %v1544 = vld [vmem:[#allocation5 + $0xee0] sm:$0xff]
    %v1545 = vld [vmem:[#allocation5 + $0xee8] sm:$0xff]
    %v1546 = vld [vmem:[#allocation5 + $0xef0] sm:$0xff]
    %v1547 = vld [vmem:[#allocation5 + $0xef8] sm:$0xff]
    %v1548 = vld [vmem:[#allocation5 + $0xf00] sm:$0xff]
    %v1549 = vld [vmem:[#allocation5 + $0xf08] sm:$0xff]
    %v1550 = vld [vmem:[#allocation5 + $0xf10] sm:$0xff]
    %v1551 = vld [vmem:[#allocation5 + $0xf18] sm:$0xff]
    %v1552 = vld [vmem:[#allocation5 + $0xf20] sm:$0xff]
    %v1553 = vld [vmem:[#allocation5 + $0xf28] sm:$0xff]
    %v1554 = vld [vmem:[#allocation5 + $0xf30] sm:$0xff]
    %v1555 = vld [vmem:[#allocation5 + $0xf38] sm:$0xff]
    %v1556 = vld [vmem:[#allocation5 + $0xf40] sm:$0xff]
    %v1557 = vld [vmem:[#allocation5 + $0xf48] sm:$0xff]
    %v1558 = vld [vmem:[#allocation5 + $0xf50] sm:$0xff]
    %v1559 = vld [vmem:[#allocation5 + $0xf58] sm:$0xff]
    %v1560 = vld [vmem:[#allocation5 + $0xf60] sm:$0xff]
    %v1561 = vld [vmem:[#allocation5 + $0xf68] sm:$0xff]
    %v1562 = vld [vmem:[#allocation5 + $0xf70] sm:$0xff]
    %v1563 = vld [vmem:[#allocation5 + $0xf78] sm:$0xff]
    %v1564 = vld [vmem:[#allocation5 + $0xf80] sm:$0xff]
    %v1565 = vld [vmem:[#allocation5 + $0xf88] sm:$0xff]
    %v1566 = vld [vmem:[#allocation5 + $0xf90] sm:$0xff]
    %v1567 = vld [vmem:[#allocation5 + $0xf98] sm:$0xff]
    %v1568 = vld [vmem:[#allocation5 + $0xfa0] sm:$0xff]
    %v1569 = vld [vmem:[#allocation5 + $0xfa8] sm:$0xff]
    %v1570 = vld [vmem:[#allocation5 + $0xfb0] sm:$0xff]
    %v1571 = vld [vmem:[#allocation5 + $0xfb8] sm:$0xff]
    %v1572 = vld [vmem:[#allocation5 + $0xfc0] sm:$0xff]
    %v1573 = vld [vmem:[#allocation5 + $0xfc8] sm:$0xff]
    %v1574 = vld [vmem:[#allocation5 + $0xfd0] sm:$0xff]
    %v1575 = vld [vmem:[#allocation5 + $0xfd8] sm:$0xff]
    %v1576 = vld [vmem:[#allocation5 + $0xfe0] sm:$0xff]
    %v1577 = vld [vmem:[#allocation5 + $0xfe8] sm:$0xff]
    %v1578 = vld [vmem:[#allocation5 + $0xff0] sm:$0xff]
    %v1579 = vld [vmem:[#allocation5 + $0xff8] sm:$0xff]
    %v1580 = vld [vmem:[#allocation5 + $0x1000] sm:$0xff]
    %v1581 = vld [vmem:[#allocation5 + $0x1008] sm:$0xff]
    %v1582 = vld [vmem:[#allocation5 + $0x1010] sm:$0xff]
    %v1583 = vld [vmem:[#allocation5 + $0x1018] sm:$0xff]
    %v1584 = vld [vmem:[#allocation5 + $0x1020] sm:$0xff]
    %v1585 = vld [vmem:[#allocation5 + $0x1028] sm:$0xff]
    %v1586 = vld [vmem:[#allocation5 + $0x1030] sm:$0xff]
    %v1587 = vld [vmem:[#allocation5 + $0x1038] sm:$0xff]
    %v1588 = vld [vmem:[#allocation5 + $0x1040] sm:$0xff]
    %v1589 = vld [vmem:[#allocation5 + $0x1048] sm:$0xff]
    %v1590 = vld [vmem:[#allocation5 + $0x1050] sm:$0xff]
    %v1591 = vld [vmem:[#allocation5 + $0x1058] sm:$0xff]
    %v1592 = vld [vmem:[#allocation5 + $0x1060] sm:$0xff]
    %v1593 = vld [vmem:[#allocation5 + $0x1068] sm:$0xff]
    %v1594 = vld [vmem:[#allocation5 + $0x1070] sm:$0xff]
    %v1595 = vld [vmem:[#allocation5 + $0x1078] sm:$0xff]
    %v1596 = vld [vmem:[#allocation5 + $0x1080] sm:$0xff]
    %v1597 = vld [vmem:[#allocation5 + $0x1088] sm:$0xff]
    %v1598 = vld [vmem:[#allocation5 + $0x1090] sm:$0xff]
    %v1599 = vld [vmem:[#allocation5 + $0x1098] sm:$0xff]
    %v1600 = vld [vmem:[#allocation5 + $0x10a0] sm:$0xff]
    %v1601 = vld [vmem:[#allocation5 + $0x10a8] sm:$0xff]
    %v1602 = vld [vmem:[#allocation5 + $0x10b0] sm:$0xff]
    %v1603 = vld [vmem:[#allocation5 + $0x10b8] sm:$0xff]
    %v1604 = vld [vmem:[#allocation5 + $0x10c0] sm:$0xff]
    %v1605 = vld [vmem:[#allocation5 + $0x10c8] sm:$0xff]
    %v1606 = vld [vmem:[#allocation5 + $0x10d0] sm:$0xff]
    %v1607 = vld [vmem:[#allocation5 + $0x10d8] sm:$0xff]
    %v1608 = vld [vmem:[#allocation5 + $0x10e0] sm:$0xff]
    %v1609 = vld [vmem:[#allocation5 + $0x10e8] sm:$0xff]
    %v1610 = vld [vmem:[#allocation5 + $0x10f0] sm:$0xff]
    %v1611 = vld [vmem:[#allocation5 + $0x10f8] sm:$0xff]
    %v1612 = vld [vmem:[#allocation5 + $0x1100] sm:$0xff]
    %v1613 = vld [vmem:[#allocation5 + $0x1108] sm:$0xff]
    %v1614 = vld [vmem:[#allocation5 + $0x1110] sm:$0xff]
    %v1615 = vld [vmem:[#allocation5 + $0x1118] sm:$0xff]
    %v1616 = vld [vmem:[#allocation5 + $0x1120] sm:$0xff]
    %v1617 = vld [vmem:[#allocation5 + $0x1128] sm:$0xff]
    %v1618 = vld [vmem:[#allocation5 + $0x1130] sm:$0xff]
    %v1619 = vld [vmem:[#allocation5 + $0x1138] sm:$0xff]
    %v1620 = vld [vmem:[#allocation5 + $0x1140] sm:$0xff]
    %v1621 = vld [vmem:[#allocation5 + $0x1148] sm:$0xff]
    %v1622 = vld [vmem:[#allocation5 + $0x1150] sm:$0xff]
    %v1623 = vld [vmem:[#allocation5 + $0x1158] sm:$0xff]
    %v1624 = vld [vmem:[#allocation5 + $0x1160] sm:$0xff]
    %v1625 = vld [vmem:[#allocation5 + $0x1168] sm:$0xff]
    %v1626 = vld [vmem:[#allocation5 + $0x1170] sm:$0xff]
    %v1627 = vld [vmem:[#allocation5 + $0x1178] sm:$0xff]
    %v1628 = vld [vmem:[#allocation5 + $0x1180] sm:$0xff]
    %v1629 = vld [vmem:[#allocation5 + $0x1188] sm:$0xff]
    %v1630 = vld [vmem:[#allocation5 + $0x1190] sm:$0xff]
    %v1631 = vld [vmem:[#allocation5 + $0x1198] sm:$0xff]
    %v1632 = vld [vmem:[#allocation5 + $0x11a0] sm:$0xff]
    %v1633 = vld [vmem:[#allocation5 + $0x11a8] sm:$0xff]
    %v1634 = vld [vmem:[#allocation5 + $0x11b0] sm:$0xff]
    %v1635 = vld [vmem:[#allocation5 + $0x11b8] sm:$0xff]
    %v1636 = vld [vmem:[#allocation5 + $0x11c0] sm:$0xff]
    %v1637 = vld [vmem:[#allocation5 + $0x11c8] sm:$0xff]
    %v1638 = vld [vmem:[#allocation5 + $0x11d0] sm:$0xff]
    %v1639 = vld [vmem:[#allocation5 + $0x11d8] sm:$0xff]
    %v1640 = vld [vmem:[#allocation5 + $0x11e0] sm:$0xff]
    %v1641 = vld [vmem:[#allocation5 + $0x11e8] sm:$0xff]
    %v1642 = vld [vmem:[#allocation5 + $0x11f0] sm:$0xff]
    %v1643 = vld [vmem:[#allocation5 + $0x11f8] sm:$0xff]
    %v1644 = vld [vmem:[#allocation5 + $0x1200] sm:$0xff]
    %v1645 = vld [vmem:[#allocation5 + $0x1208] sm:$0xff]
    %v1646 = vld [vmem:[#allocation5 + $0x1210] sm:$0xff]
    %v1647 = vld [vmem:[#allocation5 + $0x1218] sm:$0xff]
    %v1648 = vld [vmem:[#allocation5 + $0x1220] sm:$0xff]
    %v1649 = vld [vmem:[#allocation5 + $0x1228] sm:$0xff]
    %v1650 = vld [vmem:[#allocation5 + $0x1230] sm:$0xff]
    %v1651 = vld [vmem:[#allocation5 + $0x1238] sm:$0xff]
    %v1652 = vld [vmem:[#allocation5 + $0x1240] sm:$0xff]
    %v1653 = vld [vmem:[#allocation5 + $0x1248] sm:$0xff]
    %v1654 = vld [vmem:[#allocation5 + $0x1250] sm:$0xff]
    %v1655 = vld [vmem:[#allocation5 + $0x1258] sm:$0xff]
    %v1656 = vld [vmem:[#allocation5 + $0x1260] sm:$0xff]
    %v1657 = vld [vmem:[#allocation5 + $0x1268] sm:$0xff]
    %v1658 = vld [vmem:[#allocation5 + $0x1270] sm:$0xff]
    %v1659 = vld [vmem:[#allocation5 + $0x1278] sm:$0xff]
    %v1660 = vld [vmem:[#allocation5 + $0x1280] sm:$0xff]
    %v1661 = vld [vmem:[#allocation5 + $0x1288] sm:$0xff]
    %v1662 = vld [vmem:[#allocation5 + $0x1290] sm:$0xff]
    %v1663 = vld [vmem:[#allocation5 + $0x1298] sm:$0xff]
    %v1664 = vld [vmem:[#allocation5 + $0x12a0] sm:$0xff]
    %v1665 = vld [vmem:[#allocation5 + $0x12a8] sm:$0xff]
    %v1666 = vld [vmem:[#allocation5 + $0x12b0] sm:$0xff]
    %v1667 = vld [vmem:[#allocation5 + $0x12b8] sm:$0xff]
    %v1668 = vld [vmem:[#allocation5 + $0x12c0] sm:$0xff]
    %v1669 = vld [vmem:[#allocation5 + $0x12c8] sm:$0xff]
    %v1670 = vld [vmem:[#allocation5 + $0x12d0] sm:$0xff]
    %v1671 = vld [vmem:[#allocation5 + $0x12d8] sm:$0xff]
    %v1672 = vld [vmem:[#allocation5 + $0x12e0] sm:$0xff]
    %v1673 = vld [vmem:[#allocation5 + $0x12e8] sm:$0xff]
    %v1674 = vld [vmem:[#allocation5 + $0x12f0] sm:$0xff]
    %v1675 = vld [vmem:[#allocation5 + $0x12f8] sm:$0xff]
    %v1676 = vld [vmem:[#allocation5 + $0x1300] sm:$0xff]
    %v1677 = vld [vmem:[#allocation5 + $0x1308] sm:$0xff]
    %v1678 = vld [vmem:[#allocation5 + $0x1310] sm:$0xff]
    %v1679 = vld [vmem:[#allocation5 + $0x1318] sm:$0xff]
    %v1680 = vld [vmem:[#allocation5 + $0x1320] sm:$0xff]
    %v1681 = vld [vmem:[#allocation5 + $0x1328] sm:$0xff]
    %v1682 = vld [vmem:[#allocation5 + $0x1330] sm:$0xff]
    %v1683 = vld [vmem:[#allocation5 + $0x1338] sm:$0xff]
    %v1684 = vld [vmem:[#allocation5 + $0x1340] sm:$0xff]
    %v1685 = vld [vmem:[#allocation5 + $0x1348] sm:$0xff]
    %v1686 = vld [vmem:[#allocation5 + $0x1350] sm:$0xff]
    %v1687 = vld [vmem:[#allocation5 + $0x1358] sm:$0xff]
    %v1688 = vld [vmem:[#allocation5 + $0x1360] sm:$0xff]
    %v1689 = vld [vmem:[#allocation5 + $0x1368] sm:$0xff]
    %v1690 = vld [vmem:[#allocation5 + $0x1370] sm:$0xff]
    %v1691 = vld [vmem:[#allocation5 + $0x1378] sm:$0xff]
    %v1692 = vld [vmem:[#allocation5 + $0x1380] sm:$0xff]
    %v1693 = vld [vmem:[#allocation5 + $0x1388] sm:$0xff]
    %v1694 = vld [vmem:[#allocation5 + $0x1390] sm:$0xff]
    %v1695 = vld [vmem:[#allocation5 + $0x1398] sm:$0xff]
    %v1696 = vld [vmem:[#allocation5 + $0x13a0] sm:$0xff]
    %v1697 = vld [vmem:[#allocation5 + $0x13a8] sm:$0xff]
    %v1698 = vld [vmem:[#allocation5 + $0x13b0] sm:$0xff]
    %v1699 = vld [vmem:[#allocation5 + $0x13b8] sm:$0xff]
    %v1700 = vld [vmem:[#allocation5 + $0x13c0] sm:$0xff]
    %v1701 = vld [vmem:[#allocation5 + $0x13c8] sm:$0xff]
    %v1702 = vld [vmem:[#allocation5 + $0x13d0] sm:$0xff]
    %v1703 = vld [vmem:[#allocation5 + $0x13d8] sm:$0xff]
    %v1704 = vld [vmem:[#allocation5 + $0x13e0] sm:$0xff]
    %v1705 = vld [vmem:[#allocation5 + $0x13e8] sm:$0xff]
    %v1706 = vld [vmem:[#allocation5 + $0x13f0] sm:$0xff]
    %v1707 = vld [vmem:[#allocation5 + $0x13f8] sm:$0xff]
    %v1708 = vld [vmem:[#allocation5 + $0x1400] sm:$0xff]
    %v1709 = vld [vmem:[#allocation5 + $0x1408] sm:$0xff]
    %v1710 = vld [vmem:[#allocation5 + $0x1410] sm:$0xff]
    %v1711 = vld [vmem:[#allocation5 + $0x1418] sm:$0xff]
    %v1712 = vld [vmem:[#allocation5 + $0x1420] sm:$0xff]
    %v1713 = vld [vmem:[#allocation5 + $0x1428] sm:$0xff]
    %v1714 = vld [vmem:[#allocation5 + $0x1430] sm:$0xff]
    %v1715 = vld [vmem:[#allocation5 + $0x1438] sm:$0xff]
    %v1716 = vld [vmem:[#allocation5 + $0x1440] sm:$0xff]
    %v1717 = vld [vmem:[#allocation5 + $0x1448] sm:$0xff]
    %v1718 = vld [vmem:[#allocation5 + $0x1450] sm:$0xff]
    %v1719 = vld [vmem:[#allocation5 + $0x1458] sm:$0xff]
    %v1720 = vld [vmem:[#allocation5 + $0x1460] sm:$0xff]
    %v1721 = vld [vmem:[#allocation5 + $0x1468] sm:$0xff]
    %v1722 = vld [vmem:[#allocation5 + $0x1470] sm:$0xff]
    %v1723 = vld [vmem:[#allocation5 + $0x1478] sm:$0xff]
    %v1724 = vld [vmem:[#allocation5 + $0x1480] sm:$0xff]
    %v1725 = vld [vmem:[#allocation5 + $0x1488] sm:$0xff]
    %v1726 = vld [vmem:[#allocation5 + $0x1490] sm:$0xff]
    %v1727 = vld [vmem:[#allocation5 + $0x1498] sm:$0xff]
    %v1728 = vld [vmem:[#allocation5 + $0x14a0] sm:$0xff]
    %v1729 = vld [vmem:[#allocation5 + $0x14a8] sm:$0xff]
    %v1730 = vld [vmem:[#allocation5 + $0x14b0] sm:$0xff]
    %v1731 = vld [vmem:[#allocation5 + $0x14b8] sm:$0xff]
    %v1732 = vld [vmem:[#allocation5 + $0x14c0] sm:$0xff]
    %v1733 = vld [vmem:[#allocation5 + $0x14c8] sm:$0xff]
    %v1734 = vld [vmem:[#allocation5 + $0x14d0] sm:$0xff]
    %v1735 = vld [vmem:[#allocation5 + $0x14d8] sm:$0xff]
    %v1736 = vld [vmem:[#allocation5 + $0x14e0] sm:$0xff]
    %v1737 = vld [vmem:[#allocation5 + $0x14e8] sm:$0xff]
    %v1738 = vld [vmem:[#allocation5 + $0x14f0] sm:$0xff]
    %v1739 = vld [vmem:[#allocation5 + $0x14f8] sm:$0xff]
    %v1740 = vld [vmem:[#allocation5 + $0x1500] sm:$0xff]
    %v1741 = vld [vmem:[#allocation5 + $0x1508] sm:$0xff]
    %v1742 = vld [vmem:[#allocation5 + $0x1510] sm:$0xff]
    %v1743 = vld [vmem:[#allocation5 + $0x1518] sm:$0xff]
    %v1744 = vld [vmem:[#allocation5 + $0x1520] sm:$0xff]
    %v1745 = vld [vmem:[#allocation5 + $0x1528] sm:$0xff]
    %v1746 = vld [vmem:[#allocation5 + $0x1530] sm:$0xff]
    %v1747 = vld [vmem:[#allocation5 + $0x1538] sm:$0xff]
    %v1748 = vld [vmem:[#allocation5 + $0x1540] sm:$0xff]
    %v1749 = vld [vmem:[#allocation5 + $0x1548] sm:$0xff]
    %v1750 = vld [vmem:[#allocation5 + $0x1550] sm:$0xff]
    %v1751 = vld [vmem:[#allocation5 + $0x1558] sm:$0xff]
    %v1752 = vld [vmem:[#allocation5 + $0x1560] sm:$0xff]
    %v1753 = vld [vmem:[#allocation5 + $0x1568] sm:$0xff]
    %v1754 = vld [vmem:[#allocation5 + $0x1570] sm:$0xff]
    %v1755 = vld [vmem:[#allocation5 + $0x1578] sm:$0xff]
    %v1756 = vld [vmem:[#allocation5 + $0x1580] sm:$0xff]
    %v1757 = vld [vmem:[#allocation5 + $0x1588] sm:$0xff]
    %v1758 = vld [vmem:[#allocation5 + $0x1590] sm:$0xff]
    %v1759 = vld [vmem:[#allocation5 + $0x1598] sm:$0xff]
    %v1760 = vld [vmem:[#allocation5 + $0x15a0] sm:$0xff]
    %v1761 = vld [vmem:[#allocation5 + $0x15a8] sm:$0xff]
    %v1762 = vld [vmem:[#allocation5 + $0x15b0] sm:$0xff]
    %v1763 = vld [vmem:[#allocation5 + $0x15b8] sm:$0xff]
    %v1764 = vld [vmem:[#allocation5 + $0x15c0] sm:$0xff]
    %v1765 = vld [vmem:[#allocation5 + $0x15c8] sm:$0xff]
    %v1766 = vld [vmem:[#allocation5 + $0x15d0] sm:$0xff]
    %v1767 = vld [vmem:[#allocation5 + $0x15d8] sm:$0xff]
    %v1768 = vld [vmem:[#allocation5 + $0x15e0] sm:$0xff]
    %v1769 = vld [vmem:[#allocation5 + $0x15e8] sm:$0xff]
    %v1770 = vld [vmem:[#allocation5 + $0x15f0] sm:$0xff]
    %v1771 = vld [vmem:[#allocation5 + $0x15f8] sm:$0xff]
    %v1772 = vld [vmem:[#allocation5 + $0x1600] sm:$0xff]
    %v1773 = vld [vmem:[#allocation5 + $0x1608] sm:$0xff]
    %v1774 = vld [vmem:[#allocation5 + $0x1610] sm:$0xff]
    %v1775 = vld [vmem:[#allocation5 + $0x1618] sm:$0xff]
    %v1776 = vld [vmem:[#allocation5 + $0x1620] sm:$0xff]
    %v1777 = vld [vmem:[#allocation5 + $0x1628] sm:$0xff]
    %v1778 = vld [vmem:[#allocation5 + $0x1630] sm:$0xff]
    %v1779 = vld [vmem:[#allocation5 + $0x1638] sm:$0xff]
    %v1780 = vld [vmem:[#allocation5 + $0x1640] sm:$0xff]
    %v1781 = vld [vmem:[#allocation5 + $0x1648] sm:$0xff]
    %v1782 = vld [vmem:[#allocation5 + $0x1650] sm:$0xff]
    %v1783 = vld [vmem:[#allocation5 + $0x1658] sm:$0xff]
    %v1784 = vld [vmem:[#allocation5 + $0x1660] sm:$0xff]
    %v1785 = vld [vmem:[#allocation5 + $0x1668] sm:$0xff]
    %v1786 = vld [vmem:[#allocation5 + $0x1670] sm:$0xff]
    %v1787 = vld [vmem:[#allocation5 + $0x1678] sm:$0xff]
    %v1788 = vld [vmem:[#allocation5 + $0x1680] sm:$0xff]
    %v1789 = vld [vmem:[#allocation5 + $0x1688] sm:$0xff]
    %v1790 = vld [vmem:[#allocation5 + $0x1690] sm:$0xff]
    %v1791 = vld [vmem:[#allocation5 + $0x1698] sm:$0xff]
    %v1792 = vld [vmem:[#allocation5 + $0x16a0] sm:$0xff]
    %v1793 = vld [vmem:[#allocation5 + $0x16a8] sm:$0xff]
    %v1794 = vld [vmem:[#allocation5 + $0x16b0] sm:$0xff]
    %v1795 = vld [vmem:[#allocation5 + $0x16b8] sm:$0xff]
    %v1796 = vld [vmem:[#allocation5 + $0x16c0] sm:$0xff]
    %v1797 = vld [vmem:[#allocation5 + $0x16c8] sm:$0xff]
    %v1798 = vld [vmem:[#allocation5 + $0x16d0] sm:$0xff]
    %v1799 = vld [vmem:[#allocation5 + $0x16d8] sm:$0xff]
    %v1800 = vld [vmem:[#allocation5 + $0x16e0] sm:$0xff]
    %v1801 = vld [vmem:[#allocation5 + $0x16e8] sm:$0xff]
    %v1802 = vld [vmem:[#allocation5 + $0x16f0] sm:$0xff]
    %v1803 = vld [vmem:[#allocation5 + $0x16f8] sm:$0xff]
    %v1804 = vld [vmem:[#allocation5 + $0x1700] sm:$0xff]
    %v1805 = vld [vmem:[#allocation5 + $0x1708] sm:$0xff]
    %v1806 = vld [vmem:[#allocation5 + $0x1710] sm:$0xff]
    %v1807 = vld [vmem:[#allocation5 + $0x1718] sm:$0xff]
    %v1808 = vld [vmem:[#allocation5 + $0x1720] sm:$0xff]
    %v1809 = vld [vmem:[#allocation5 + $0x1728] sm:$0xff]
    %v1810 = vld [vmem:[#allocation5 + $0x1730] sm:$0xff]
    %v1811 = vld [vmem:[#allocation5 + $0x1738] sm:$0xff]
    %v1812 = vld [vmem:[#allocation5 + $0x1740] sm:$0xff]
    %v1813 = vld [vmem:[#allocation5 + $0x1748] sm:$0xff]
    %v1814 = vld [vmem:[#allocation5 + $0x1750] sm:$0xff]
    %v1815 = vld [vmem:[#allocation5 + $0x1758] sm:$0xff]
    %v1816 = vld [vmem:[#allocation5 + $0x1760] sm:$0xff]
    %v1817 = vld [vmem:[#allocation5 + $0x1768] sm:$0xff]
    %v1818 = vld [vmem:[#allocation5 + $0x1770] sm:$0xff]
    %v1819 = vld [vmem:[#allocation5 + $0x1778] sm:$0xff]
    %v1820 = vld [vmem:[#allocation5 + $0x1780] sm:$0xff]
    %v1821 = vld [vmem:[#allocation5 + $0x1788] sm:$0xff]
    %v1822 = vld [vmem:[#allocation5 + $0x1790] sm:$0xff]
    %v1823 = vld [vmem:[#allocation5 + $0x1798] sm:$0xff]
    %v1824 = vld [vmem:[#allocation5 + $0x17a0] sm:$0xff]
    %v1825 = vld [vmem:[#allocation5 + $0x17a8] sm:$0xff]
    %v1826 = vld [vmem:[#allocation5 + $0x17b0] sm:$0xff]
    %v1827 = vld [vmem:[#allocation5 + $0x17b8] sm:$0xff]
    %v1828 = vld [vmem:[#allocation5 + $0x17c0] sm:$0xff]
    %v1829 = vld [vmem:[#allocation5 + $0x17c8] sm:$0xff]
    %v1830 = vld [vmem:[#allocation5 + $0x17d0] sm:$0xff]
    %v1831 = vld [vmem:[#allocation5 + $0x17d8] sm:$0xff]
    %v1832 = vld [vmem:[#allocation5 + $0x17e0] sm:$0xff]
    %v1833 = vld [vmem:[#allocation5 + $0x17e8] sm:$0xff]
    %v1834 = vld [vmem:[#allocation5 + $0x17f0] sm:$0xff]
    %v1835 = vld [vmem:[#allocation5 + $0x17f8] sm:$0xff]
    %v1836 = vld [vmem:[#allocation5 + $0x1800] sm:$0xff]
    %v1837 = vld [vmem:[#allocation5 + $0x1808] sm:$0xff]
    %v1838 = vld [vmem:[#allocation5 + $0x1810] sm:$0xff]
    %v1839 = vld [vmem:[#allocation5 + $0x1818] sm:$0xff]
    %v1840 = vld [vmem:[#allocation5 + $0x1820] sm:$0xff]
    %v1841 = vld [vmem:[#allocation5 + $0x1828] sm:$0xff]
    %v1842 = vld [vmem:[#allocation5 + $0x1830] sm:$0xff]
    %v1843 = vld [vmem:[#allocation5 + $0x1838] sm:$0xff]
    %v1844 = vld [vmem:[#allocation5 + $0x1840] sm:$0xff]
    %v1845 = vld [vmem:[#allocation5 + $0x1848] sm:$0xff]
    %v1846 = vld [vmem:[#allocation5 + $0x1850] sm:$0xff]
    %v1847 = vld [vmem:[#allocation5 + $0x1858] sm:$0xff]
    %v1848 = vld [vmem:[#allocation5 + $0x1860] sm:$0xff]
    %v1849 = vld [vmem:[#allocation5 + $0x1868] sm:$0xff]
    %v1850 = vld [vmem:[#allocation5 + $0x1870] sm:$0xff]
    %v1851 = vld [vmem:[#allocation5 + $0x1878] sm:$0xff]
    %v1852 = vld [vmem:[#allocation5 + $0x1880] sm:$0xff]
    %v1853 = vld [vmem:[#allocation5 + $0x1888] sm:$0xff]
    %v1854 = vld [vmem:[#allocation5 + $0x1890] sm:$0xff]
    %v1855 = vld [vmem:[#allocation5 + $0x1898] sm:$0xff]
    %v1856 = vld [vmem:[#allocation5 + $0x18a0] sm:$0xff]
    %v1857 = vld [vmem:[#allocation5 + $0x18a8] sm:$0xff]
    %v1858 = vld [vmem:[#allocation5 + $0x18b0] sm:$0xff]
    %v1859 = vld [vmem:[#allocation5 + $0x18b8] sm:$0xff]
    %v1860 = vld [vmem:[#allocation5 + $0x18c0] sm:$0xff]
    %v1861 = vld [vmem:[#allocation5 + $0x18c8] sm:$0xff]
    %v1862 = vld [vmem:[#allocation5 + $0x18d0] sm:$0xff]
    %v1863 = vld [vmem:[#allocation5 + $0x18d8] sm:$0xff]
    %v1864 = vld [vmem:[#allocation5 + $0x18e0] sm:$0xff]
    %v1865 = vld [vmem:[#allocation5 + $0x18e8] sm:$0xff]
    %v1866 = vld [vmem:[#allocation5 + $0x18f0] sm:$0xff]
    %v1867 = vld [vmem:[#allocation5 + $0x18f8] sm:$0xff]
    %v1868 = vld [vmem:[#allocation5 + $0x1900] sm:$0xff]
    %v1869 = vld [vmem:[#allocation5 + $0x1908] sm:$0xff]
    %v1870 = vld [vmem:[#allocation5 + $0x1910] sm:$0xff]
    %v1871 = vld [vmem:[#allocation5 + $0x1918] sm:$0xff]
    %v1872 = vld [vmem:[#allocation5 + $0x1920] sm:$0xff]
    %v1873 = vld [vmem:[#allocation5 + $0x1928] sm:$0xff]
    %v1874 = vld [vmem:[#allocation5 + $0x1930] sm:$0xff]
    %v1875 = vld [vmem:[#allocation5 + $0x1938] sm:$0xff]
    %v1876 = vld [vmem:[#allocation5 + $0x1940] sm:$0xff]
    %v1877 = vld [vmem:[#allocation5 + $0x1948] sm:$0xff]
    %v1878 = vld [vmem:[#allocation5 + $0x1950] sm:$0xff]
    %v1879 = vld [vmem:[#allocation5 + $0x1958] sm:$0xff]
    %v1880 = vld [vmem:[#allocation5 + $0x1960] sm:$0xff]
    %v1881 = vld [vmem:[#allocation5 + $0x1968] sm:$0xff]
    %v1882 = vld [vmem:[#allocation5 + $0x1970] sm:$0xff]
    %v1883 = vld [vmem:[#allocation5 + $0x1978] sm:$0xff]
    %v1884 = vld [vmem:[#allocation5 + $0x1980] sm:$0xff]
    %v1885 = vld [vmem:[#allocation5 + $0x1988] sm:$0xff]
    %v1886 = vld [vmem:[#allocation5 + $0x1990] sm:$0xff]
    %v1887 = vld [vmem:[#allocation5 + $0x1998] sm:$0xff]
    %v1888 = vld [vmem:[#allocation5 + $0x19a0] sm:$0xff]
    %v1889 = vld [vmem:[#allocation5 + $0x19a8] sm:$0xff]
    %v1890 = vld [vmem:[#allocation5 + $0x19b0] sm:$0xff]
    %v1891 = vld [vmem:[#allocation5 + $0x19b8] sm:$0xff]
    %v1892 = vld [vmem:[#allocation5 + $0x19c0] sm:$0xff]
    %v1893 = vld [vmem:[#allocation5 + $0x19c8] sm:$0xff]
    %v1894 = vld [vmem:[#allocation5 + $0x19d0] sm:$0xff]
    %v1895 = vld [vmem:[#allocation5 + $0x19d8] sm:$0xff]
    %v1896 = vld [vmem:[#allocation5 + $0x19e0] sm:$0xff]
    %v1897 = vld [vmem:[#allocation5 + $0x19e8] sm:$0xff]
    %v1898 = vld [vmem:[#allocation5 + $0x19f0] sm:$0xff]
    %v1899 = vld [vmem:[#allocation5 + $0x19f8] sm:$0xff]
    %v1900 = vld [vmem:[#allocation5 + $0x1a00] sm:$0xff]
    %v1901 = vld [vmem:[#allocation5 + $0x1a08] sm:$0xff]
    %v1902 = vld [vmem:[#allocation5 + $0x1a10] sm:$0xff]
    %v1903 = vld [vmem:[#allocation5 + $0x1a18] sm:$0xff]
    %v1904 = vld [vmem:[#allocation5 + $0x1a20] sm:$0xff]
    %v1905 = vld [vmem:[#allocation5 + $0x1a28] sm:$0xff]
    %v1906 = vld [vmem:[#allocation5 + $0x1a30] sm:$0xff]
    %v1907 = vld [vmem:[#allocation5 + $0x1a38] sm:$0xff]
    %v1908 = vld [vmem:[#allocation5 + $0x1a40] sm:$0xff]
    %v1909 = vld [vmem:[#allocation5 + $0x1a48] sm:$0xff]
    %v1910 = vld [vmem:[#allocation5 + $0x1a50] sm:$0xff]
    %v1911 = vld [vmem:[#allocation5 + $0x1a58] sm:$0xff]
    %v1912 = vld [vmem:[#allocation5 + $0x1a60] sm:$0xff]
    %v1913 = vld [vmem:[#allocation5 + $0x1a68] sm:$0xff]
    %v1914 = vld [vmem:[#allocation5 + $0x1a70] sm:$0xff]
    %v1915 = vld [vmem:[#allocation5 + $0x1a78] sm:$0xff]
    %v1916 = vld [vmem:[#allocation5 + $0x1a80] sm:$0xff]
    %v1917 = vld [vmem:[#allocation5 + $0x1a88] sm:$0xff]
    %v1918 = vld [vmem:[#allocation5 + $0x1a90] sm:$0xff]
    %v1919 = vld [vmem:[#allocation5 + $0x1a98] sm:$0xff]
    %v1920 = vld [vmem:[#allocation5 + $0x1aa0] sm:$0xff]
    %v1921 = vld [vmem:[#allocation5 + $0x1aa8] sm:$0xff]
    %v1922 = vld [vmem:[#allocation5 + $0x1ab0] sm:$0xff]
    %v1923 = vld [vmem:[#allocation5 + $0x1ab8] sm:$0xff]
    %v1924 = vld [vmem:[#allocation5 + $0x1ac0] sm:$0xff]
    %v1925 = vld [vmem:[#allocation5 + $0x1ac8] sm:$0xff]
    %v1926 = vld [vmem:[#allocation5 + $0x1ad0] sm:$0xff]
    %v1927 = vld [vmem:[#allocation5 + $0x1ad8] sm:$0xff]
    %v1928 = vld [vmem:[#allocation5 + $0x1ae0] sm:$0xff]
    %v1929 = vld [vmem:[#allocation5 + $0x1ae8] sm:$0xff]
    %v1930 = vld [vmem:[#allocation5 + $0x1af0] sm:$0xff]
    %v1931 = vld [vmem:[#allocation5 + $0x1af8] sm:$0xff]
    %v1932 = vld [vmem:[#allocation5 + $0x1b00] sm:$0xff]
    %v1933 = vld [vmem:[#allocation5 + $0x1b08] sm:$0xff]
    %v1934 = vld [vmem:[#allocation5 + $0x1b10] sm:$0xff]
    %v1935 = vld [vmem:[#allocation5 + $0x1b18] sm:$0xff]
    %v1936 = vld [vmem:[#allocation5 + $0x1b20] sm:$0xff]
    %v1937 = vld [vmem:[#allocation5 + $0x1b28] sm:$0xff]
    %v1938 = vld [vmem:[#allocation5 + $0x1b30] sm:$0xff]
    %v1939 = vld [vmem:[#allocation5 + $0x1b38] sm:$0xff]
    %v1940 = vld [vmem:[#allocation5 + $0x1b40] sm:$0xff]
    %v1941 = vld [vmem:[#allocation5 + $0x1b48] sm:$0xff]
    %v1942 = vld [vmem:[#allocation5 + $0x1b50] sm:$0xff]
    %v1943 = vld [vmem:[#allocation5 + $0x1b58] sm:$0xff]
    %v1944 = vld [vmem:[#allocation5 + $0x1b60] sm:$0xff]
    %v1945 = vld [vmem:[#allocation5 + $0x1b68] sm:$0xff]
    %v1946 = vld [vmem:[#allocation5 + $0x1b70] sm:$0xff]
    %v1947 = vld [vmem:[#allocation5 + $0x1b78] sm:$0xff]
    %v1948 = vld [vmem:[#allocation5 + $0x1b80] sm:$0xff]
    %v1949 = vld [vmem:[#allocation5 + $0x1b88] sm:$0xff]
    %v1950 = vld [vmem:[#allocation5 + $0x1b90] sm:$0xff]
    %v1951 = vld [vmem:[#allocation5 + $0x1b98] sm:$0xff]
    %v1952 = vld [vmem:[#allocation5 + $0x1ba0] sm:$0xff]
    %v1953 = vld [vmem:[#allocation5 + $0x1ba8] sm:$0xff]
    %v1954 = vld [vmem:[#allocation5 + $0x1bb0] sm:$0xff]
    %v1955 = vld [vmem:[#allocation5 + $0x1bb8] sm:$0xff]
    %v1956 = vld [vmem:[#allocation5 + $0x1bc0] sm:$0xff]
    %v1957 = vld [vmem:[#allocation5 + $0x1bc8] sm:$0xff]
    %v1958 = vld [vmem:[#allocation5 + $0x1bd0] sm:$0xff]
    %v1959 = vld [vmem:[#allocation5 + $0x1bd8] sm:$0xff]
    %v1960 = vld [vmem:[#allocation5 + $0x1be0] sm:$0xff]
    %v1961 = vld [vmem:[#allocation5 + $0x1be8] sm:$0xff]
    %v1962 = vld [vmem:[#allocation5 + $0x1bf0] sm:$0xff]
    %v1963 = vld [vmem:[#allocation5 + $0x1bf8] sm:$0xff]
    %v1964 = vld [vmem:[#allocation5 + $0x1c00] sm:$0xff]
    %v1965 = vld [vmem:[#allocation5 + $0x1c08] sm:$0xff]
    %v1966 = vld [vmem:[#allocation5 + $0x1c10] sm:$0xff]
    %v1967 = vld [vmem:[#allocation5 + $0x1c18] sm:$0xff]
    %v1968 = vld [vmem:[#allocation5 + $0x1c20] sm:$0xff]
    %v1969 = vld [vmem:[#allocation5 + $0x1c28] sm:$0xff]
    %v1970 = vld [vmem:[#allocation5 + $0x1c30] sm:$0xff]
    %v1971 = vld [vmem:[#allocation5 + $0x1c38] sm:$0xff]
    %v1972 = vld [vmem:[#allocation5 + $0x1c40] sm:$0xff]
    %v1973 = vld [vmem:[#allocation5 + $0x1c48] sm:$0xff]
    %v1974 = vld [vmem:[#allocation5 + $0x1c50] sm:$0xff]
    %v1975 = vld [vmem:[#allocation5 + $0x1c58] sm:$0xff]
    %v1976 = vld [vmem:[#allocation5 + $0x1c60] sm:$0xff]
    %v1977 = vld [vmem:[#allocation5 + $0x1c68] sm:$0xff]
    %v1978 = vld [vmem:[#allocation5 + $0x1c70] sm:$0xff]
    %v1979 = vld [vmem:[#allocation5 + $0x1c78] sm:$0xff]
    %v1980 = vld [vmem:[#allocation5 + $0x1c80] sm:$0xff]
    %v1981 = vld [vmem:[#allocation5 + $0x1c88] sm:$0xff]
    %v1982 = vld [vmem:[#allocation5 + $0x1c90] sm:$0xff]
    %v1983 = vld [vmem:[#allocation5 + $0x1c98] sm:$0xff]
    %v1984 = vld [vmem:[#allocation5 + $0x1ca0] sm:$0xff]
    %v1985 = vld [vmem:[#allocation5 + $0x1ca8] sm:$0xff]
    %v1986 = vld [vmem:[#allocation5 + $0x1cb0] sm:$0xff]
    %v1987 = vld [vmem:[#allocation5 + $0x1cb8] sm:$0xff]
    %v1988 = vld [vmem:[#allocation5 + $0x1cc0] sm:$0xff]
    %v1989 = vld [vmem:[#allocation5 + $0x1cc8] sm:$0xff]
    %v1990 = vld [vmem:[#allocation5 + $0x1cd0] sm:$0xff]
    %v1991 = vld [vmem:[#allocation5 + $0x1cd8] sm:$0xff]
    %v1992 = vld [vmem:[#allocation5 + $0x1ce0] sm:$0xff]
    %v1993 = vld [vmem:[#allocation5 + $0x1ce8] sm:$0xff]
    %v1994 = vld [vmem:[#allocation5 + $0x1cf0] sm:$0xff]
    %v1995 = vld [vmem:[#allocation5 + $0x1cf8] sm:$0xff]
    %v1996 = vld [vmem:[#allocation5 + $0x1d00] sm:$0xff]
    %v1997 = vld [vmem:[#allocation5 + $0x1d08] sm:$0xff]
    %v1998 = vld [vmem:[#allocation5 + $0x1d10] sm:$0xff]
    %v1999 = vld [vmem:[#allocation5 + $0x1d18] sm:$0xff]
    %v2000 = vld [vmem:[#allocation5 + $0x1d20] sm:$0xff]
    %v2001 = vld [vmem:[#allocation5 + $0x1d28] sm:$0xff]
    %v2002 = vld [vmem:[#allocation5 + $0x1d30] sm:$0xff]
    %v2003 = vld [vmem:[#allocation5 + $0x1d38] sm:$0xff]
    %v2004 = vld [vmem:[#allocation5 + $0x1d40] sm:$0xff]
    %v2005 = vld [vmem:[#allocation5 + $0x1d48] sm:$0xff]
    %v2006 = vld [vmem:[#allocation5 + $0x1d50] sm:$0xff]
    %v2007 = vld [vmem:[#allocation5 + $0x1d58] sm:$0xff]
    %v2008 = vld [vmem:[#allocation5 + $0x1d60] sm:$0xff]
    %v2009 = vld [vmem:[#allocation5 + $0x1d68] sm:$0xff]
    %v2010 = vld [vmem:[#allocation5 + $0x1d70] sm:$0xff]
    %v2011 = vld [vmem:[#allocation5 + $0x1d78] sm:$0xff]
    %v2012 = vld [vmem:[#allocation5 + $0x1d80] sm:$0xff]
    %v2013 = vld [vmem:[#allocation5 + $0x1d88] sm:$0xff]
    %v2014 = vld [vmem:[#allocation5 + $0x1d90] sm:$0xff]
    %v2015 = vld [vmem:[#allocation5 + $0x1d98] sm:$0xff]
    %v2016 = vld [vmem:[#allocation5 + $0x1da0] sm:$0xff]
    %v2017 = vld [vmem:[#allocation5 + $0x1da8] sm:$0xff]
    %v2018 = vld [vmem:[#allocation5 + $0x1db0] sm:$0xff]
    %v2019 = vld [vmem:[#allocation5 + $0x1db8] sm:$0xff]
    %v2020 = vld [vmem:[#allocation5 + $0x1dc0] sm:$0xff]
    %v2021 = vld [vmem:[#allocation5 + $0x1dc8] sm:$0xff]
    %v2022 = vld [vmem:[#allocation5 + $0x1dd0] sm:$0xff]
    %v2023 = vld [vmem:[#allocation5 + $0x1dd8] sm:$0xff]
    %v2024 = vld [vmem:[#allocation5 + $0x1de0] sm:$0xff]
    %v2025 = vld [vmem:[#allocation5 + $0x1de8] sm:$0xff]
    %v2026 = vld [vmem:[#allocation5 + $0x1df0] sm:$0xff]
    %v2027 = vld [vmem:[#allocation5 + $0x1df8] sm:$0xff]
    %v2028 = vld [vmem:[#allocation5 + $0x1e00] sm:$0xff]
    %v2029 = vld [vmem:[#allocation5 + $0x1e08] sm:$0xff]
    %v2030 = vld [vmem:[#allocation5 + $0x1e10] sm:$0xff]
    %v2031 = vld [vmem:[#allocation5 + $0x1e18] sm:$0xff]
    %v2032 = vld [vmem:[#allocation5 + $0x1e20] sm:$0xff]
    %v2033 = vld [vmem:[#allocation5 + $0x1e28] sm:$0xff]
    %v2034 = vld [vmem:[#allocation5 + $0x1e30] sm:$0xff]
    %v2035 = vld [vmem:[#allocation5 + $0x1e38] sm:$0xff]
    %v2036 = vld [vmem:[#allocation5 + $0x1e40] sm:$0xff]
    %v2037 = vld [vmem:[#allocation5 + $0x1e48] sm:$0xff]
    %v2038 = vld [vmem:[#allocation5 + $0x1e50] sm:$0xff]
    %v2039 = vld [vmem:[#allocation5 + $0x1e58] sm:$0xff]
    %v2040 = vld [vmem:[#allocation5 + $0x1e60] sm:$0xff]
    %v2041 = vld [vmem:[#allocation5 + $0x1e68] sm:$0xff]
    %v2042 = vld [vmem:[#allocation5 + $0x1e70] sm:$0xff]
    %v2043 = vld [vmem:[#allocation5 + $0x1e78] sm:$0xff]
    %v2044 = vld [vmem:[#allocation5 + $0x1e80] sm:$0xff]
    %v2045 = vld [vmem:[#allocation5 + $0x1e88] sm:$0xff]
    %v2046 = vld [vmem:[#allocation5 + $0x1e90] sm:$0xff]
    %v2047 = vld [vmem:[#allocation5 + $0x1e98] sm:$0xff]
    %v2048 = vld [vmem:[#allocation5 + $0x1ea0] sm:$0xff]
    %v2049 = vld [vmem:[#allocation5 + $0x1ea8] sm:$0xff]
    %v2050 = vld [vmem:[#allocation5 + $0x1eb0] sm:$0xff]
    %v2051 = vld [vmem:[#allocation5 + $0x1eb8] sm:$0xff]
    %v2052 = vld [vmem:[#allocation5 + $0x1ec0] sm:$0xff]
    %v2053 = vld [vmem:[#allocation5 + $0x1ec8] sm:$0xff]
    %v2054 = vld [vmem:[#allocation5 + $0x1ed0] sm:$0xff]
    %v2055 = vld [vmem:[#allocation5 + $0x1ed8] sm:$0xff]
    %v2056 = vld [vmem:[#allocation5 + $0x1ee0] sm:$0xff]
    %v2057 = vld [vmem:[#allocation5 + $0x1ee8] sm:$0xff]
    %v2058 = vld [vmem:[#allocation5 + $0x1ef0] sm:$0xff]
    %v2059 = vld [vmem:[#allocation5 + $0x1ef8] sm:$0xff]
    %v2060 = vld [vmem:[#allocation5 + $0x1f00] sm:$0xff]
    %v2061 = vld [vmem:[#allocation5 + $0x1f08] sm:$0xff]
    %v2062 = vld [vmem:[#allocation5 + $0x1f10] sm:$0xff]
    %v2063 = vld [vmem:[#allocation5 + $0x1f18] sm:$0xff]
    %v2064 = vld [vmem:[#allocation5 + $0x1f20] sm:$0xff]
    %v2065 = vld [vmem:[#allocation5 + $0x1f28] sm:$0xff]
    %v2066 = vld [vmem:[#allocation5 + $0x1f30] sm:$0xff]
    %v2067 = vld [vmem:[#allocation5 + $0x1f38] sm:$0xff]
    %v2068 = vld [vmem:[#allocation5 + $0x1f40] sm:$0xff]
    %v2069 = vld [vmem:[#allocation5 + $0x1f48] sm:$0xff]
    %v2070 = vld [vmem:[#allocation5 + $0x1f50] sm:$0xff]
    %v2071 = vld [vmem:[#allocation5 + $0x1f58] sm:$0xff]
    %v2072 = vld [vmem:[#allocation5 + $0x1f60] sm:$0xff]
    %v2073 = vld [vmem:[#allocation5 + $0x1f68] sm:$0xff]
    %v2074 = vld [vmem:[#allocation5 + $0x1f70] sm:$0xff]
    %v2075 = vld [vmem:[#allocation5 + $0x1f78] sm:$0xff]
    %v2076 = vld [vmem:[#allocation5 + $0x1f80] sm:$0xff]
    %v2077 = vld [vmem:[#allocation5 + $0x1f88] sm:$0xff]
    %v2078 = vld [vmem:[#allocation5 + $0x1f90] sm:$0xff]
    %v2079 = vld [vmem:[#allocation5 + $0x1f98] sm:$0xff]
    %v2080 = vld [vmem:[#allocation5 + $0x1fa0] sm:$0xff]
    %v2081 = vld [vmem:[#allocation5 + $0x1fa8] sm:$0xff]
    %v2082 = vld [vmem:[#allocation5 + $0x1fb0] sm:$0xff]
    %v2083 = vld [vmem:[#allocation5 + $0x1fb8] sm:$0xff]
    %v2084 = vld [vmem:[#allocation5 + $0x1fc0] sm:$0xff]
    %v2085 = vld [vmem:[#allocation5 + $0x1fc8] sm:$0xff]
    %v2086 = vld [vmem:[#allocation5 + $0x1fd0] sm:$0xff]
    %v2087 = vld [vmem:[#allocation5 + $0x1fd8] sm:$0xff]
    %v2088 = vld [vmem:[#allocation5 + $0x1fe0] sm:$0xff]
    %v2089 = vld [vmem:[#allocation5 + $0x1fe8] sm:$0xff]
    %v2090 = vld [vmem:[#allocation5 + $0x1ff0] sm:$0xff]
    %v2091 = vld [vmem:[#allocation5 + $0x1ff8] sm:$0xff]
    %v2092 = vadd.f32 %v44, %v1068
    %v2093 = vadd.f32 %v45, %v1069
    %v2094 = vadd.f32 %v46, %v1070
    %v2095 = vadd.f32 %v47, %v1071
    %v2096 = vadd.f32 %v48, %v1072
    %v2097 = vadd.f32 %v49, %v1073
    %v2098 = vadd.f32 %v50, %v1074
    %v2099 = vadd.f32 %v51, %v1075
    %v2100 = vadd.f32 %v52, %v1076
    %v2101 = vadd.f32 %v53, %v1077
    %v2102 = vadd.f32 %v54, %v1078
    %v2103 = vadd.f32 %v55, %v1079
    %v2104 = vadd.f32 %v56, %v1080
    %v2105 = vadd.f32 %v57, %v1081
    %v2106 = vadd.f32 %v58, %v1082
    %v2107 = vadd.f32 %v59, %v1083
    %v2108 = vadd.f32 %v60, %v1084
    %v2109 = vadd.f32 %v61, %v1085
    %v2110 = vadd.f32 %v62, %v1086
    %v2111 = vadd.f32 %v63, %v1087
    %v2112 = vadd.f32 %v64, %v1088
    %v2113 = vadd.f32 %v65, %v1089
    %v2114 = vadd.f32 %v66, %v1090
    %v2115 = vadd.f32 %v67, %v1091
    %v2116 = vadd.f32 %v68, %v1092
    %v2117 = vadd.f32 %v69, %v1093
    %v2118 = vadd.f32 %v70, %v1094
    %v2119 = vadd.f32 %v71, %v1095
    %v2120 = vadd.f32 %v72, %v1096
    %v2121 = vadd.f32 %v73, %v1097
    %v2122 = vadd.f32 %v74, %v1098
    %v2123 = vadd.f32 %v75, %v1099
    %v2124 = vadd.f32 %v76, %v1100
    %v2125 = vadd.f32 %v77, %v1101
    %v2126 = vadd.f32 %v78, %v1102
    %v2127 = vadd.f32 %v79, %v1103
    %v2128 = vadd.f32 %v80, %v1104
    %v2129 = vadd.f32 %v81, %v1105
    %v2130 = vadd.f32 %v82, %v1106
    %v2131 = vadd.f32 %v83, %v1107
    %v2132 = vadd.f32 %v84, %v1108
    %v2133 = vadd.f32 %v85, %v1109
    %v2134 = vadd.f32 %v86, %v1110
    %v2135 = vadd.f32 %v87, %v1111
    %v2136 = vadd.f32 %v88, %v1112
    %v2137 = vadd.f32 %v89, %v1113
    %v2138 = vadd.f32 %v90, %v1114
    %v2139 = vadd.f32 %v91, %v1115
    %v2140 = vadd.f32 %v92, %v1116
    %v2141 = vadd.f32 %v93, %v1117
    %v2142 = vadd.f32 %v94, %v1118
    %v2143 = vadd.f32 %v95, %v1119
    %v2144 = vadd.f32 %v96, %v1120
    %v2145 = vadd.f32 %v97, %v1121
    %v2146 = vadd.f32 %v98, %v1122
    %v2147 = vadd.f32 %v99, %v1123
    %v2148 = vadd.f32 %v100, %v1124
    %v2149 = vadd.f32 %v101, %v1125
    %v2150 = vadd.f32 %v102, %v1126
    %v2151 = vadd.f32 %v103, %v1127
    %v2152 = vadd.f32 %v104, %v1128
    %v2153 = vadd.f32 %v105, %v1129
    %v2154 = vadd.f32 %v106, %v1130
    %v2155 = vadd.f32 %v107, %v1131
    %v2156 = vadd.f32 %v108, %v1132
    %v2157 = vadd.f32 %v109, %v1133
    %v2158 = vadd.f32 %v110, %v1134
    %v2159 = vadd.f32 %v111, %v1135
    %v2160 = vadd.f32 %v112, %v1136
    %v2161 = vadd.f32 %v113, %v1137
    %v2162 = vadd.f32 %v114, %v1138
    %v2163 = vadd.f32 %v115, %v1139
    %v2164 = vadd.f32 %v116, %v1140
    %v2165 = vadd.f32 %v117, %v1141
    %v2166 = vadd.f32 %v118, %v1142
    %v2167 = vadd.f32 %v119, %v1143
    %v2168 = vadd.f32 %v120, %v1144
    %v2169 = vadd.f32 %v121, %v1145
    %v2170 = vadd.f32 %v122, %v1146
    %v2171 = vadd.f32 %v123, %v1147
    %v2172 = vadd.f32 %v124, %v1148
    %v2173 = vadd.f32 %v125, %v1149
    %v2174 = vadd.f32 %v126, %v1150
    %v2175 = vadd.f32 %v127, %v1151
    %v2176 = vadd.f32 %v128, %v1152
    %v2177 = vadd.f32 %v129, %v1153
    %v2178 = vadd.f32 %v130, %v1154
    %v2179 = vadd.f32 %v131, %v1155
    %v2180 = vadd.f32 %v132, %v1156
    %v2181 = vadd.f32 %v133, %v1157
    %v2182 = vadd.f32 %v134, %v1158
    %v2183 = vadd.f32 %v135, %v1159
    %v2184 = vadd.f32 %v136, %v1160
    %v2185 = vadd.f32 %v137, %v1161
    %v2186 = vadd.f32 %v138, %v1162
    %v2187 = vadd.f32 %v139, %v1163
    %v2188 = vadd.f32 %v140, %v1164
    %v2189 = vadd.f32 %v141, %v1165
    %v2190 = vadd.f32 %v142, %v1166
    %v2191 = vadd.f32 %v143, %v1167
    %v2192 = vadd.f32 %v144, %v1168
    %v2193 = vadd.f32 %v145, %v1169
    %v2194 = vadd.f32 %v146, %v1170
    %v2195 = vadd.f32 %v147, %v1171
    %v2196 = vadd.f32 %v148, %v1172
    %v2197 = vadd.f32 %v149, %v1173
    %v2198 = vadd.f32 %v150, %v1174
    %v2199 = vadd.f32 %v151, %v1175
    %v2200 = vadd.f32 %v152, %v1176
    %v2201 = vadd.f32 %v153, %v1177
    %v2202 = vadd.f32 %v154, %v1178
    %v2203 = vadd.f32 %v155, %v1179
    %v2204 = vadd.f32 %v156, %v1180
    %v2205 = vadd.f32 %v157, %v1181
    %v2206 = vadd.f32 %v158, %v1182
    %v2207 = vadd.f32 %v159, %v1183
    %v2208 = vadd.f32 %v160, %v1184
    %v2209 = vadd.f32 %v161, %v1185
    %v2210 = vadd.f32 %v162, %v1186
    %v2211 = vadd.f32 %v163, %v1187
    %v2212 = vadd.f32 %v164, %v1188
    %v2213 = vadd.f32 %v165, %v1189
    %v2214 = vadd.f32 %v166, %v1190
    %v2215 = vadd.f32 %v167, %v1191
    %v2216 = vadd.f32 %v168, %v1192
    %v2217 = vadd.f32 %v169, %v1193
    %v2218 = vadd.f32 %v170, %v1194
    %v2219 = vadd.f32 %v171, %v1195
    %v2220 = vadd.f32 %v172, %v1196
    %v2221 = vadd.f32 %v173, %v1197
    %v2222 = vadd.f32 %v174, %v1198
    %v2223 = vadd.f32 %v175, %v1199
    %v2224 = vadd.f32 %v176, %v1200
    %v2225 = vadd.f32 %v177, %v1201
    %v2226 = vadd.f32 %v178, %v1202
    %v2227 = vadd.f32 %v179, %v1203
    %v2228 = vadd.f32 %v180, %v1204
    %v2229 = vadd.f32 %v181, %v1205
    %v2230 = vadd.f32 %v182, %v1206
    %v2231 = vadd.f32 %v183, %v1207
    %v2232 = vadd.f32 %v184, %v1208
    %v2233 = vadd.f32 %v185, %v1209
    %v2234 = vadd.f32 %v186, %v1210
    %v2235 = vadd.f32 %v187, %v1211
    %v2236 = vadd.f32 %v188, %v1212
    %v2237 = vadd.f32 %v189, %v1213
    %v2238 = vadd.f32 %v190, %v1214
    %v2239 = vadd.f32 %v191, %v1215
    %v2240 = vadd.f32 %v192, %v1216
    %v2241 = vadd.f32 %v193, %v1217
    %v2242 = vadd.f32 %v194, %v1218
    %v2243 = vadd.f32 %v195, %v1219
    %v2244 = vadd.f32 %v196, %v1220
    %v2245 = vadd.f32 %v197, %v1221
    %v2246 = vadd.f32 %v198, %v1222
    %v2247 = vadd.f32 %v199, %v1223
    %v2248 = vadd.f32 %v200, %v1224
    %v2249 = vadd.f32 %v201, %v1225
    %v2250 = vadd.f32 %v202, %v1226
    %v2251 = vadd.f32 %v203, %v1227
    %v2252 = vadd.f32 %v204, %v1228
    %v2253 = vadd.f32 %v205, %v1229
    %v2254 = vadd.f32 %v206, %v1230
    %v2255 = vadd.f32 %v207, %v1231
    %v2256 = vadd.f32 %v208, %v1232
    %v2257 = vadd.f32 %v209, %v1233
    %v2258 = vadd.f32 %v210, %v1234
    %v2259 = vadd.f32 %v211, %v1235
    %v2260 = vadd.f32 %v212, %v1236
    %v2261 = vadd.f32 %v213, %v1237
    %v2262 = vadd.f32 %v214, %v1238
    %v2263 = vadd.f32 %v215, %v1239
    %v2264 = vadd.f32 %v216, %v1240
    %v2265 = vadd.f32 %v217, %v1241
    %v2266 = vadd.f32 %v218, %v1242
    %v2267 = vadd.f32 %v219, %v1243
    %v2268 = vadd.f32 %v220, %v1244
    %v2269 = vadd.f32 %v221, %v1245
    %v2270 = vadd.f32 %v222, %v1246
    %v2271 = vadd.f32 %v223, %v1247
    %v2272 = vadd.f32 %v224, %v1248
    %v2273 = vadd.f32 %v225, %v1249
    %v2274 = vadd.f32 %v226, %v1250
    %v2275 = vadd.f32 %v227, %v1251
    %v2276 = vadd.f32 %v228, %v1252
    %v2277 = vadd.f32 %v229, %v1253
    %v2278 = vadd.f32 %v230, %v1254
    %v2279 = vadd.f32 %v231, %v1255
    %v2280 = vadd.f32 %v232, %v1256
    %v2281 = vadd.f32 %v233, %v1257
    %v2282 = vadd.f32 %v234, %v1258
    %v2283 = vadd.f32 %v235, %v1259
    %v2284 = vadd.f32 %v236, %v1260
    %v2285 = vadd.f32 %v237, %v1261
    %v2286 = vadd.f32 %v238, %v1262
    %v2287 = vadd.f32 %v239, %v1263
    %v2288 = vadd.f32 %v240, %v1264
    %v2289 = vadd.f32 %v241, %v1265
    %v2290 = vadd.f32 %v242, %v1266
    %v2291 = vadd.f32 %v243, %v1267
    %v2292 = vadd.f32 %v244, %v1268
    %v2293 = vadd.f32 %v245, %v1269
    %v2294 = vadd.f32 %v246, %v1270
    %v2295 = vadd.f32 %v247, %v1271
    %v2296 = vadd.f32 %v248, %v1272
    %v2297 = vadd.f32 %v249, %v1273
    %v2298 = vadd.f32 %v250, %v1274
    %v2299 = vadd.f32 %v251, %v1275
    %v2300 = vadd.f32 %v252, %v1276
    %v2301 = vadd.f32 %v253, %v1277
    %v2302 = vadd.f32 %v254, %v1278
    %v2303 = vadd.f32 %v255, %v1279
    %v2304 = vadd.f32 %v256, %v1280
    %v2305 = vadd.f32 %v257, %v1281
    %v2306 = vadd.f32 %v258, %v1282
    %v2307 = vadd.f32 %v259, %v1283
    %v2308 = vadd.f32 %v260, %v1284
    %v2309 = vadd.f32 %v261, %v1285
    %v2310 = vadd.f32 %v262, %v1286
    %v2311 = vadd.f32 %v263, %v1287
    %v2312 = vadd.f32 %v264, %v1288
    %v2313 = vadd.f32 %v265, %v1289
    %v2314 = vadd.f32 %v266, %v1290
    %v2315 = vadd.f32 %v267, %v1291
    %v2316 = vadd.f32 %v268, %v1292
    %v2317 = vadd.f32 %v269, %v1293
    %v2318 = vadd.f32 %v270, %v1294
    %v2319 = vadd.f32 %v271, %v1295
    %v2320 = vadd.f32 %v272, %v1296
    %v2321 = vadd.f32 %v273, %v1297
    %v2322 = vadd.f32 %v274, %v1298
    %v2323 = vadd.f32 %v275, %v1299
    %v2324 = vadd.f32 %v276, %v1300
    %v2325 = vadd.f32 %v277, %v1301
    %v2326 = vadd.f32 %v278, %v1302
    %v2327 = vadd.f32 %v279, %v1303
    %v2328 = vadd.f32 %v280, %v1304
    %v2329 = vadd.f32 %v281, %v1305
    %v2330 = vadd.f32 %v282, %v1306
    %v2331 = vadd.f32 %v283, %v1307
    %v2332 = vadd.f32 %v284, %v1308
    %v2333 = vadd.f32 %v285, %v1309
    %v2334 = vadd.f32 %v286, %v1310
    %v2335 = vadd.f32 %v287, %v1311
    %v2336 = vadd.f32 %v288, %v1312
    %v2337 = vadd.f32 %v289, %v1313
    %v2338 = vadd.f32 %v290, %v1314
    %v2339 = vadd.f32 %v291, %v1315
    %v2340 = vadd.f32 %v292, %v1316
    %v2341 = vadd.f32 %v293, %v1317
    %v2342 = vadd.f32 %v294, %v1318
    %v2343 = vadd.f32 %v295, %v1319
    %v2344 = vadd.f32 %v296, %v1320
    %v2345 = vadd.f32 %v297, %v1321
    %v2346 = vadd.f32 %v298, %v1322
    %v2347 = vadd.f32 %v299, %v1323
    %v2348 = vadd.f32 %v300, %v1324
    %v2349 = vadd.f32 %v301, %v1325
    %v2350 = vadd.f32 %v302, %v1326
    %v2351 = vadd.f32 %v303, %v1327
    %v2352 = vadd.f32 %v304, %v1328
    %v2353 = vadd.f32 %v305, %v1329
    %v2354 = vadd.f32 %v306, %v1330
    %v2355 = vadd.f32 %v307, %v1331
    %v2356 = vadd.f32 %v308, %v1332
    %v2357 = vadd.f32 %v309, %v1333
    %v2358 = vadd.f32 %v310, %v1334
    %v2359 = vadd.f32 %v311, %v1335
    %v2360 = vadd.f32 %v312, %v1336
    %v2361 = vadd.f32 %v313, %v1337
    %v2362 = vadd.f32 %v314, %v1338
    %v2363 = vadd.f32 %v315, %v1339
    %v2364 = vadd.f32 %v316, %v1340
    %v2365 = vadd.f32 %v317, %v1341
    %v2366 = vadd.f32 %v318, %v1342
    %v2367 = vadd.f32 %v319, %v1343
    %v2368 = vadd.f32 %v320, %v1344
    %v2369 = vadd.f32 %v321, %v1345
    %v2370 = vadd.f32 %v322, %v1346
    %v2371 = vadd.f32 %v323, %v1347
    %v2372 = vadd.f32 %v324, %v1348
    %v2373 = vadd.f32 %v325, %v1349
    %v2374 = vadd.f32 %v326, %v1350
    %v2375 = vadd.f32 %v327, %v1351
    %v2376 = vadd.f32 %v328, %v1352
    %v2377 = vadd.f32 %v329, %v1353
    %v2378 = vadd.f32 %v330, %v1354
    %v2379 = vadd.f32 %v331, %v1355
    %v2380 = vadd.f32 %v332, %v1356
    %v2381 = vadd.f32 %v333, %v1357
    %v2382 = vadd.f32 %v334, %v1358
    %v2383 = vadd.f32 %v335, %v1359
    %v2384 = vadd.f32 %v336, %v1360
    %v2385 = vadd.f32 %v337, %v1361
    %v2386 = vadd.f32 %v338, %v1362
    %v2387 = vadd.f32 %v339, %v1363
    %v2388 = vadd.f32 %v340, %v1364
    %v2389 = vadd.f32 %v341, %v1365
    %v2390 = vadd.f32 %v342, %v1366
    %v2391 = vadd.f32 %v343, %v1367
    %v2392 = vadd.f32 %v344, %v1368
    %v2393 = vadd.f32 %v345, %v1369
    %v2394 = vadd.f32 %v346, %v1370
    %v2395 = vadd.f32 %v347, %v1371
    %v2396 = vadd.f32 %v348, %v1372
    %v2397 = vadd.f32 %v349, %v1373
    %v2398 = vadd.f32 %v350, %v1374
    %v2399 = vadd.f32 %v351, %v1375
    %v2400 = vadd.f32 %v352, %v1376
    %v2401 = vadd.f32 %v353, %v1377
    %v2402 = vadd.f32 %v354, %v1378
    %v2403 = vadd.f32 %v355, %v1379
    %v2404 = vadd.f32 %v356, %v1380
    %v2405 = vadd.f32 %v357, %v1381
    %v2406 = vadd.f32 %v358, %v1382
    %v2407 = vadd.f32 %v359, %v1383
    %v2408 = vadd.f32 %v360, %v1384
    %v2409 = vadd.f32 %v361, %v1385
    %v2410 = vadd.f32 %v362, %v1386
    %v2411 = vadd.f32 %v363, %v1387
    %v2412 = vadd.f32 %v364, %v1388
    %v2413 = vadd.f32 %v365, %v1389
    %v2414 = vadd.f32 %v366, %v1390
    %v2415 = vadd.f32 %v367, %v1391
    %v2416 = vadd.f32 %v368, %v1392
    %v2417 = vadd.f32 %v369, %v1393
    %v2418 = vadd.f32 %v370, %v1394
    %v2419 = vadd.f32 %v371, %v1395
    %v2420 = vadd.f32 %v372, %v1396
    %v2421 = vadd.f32 %v373, %v1397
    %v2422 = vadd.f32 %v374, %v1398
    %v2423 = vadd.f32 %v375, %v1399
    %v2424 = vadd.f32 %v376, %v1400
    %v2425 = vadd.f32 %v377, %v1401
    %v2426 = vadd.f32 %v378, %v1402
    %v2427 = vadd.f32 %v379, %v1403
    %v2428 = vadd.f32 %v380, %v1404
    %v2429 = vadd.f32 %v381, %v1405
    %v2430 = vadd.f32 %v382, %v1406
    %v2431 = vadd.f32 %v383, %v1407
    %v2432 = vadd.f32 %v384, %v1408
    %v2433 = vadd.f32 %v385, %v1409
    %v2434 = vadd.f32 %v386, %v1410
    %v2435 = vadd.f32 %v387, %v1411
    %v2436 = vadd.f32 %v388, %v1412
    %v2437 = vadd.f32 %v389, %v1413
    %v2438 = vadd.f32 %v390, %v1414
    %v2439 = vadd.f32 %v391, %v1415
    %v2440 = vadd.f32 %v392, %v1416
    %v2441 = vadd.f32 %v393, %v1417
    %v2442 = vadd.f32 %v394, %v1418
    %v2443 = vadd.f32 %v395, %v1419
    %v2444 = vadd.f32 %v396, %v1420
    %v2445 = vadd.f32 %v397, %v1421
    %v2446 = vadd.f32 %v398, %v1422
    %v2447 = vadd.f32 %v399, %v1423
    %v2448 = vadd.f32 %v400, %v1424
    %v2449 = vadd.f32 %v401, %v1425
    %v2450 = vadd.f32 %v402, %v1426
    %v2451 = vadd.f32 %v403, %v1427
    %v2452 = vadd.f32 %v404, %v1428
    %v2453 = vadd.f32 %v405, %v1429
    %v2454 = vadd.f32 %v406, %v1430
    %v2455 = vadd.f32 %v407, %v1431
    %v2456 = vadd.f32 %v408, %v1432
    %v2457 = vadd.f32 %v409, %v1433
    %v2458 = vadd.f32 %v410, %v1434
    %v2459 = vadd.f32 %v411, %v1435
    %v2460 = vadd.f32 %v412, %v1436
    %v2461 = vadd.f32 %v413, %v1437
    %v2462 = vadd.f32 %v414, %v1438
    %v2463 = vadd.f32 %v415, %v1439
    %v2464 = vadd.f32 %v416, %v1440
    %v2465 = vadd.f32 %v417, %v1441
    %v2466 = vadd.f32 %v418, %v1442
    %v2467 = vadd.f32 %v419, %v1443
    %v2468 = vadd.f32 %v420, %v1444
    %v2469 = vadd.f32 %v421, %v1445
    %v2470 = vadd.f32 %v422, %v1446
    %v2471 = vadd.f32 %v423, %v1447
    %v2472 = vadd.f32 %v424, %v1448
    %v2473 = vadd.f32 %v425, %v1449
    %v2474 = vadd.f32 %v426, %v1450
    %v2475 = vadd.f32 %v427, %v1451
    %v2476 = vadd.f32 %v428, %v1452
    %v2477 = vadd.f32 %v429, %v1453
    %v2478 = vadd.f32 %v430, %v1454
    %v2479 = vadd.f32 %v431, %v1455
    %v2480 = vadd.f32 %v432, %v1456
    %v2481 = vadd.f32 %v433, %v1457
    %v2482 = vadd.f32 %v434, %v1458
    %v2483 = vadd.f32 %v435, %v1459
    %v2484 = vadd.f32 %v436, %v1460
    %v2485 = vadd.f32 %v437, %v1461
    %v2486 = vadd.f32 %v438, %v1462
    %v2487 = vadd.f32 %v439, %v1463
    %v2488 = vadd.f32 %v440, %v1464
    %v2489 = vadd.f32 %v441, %v1465
    %v2490 = vadd.f32 %v442, %v1466
    %v2491 = vadd.f32 %v443, %v1467
    %v2492 = vadd.f32 %v444, %v1468
    %v2493 = vadd.f32 %v445, %v1469
    %v2494 = vadd.f32 %v446, %v1470
    %v2495 = vadd.f32 %v447, %v1471
    %v2496 = vadd.f32 %v448, %v1472
    %v2497 = vadd.f32 %v449, %v1473
    %v2498 = vadd.f32 %v450, %v1474
    %v2499 = vadd.f32 %v451, %v1475
    %v2500 = vadd.f32 %v452, %v1476
    %v2501 = vadd.f32 %v453, %v1477
    %v2502 = vadd.f32 %v454, %v1478
    %v2503 = vadd.f32 %v455, %v1479
    %v2504 = vadd.f32 %v456, %v1480
    %v2505 = vadd.f32 %v457, %v1481
    %v2506 = vadd.f32 %v458, %v1482
    %v2507 = vadd.f32 %v459, %v1483
    %v2508 = vadd.f32 %v460, %v1484
    %v2509 = vadd.f32 %v461, %v1485
    %v2510 = vadd.f32 %v462, %v1486
    %v2511 = vadd.f32 %v463, %v1487
    %v2512 = vadd.f32 %v464, %v1488
    %v2513 = vadd.f32 %v465, %v1489
    %v2514 = vadd.f32 %v466, %v1490
    %v2515 = vadd.f32 %v467, %v1491
    %v2516 = vadd.f32 %v468, %v1492
    %v2517 = vadd.f32 %v469, %v1493
    %v2518 = vadd.f32 %v470, %v1494
    %v2519 = vadd.f32 %v471, %v1495
    %v2520 = vadd.f32 %v472, %v1496
    %v2521 = vadd.f32 %v473, %v1497
    %v2522 = vadd.f32 %v474, %v1498
    %v2523 = vadd.f32 %v475, %v1499
    %v2524 = vadd.f32 %v476, %v1500
    %v2525 = vadd.f32 %v477, %v1501
    %v2526 = vadd.f32 %v478, %v1502
    %v2527 = vadd.f32 %v479, %v1503
    %v2528 = vadd.f32 %v480, %v1504
    %v2529 = vadd.f32 %v481, %v1505
    %v2530 = vadd.f32 %v482, %v1506
    %v2531 = vadd.f32 %v483, %v1507
    %v2532 = vadd.f32 %v484, %v1508
    %v2533 = vadd.f32 %v485, %v1509
    %v2534 = vadd.f32 %v486, %v1510
    %v2535 = vadd.f32 %v487, %v1511
    %v2536 = vadd.f32 %v488, %v1512
    %v2537 = vadd.f32 %v489, %v1513
    %v2538 = vadd.f32 %v490, %v1514
    %v2539 = vadd.f32 %v491, %v1515
    %v2540 = vadd.f32 %v492, %v1516
    %v2541 = vadd.f32 %v493, %v1517
    %v2542 = vadd.f32 %v494, %v1518
    %v2543 = vadd.f32 %v495, %v1519
    %v2544 = vadd.f32 %v496, %v1520
    %v2545 = vadd.f32 %v497, %v1521
    %v2546 = vadd.f32 %v498, %v1522
    %v2547 = vadd.f32 %v499, %v1523
    %v2548 = vadd.f32 %v500, %v1524
    %v2549 = vadd.f32 %v501, %v1525
    %v2550 = vadd.f32 %v502, %v1526
    %v2551 = vadd.f32 %v503, %v1527
    %v2552 = vadd.f32 %v504, %v1528
    %v2553 = vadd.f32 %v505, %v1529
    %v2554 = vadd.f32 %v506, %v1530
    %v2555 = vadd.f32 %v507, %v1531
    %v2556 = vadd.f32 %v508, %v1532
    %v2557 = vadd.f32 %v509, %v1533
    %v2558 = vadd.f32 %v510, %v1534
    %v2559 = vadd.f32 %v511, %v1535
    %v2560 = vadd.f32 %v512, %v1536
    %v2561 = vadd.f32 %v513, %v1537
    %v2562 = vadd.f32 %v514, %v1538
    %v2563 = vadd.f32 %v515, %v1539
    %v2564 = vadd.f32 %v516, %v1540
    %v2565 = vadd.f32 %v517, %v1541
    %v2566 = vadd.f32 %v518, %v1542
    %v2567 = vadd.f32 %v519, %v1543
    %v2568 = vadd.f32 %v520, %v1544
    %v2569 = vadd.f32 %v521, %v1545
    %v2570 = vadd.f32 %v522, %v1546
    %v2571 = vadd.f32 %v523, %v1547
    %v2572 = vadd.f32 %v524, %v1548
    %v2573 = vadd.f32 %v525, %v1549
    %v2574 = vadd.f32 %v526, %v1550
    %v2575 = vadd.f32 %v527, %v1551
    %v2576 = vadd.f32 %v528, %v1552
    %v2577 = vadd.f32 %v529, %v1553
    %v2578 = vadd.f32 %v530, %v1554
    %v2579 = vadd.f32 %v531, %v1555
    %v2580 = vadd.f32 %v532, %v1556
    %v2581 = vadd.f32 %v533, %v1557
    %v2582 = vadd.f32 %v534, %v1558
    %v2583 = vadd.f32 %v535, %v1559
    %v2584 = vadd.f32 %v536, %v1560
    %v2585 = vadd.f32 %v537, %v1561
    %v2586 = vadd.f32 %v538, %v1562
    %v2587 = vadd.f32 %v539, %v1563
    %v2588 = vadd.f32 %v540, %v1564
    %v2589 = vadd.f32 %v541, %v1565
    %v2590 = vadd.f32 %v542, %v1566
    %v2591 = vadd.f32 %v543, %v1567
    %v2592 = vadd.f32 %v544, %v1568
    %v2593 = vadd.f32 %v545, %v1569
    %v2594 = vadd.f32 %v546, %v1570
    %v2595 = vadd.f32 %v547, %v1571
    %v2596 = vadd.f32 %v548, %v1572
    %v2597 = vadd.f32 %v549, %v1573
    %v2598 = vadd.f32 %v550, %v1574
    %v2599 = vadd.f32 %v551, %v1575
    %v2600 = vadd.f32 %v552, %v1576
    %v2601 = vadd.f32 %v553, %v1577
    %v2602 = vadd.f32 %v554, %v1578
    %v2603 = vadd.f32 %v555, %v1579
    %v2604 = vadd.f32 %v556, %v1580
    %v2605 = vadd.f32 %v557, %v1581
    %v2606 = vadd.f32 %v558, %v1582
    %v2607 = vadd.f32 %v559, %v1583
    %v2608 = vadd.f32 %v560, %v1584
    %v2609 = vadd.f32 %v561, %v1585
    %v2610 = vadd.f32 %v562, %v1586
    %v2611 = vadd.f32 %v563, %v1587
    %v2612 = vadd.f32 %v564, %v1588
    %v2613 = vadd.f32 %v565, %v1589
    %v2614 = vadd.f32 %v566, %v1590
    %v2615 = vadd.f32 %v567, %v1591
    %v2616 = vadd.f32 %v568, %v1592
    %v2617 = vadd.f32 %v569, %v1593
    %v2618 = vadd.f32 %v570, %v1594
    %v2619 = vadd.f32 %v571, %v1595
    %v2620 = vadd.f32 %v572, %v1596
    %v2621 = vadd.f32 %v573, %v1597
    %v2622 = vadd.f32 %v574, %v1598
    %v2623 = vadd.f32 %v575, %v1599
    %v2624 = vadd.f32 %v576, %v1600
    %v2625 = vadd.f32 %v577, %v1601
    %v2626 = vadd.f32 %v578, %v1602
    %v2627 = vadd.f32 %v579, %v1603
    %v2628 = vadd.f32 %v580, %v1604
    %v2629 = vadd.f32 %v581, %v1605
    %v2630 = vadd.f32 %v582, %v1606
    %v2631 = vadd.f32 %v583, %v1607
    %v2632 = vadd.f32 %v584, %v1608
    %v2633 = vadd.f32 %v585, %v1609
    %v2634 = vadd.f32 %v586, %v1610
    %v2635 = vadd.f32 %v587, %v1611
    %v2636 = vadd.f32 %v588, %v1612
    %v2637 = vadd.f32 %v589, %v1613
    %v2638 = vadd.f32 %v590, %v1614
    %v2639 = vadd.f32 %v591, %v1615
    %v2640 = vadd.f32 %v592, %v1616
    %v2641 = vadd.f32 %v593, %v1617
    %v2642 = vadd.f32 %v594, %v1618
    %v2643 = vadd.f32 %v595, %v1619
    %v2644 = vadd.f32 %v596, %v1620
    %v2645 = vadd.f32 %v597, %v1621
    %v2646 = vadd.f32 %v598, %v1622
    %v2647 = vadd.f32 %v599, %v1623
    %v2648 = vadd.f32 %v600, %v1624
    %v2649 = vadd.f32 %v601, %v1625
    %v2650 = vadd.f32 %v602, %v1626
    %v2651 = vadd.f32 %v603, %v1627
    %v2652 = vadd.f32 %v604, %v1628
    %v2653 = vadd.f32 %v605, %v1629
    %v2654 = vadd.f32 %v606, %v1630
    %v2655 = vadd.f32 %v607, %v1631
    %v2656 = vadd.f32 %v608, %v1632
    %v2657 = vadd.f32 %v609, %v1633
    %v2658 = vadd.f32 %v610, %v1634
    %v2659 = vadd.f32 %v611, %v1635
    %v2660 = vadd.f32 %v612, %v1636
    %v2661 = vadd.f32 %v613, %v1637
    %v2662 = vadd.f32 %v614, %v1638
    %v2663 = vadd.f32 %v615, %v1639
    %v2664 = vadd.f32 %v616, %v1640
    %v2665 = vadd.f32 %v617, %v1641
    %v2666 = vadd.f32 %v618, %v1642
    %v2667 = vadd.f32 %v619, %v1643
    %v2668 = vadd.f32 %v620, %v1644
    %v2669 = vadd.f32 %v621, %v1645
    %v2670 = vadd.f32 %v622, %v1646
    %v2671 = vadd.f32 %v623, %v1647
    %v2672 = vadd.f32 %v624, %v1648
    %v2673 = vadd.f32 %v625, %v1649
    %v2674 = vadd.f32 %v626, %v1650
    %v2675 = vadd.f32 %v627, %v1651
    %v2676 = vadd.f32 %v628, %v1652
    %v2677 = vadd.f32 %v629, %v1653
    %v2678 = vadd.f32 %v630, %v1654
    %v2679 = vadd.f32 %v631, %v1655
    %v2680 = vadd.f32 %v632, %v1656
    %v2681 = vadd.f32 %v633, %v1657
    %v2682 = vadd.f32 %v634, %v1658
    %v2683 = vadd.f32 %v635, %v1659
    %v2684 = vadd.f32 %v636, %v1660
    %v2685 = vadd.f32 %v637, %v1661
    %v2686 = vadd.f32 %v638, %v1662
    %v2687 = vadd.f32 %v639, %v1663
    %v2688 = vadd.f32 %v640, %v1664
    %v2689 = vadd.f32 %v641, %v1665
    %v2690 = vadd.f32 %v642, %v1666
    %v2691 = vadd.f32 %v643, %v1667
    %v2692 = vadd.f32 %v644, %v1668
    %v2693 = vadd.f32 %v645, %v1669
    %v2694 = vadd.f32 %v646, %v1670
    %v2695 = vadd.f32 %v647, %v1671
    %v2696 = vadd.f32 %v648, %v1672
    %v2697 = vadd.f32 %v649, %v1673
    %v2698 = vadd.f32 %v650, %v1674
    %v2699 = vadd.f32 %v651, %v1675
    %v2700 = vadd.f32 %v652, %v1676
    %v2701 = vadd.f32 %v653, %v1677
    %v2702 = vadd.f32 %v654, %v1678
    %v2703 = vadd.f32 %v655, %v1679
    %v2704 = vadd.f32 %v656, %v1680
    %v2705 = vadd.f32 %v657, %v1681
    %v2706 = vadd.f32 %v658, %v1682
    %v2707 = vadd.f32 %v659, %v1683
    %v2708 = vadd.f32 %v660, %v1684
    %v2709 = vadd.f32 %v661, %v1685
    %v2710 = vadd.f32 %v662, %v1686
    %v2711 = vadd.f32 %v663, %v1687
    %v2712 = vadd.f32 %v664, %v1688
    %v2713 = vadd.f32 %v665, %v1689
    %v2714 = vadd.f32 %v666, %v1690
    %v2715 = vadd.f32 %v667, %v1691
    %v2716 = vadd.f32 %v668, %v1692
    %v2717 = vadd.f32 %v669, %v1693
    %v2718 = vadd.f32 %v670, %v1694
    %v2719 = vadd.f32 %v671, %v1695
    %v2720 = vadd.f32 %v672, %v1696
    %v2721 = vadd.f32 %v673, %v1697
    %v2722 = vadd.f32 %v674, %v1698
    %v2723 = vadd.f32 %v675, %v1699
    %v2724 = vadd.f32 %v676, %v1700
    %v2725 = vadd.f32 %v677, %v1701
    %v2726 = vadd.f32 %v678, %v1702
    %v2727 = vadd.f32 %v679, %v1703
    %v2728 = vadd.f32 %v680, %v1704
    %v2729 = vadd.f32 %v681, %v1705
    %v2730 = vadd.f32 %v682, %v1706
    %v2731 = vadd.f32 %v683, %v1707
    %v2732 = vadd.f32 %v684, %v1708
    %v2733 = vadd.f32 %v685, %v1709
    %v2734 = vadd.f32 %v686, %v1710
    %v2735 = vadd.f32 %v687, %v1711
    %v2736 = vadd.f32 %v688, %v1712
    %v2737 = vadd.f32 %v689, %v1713
    %v2738 = vadd.f32 %v690, %v1714
    %v2739 = vadd.f32 %v691, %v1715
    %v2740 = vadd.f32 %v692, %v1716
    %v2741 = vadd.f32 %v693, %v1717
    %v2742 = vadd.f32 %v694, %v1718
    %v2743 = vadd.f32 %v695, %v1719
    %v2744 = vadd.f32 %v696, %v1720
    %v2745 = vadd.f32 %v697, %v1721
    %v2746 = vadd.f32 %v698, %v1722
    %v2747 = vadd.f32 %v699, %v1723
    %v2748 = vadd.f32 %v700, %v1724
    %v2749 = vadd.f32 %v701, %v1725
    %v2750 = vadd.f32 %v702, %v1726
    %v2751 = vadd.f32 %v703, %v1727
    %v2752 = vadd.f32 %v704, %v1728
    %v2753 = vadd.f32 %v705, %v1729
    %v2754 = vadd.f32 %v706, %v1730
    %v2755 = vadd.f32 %v707, %v1731
    %v2756 = vadd.f32 %v708, %v1732
    %v2757 = vadd.f32 %v709, %v1733
    %v2758 = vadd.f32 %v710, %v1734
    %v2759 = vadd.f32 %v711, %v1735
    %v2760 = vadd.f32 %v712, %v1736
    %v2761 = vadd.f32 %v713, %v1737
    %v2762 = vadd.f32 %v714, %v1738
    %v2763 = vadd.f32 %v715, %v1739
    %v2764 = vadd.f32 %v716, %v1740
    %v2765 = vadd.f32 %v717, %v1741
    %v2766 = vadd.f32 %v718, %v1742
    %v2767 = vadd.f32 %v719, %v1743
    %v2768 = vadd.f32 %v720, %v1744
    %v2769 = vadd.f32 %v721, %v1745
    %v2770 = vadd.f32 %v722, %v1746
    %v2771 = vadd.f32 %v723, %v1747
    %v2772 = vadd.f32 %v724, %v1748
    %v2773 = vadd.f32 %v725, %v1749
    %v2774 = vadd.f32 %v726, %v1750
    %v2775 = vadd.f32 %v727, %v1751
    %v2776 = vadd.f32 %v728, %v1752
    %v2777 = vadd.f32 %v729, %v1753
    %v2778 = vadd.f32 %v730, %v1754
    %v2779 = vadd.f32 %v731, %v1755
    %v2780 = vadd.f32 %v732, %v1756
    %v2781 = vadd.f32 %v733, %v1757
    %v2782 = vadd.f32 %v734, %v1758
    %v2783 = vadd.f32 %v735, %v1759
    %v2784 = vadd.f32 %v736, %v1760
    %v2785 = vadd.f32 %v737, %v1761
    %v2786 = vadd.f32 %v738, %v1762
    %v2787 = vadd.f32 %v739, %v1763
    %v2788 = vadd.f32 %v740, %v1764
    %v2789 = vadd.f32 %v741, %v1765
    %v2790 = vadd.f32 %v742, %v1766
    %v2791 = vadd.f32 %v743, %v1767
    %v2792 = vadd.f32 %v744, %v1768
    %v2793 = vadd.f32 %v745, %v1769
    %v2794 = vadd.f32 %v746, %v1770
    %v2795 = vadd.f32 %v747, %v1771
    %v2796 = vadd.f32 %v748, %v1772
    %v2797 = vadd.f32 %v749, %v1773
    %v2798 = vadd.f32 %v750, %v1774
    %v2799 = vadd.f32 %v751, %v1775
    %v2800 = vadd.f32 %v752, %v1776
    %v2801 = vadd.f32 %v753, %v1777
    %v2802 = vadd.f32 %v754, %v1778
    %v2803 = vadd.f32 %v755, %v1779
    %v2804 = vadd.f32 %v756, %v1780
    %v2805 = vadd.f32 %v757, %v1781
    %v2806 = vadd.f32 %v758, %v1782
    %v2807 = vadd.f32 %v759, %v1783
    %v2808 = vadd.f32 %v760, %v1784
    %v2809 = vadd.f32 %v761, %v1785
    %v2810 = vadd.f32 %v762, %v1786
    %v2811 = vadd.f32 %v763, %v1787
    %v2812 = vadd.f32 %v764, %v1788
    %v2813 = vadd.f32 %v765, %v1789
    %v2814 = vadd.f32 %v766, %v1790
    %v2815 = vadd.f32 %v767, %v1791
    %v2816 = vadd.f32 %v768, %v1792
    %v2817 = vadd.f32 %v769, %v1793
    %v2818 = vadd.f32 %v770, %v1794
    %v2819 = vadd.f32 %v771, %v1795
    %v2820 = vadd.f32 %v772, %v1796
    %v2821 = vadd.f32 %v773, %v1797
    %v2822 = vadd.f32 %v774, %v1798
    %v2823 = vadd.f32 %v775, %v1799
    %v2824 = vadd.f32 %v776, %v1800
    %v2825 = vadd.f32 %v777, %v1801
    %v2826 = vadd.f32 %v778, %v1802
    %v2827 = vadd.f32 %v779, %v1803
    %v2828 = vadd.f32 %v780, %v1804
    %v2829 = vadd.f32 %v781, %v1805
    %v2830 = vadd.f32 %v782, %v1806
    %v2831 = vadd.f32 %v783, %v1807
    %v2832 = vadd.f32 %v784, %v1808
    %v2833 = vadd.f32 %v785, %v1809
    %v2834 = vadd.f32 %v786, %v1810
    %v2835 = vadd.f32 %v787, %v1811
    %v2836 = vadd.f32 %v788, %v1812
    %v2837 = vadd.f32 %v789, %v1813
    %v2838 = vadd.f32 %v790, %v1814
    %v2839 = vadd.f32 %v791, %v1815
    %v2840 = vadd.f32 %v792, %v1816
    %v2841 = vadd.f32 %v793, %v1817
    %v2842 = vadd.f32 %v794, %v1818
    %v2843 = vadd.f32 %v795, %v1819
    %v2844 = vadd.f32 %v796, %v1820
    %v2845 = vadd.f32 %v797, %v1821
    %v2846 = vadd.f32 %v798, %v1822
    %v2847 = vadd.f32 %v799, %v1823
    %v2848 = vadd.f32 %v800, %v1824
    %v2849 = vadd.f32 %v801, %v1825
    %v2850 = vadd.f32 %v802, %v1826
    %v2851 = vadd.f32 %v803, %v1827
    %v2852 = vadd.f32 %v804, %v1828
    %v2853 = vadd.f32 %v805, %v1829
    %v2854 = vadd.f32 %v806, %v1830
    %v2855 = vadd.f32 %v807, %v1831
    %v2856 = vadd.f32 %v808, %v1832
    %v2857 = vadd.f32 %v809, %v1833
    %v2858 = vadd.f32 %v810, %v1834
    %v2859 = vadd.f32 %v811, %v1835
    %v2860 = vadd.f32 %v812, %v1836
    %v2861 = vadd.f32 %v813, %v1837
    %v2862 = vadd.f32 %v814, %v1838
    %v2863 = vadd.f32 %v815, %v1839
    %v2864 = vadd.f32 %v816, %v1840
    %v2865 = vadd.f32 %v817, %v1841
    %v2866 = vadd.f32 %v818, %v1842
    %v2867 = vadd.f32 %v819, %v1843
    %v2868 = vadd.f32 %v820, %v1844
    %v2869 = vadd.f32 %v821, %v1845
    %v2870 = vadd.f32 %v822, %v1846
    %v2871 = vadd.f32 %v823, %v1847
    %v2872 = vadd.f32 %v824, %v1848
    %v2873 = vadd.f32 %v825, %v1849
    %v2874 = vadd.f32 %v826, %v1850
    %v2875 = vadd.f32 %v827, %v1851
    %v2876 = vadd.f32 %v828, %v1852
    %v2877 = vadd.f32 %v829, %v1853
    %v2878 = vadd.f32 %v830, %v1854
    %v2879 = vadd.f32 %v831, %v1855
    %v2880 = vadd.f32 %v832, %v1856
    %v2881 = vadd.f32 %v833, %v1857
    %v2882 = vadd.f32 %v834, %v1858
    %v2883 = vadd.f32 %v835, %v1859
    %v2884 = vadd.f32 %v836, %v1860
    %v2885 = vadd.f32 %v837, %v1861
    %v2886 = vadd.f32 %v838, %v1862
    %v2887 = vadd.f32 %v839, %v1863
    %v2888 = vadd.f32 %v840, %v1864
    %v2889 = vadd.f32 %v841, %v1865
    %v2890 = vadd.f32 %v842, %v1866
    %v2891 = vadd.f32 %v843, %v1867
    %v2892 = vadd.f32 %v844, %v1868
    %v2893 = vadd.f32 %v845, %v1869
    %v2894 = vadd.f32 %v846, %v1870
    %v2895 = vadd.f32 %v847, %v1871
    %v2896 = vadd.f32 %v848, %v1872
    %v2897 = vadd.f32 %v849, %v1873
    %v2898 = vadd.f32 %v850, %v1874
    %v2899 = vadd.f32 %v851, %v1875
    %v2900 = vadd.f32 %v852, %v1876
    %v2901 = vadd.f32 %v853, %v1877
    %v2902 = vadd.f32 %v854, %v1878
    %v2903 = vadd.f32 %v855, %v1879
    %v2904 = vadd.f32 %v856, %v1880
    %v2905 = vadd.f32 %v857, %v1881
    %v2906 = vadd.f32 %v858, %v1882
    %v2907 = vadd.f32 %v859, %v1883
    %v2908 = vadd.f32 %v860, %v1884
    %v2909 = vadd.f32 %v861, %v1885
    %v2910 = vadd.f32 %v862, %v1886
    %v2911 = vadd.f32 %v863, %v1887
    %v2912 = vadd.f32 %v864, %v1888
    %v2913 = vadd.f32 %v865, %v1889
    %v2914 = vadd.f32 %v866, %v1890
    %v2915 = vadd.f32 %v867, %v1891
    %v2916 = vadd.f32 %v868, %v1892
    %v2917 = vadd.f32 %v869, %v1893
    %v2918 = vadd.f32 %v870, %v1894
    %v2919 = vadd.f32 %v871, %v1895
    %v2920 = vadd.f32 %v872, %v1896
    %v2921 = vadd.f32 %v873, %v1897
    %v2922 = vadd.f32 %v874, %v1898
    %v2923 = vadd.f32 %v875, %v1899
    %v2924 = vadd.f32 %v876, %v1900
    %v2925 = vadd.f32 %v877, %v1901
    %v2926 = vadd.f32 %v878, %v1902
    %v2927 = vadd.f32 %v879, %v1903
    %v2928 = vadd.f32 %v880, %v1904
    %v2929 = vadd.f32 %v881, %v1905
    %v2930 = vadd.f32 %v882, %v1906
    %v2931 = vadd.f32 %v883, %v1907
    %v2932 = vadd.f32 %v884, %v1908
    %v2933 = vadd.f32 %v885, %v1909
    %v2934 = vadd.f32 %v886, %v1910
    %v2935 = vadd.f32 %v887, %v1911
    %v2936 = vadd.f32 %v888, %v1912
    %v2937 = vadd.f32 %v889, %v1913
    %v2938 = vadd.f32 %v890, %v1914
    %v2939 = vadd.f32 %v891, %v1915
    %v2940 = vadd.f32 %v892, %v1916
    %v2941 = vadd.f32 %v893, %v1917
    %v2942 = vadd.f32 %v894, %v1918
    %v2943 = vadd.f32 %v895, %v1919
    %v2944 = vadd.f32 %v896, %v1920
    %v2945 = vadd.f32 %v897, %v1921
    %v2946 = vadd.f32 %v898, %v1922
    %v2947 = vadd.f32 %v899, %v1923
    %v2948 = vadd.f32 %v900, %v1924
    %v2949 = vadd.f32 %v901, %v1925
    %v2950 = vadd.f32 %v902, %v1926
    %v2951 = vadd.f32 %v903, %v1927
    %v2952 = vadd.f32 %v904, %v1928
    %v2953 = vadd.f32 %v905, %v1929
    %v2954 = vadd.f32 %v906, %v1930
    %v2955 = vadd.f32 %v907, %v1931
    %v2956 = vadd.f32 %v908, %v1932
    %v2957 = vadd.f32 %v909, %v1933
    %v2958 = vadd.f32 %v910, %v1934
    %v2959 = vadd.f32 %v911, %v1935
    %v2960 = vadd.f32 %v912, %v1936
    %v2961 = vadd.f32 %v913, %v1937
    %v2962 = vadd.f32 %v914, %v1938
    %v2963 = vadd.f32 %v915, %v1939
    %v2964 = vadd.f32 %v916, %v1940
    %v2965 = vadd.f32 %v917, %v1941
    %v2966 = vadd.f32 %v918, %v1942
    %v2967 = vadd.f32 %v919, %v1943
    %v2968 = vadd.f32 %v920, %v1944
    %v2969 = vadd.f32 %v921, %v1945
    %v2970 = vadd.f32 %v922, %v1946
    %v2971 = vadd.f32 %v923, %v1947
    %v2972 = vadd.f32 %v924, %v1948
    %v2973 = vadd.f32 %v925, %v1949
    %v2974 = vadd.f32 %v926, %v1950
    %v2975 = vadd.f32 %v927, %v1951
    %v2976 = vadd.f32 %v928, %v1952
    %v2977 = vadd.f32 %v929, %v1953
    %v2978 = vadd.f32 %v930, %v1954
    %v2979 = vadd.f32 %v931, %v1955
    %v2980 = vadd.f32 %v932, %v1956
    %v2981 = vadd.f32 %v933, %v1957
    %v2982 = vadd.f32 %v934, %v1958
    %v2983 = vadd.f32 %v935, %v1959
    %v2984 = vadd.f32 %v936, %v1960
    %v2985 = vadd.f32 %v937, %v1961
    %v2986 = vadd.f32 %v938, %v1962
    %v2987 = vadd.f32 %v939, %v1963
    %v2988 = vadd.f32 %v940, %v1964
    %v2989 = vadd.f32 %v941, %v1965
    %v2990 = vadd.f32 %v942, %v1966
    %v2991 = vadd.f32 %v943, %v1967
    %v2992 = vadd.f32 %v944, %v1968
    %v2993 = vadd.f32 %v945, %v1969
    %v2994 = vadd.f32 %v946, %v1970
    %v2995 = vadd.f32 %v947, %v1971
    %v2996 = vadd.f32 %v948, %v1972
    %v2997 = vadd.f32 %v949, %v1973
    %v2998 = vadd.f32 %v950, %v1974
    %v2999 = vadd.f32 %v951, %v1975
    %v3000 = vadd.f32 %v952, %v1976
    %v3001 = vadd.f32 %v953, %v1977
    %v3002 = vadd.f32 %v954, %v1978
    %v3003 = vadd.f32 %v955, %v1979
    %v3004 = vadd.f32 %v956, %v1980
    %v3005 = vadd.f32 %v957, %v1981
    %v3006 = vadd.f32 %v958, %v1982
    %v3007 = vadd.f32 %v959, %v1983
    %v3008 = vadd.f32 %v960, %v1984
    %v3009 = vadd.f32 %v961, %v1985
    %v3010 = vadd.f32 %v962, %v1986
    %v3011 = vadd.f32 %v963, %v1987
    %v3012 = vadd.f32 %v964, %v1988
    %v3013 = vadd.f32 %v965, %v1989
    %v3014 = vadd.f32 %v966, %v1990
    %v3015 = vadd.f32 %v967, %v1991
    %v3016 = vadd.f32 %v968, %v1992
    %v3017 = vadd.f32 %v969, %v1993
    %v3018 = vadd.f32 %v970, %v1994
    %v3019 = vadd.f32 %v971, %v1995
    %v3020 = vadd.f32 %v972, %v1996
    %v3021 = vadd.f32 %v973, %v1997
    %v3022 = vadd.f32 %v974, %v1998
    %v3023 = vadd.f32 %v975, %v1999
    %v3024 = vadd.f32 %v976, %v2000
    %v3025 = vadd.f32 %v977, %v2001
    %v3026 = vadd.f32 %v978, %v2002
    %v3027 = vadd.f32 %v979, %v2003
    %v3028 = vadd.f32 %v980, %v2004
    %v3029 = vadd.f32 %v981, %v2005
    %v3030 = vadd.f32 %v982, %v2006
    %v3031 = vadd.f32 %v983, %v2007
    %v3032 = vadd.f32 %v984, %v2008
    %v3033 = vadd.f32 %v985, %v2009
    %v3034 = vadd.f32 %v986, %v2010
    %v3035 = vadd.f32 %v987, %v2011
    %v3036 = vadd.f32 %v988, %v2012
    %v3037 = vadd.f32 %v989, %v2013
    %v3038 = vadd.f32 %v990, %v2014
    %v3039 = vadd.f32 %v991, %v2015
    %v3040 = vadd.f32 %v992, %v2016
    %v3041 = vadd.f32 %v993, %v2017
    %v3042 = vadd.f32 %v994, %v2018
    %v3043 = vadd.f32 %v995, %v2019
    %v3044 = vadd.f32 %v996, %v2020
    %v3045 = vadd.f32 %v997, %v2021
    %v3046 = vadd.f32 %v998, %v2022
    %v3047 = vadd.f32 %v999, %v2023
    %v3048 = vadd.f32 %v1000, %v2024
    %v3049 = vadd.f32 %v1001, %v2025
    %v3050 = vadd.f32 %v1002, %v2026
    %v3051 = vadd.f32 %v1003, %v2027
    %v3052 = vadd.f32 %v1004, %v2028
    %v3053 = vadd.f32 %v1005, %v2029
    %v3054 = vadd.f32 %v1006, %v2030
    %v3055 = vadd.f32 %v1007, %v2031
    %v3056 = vadd.f32 %v1008, %v2032
    %v3057 = vadd.f32 %v1009, %v2033
    %v3058 = vadd.f32 %v1010, %v2034
    %v3059 = vadd.f32 %v1011, %v2035
    %v3060 = vadd.f32 %v1012, %v2036
    %v3061 = vadd.f32 %v1013, %v2037
    %v3062 = vadd.f32 %v1014, %v2038
    %v3063 = vadd.f32 %v1015, %v2039
    %v3064 = vadd.f32 %v1016, %v2040
    %v3065 = vadd.f32 %v1017, %v2041
    %v3066 = vadd.f32 %v1018, %v2042
    %v3067 = vadd.f32 %v1019, %v2043
    %v3068 = vadd.f32 %v1020, %v2044
    %v3069 = vadd.f32 %v1021, %v2045
    %v3070 = vadd.f32 %v1022, %v2046
    %v3071 = vadd.f32 %v1023, %v2047
    %v3072 = vadd.f32 %v1024, %v2048
    %v3073 = vadd.f32 %v1025, %v2049
    %v3074 = vadd.f32 %v1026, %v2050
    %v3075 = vadd.f32 %v1027, %v2051
    %v3076 = vadd.f32 %v1028, %v2052
    %v3077 = vadd.f32 %v1029, %v2053
    %v3078 = vadd.f32 %v1030, %v2054
    %v3079 = vadd.f32 %v1031, %v2055
    %v3080 = vadd.f32 %v1032, %v2056
    %v3081 = vadd.f32 %v1033, %v2057
    %v3082 = vadd.f32 %v1034, %v2058
    %v3083 = vadd.f32 %v1035, %v2059
    %v3084 = vadd.f32 %v1036, %v2060
    %v3085 = vadd.f32 %v1037, %v2061
    %v3086 = vadd.f32 %v1038, %v2062
    %v3087 = vadd.f32 %v1039, %v2063
    %v3088 = vadd.f32 %v1040, %v2064
    %v3089 = vadd.f32 %v1041, %v2065
    %v3090 = vadd.f32 %v1042, %v2066
    %v3091 = vadd.f32 %v1043, %v2067
    %v3092 = vadd.f32 %v1044, %v2068
    %v3093 = vadd.f32 %v1045, %v2069
    %v3094 = vadd.f32 %v1046, %v2070
    %v3095 = vadd.f32 %v1047, %v2071
    %v3096 = vadd.f32 %v1048, %v2072
    %v3097 = vadd.f32 %v1049, %v2073
    %v3098 = vadd.f32 %v1050, %v2074
    %v3099 = vadd.f32 %v1051, %v2075
    %v3100 = vadd.f32 %v1052, %v2076
    %v3101 = vadd.f32 %v1053, %v2077
    %v3102 = vadd.f32 %v1054, %v2078
    %v3103 = vadd.f32 %v1055, %v2079
    %v3104 = vadd.f32 %v1056, %v2080
    %v3105 = vadd.f32 %v1057, %v2081
    %v3106 = vadd.f32 %v1058, %v2082
    %v3107 = vadd.f32 %v1059, %v2083
    %v3108 = vadd.f32 %v1060, %v2084
    %v3109 = vadd.f32 %v1061, %v2085
    %v3110 = vadd.f32 %v1062, %v2086
    %v3111 = vadd.f32 %v1063, %v2087
    %v3112 = vadd.f32 %v1064, %v2088
    %v3113 = vadd.f32 %v1065, %v2089
    %v3114 = vadd.f32 %v1066, %v2090
    %v3115 = vadd.f32 %v1067, %v2091
    %v3116 = vmax.f32 %v2092, -0.5
    %v3117 = vmax.f32 %v2093, -0.5
    %v3118 = vmax.f32 %v2094, -0.5
    %v3119 = vmax.f32 %v2095, -0.5
    %v3120 = vmax.f32 %v2096, -0.5
    %v3121 = vmax.f32 %v2097, -0.5
    %v3122 = vmax.f32 %v2098, -0.5
    %v3123 = vmax.f32 %v2099, -0.5
    %v3124 = vmax.f32 %v2100, -0.5
    %v3125 = vmax.f32 %v2101, -0.5
    %v3126 = vmax.f32 %v2102, -0.5
    %v3127 = vmax.f32 %v2103, -0.5
    %v3128 = vmax.f32 %v2104, -0.5
    %v3129 = vmax.f32 %v2105, -0.5
    %v3130 = vmax.f32 %v2106, -0.5
    %v3131 = vmax.f32 %v2107, -0.5
    %v3132 = vmax.f32 %v2108, -0.5
    %v3133 = vmax.f32 %v2109, -0.5
    %v3134 = vmax.f32 %v2110, -0.5
    %v3135 = vmax.f32 %v2111, -0.5
    %v3136 = vmax.f32 %v2112, -0.5
    %v3137 = vmax.f32 %v2113, -0.5
    %v3138 = vmax.f32 %v2114, -0.5
    %v3139 = vmax.f32 %v2115, -0.5
    %v3140 = vmax.f32 %v2116, -0.5
    %v3141 = vmax.f32 %v2117, -0.5
    %v3142 = vmax.f32 %v2118, -0.5
    %v3143 = vmax.f32 %v2119, -0.5
    %v3144 = vmax.f32 %v2120, -0.5
    %v3145 = vmax.f32 %v2121, -0.5
    %v3146 = vmax.f32 %v2122, -0.5
    %v3147 = vmax.f32 %v2123, -0.5
    %v3148 = vmax.f32 %v2124, -0.5
    %v3149 = vmax.f32 %v2125, -0.5
    %v3150 = vmax.f32 %v2126, -0.5
    %v3151 = vmax.f32 %v2127, -0.5
    %v3152 = vmax.f32 %v2128, -0.5
    %v3153 = vmax.f32 %v2129, -0.5
    %v3154 = vmax.f32 %v2130, -0.5
    %v3155 = vmax.f32 %v2131, -0.5
    %v3156 = vmax.f32 %v2132, -0.5
    %v3157 = vmax.f32 %v2133, -0.5
    %v3158 = vmax.f32 %v2134, -0.5
    %v3159 = vmax.f32 %v2135, -0.5
    %v3160 = vmax.f32 %v2136, -0.5
    %v3161 = vmax.f32 %v2137, -0.5
    %v3162 = vmax.f32 %v2138, -0.5
    %v3163 = vmax.f32 %v2139, -0.5
    %v3164 = vmax.f32 %v2140, -0.5
    %v3165 = vmax.f32 %v2141, -0.5
    %v3166 = vmax.f32 %v2142, -0.5
    %v3167 = vmax.f32 %v2143, -0.5
    %v3168 = vmax.f32 %v2144, -0.5
    %v3169 = vmax.f32 %v2145, -0.5
    %v3170 = vmax.f32 %v2146, -0.5
    %v3171 = vmax.f32 %v2147, -0.5
    %v3172 = vmax.f32 %v2148, -0.5
    %v3173 = vmax.f32 %v2149, -0.5
    %v3174 = vmax.f32 %v2150, -0.5
    %v3175 = vmax.f32 %v2151, -0.5
    %v3176 = vmax.f32 %v2152, -0.5
    %v3177 = vmax.f32 %v2153, -0.5
    %v3178 = vmax.f32 %v2154, -0.5
    %v3179 = vmax.f32 %v2155, -0.5
    %v3180 = vmax.f32 %v2156, -0.5
    %v3181 = vmax.f32 %v2157, -0.5
    %v3182 = vmax.f32 %v2158, -0.5
    %v3183 = vmax.f32 %v2159, -0.5
    %v3184 = vmax.f32 %v2160, -0.5
    %v3185 = vmax.f32 %v2161, -0.5
    %v3186 = vmax.f32 %v2162, -0.5
    %v3187 = vmax.f32 %v2163, -0.5
    %v3188 = vmax.f32 %v2164, -0.5
    %v3189 = vmax.f32 %v2165, -0.5
    %v3190 = vmax.f32 %v2166, -0.5
    %v3191 = vmax.f32 %v2167, -0.5
    %v3192 = vmax.f32 %v2168, -0.5
    %v3193 = vmax.f32 %v2169, -0.5
    %v3194 = vmax.f32 %v2170, -0.5
    %v3195 = vmax.f32 %v2171, -0.5
    %v3196 = vmax.f32 %v2172, -0.5
    %v3197 = vmax.f32 %v2173, -0.5
    %v3198 = vmax.f32 %v2174, -0.5
    %v3199 = vmax.f32 %v2175, -0.5
    %v3200 = vmax.f32 %v2176, -0.5
    %v3201 = vmax.f32 %v2177, -0.5
    %v3202 = vmax.f32 %v2178, -0.5
    %v3203 = vmax.f32 %v2179, -0.5
    %v3204 = vmax.f32 %v2180, -0.5
    %v3205 = vmax.f32 %v2181, -0.5
    %v3206 = vmax.f32 %v2182, -0.5
    %v3207 = vmax.f32 %v2183, -0.5
    %v3208 = vmax.f32 %v2184, -0.5
    %v3209 = vmax.f32 %v2185, -0.5
    %v3210 = vmax.f32 %v2186, -0.5
    %v3211 = vmax.f32 %v2187, -0.5
    %v3212 = vmax.f32 %v2188, -0.5
    %v3213 = vmax.f32 %v2189, -0.5
    %v3214 = vmax.f32 %v2190, -0.5
    %v3215 = vmax.f32 %v2191, -0.5
    %v3216 = vmax.f32 %v2192, -0.5
    %v3217 = vmax.f32 %v2193, -0.5
    %v3218 = vmax.f32 %v2194, -0.5
    %v3219 = vmax.f32 %v2195, -0.5
    %v3220 = vmax.f32 %v2196, -0.5
    %v3221 = vmax.f32 %v2197, -0.5
    %v3222 = vmax.f32 %v2198, -0.5
    %v3223 = vmax.f32 %v2199, -0.5
    %v3224 = vmax.f32 %v2200, -0.5
    %v3225 = vmax.f32 %v2201, -0.5
    %v3226 = vmax.f32 %v2202, -0.5
    %v3227 = vmax.f32 %v2203, -0.5
    %v3228 = vmax.f32 %v2204, -0.5
    %v3229 = vmax.f32 %v2205, -0.5
    %v3230 = vmax.f32 %v2206, -0.5
    %v3231 = vmax.f32 %v2207, -0.5
    %v3232 = vmax.f32 %v2208, -0.5
    %v3233 = vmax.f32 %v2209, -0.5
    %v3234 = vmax.f32 %v2210, -0.5
    %v3235 = vmax.f32 %v2211, -0.5
    %v3236 = vmax.f32 %v2212, -0.5
    %v3237 = vmax.f32 %v2213, -0.5
    %v3238 = vmax.f32 %v2214, -0.5
    %v3239 = vmax.f32 %v2215, -0.5
    %v3240 = vmax.f32 %v2216, -0.5
    %v3241 = vmax.f32 %v2217, -0.5
    %v3242 = vmax.f32 %v2218, -0.5
    %v3243 = vmax.f32 %v2219, -0.5
    %v3244 = vmax.f32 %v2220, -0.5
    %v3245 = vmax.f32 %v2221, -0.5
    %v3246 = vmax.f32 %v2222, -0.5
    %v3247 = vmax.f32 %v2223, -0.5
    %v3248 = vmax.f32 %v2224, -0.5
    %v3249 = vmax.f32 %v2225, -0.5
    %v3250 = vmax.f32 %v2226, -0.5
    %v3251 = vmax.f32 %v2227, -0.5
    %v3252 = vmax.f32 %v2228, -0.5
    %v3253 = vmax.f32 %v2229, -0.5
    %v3254 = vmax.f32 %v2230, -0.5
    %v3255 = vmax.f32 %v2231, -0.5
    %v3256 = vmax.f32 %v2232, -0.5
    %v3257 = vmax.f32 %v2233, -0.5
    %v3258 = vmax.f32 %v2234, -0.5
    %v3259 = vmax.f32 %v2235, -0.5
    %v3260 = vmax.f32 %v2236, -0.5
    %v3261 = vmax.f32 %v2237, -0.5
    %v3262 = vmax.f32 %v2238, -0.5
    %v3263 = vmax.f32 %v2239, -0.5
    %v3264 = vmax.f32 %v2240, -0.5
    %v3265 = vmax.f32 %v2241, -0.5
    %v3266 = vmax.f32 %v2242, -0.5
    %v3267 = vmax.f32 %v2243, -0.5
    %v3268 = vmax.f32 %v2244, -0.5
    %v3269 = vmax.f32 %v2245, -0.5
    %v3270 = vmax.f32 %v2246, -0.5
    %v3271 = vmax.f32 %v2247, -0.5
    %v3272 = vmax.f32 %v2248, -0.5
    %v3273 = vmax.f32 %v2249, -0.5
    %v3274 = vmax.f32 %v2250, -0.5
    %v3275 = vmax.f32 %v2251, -0.5
    %v3276 = vmax.f32 %v2252, -0.5
    %v3277 = vmax.f32 %v2253, -0.5
    %v3278 = vmax.f32 %v2254, -0.5
    %v3279 = vmax.f32 %v2255, -0.5
    %v3280 = vmax.f32 %v2256, -0.5
    %v3281 = vmax.f32 %v2257, -0.5
    %v3282 = vmax.f32 %v2258, -0.5
    %v3283 = vmax.f32 %v2259, -0.5
    %v3284 = vmax.f32 %v2260, -0.5
    %v3285 = vmax.f32 %v2261, -0.5
    %v3286 = vmax.f32 %v2262, -0.5
    %v3287 = vmax.f32 %v2263, -0.5
    %v3288 = vmax.f32 %v2264, -0.5
    %v3289 = vmax.f32 %v2265, -0.5
    %v3290 = vmax.f32 %v2266, -0.5
    %v3291 = vmax.f32 %v2267, -0.5
    %v3292 = vmax.f32 %v2268, -0.5
    %v3293 = vmax.f32 %v2269, -0.5
    %v3294 = vmax.f32 %v2270, -0.5
    %v3295 = vmax.f32 %v2271, -0.5
    %v3296 = vmax.f32 %v2272, -0.5
    %v3297 = vmax.f32 %v2273, -0.5
    %v3298 = vmax.f32 %v2274, -0.5
    %v3299 = vmax.f32 %v2275, -0.5
    %v3300 = vmax.f32 %v2276, -0.5
    %v3301 = vmax.f32 %v2277, -0.5
    %v3302 = vmax.f32 %v2278, -0.5
    %v3303 = vmax.f32 %v2279, -0.5
    %v3304 = vmax.f32 %v2280, -0.5
    %v3305 = vmax.f32 %v2281, -0.5
    %v3306 = vmax.f32 %v2282, -0.5
    %v3307 = vmax.f32 %v2283, -0.5
    %v3308 = vmax.f32 %v2284, -0.5
    %v3309 = vmax.f32 %v2285, -0.5
    %v3310 = vmax.f32 %v2286, -0.5
    %v3311 = vmax.f32 %v2287, -0.5
    %v3312 = vmax.f32 %v2288, -0.5
    %v3313 = vmax.f32 %v2289, -0.5
    %v3314 = vmax.f32 %v2290, -0.5
    %v3315 = vmax.f32 %v2291, -0.5
    %v3316 = vmax.f32 %v2292, -0.5
    %v3317 = vmax.f32 %v2293, -0.5
    %v3318 = vmax.f32 %v2294, -0.5
    %v3319 = vmax.f32 %v2295, -0.5
    %v3320 = vmax.f32 %v2296, -0.5
    %v3321 = vmax.f32 %v2297, -0.5
    %v3322 = vmax.f32 %v2298, -0.5
    %v3323 = vmax.f32 %v2299, -0.5
    %v3324 = vmax.f32 %v2300, -0.5
    %v3325 = vmax.f32 %v2301, -0.5
    %v3326 = vmax.f32 %v2302, -0.5
    %v3327 = vmax.f32 %v2303, -0.5
    %v3328 = vmax.f32 %v2304, -0.5
    %v3329 = vmax.f32 %v2305, -0.5
    %v3330 = vmax.f32 %v2306, -0.5
    %v3331 = vmax.f32 %v2307, -0.5
    %v3332 = vmax.f32 %v2308, -0.5
    %v3333 = vmax.f32 %v2309, -0.5
    %v3334 = vmax.f32 %v2310, -0.5
    %v3335 = vmax.f32 %v2311, -0.5
    %v3336 = vmax.f32 %v2312, -0.5
    %v3337 = vmax.f32 %v2313, -0.5
    %v3338 = vmax.f32 %v2314, -0.5
    %v3339 = vmax.f32 %v2315, -0.5
    %v3340 = vmax.f32 %v2316, -0.5
    %v3341 = vmax.f32 %v2317, -0.5
    %v3342 = vmax.f32 %v2318, -0.5
    %v3343 = vmax.f32 %v2319, -0.5
    %v3344 = vmax.f32 %v2320, -0.5
    %v3345 = vmax.f32 %v2321, -0.5
    %v3346 = vmax.f32 %v2322, -0.5
    %v3347 = vmax.f32 %v2323, -0.5
    %v3348 = vmax.f32 %v2324, -0.5
    %v3349 = vmax.f32 %v2325, -0.5
    %v3350 = vmax.f32 %v2326, -0.5
    %v3351 = vmax.f32 %v2327, -0.5
    %v3352 = vmax.f32 %v2328, -0.5
    %v3353 = vmax.f32 %v2329, -0.5
    %v3354 = vmax.f32 %v2330, -0.5
    %v3355 = vmax.f32 %v2331, -0.5
    %v3356 = vmax.f32 %v2332, -0.5
    %v3357 = vmax.f32 %v2333, -0.5
    %v3358 = vmax.f32 %v2334, -0.5
    %v3359 = vmax.f32 %v2335, -0.5
    %v3360 = vmax.f32 %v2336, -0.5
    %v3361 = vmax.f32 %v2337, -0.5
    %v3362 = vmax.f32 %v2338, -0.5
    %v3363 = vmax.f32 %v2339, -0.5
    %v3364 = vmax.f32 %v2340, -0.5
    %v3365 = vmax.f32 %v2341, -0.5
    %v3366 = vmax.f32 %v2342, -0.5
    %v3367 = vmax.f32 %v2343, -0.5
    %v3368 = vmax.f32 %v2344, -0.5
    %v3369 = vmax.f32 %v2345, -0.5
    %v3370 = vmax.f32 %v2346, -0.5
    %v3371 = vmax.f32 %v2347, -0.5
    %v3372 = vmax.f32 %v2348, -0.5
    %v3373 = vmax.f32 %v2349, -0.5
    %v3374 = vmax.f32 %v2350, -0.5
    %v3375 = vmax.f32 %v2351, -0.5
    %v3376 = vmax.f32 %v2352, -0.5
    %v3377 = vmax.f32 %v2353, -0.5
    %v3378 = vmax.f32 %v2354, -0.5
    %v3379 = vmax.f32 %v2355, -0.5
    %v3380 = vmax.f32 %v2356, -0.5
    %v3381 = vmax.f32 %v2357, -0.5
    %v3382 = vmax.f32 %v2358, -0.5
    %v3383 = vmax.f32 %v2359, -0.5
    %v3384 = vmax.f32 %v2360, -0.5
    %v3385 = vmax.f32 %v2361, -0.5
    %v3386 = vmax.f32 %v2362, -0.5
    %v3387 = vmax.f32 %v2363, -0.5
    %v3388 = vmax.f32 %v2364, -0.5
    %v3389 = vmax.f32 %v2365, -0.5
    %v3390 = vmax.f32 %v2366, -0.5
    %v3391 = vmax.f32 %v2367, -0.5
    %v3392 = vmax.f32 %v2368, -0.5
    %v3393 = vmax.f32 %v2369, -0.5
    %v3394 = vmax.f32 %v2370, -0.5
    %v3395 = vmax.f32 %v2371, -0.5
    %v3396 = vmax.f32 %v2372, -0.5
    %v3397 = vmax.f32 %v2373, -0.5
    %v3398 = vmax.f32 %v2374, -0.5
    %v3399 = vmax.f32 %v2375, -0.5
    %v3400 = vmax.f32 %v2376, -0.5
    %v3401 = vmax.f32 %v2377, -0.5
    %v3402 = vmax.f32 %v2378, -0.5
    %v3403 = vmax.f32 %v2379, -0.5
    %v3404 = vmax.f32 %v2380, -0.5
    %v3405 = vmax.f32 %v2381, -0.5
    %v3406 = vmax.f32 %v2382, -0.5
    %v3407 = vmax.f32 %v2383, -0.5
    %v3408 = vmax.f32 %v2384, -0.5
    %v3409 = vmax.f32 %v2385, -0.5
    %v3410 = vmax.f32 %v2386, -0.5
    %v3411 = vmax.f32 %v2387, -0.5
    %v3412 = vmax.f32 %v2388, -0.5
    %v3413 = vmax.f32 %v2389, -0.5
    %v3414 = vmax.f32 %v2390, -0.5
    %v3415 = vmax.f32 %v2391, -0.5
    %v3416 = vmax.f32 %v2392, -0.5
    %v3417 = vmax.f32 %v2393, -0.5
    %v3418 = vmax.f32 %v2394, -0.5
    %v3419 = vmax.f32 %v2395, -0.5
    %v3420 = vmax.f32 %v2396, -0.5
    %v3421 = vmax.f32 %v2397, -0.5
    %v3422 = vmax.f32 %v2398, -0.5
    %v3423 = vmax.f32 %v2399, -0.5
    %v3424 = vmax.f32 %v2400, -0.5
    %v3425 = vmax.f32 %v2401, -0.5
    %v3426 = vmax.f32 %v2402, -0.5
    %v3427 = vmax.f32 %v2403, -0.5
    %v3428 = vmax.f32 %v2404, -0.5
    %v3429 = vmax.f32 %v2405, -0.5
    %v3430 = vmax.f32 %v2406, -0.5
    %v3431 = vmax.f32 %v2407, -0.5
    %v3432 = vmax.f32 %v2408, -0.5
    %v3433 = vmax.f32 %v2409, -0.5
    %v3434 = vmax.f32 %v2410, -0.5
    %v3435 = vmax.f32 %v2411, -0.5
    %v3436 = vmax.f32 %v2412, -0.5
    %v3437 = vmax.f32 %v2413, -0.5
    %v3438 = vmax.f32 %v2414, -0.5
    %v3439 = vmax.f32 %v2415, -0.5
    %v3440 = vmax.f32 %v2416, -0.5
    %v3441 = vmax.f32 %v2417, -0.5
    %v3442 = vmax.f32 %v2418, -0.5
    %v3443 = vmax.f32 %v2419, -0.5
    %v3444 = vmax.f32 %v2420, -0.5
    %v3445 = vmax.f32 %v2421, -0.5
    %v3446 = vmax.f32 %v2422, -0.5
    %v3447 = vmax.f32 %v2423, -0.5
    %v3448 = vmax.f32 %v2424, -0.5
    %v3449 = vmax.f32 %v2425, -0.5
    %v3450 = vmax.f32 %v2426, -0.5
    %v3451 = vmax.f32 %v2427, -0.5
    %v3452 = vmax.f32 %v2428, -0.5
    %v3453 = vmax.f32 %v2429, -0.5
    %v3454 = vmax.f32 %v2430, -0.5
    %v3455 = vmax.f32 %v2431, -0.5
    %v3456 = vmax.f32 %v2432, -0.5
    %v3457 = vmax.f32 %v2433, -0.5
    %v3458 = vmax.f32 %v2434, -0.5
    %v3459 = vmax.f32 %v2435, -0.5
    %v3460 = vmax.f32 %v2436, -0.5
    %v3461 = vmax.f32 %v2437, -0.5
    %v3462 = vmax.f32 %v2438, -0.5
    %v3463 = vmax.f32 %v2439, -0.5
    %v3464 = vmax.f32 %v2440, -0.5
    %v3465 = vmax.f32 %v2441, -0.5
    %v3466 = vmax.f32 %v2442, -0.5
    %v3467 = vmax.f32 %v2443, -0.5
    %v3468 = vmax.f32 %v2444, -0.5
    %v3469 = vmax.f32 %v2445, -0.5
    %v3470 = vmax.f32 %v2446, -0.5
    %v3471 = vmax.f32 %v2447, -0.5
    %v3472 = vmax.f32 %v2448, -0.5
    %v3473 = vmax.f32 %v2449, -0.5
    %v3474 = vmax.f32 %v2450, -0.5
    %v3475 = vmax.f32 %v2451, -0.5
    %v3476 = vmax.f32 %v2452, -0.5
    %v3477 = vmax.f32 %v2453, -0.5
    %v3478 = vmax.f32 %v2454, -0.5
    %v3479 = vmax.f32 %v2455, -0.5
    %v3480 = vmax.f32 %v2456, -0.5
    %v3481 = vmax.f32 %v2457, -0.5
    %v3482 = vmax.f32 %v2458, -0.5
    %v3483 = vmax.f32 %v2459, -0.5
    %v3484 = vmax.f32 %v2460, -0.5
    %v3485 = vmax.f32 %v2461, -0.5
    %v3486 = vmax.f32 %v2462, -0.5
    %v3487 = vmax.f32 %v2463, -0.5
    %v3488 = vmax.f32 %v2464, -0.5
    %v3489 = vmax.f32 %v2465, -0.5
    %v3490 = vmax.f32 %v2466, -0.5
    %v3491 = vmax.f32 %v2467, -0.5
    %v3492 = vmax.f32 %v2468, -0.5
    %v3493 = vmax.f32 %v2469, -0.5
    %v3494 = vmax.f32 %v2470, -0.5
    %v3495 = vmax.f32 %v2471, -0.5
    %v3496 = vmax.f32 %v2472, -0.5
    %v3497 = vmax.f32 %v2473, -0.5
    %v3498 = vmax.f32 %v2474, -0.5
    %v3499 = vmax.f32 %v2475, -0.5
    %v3500 = vmax.f32 %v2476, -0.5
    %v3501 = vmax.f32 %v2477, -0.5
    %v3502 = vmax.f32 %v2478, -0.5
    %v3503 = vmax.f32 %v2479, -0.5
    %v3504 = vmax.f32 %v2480, -0.5
    %v3505 = vmax.f32 %v2481, -0.5
    %v3506 = vmax.f32 %v2482, -0.5
    %v3507 = vmax.f32 %v2483, -0.5
    %v3508 = vmax.f32 %v2484, -0.5
    %v3509 = vmax.f32 %v2485, -0.5
    %v3510 = vmax.f32 %v2486, -0.5
    %v3511 = vmax.f32 %v2487, -0.5
    %v3512 = vmax.f32 %v2488, -0.5
    %v3513 = vmax.f32 %v2489, -0.5
    %v3514 = vmax.f32 %v2490, -0.5
    %v3515 = vmax.f32 %v2491, -0.5
    %v3516 = vmax.f32 %v2492, -0.5
    %v3517 = vmax.f32 %v2493, -0.5
    %v3518 = vmax.f32 %v2494, -0.5
    %v3519 = vmax.f32 %v2495, -0.5
    %v3520 = vmax.f32 %v2496, -0.5
    %v3521 = vmax.f32 %v2497, -0.5
    %v3522 = vmax.f32 %v2498, -0.5
    %v3523 = vmax.f32 %v2499, -0.5
    %v3524 = vmax.f32 %v2500, -0.5
    %v3525 = vmax.f32 %v2501, -0.5
    %v3526 = vmax.f32 %v2502, -0.5
    %v3527 = vmax.f32 %v2503, -0.5
    %v3528 = vmax.f32 %v2504, -0.5
    %v3529 = vmax.f32 %v2505, -0.5
    %v3530 = vmax.f32 %v2506, -0.5
    %v3531 = vmax.f32 %v2507, -0.5
    %v3532 = vmax.f32 %v2508, -0.5
    %v3533 = vmax.f32 %v2509, -0.5
    %v3534 = vmax.f32 %v2510, -0.5
    %v3535 = vmax.f32 %v2511, -0.5
    %v3536 = vmax.f32 %v2512, -0.5
    %v3537 = vmax.f32 %v2513, -0.5
    %v3538 = vmax.f32 %v2514, -0.5
    %v3539 = vmax.f32 %v2515, -0.5
    %v3540 = vmax.f32 %v2516, -0.5
    %v3541 = vmax.f32 %v2517, -0.5
    %v3542 = vmax.f32 %v2518, -0.5
    %v3543 = vmax.f32 %v2519, -0.5
    %v3544 = vmax.f32 %v2520, -0.5
    %v3545 = vmax.f32 %v2521, -0.5
    %v3546 = vmax.f32 %v2522, -0.5
    %v3547 = vmax.f32 %v2523, -0.5
    %v3548 = vmax.f32 %v2524, -0.5
    %v3549 = vmax.f32 %v2525, -0.5
    %v3550 = vmax.f32 %v2526, -0.5
    %v3551 = vmax.f32 %v2527, -0.5
    %v3552 = vmax.f32 %v2528, -0.5
    %v3553 = vmax.f32 %v2529, -0.5
    %v3554 = vmax.f32 %v2530, -0.5
    %v3555 = vmax.f32 %v2531, -0.5
    %v3556 = vmax.f32 %v2532, -0.5
    %v3557 = vmax.f32 %v2533, -0.5
    %v3558 = vmax.f32 %v2534, -0.5
    %v3559 = vmax.f32 %v2535, -0.5
    %v3560 = vmax.f32 %v2536, -0.5
    %v3561 = vmax.f32 %v2537, -0.5
    %v3562 = vmax.f32 %v2538, -0.5
    %v3563 = vmax.f32 %v2539, -0.5
    %v3564 = vmax.f32 %v2540, -0.5
    %v3565 = vmax.f32 %v2541, -0.5
    %v3566 = vmax.f32 %v2542, -0.5
    %v3567 = vmax.f32 %v2543, -0.5
    %v3568 = vmax.f32 %v2544, -0.5
    %v3569 = vmax.f32 %v2545, -0.5
    %v3570 = vmax.f32 %v2546, -0.5
    %v3571 = vmax.f32 %v2547, -0.5
    %v3572 = vmax.f32 %v2548, -0.5
    %v3573 = vmax.f32 %v2549, -0.5
    %v3574 = vmax.f32 %v2550, -0.5
    %v3575 = vmax.f32 %v2551, -0.5
    %v3576 = vmax.f32 %v2552, -0.5
    %v3577 = vmax.f32 %v2553, -0.5
    %v3578 = vmax.f32 %v2554, -0.5
    %v3579 = vmax.f32 %v2555, -0.5
    %v3580 = vmax.f32 %v2556, -0.5
    %v3581 = vmax.f32 %v2557, -0.5
    %v3582 = vmax.f32 %v2558, -0.5
    %v3583 = vmax.f32 %v2559, -0.5
    %v3584 = vmax.f32 %v2560, -0.5
    %v3585 = vmax.f32 %v2561, -0.5
    %v3586 = vmax.f32 %v2562, -0.5
    %v3587 = vmax.f32 %v2563, -0.5
    %v3588 = vmax.f32 %v2564, -0.5
    %v3589 = vmax.f32 %v2565, -0.5
    %v3590 = vmax.f32 %v2566, -0.5
    %v3591 = vmax.f32 %v2567, -0.5
    %v3592 = vmax.f32 %v2568, -0.5
    %v3593 = vmax.f32 %v2569, -0.5
    %v3594 = vmax.f32 %v2570, -0.5
    %v3595 = vmax.f32 %v2571, -0.5
    %v3596 = vmax.f32 %v2572, -0.5
    %v3597 = vmax.f32 %v2573, -0.5
    %v3598 = vmax.f32 %v2574, -0.5
    %v3599 = vmax.f32 %v2575, -0.5
    %v3600 = vmax.f32 %v2576, -0.5
    %v3601 = vmax.f32 %v2577, -0.5
    %v3602 = vmax.f32 %v2578, -0.5
    %v3603 = vmax.f32 %v2579, -0.5
    %v3604 = vmax.f32 %v2580, -0.5
    %v3605 = vmax.f32 %v2581, -0.5
    %v3606 = vmax.f32 %v2582, -0.5
    %v3607 = vmax.f32 %v2583, -0.5
    %v3608 = vmax.f32 %v2584, -0.5
    %v3609 = vmax.f32 %v2585, -0.5
    %v3610 = vmax.f32 %v2586, -0.5
    %v3611 = vmax.f32 %v2587, -0.5
    %v3612 = vmax.f32 %v2588, -0.5
    %v3613 = vmax.f32 %v2589, -0.5
    %v3614 = vmax.f32 %v2590, -0.5
    %v3615 = vmax.f32 %v2591, -0.5
    %v3616 = vmax.f32 %v2592, -0.5
    %v3617 = vmax.f32 %v2593, -0.5
    %v3618 = vmax.f32 %v2594, -0.5
    %v3619 = vmax.f32 %v2595, -0.5
    %v3620 = vmax.f32 %v2596, -0.5
    %v3621 = vmax.f32 %v2597, -0.5
    %v3622 = vmax.f32 %v2598, -0.5
    %v3623 = vmax.f32 %v2599, -0.5
    %v3624 = vmax.f32 %v2600, -0.5
    %v3625 = vmax.f32 %v2601, -0.5
    %v3626 = vmax.f32 %v2602, -0.5
    %v3627 = vmax.f32 %v2603, -0.5
    %v3628 = vmax.f32 %v2604, -0.5
    %v3629 = vmax.f32 %v2605, -0.5
    %v3630 = vmax.f32 %v2606, -0.5
    %v3631 = vmax.f32 %v2607, -0.5
    %v3632 = vmax.f32 %v2608, -0.5
    %v3633 = vmax.f32 %v2609, -0.5
    %v3634 = vmax.f32 %v2610, -0.5
    %v3635 = vmax.f32 %v2611, -0.5
    %v3636 = vmax.f32 %v2612, -0.5
    %v3637 = vmax.f32 %v2613, -0.5
    %v3638 = vmax.f32 %v2614, -0.5
    %v3639 = vmax.f32 %v2615, -0.5
    %v3640 = vmax.f32 %v2616, -0.5
    %v3641 = vmax.f32 %v2617, -0.5
    %v3642 = vmax.f32 %v2618, -0.5
    %v3643 = vmax.f32 %v2619, -0.5
    %v3644 = vmax.f32 %v2620, -0.5
    %v3645 = vmax.f32 %v2621, -0.5
    %v3646 = vmax.f32 %v2622, -0.5
    %v3647 = vmax.f32 %v2623, -0.5
    %v3648 = vmax.f32 %v2624, -0.5
    %v3649 = vmax.f32 %v2625, -0.5
    %v3650 = vmax.f32 %v2626, -0.5
    %v3651 = vmax.f32 %v2627, -0.5
    %v3652 = vmax.f32 %v2628, -0.5
    %v3653 = vmax.f32 %v2629, -0.5
    %v3654 = vmax.f32 %v2630, -0.5
    %v3655 = vmax.f32 %v2631, -0.5
    %v3656 = vmax.f32 %v2632, -0.5
    %v3657 = vmax.f32 %v2633, -0.5
    %v3658 = vmax.f32 %v2634, -0.5
    %v3659 = vmax.f32 %v2635, -0.5
    %v3660 = vmax.f32 %v2636, -0.5
    %v3661 = vmax.f32 %v2637, -0.5
    %v3662 = vmax.f32 %v2638, -0.5
    %v3663 = vmax.f32 %v2639, -0.5
    %v3664 = vmax.f32 %v2640, -0.5
    %v3665 = vmax.f32 %v2641, -0.5
    %v3666 = vmax.f32 %v2642, -0.5
    %v3667 = vmax.f32 %v2643, -0.5
    %v3668 = vmax.f32 %v2644, -0.5
    %v3669 = vmax.f32 %v2645, -0.5
    %v3670 = vmax.f32 %v2646, -0.5
    %v3671 = vmax.f32 %v2647, -0.5
    %v3672 = vmax.f32 %v2648, -0.5
    %v3673 = vmax.f32 %v2649, -0.5
    %v3674 = vmax.f32 %v2650, -0.5
    %v3675 = vmax.f32 %v2651, -0.5
    %v3676 = vmax.f32 %v2652, -0.5
    %v3677 = vmax.f32 %v2653, -0.5
    %v3678 = vmax.f32 %v2654, -0.5
    %v3679 = vmax.f32 %v2655, -0.5
    %v3680 = vmax.f32 %v2656, -0.5
    %v3681 = vmax.f32 %v2657, -0.5
    %v3682 = vmax.f32 %v2658, -0.5
    %v3683 = vmax.f32 %v2659, -0.5
    %v3684 = vmax.f32 %v2660, -0.5
    %v3685 = vmax.f32 %v2661, -0.5
    %v3686 = vmax.f32 %v2662, -0.5
    %v3687 = vmax.f32 %v2663, -0.5
    %v3688 = vmax.f32 %v2664, -0.5
    %v3689 = vmax.f32 %v2665, -0.5
    %v3690 = vmax.f32 %v2666, -0.5
    %v3691 = vmax.f32 %v2667, -0.5
    %v3692 = vmax.f32 %v2668, -0.5
    %v3693 = vmax.f32 %v2669, -0.5
    %v3694 = vmax.f32 %v2670, -0.5
    %v3695 = vmax.f32 %v2671, -0.5
    %v3696 = vmax.f32 %v2672, -0.5
    %v3697 = vmax.f32 %v2673, -0.5
    %v3698 = vmax.f32 %v2674, -0.5
    %v3699 = vmax.f32 %v2675, -0.5
    %v3700 = vmax.f32 %v2676, -0.5
    %v3701 = vmax.f32 %v2677, -0.5
    %v3702 = vmax.f32 %v2678, -0.5
    %v3703 = vmax.f32 %v2679, -0.5
    %v3704 = vmax.f32 %v2680, -0.5
    %v3705 = vmax.f32 %v2681, -0.5
    %v3706 = vmax.f32 %v2682, -0.5
    %v3707 = vmax.f32 %v2683, -0.5
    %v3708 = vmax.f32 %v2684, -0.5
    %v3709 = vmax.f32 %v2685, -0.5
    %v3710 = vmax.f32 %v2686, -0.5
    %v3711 = vmax.f32 %v2687, -0.5
    %v3712 = vmax.f32 %v2688, -0.5
    %v3713 = vmax.f32 %v2689, -0.5
    %v3714 = vmax.f32 %v2690, -0.5
    %v3715 = vmax.f32 %v2691, -0.5
    %v3716 = vmax.f32 %v2692, -0.5
    %v3717 = vmax.f32 %v2693, -0.5
    %v3718 = vmax.f32 %v2694, -0.5
    %v3719 = vmax.f32 %v2695, -0.5
    %v3720 = vmax.f32 %v2696, -0.5
    %v3721 = vmax.f32 %v2697, -0.5
    %v3722 = vmax.f32 %v2698, -0.5
    %v3723 = vmax.f32 %v2699, -0.5
    %v3724 = vmax.f32 %v2700, -0.5
    %v3725 = vmax.f32 %v2701, -0.5
    %v3726 = vmax.f32 %v2702, -0.5
    %v3727 = vmax.f32 %v2703, -0.5
    %v3728 = vmax.f32 %v2704, -0.5
    %v3729 = vmax.f32 %v2705, -0.5
    %v3730 = vmax.f32 %v2706, -0.5
    %v3731 = vmax.f32 %v2707, -0.5
    %v3732 = vmax.f32 %v2708, -0.5
    %v3733 = vmax.f32 %v2709, -0.5
    %v3734 = vmax.f32 %v2710, -0.5
    %v3735 = vmax.f32 %v2711, -0.5
    %v3736 = vmax.f32 %v2712, -0.5
    %v3737 = vmax.f32 %v2713, -0.5
    %v3738 = vmax.f32 %v2714, -0.5
    %v3739 = vmax.f32 %v2715, -0.5
    %v3740 = vmax.f32 %v2716, -0.5
    %v3741 = vmax.f32 %v2717, -0.5
    %v3742 = vmax.f32 %v2718, -0.5
    %v3743 = vmax.f32 %v2719, -0.5
    %v3744 = vmax.f32 %v2720, -0.5
    %v3745 = vmax.f32 %v2721, -0.5
    %v3746 = vmax.f32 %v2722, -0.5
    %v3747 = vmax.f32 %v2723, -0.5
    %v3748 = vmax.f32 %v2724, -0.5
    %v3749 = vmax.f32 %v2725, -0.5
    %v3750 = vmax.f32 %v2726, -0.5
    %v3751 = vmax.f32 %v2727, -0.5
    %v3752 = vmax.f32 %v2728, -0.5
    %v3753 = vmax.f32 %v2729, -0.5
    %v3754 = vmax.f32 %v2730, -0.5
    %v3755 = vmax.f32 %v2731, -0.5
    %v3756 = vmax.f32 %v2732, -0.5
    %v3757 = vmax.f32 %v2733, -0.5
    %v3758 = vmax.f32 %v2734, -0.5
    %v3759 = vmax.f32 %v2735, -0.5
    %v3760 = vmax.f32 %v2736, -0.5
    %v3761 = vmax.f32 %v2737, -0.5
    %v3762 = vmax.f32 %v2738, -0.5
    %v3763 = vmax.f32 %v2739, -0.5
    %v3764 = vmax.f32 %v2740, -0.5
    %v3765 = vmax.f32 %v2741, -0.5
    %v3766 = vmax.f32 %v2742, -0.5
    %v3767 = vmax.f32 %v2743, -0.5
    %v3768 = vmax.f32 %v2744, -0.5
    %v3769 = vmax.f32 %v2745, -0.5
    %v3770 = vmax.f32 %v2746, -0.5
    %v3771 = vmax.f32 %v2747, -0.5
    %v3772 = vmax.f32 %v2748, -0.5
    %v3773 = vmax.f32 %v2749, -0.5
    %v3774 = vmax.f32 %v2750, -0.5
    %v3775 = vmax.f32 %v2751, -0.5
    %v3776 = vmax.f32 %v2752, -0.5
    %v3777 = vmax.f32 %v2753, -0.5
    %v3778 = vmax.f32 %v2754, -0.5
    %v3779 = vmax.f32 %v2755, -0.5
    %v3780 = vmax.f32 %v2756, -0.5
    %v3781 = vmax.f32 %v2757, -0.5
    %v3782 = vmax.f32 %v2758, -0.5
    %v3783 = vmax.f32 %v2759, -0.5
    %v3784 = vmax.f32 %v2760, -0.5
    %v3785 = vmax.f32 %v2761, -0.5
    %v3786 = vmax.f32 %v2762, -0.5
    %v3787 = vmax.f32 %v2763, -0.5
    %v3788 = vmax.f32 %v2764, -0.5
    %v3789 = vmax.f32 %v2765, -0.5
    %v3790 = vmax.f32 %v2766, -0.5
    %v3791 = vmax.f32 %v2767, -0.5
    %v3792 = vmax.f32 %v2768, -0.5
    %v3793 = vmax.f32 %v2769, -0.5
    %v3794 = vmax.f32 %v2770, -0.5
    %v3795 = vmax.f32 %v2771, -0.5
    %v3796 = vmax.f32 %v2772, -0.5
    %v3797 = vmax.f32 %v2773, -0.5
    %v3798 = vmax.f32 %v2774, -0.5
    %v3799 = vmax.f32 %v2775, -0.5
    %v3800 = vmax.f32 %v2776, -0.5
    %v3801 = vmax.f32 %v2777, -0.5
    %v3802 = vmax.f32 %v2778, -0.5
    %v3803 = vmax.f32 %v2779, -0.5
    %v3804 = vmax.f32 %v2780, -0.5
    %v3805 = vmax.f32 %v2781, -0.5
    %v3806 = vmax.f32 %v2782, -0.5
    %v3807 = vmax.f32 %v2783, -0.5
    %v3808 = vmax.f32 %v2784, -0.5
    %v3809 = vmax.f32 %v2785, -0.5
    %v3810 = vmax.f32 %v2786, -0.5
    %v3811 = vmax.f32 %v2787, -0.5
    %v3812 = vmax.f32 %v2788, -0.5
    %v3813 = vmax.f32 %v2789, -0.5
    %v3814 = vmax.f32 %v2790, -0.5
    %v3815 = vmax.f32 %v2791, -0.5
    %v3816 = vmax.f32 %v2792, -0.5
    %v3817 = vmax.f32 %v2793, -0.5
    %v3818 = vmax.f32 %v2794, -0.5
    %v3819 = vmax.f32 %v2795, -0.5
    %v3820 = vmax.f32 %v2796, -0.5
    %v3821 = vmax.f32 %v2797, -0.5
    %v3822 = vmax.f32 %v2798, -0.5
    %v3823 = vmax.f32 %v2799, -0.5
    %v3824 = vmax.f32 %v2800, -0.5
    %v3825 = vmax.f32 %v2801, -0.5
    %v3826 = vmax.f32 %v2802, -0.5
    %v3827 = vmax.f32 %v2803, -0.5
    %v3828 = vmax.f32 %v2804, -0.5
    %v3829 = vmax.f32 %v2805, -0.5
    %v3830 = vmax.f32 %v2806, -0.5
    %v3831 = vmax.f32 %v2807, -0.5
    %v3832 = vmax.f32 %v2808, -0.5
    %v3833 = vmax.f32 %v2809, -0.5
    %v3834 = vmax.f32 %v2810, -0.5
    %v3835 = vmax.f32 %v2811, -0.5
    %v3836 = vmax.f32 %v2812, -0.5
    %v3837 = vmax.f32 %v2813, -0.5
    %v3838 = vmax.f32 %v2814, -0.5
    %v3839 = vmax.f32 %v2815, -0.5
    %v3840 = vmax.f32 %v2816, -0.5
    %v3841 = vmax.f32 %v2817, -0.5
    %v3842 = vmax.f32 %v2818, -0.5
    %v3843 = vmax.f32 %v2819, -0.5
    %v3844 = vmax.f32 %v2820, -0.5
    %v3845 = vmax.f32 %v2821, -0.5
    %v3846 = vmax.f32 %v2822, -0.5
    %v3847 = vmax.f32 %v2823, -0.5
    %v3848 = vmax.f32 %v2824, -0.5
    %v3849 = vmax.f32 %v2825, -0.5
    %v3850 = vmax.f32 %v2826, -0.5
    %v3851 = vmax.f32 %v2827, -0.5
    %v3852 = vmax.f32 %v2828, -0.5
    %v3853 = vmax.f32 %v2829, -0.5
    %v3854 = vmax.f32 %v2830, -0.5
    %v3855 = vmax.f32 %v2831, -0.5
    %v3856 = vmax.f32 %v2832, -0.5
    %v3857 = vmax.f32 %v2833, -0.5
    %v3858 = vmax.f32 %v2834, -0.5
    %v3859 = vmax.f32 %v2835, -0.5
    %v3860 = vmax.f32 %v2836, -0.5
    %v3861 = vmax.f32 %v2837, -0.5
    %v3862 = vmax.f32 %v2838, -0.5
    %v3863 = vmax.f32 %v2839, -0.5
    %v3864 = vmax.f32 %v2840, -0.5
    %v3865 = vmax.f32 %v2841, -0.5
    %v3866 = vmax.f32 %v2842, -0.5
    %v3867 = vmax.f32 %v2843, -0.5
    %v3868 = vmax.f32 %v2844, -0.5
    %v3869 = vmax.f32 %v2845, -0.5
    %v3870 = vmax.f32 %v2846, -0.5
    %v3871 = vmax.f32 %v2847, -0.5
    %v3872 = vmax.f32 %v2848, -0.5
    %v3873 = vmax.f32 %v2849, -0.5
    %v3874 = vmax.f32 %v2850, -0.5
    %v3875 = vmax.f32 %v2851, -0.5
    %v3876 = vmax.f32 %v2852, -0.5
    %v3877 = vmax.f32 %v2853, -0.5
    %v3878 = vmax.f32 %v2854, -0.5
    %v3879 = vmax.f32 %v2855, -0.5
    %v3880 = vmax.f32 %v2856, -0.5
    %v3881 = vmax.f32 %v2857, -0.5
    %v3882 = vmax.f32 %v2858, -0.5
    %v3883 = vmax.f32 %v2859, -0.5
    %v3884 = vmax.f32 %v2860, -0.5
    %v3885 = vmax.f32 %v2861, -0.5
    %v3886 = vmax.f32 %v2862, -0.5
    %v3887 = vmax.f32 %v2863, -0.5
    %v3888 = vmax.f32 %v2864, -0.5
    %v3889 = vmax.f32 %v2865, -0.5
    %v3890 = vmax.f32 %v2866, -0.5
    %v3891 = vmax.f32 %v2867, -0.5
    %v3892 = vmax.f32 %v2868, -0.5
    %v3893 = vmax.f32 %v2869, -0.5
    %v3894 = vmax.f32 %v2870, -0.5
    %v3895 = vmax.f32 %v2871, -0.5
    %v3896 = vmax.f32 %v2872, -0.5
    %v3897 = vmax.f32 %v2873, -0.5
    %v3898 = vmax.f32 %v2874, -0.5
    %v3899 = vmax.f32 %v2875, -0.5
    %v3900 = vmax.f32 %v2876, -0.5
    %v3901 = vmax.f32 %v2877, -0.5
    %v3902 = vmax.f32 %v2878, -0.5
    %v3903 = vmax.f32 %v2879, -0.5
    %v3904 = vmax.f32 %v2880, -0.5
    %v3905 = vmax.f32 %v2881, -0.5
    %v3906 = vmax.f32 %v2882, -0.5
    %v3907 = vmax.f32 %v2883, -0.5
    %v3908 = vmax.f32 %v2884, -0.5
    %v3909 = vmax.f32 %v2885, -0.5
    %v3910 = vmax.f32 %v2886, -0.5
    %v3911 = vmax.f32 %v2887, -0.5
    %v3912 = vmax.f32 %v2888, -0.5
    %v3913 = vmax.f32 %v2889, -0.5
    %v3914 = vmax.f32 %v2890, -0.5
    %v3915 = vmax.f32 %v2891, -0.5
    %v3916 = vmax.f32 %v2892, -0.5
    %v3917 = vmax.f32 %v2893, -0.5
    %v3918 = vmax.f32 %v2894, -0.5
    %v3919 = vmax.f32 %v2895, -0.5
    %v3920 = vmax.f32 %v2896, -0.5
    %v3921 = vmax.f32 %v2897, -0.5
    %v3922 = vmax.f32 %v2898, -0.5
    %v3923 = vmax.f32 %v2899, -0.5
    %v3924 = vmax.f32 %v2900, -0.5
    %v3925 = vmax.f32 %v2901, -0.5
    %v3926 = vmax.f32 %v2902, -0.5
    %v3927 = vmax.f32 %v2903, -0.5
    %v3928 = vmax.f32 %v2904, -0.5
    %v3929 = vmax.f32 %v2905, -0.5
    %v3930 = vmax.f32 %v2906, -0.5
    %v3931 = vmax.f32 %v2907, -0.5
    %v3932 = vmax.f32 %v2908, -0.5
    %v3933 = vmax.f32 %v2909, -0.5
    %v3934 = vmax.f32 %v2910, -0.5
    %v3935 = vmax.f32 %v2911, -0.5
    %v3936 = vmax.f32 %v2912, -0.5
    %v3937 = vmax.f32 %v2913, -0.5
    %v3938 = vmax.f32 %v2914, -0.5
    %v3939 = vmax.f32 %v2915, -0.5
    %v3940 = vmax.f32 %v2916, -0.5
    %v3941 = vmax.f32 %v2917, -0.5
    %v3942 = vmax.f32 %v2918, -0.5
    %v3943 = vmax.f32 %v2919, -0.5
    %v3944 = vmax.f32 %v2920, -0.5
    %v3945 = vmax.f32 %v2921, -0.5
    %v3946 = vmax.f32 %v2922, -0.5
    %v3947 = vmax.f32 %v2923, -0.5
    %v3948 = vmax.f32 %v2924, -0.5
    %v3949 = vmax.f32 %v2925, -0.5
    %v3950 = vmax.f32 %v2926, -0.5
    %v3951 = vmax.f32 %v2927, -0.5
    %v3952 = vmax.f32 %v2928, -0.5
    %v3953 = vmax.f32 %v2929, -0.5
    %v3954 = vmax.f32 %v2930, -0.5
    %v3955 = vmax.f32 %v2931, -0.5
    %v3956 = vmax.f32 %v2932, -0.5
    %v3957 = vmax.f32 %v2933, -0.5
    %v3958 = vmax.f32 %v2934, -0.5
    %v3959 = vmax.f32 %v2935, -0.5
    %v3960 = vmax.f32 %v2936, -0.5
    %v3961 = vmax.f32 %v2937, -0.5
    %v3962 = vmax.f32 %v2938, -0.5
    %v3963 = vmax.f32 %v2939, -0.5
    %v3964 = vmax.f32 %v2940, -0.5
    %v3965 = vmax.f32 %v2941, -0.5
    %v3966 = vmax.f32 %v2942, -0.5
    %v3967 = vmax.f32 %v2943, -0.5
    %v3968 = vmax.f32 %v2944, -0.5
    %v3969 = vmax.f32 %v2945, -0.5
    %v3970 = vmax.f32 %v2946, -0.5
    %v3971 = vmax.f32 %v2947, -0.5
    %v3972 = vmax.f32 %v2948, -0.5
    %v3973 = vmax.f32 %v2949, -0.5
    %v3974 = vmax.f32 %v2950, -0.5
    %v3975 = vmax.f32 %v2951, -0.5
    %v3976 = vmax.f32 %v2952, -0.5
    %v3977 = vmax.f32 %v2953, -0.5
    %v3978 = vmax.f32 %v2954, -0.5
    %v3979 = vmax.f32 %v2955, -0.5
    %v3980 = vmax.f32 %v2956, -0.5
    %v3981 = vmax.f32 %v2957, -0.5
    %v3982 = vmax.f32 %v2958, -0.5
    %v3983 = vmax.f32 %v2959, -0.5
    %v3984 = vmax.f32 %v2960, -0.5
    %v3985 = vmax.f32 %v2961, -0.5
    %v3986 = vmax.f32 %v2962, -0.5
    %v3987 = vmax.f32 %v2963, -0.5
    %v3988 = vmax.f32 %v2964, -0.5
    %v3989 = vmax.f32 %v2965, -0.5
    %v3990 = vmax.f32 %v2966, -0.5
    %v3991 = vmax.f32 %v2967, -0.5
    %v3992 = vmax.f32 %v2968, -0.5
    %v3993 = vmax.f32 %v2969, -0.5
    %v3994 = vmax.f32 %v2970, -0.5
    %v3995 = vmax.f32 %v2971, -0.5
    %v3996 = vmax.f32 %v2972, -0.5
    %v3997 = vmax.f32 %v2973, -0.5
    %v3998 = vmax.f32 %v2974, -0.5
    %v3999 = vmax.f32 %v2975, -0.5
    %v4000 = vmax.f32 %v2976, -0.5
    %v4001 = vmax.f32 %v2977, -0.5
    %v4002 = vmax.f32 %v2978, -0.5
    %v4003 = vmax.f32 %v2979, -0.5
    %v4004 = vmax.f32 %v2980, -0.5
    %v4005 = vmax.f32 %v2981, -0.5
    %v4006 = vmax.f32 %v2982, -0.5
    %v4007 = vmax.f32 %v2983, -0.5
    %v4008 = vmax.f32 %v2984, -0.5
    %v4009 = vmax.f32 %v2985, -0.5
    %v4010 = vmax.f32 %v2986, -0.5
    %v4011 = vmax.f32 %v2987, -0.5
    %v4012 = vmax.f32 %v2988, -0.5
    %v4013 = vmax.f32 %v2989, -0.5
    %v4014 = vmax.f32 %v2990, -0.5
    %v4015 = vmax.f32 %v2991, -0.5
    %v4016 = vmax.f32 %v2992, -0.5
    %v4017 = vmax.f32 %v2993, -0.5
    %v4018 = vmax.f32 %v2994, -0.5
    %v4019 = vmax.f32 %v2995, -0.5
    %v4020 = vmax.f32 %v2996, -0.5
    %v4021 = vmax.f32 %v2997, -0.5
    %v4022 = vmax.f32 %v2998, -0.5
    %v4023 = vmax.f32 %v2999, -0.5
    %v4024 = vmax.f32 %v3000, -0.5
    %v4025 = vmax.f32 %v3001, -0.5
    %v4026 = vmax.f32 %v3002, -0.5
    %v4027 = vmax.f32 %v3003, -0.5
    %v4028 = vmax.f32 %v3004, -0.5
    %v4029 = vmax.f32 %v3005, -0.5
    %v4030 = vmax.f32 %v3006, -0.5
    %v4031 = vmax.f32 %v3007, -0.5
    %v4032 = vmax.f32 %v3008, -0.5
    %v4033 = vmax.f32 %v3009, -0.5
    %v4034 = vmax.f32 %v3010, -0.5
    %v4035 = vmax.f32 %v3011, -0.5
    %v4036 = vmax.f32 %v3012, -0.5
    %v4037 = vmax.f32 %v3013, -0.5
    %v4038 = vmax.f32 %v3014, -0.5
    %v4039 = vmax.f32 %v3015, -0.5
    %v4040 = vmax.f32 %v3016, -0.5
    %v4041 = vmax.f32 %v3017, -0.5
    %v4042 = vmax.f32 %v3018, -0.5
    %v4043 = vmax.f32 %v3019, -0.5
    %v4044 = vmax.f32 %v3020, -0.5
    %v4045 = vmax.f32 %v3021, -0.5
    %v4046 = vmax.f32 %v3022, -0.5
    %v4047 = vmax.f32 %v3023, -0.5
    %v4048 = vmax.f32 %v3024, -0.5
    %v4049 = vmax.f32 %v3025, -0.5
    %v4050 = vmax.f32 %v3026, -0.5
    %v4051 = vmax.f32 %v3027, -0.5
    %v4052 = vmax.f32 %v3028, -0.5
    %v4053 = vmax.f32 %v3029, -0.5
    %v4054 = vmax.f32 %v3030, -0.5
    %v4055 = vmax.f32 %v3031, -0.5
    %v4056 = vmax.f32 %v3032, -0.5
    %v4057 = vmax.f32 %v3033, -0.5
    %v4058 = vmax.f32 %v3034, -0.5
    %v4059 = vmax.f32 %v3035, -0.5
    %v4060 = vmax.f32 %v3036, -0.5
    %v4061 = vmax.f32 %v3037, -0.5
    %v4062 = vmax.f32 %v3038, -0.5
    %v4063 = vmax.f32 %v3039, -0.5
    %v4064 = vmax.f32 %v3040, -0.5
    %v4065 = vmax.f32 %v3041, -0.5
    %v4066 = vmax.f32 %v3042, -0.5
    %v4067 = vmax.f32 %v3043, -0.5
    %v4068 = vmax.f32 %v3044, -0.5
    %v4069 = vmax.f32 %v3045, -0.5
    %v4070 = vmax.f32 %v3046, -0.5
    %v4071 = vmax.f32 %v3047, -0.5
    %v4072 = vmax.f32 %v3048, -0.5
    %v4073 = vmax.f32 %v3049, -0.5
    %v4074 = vmax.f32 %v3050, -0.5
    %v4075 = vmax.f32 %v3051, -0.5
    %v4076 = vmax.f32 %v3052, -0.5
    %v4077 = vmax.f32 %v3053, -0.5
    %v4078 = vmax.f32 %v3054, -0.5
    %v4079 = vmax.f32 %v3055, -0.5
    %v4080 = vmax.f32 %v3056, -0.5
    %v4081 = vmax.f32 %v3057, -0.5
    %v4082 = vmax.f32 %v3058, -0.5
    %v4083 = vmax.f32 %v3059, -0.5
    %v4084 = vmax.f32 %v3060, -0.5
    %v4085 = vmax.f32 %v3061, -0.5
    %v4086 = vmax.f32 %v3062, -0.5
    %v4087 = vmax.f32 %v3063, -0.5
    %v4088 = vmax.f32 %v3064, -0.5
    %v4089 = vmax.f32 %v3065, -0.5
    %v4090 = vmax.f32 %v3066, -0.5
    %v4091 = vmax.f32 %v3067, -0.5
    %v4092 = vmax.f32 %v3068, -0.5
    %v4093 = vmax.f32 %v3069, -0.5
    %v4094 = vmax.f32 %v3070, -0.5
    %v4095 = vmax.f32 %v3071, -0.5
    %v4096 = vmax.f32 %v3072, -0.5
    %v4097 = vmax.f32 %v3073, -0.5
    %v4098 = vmax.f32 %v3074, -0.5
    %v4099 = vmax.f32 %v3075, -0.5
    %v4100 = vmax.f32 %v3076, -0.5
    %v4101 = vmax.f32 %v3077, -0.5
    %v4102 = vmax.f32 %v3078, -0.5
    %v4103 = vmax.f32 %v3079, -0.5
    %v4104 = vmax.f32 %v3080, -0.5
    %v4105 = vmax.f32 %v3081, -0.5
    %v4106 = vmax.f32 %v3082, -0.5
    %v4107 = vmax.f32 %v3083, -0.5
    %v4108 = vmax.f32 %v3084, -0.5
    %v4109 = vmax.f32 %v3085, -0.5
    %v4110 = vmax.f32 %v3086, -0.5
    %v4111 = vmax.f32 %v3087, -0.5
    %v4112 = vmax.f32 %v3088, -0.5
    %v4113 = vmax.f32 %v3089, -0.5
    %v4114 = vmax.f32 %v3090, -0.5
    %v4115 = vmax.f32 %v3091, -0.5
    %v4116 = vmax.f32 %v3092, -0.5
    %v4117 = vmax.f32 %v3093, -0.5
    %v4118 = vmax.f32 %v3094, -0.5
    %v4119 = vmax.f32 %v3095, -0.5
    %v4120 = vmax.f32 %v3096, -0.5
    %v4121 = vmax.f32 %v3097, -0.5
    %v4122 = vmax.f32 %v3098, -0.5
    %v4123 = vmax.f32 %v3099, -0.5
    %v4124 = vmax.f32 %v3100, -0.5
    %v4125 = vmax.f32 %v3101, -0.5
    %v4126 = vmax.f32 %v3102, -0.5
    %v4127 = vmax.f32 %v3103, -0.5
    %v4128 = vmax.f32 %v3104, -0.5
    %v4129 = vmax.f32 %v3105, -0.5
    %v4130 = vmax.f32 %v3106, -0.5
    %v4131 = vmax.f32 %v3107, -0.5
    %v4132 = vmax.f32 %v3108, -0.5
    %v4133 = vmax.f32 %v3109, -0.5
    %v4134 = vmax.f32 %v3110, -0.5
    %v4135 = vmax.f32 %v3111, -0.5
    %v4136 = vmax.f32 %v3112, -0.5
    %v4137 = vmax.f32 %v3113, -0.5
    %v4138 = vmax.f32 %v3114, -0.5
    %v4139 = vmax.f32 %v3115, -0.5
    %v4140 = vmin.f32 %v3116, 0.5
    %v4141 = vmin.f32 %v3117, 0.5
    %v4142 = vmin.f32 %v3118, 0.5
    %v4143 = vmin.f32 %v3119, 0.5
    %v4144 = vmin.f32 %v3120, 0.5
    %v4145 = vmin.f32 %v3121, 0.5
    %v4146 = vmin.f32 %v3122, 0.5
    %v4147 = vmin.f32 %v3123, 0.5
    %v4148 = vmin.f32 %v3124, 0.5
    %v4149 = vmin.f32 %v3125, 0.5
    %v4150 = vmin.f32 %v3126, 0.5
    %v4151 = vmin.f32 %v3127, 0.5
    %v4152 = vmin.f32 %v3128, 0.5
    %v4153 = vmin.f32 %v3129, 0.5
    %v4154 = vmin.f32 %v3130, 0.5
    %v4155 = vmin.f32 %v3131, 0.5
    %v4156 = vmin.f32 %v3132, 0.5
    %v4157 = vmin.f32 %v3133, 0.5
    %v4158 = vmin.f32 %v3134, 0.5
    %v4159 = vmin.f32 %v3135, 0.5
    %v4160 = vmin.f32 %v3136, 0.5
    %v4161 = vmin.f32 %v3137, 0.5
    %v4162 = vmin.f32 %v3138, 0.5
    %v4163 = vmin.f32 %v3139, 0.5
    %v4164 = vmin.f32 %v3140, 0.5
    %v4165 = vmin.f32 %v3141, 0.5
    %v4166 = vmin.f32 %v3142, 0.5
    %v4167 = vmin.f32 %v3143, 0.5
    %v4168 = vmin.f32 %v3144, 0.5
    %v4169 = vmin.f32 %v3145, 0.5
    %v4170 = vmin.f32 %v3146, 0.5
    %v4171 = vmin.f32 %v3147, 0.5
    %v4172 = vmin.f32 %v3148, 0.5
    %v4173 = vmin.f32 %v3149, 0.5
    %v4174 = vmin.f32 %v3150, 0.5
    %v4175 = vmin.f32 %v3151, 0.5
    %v4176 = vmin.f32 %v3152, 0.5
    %v4177 = vmin.f32 %v3153, 0.5
    %v4178 = vmin.f32 %v3154, 0.5
    %v4179 = vmin.f32 %v3155, 0.5
    %v4180 = vmin.f32 %v3156, 0.5
    %v4181 = vmin.f32 %v3157, 0.5
    %v4182 = vmin.f32 %v3158, 0.5
    %v4183 = vmin.f32 %v3159, 0.5
    %v4184 = vmin.f32 %v3160, 0.5
    %v4185 = vmin.f32 %v3161, 0.5
    %v4186 = vmin.f32 %v3162, 0.5
    %v4187 = vmin.f32 %v3163, 0.5
    %v4188 = vmin.f32 %v3164, 0.5
    %v4189 = vmin.f32 %v3165, 0.5
    %v4190 = vmin.f32 %v3166, 0.5
    %v4191 = vmin.f32 %v3167, 0.5
    %v4192 = vmin.f32 %v3168, 0.5
    %v4193 = vmin.f32 %v3169, 0.5
    %v4194 = vmin.f32 %v3170, 0.5
    %v4195 = vmin.f32 %v3171, 0.5
    %v4196 = vmin.f32 %v3172, 0.5
    %v4197 = vmin.f32 %v3173, 0.5
    %v4198 = vmin.f32 %v3174, 0.5
    %v4199 = vmin.f32 %v3175, 0.5
    %v4200 = vmin.f32 %v3176, 0.5
    %v4201 = vmin.f32 %v3177, 0.5
    %v4202 = vmin.f32 %v3178, 0.5
    %v4203 = vmin.f32 %v3179, 0.5
    %v4204 = vmin.f32 %v3180, 0.5
    %v4205 = vmin.f32 %v3181, 0.5
    %v4206 = vmin.f32 %v3182, 0.5
    %v4207 = vmin.f32 %v3183, 0.5
    %v4208 = vmin.f32 %v3184, 0.5
    %v4209 = vmin.f32 %v3185, 0.5
    %v4210 = vmin.f32 %v3186, 0.5
    %v4211 = vmin.f32 %v3187, 0.5
    %v4212 = vmin.f32 %v3188, 0.5
    %v4213 = vmin.f32 %v3189, 0.5
    %v4214 = vmin.f32 %v3190, 0.5
    %v4215 = vmin.f32 %v3191, 0.5
    %v4216 = vmin.f32 %v3192, 0.5
    %v4217 = vmin.f32 %v3193, 0.5
    %v4218 = vmin.f32 %v3194, 0.5
    %v4219 = vmin.f32 %v3195, 0.5
    %v4220 = vmin.f32 %v3196, 0.5
    %v4221 = vmin.f32 %v3197, 0.5
    %v4222 = vmin.f32 %v3198, 0.5
    %v4223 = vmin.f32 %v3199, 0.5
    %v4224 = vmin.f32 %v3200, 0.5
    %v4225 = vmin.f32 %v3201, 0.5
    %v4226 = vmin.f32 %v3202, 0.5
    %v4227 = vmin.f32 %v3203, 0.5
    %v4228 = vmin.f32 %v3204, 0.5
    %v4229 = vmin.f32 %v3205, 0.5
    %v4230 = vmin.f32 %v3206, 0.5
    %v4231 = vmin.f32 %v3207, 0.5
    %v4232 = vmin.f32 %v3208, 0.5
    %v4233 = vmin.f32 %v3209, 0.5
    %v4234 = vmin.f32 %v3210, 0.5
    %v4235 = vmin.f32 %v3211, 0.5
    %v4236 = vmin.f32 %v3212, 0.5
    %v4237 = vmin.f32 %v3213, 0.5
    %v4238 = vmin.f32 %v3214, 0.5
    %v4239 = vmin.f32 %v3215, 0.5
    %v4240 = vmin.f32 %v3216, 0.5
    %v4241 = vmin.f32 %v3217, 0.5
    %v4242 = vmin.f32 %v3218, 0.5
    %v4243 = vmin.f32 %v3219, 0.5
    %v4244 = vmin.f32 %v3220, 0.5
    %v4245 = vmin.f32 %v3221, 0.5
    %v4246 = vmin.f32 %v3222, 0.5
    %v4247 = vmin.f32 %v3223, 0.5
    %v4248 = vmin.f32 %v3224, 0.5
    %v4249 = vmin.f32 %v3225, 0.5
    %v4250 = vmin.f32 %v3226, 0.5
    %v4251 = vmin.f32 %v3227, 0.5
    %v4252 = vmin.f32 %v3228, 0.5
    %v4253 = vmin.f32 %v3229, 0.5
    %v4254 = vmin.f32 %v3230, 0.5
    %v4255 = vmin.f32 %v3231, 0.5
    %v4256 = vmin.f32 %v3232, 0.5
    %v4257 = vmin.f32 %v3233, 0.5
    %v4258 = vmin.f32 %v3234, 0.5
    %v4259 = vmin.f32 %v3235, 0.5
    %v4260 = vmin.f32 %v3236, 0.5
    %v4261 = vmin.f32 %v3237, 0.5
    %v4262 = vmin.f32 %v3238, 0.5
    %v4263 = vmin.f32 %v3239, 0.5
    %v4264 = vmin.f32 %v3240, 0.5
    %v4265 = vmin.f32 %v3241, 0.5
    %v4266 = vmin.f32 %v3242, 0.5
    %v4267 = vmin.f32 %v3243, 0.5
    %v4268 = vmin.f32 %v3244, 0.5
    %v4269 = vmin.f32 %v3245, 0.5
    %v4270 = vmin.f32 %v3246, 0.5
    %v4271 = vmin.f32 %v3247, 0.5
    %v4272 = vmin.f32 %v3248, 0.5
    %v4273 = vmin.f32 %v3249, 0.5
    %v4274 = vmin.f32 %v3250, 0.5
    %v4275 = vmin.f32 %v3251, 0.5
    %v4276 = vmin.f32 %v3252, 0.5
    %v4277 = vmin.f32 %v3253, 0.5
    %v4278 = vmin.f32 %v3254, 0.5
    %v4279 = vmin.f32 %v3255, 0.5
    %v4280 = vmin.f32 %v3256, 0.5
    %v4281 = vmin.f32 %v3257, 0.5
    %v4282 = vmin.f32 %v3258, 0.5
    %v4283 = vmin.f32 %v3259, 0.5
    %v4284 = vmin.f32 %v3260, 0.5
    %v4285 = vmin.f32 %v3261, 0.5
    %v4286 = vmin.f32 %v3262, 0.5
    %v4287 = vmin.f32 %v3263, 0.5
    %v4288 = vmin.f32 %v3264, 0.5
    %v4289 = vmin.f32 %v3265, 0.5
    %v4290 = vmin.f32 %v3266, 0.5
    %v4291 = vmin.f32 %v3267, 0.5
    %v4292 = vmin.f32 %v3268, 0.5
    %v4293 = vmin.f32 %v3269, 0.5
    %v4294 = vmin.f32 %v3270, 0.5
    %v4295 = vmin.f32 %v3271, 0.5
    %v4296 = vmin.f32 %v3272, 0.5
    %v4297 = vmin.f32 %v3273, 0.5
    %v4298 = vmin.f32 %v3274, 0.5
    %v4299 = vmin.f32 %v3275, 0.5
    %v4300 = vmin.f32 %v3276, 0.5
    %v4301 = vmin.f32 %v3277, 0.5
    %v4302 = vmin.f32 %v3278, 0.5
    %v4303 = vmin.f32 %v3279, 0.5
    %v4304 = vmin.f32 %v3280, 0.5
    %v4305 = vmin.f32 %v3281, 0.5
    %v4306 = vmin.f32 %v3282, 0.5
    %v4307 = vmin.f32 %v3283, 0.5
    %v4308 = vmin.f32 %v3284, 0.5
    %v4309 = vmin.f32 %v3285, 0.5
    %v4310 = vmin.f32 %v3286, 0.5
    %v4311 = vmin.f32 %v3287, 0.5
    %v4312 = vmin.f32 %v3288, 0.5
    %v4313 = vmin.f32 %v3289, 0.5
    %v4314 = vmin.f32 %v3290, 0.5
    %v4315 = vmin.f32 %v3291, 0.5
    %v4316 = vmin.f32 %v3292, 0.5
    %v4317 = vmin.f32 %v3293, 0.5
    %v4318 = vmin.f32 %v3294, 0.5
    %v4319 = vmin.f32 %v3295, 0.5
    %v4320 = vmin.f32 %v3296, 0.5
    %v4321 = vmin.f32 %v3297, 0.5
    %v4322 = vmin.f32 %v3298, 0.5
    %v4323 = vmin.f32 %v3299, 0.5
    %v4324 = vmin.f32 %v3300, 0.5
    %v4325 = vmin.f32 %v3301, 0.5
    %v4326 = vmin.f32 %v3302, 0.5
    %v4327 = vmin.f32 %v3303, 0.5
    %v4328 = vmin.f32 %v3304, 0.5
    %v4329 = vmin.f32 %v3305, 0.5
    %v4330 = vmin.f32 %v3306, 0.5
    %v4331 = vmin.f32 %v3307, 0.5
    %v4332 = vmin.f32 %v3308, 0.5
    %v4333 = vmin.f32 %v3309, 0.5
    %v4334 = vmin.f32 %v3310, 0.5
    %v4335 = vmin.f32 %v3311, 0.5
    %v4336 = vmin.f32 %v3312, 0.5
    %v4337 = vmin.f32 %v3313, 0.5
    %v4338 = vmin.f32 %v3314, 0.5
    %v4339 = vmin.f32 %v3315, 0.5
    %v4340 = vmin.f32 %v3316, 0.5
    %v4341 = vmin.f32 %v3317, 0.5
    %v4342 = vmin.f32 %v3318, 0.5
    %v4343 = vmin.f32 %v3319, 0.5
    %v4344 = vmin.f32 %v3320, 0.5
    %v4345 = vmin.f32 %v3321, 0.5
    %v4346 = vmin.f32 %v3322, 0.5
    %v4347 = vmin.f32 %v3323, 0.5
    %v4348 = vmin.f32 %v3324, 0.5
    %v4349 = vmin.f32 %v3325, 0.5
    %v4350 = vmin.f32 %v3326, 0.5
    %v4351 = vmin.f32 %v3327, 0.5
    %v4352 = vmin.f32 %v3328, 0.5
    %v4353 = vmin.f32 %v3329, 0.5
    %v4354 = vmin.f32 %v3330, 0.5
    %v4355 = vmin.f32 %v3331, 0.5
    %v4356 = vmin.f32 %v3332, 0.5
    %v4357 = vmin.f32 %v3333, 0.5
    %v4358 = vmin.f32 %v3334, 0.5
    %v4359 = vmin.f32 %v3335, 0.5
    %v4360 = vmin.f32 %v3336, 0.5
    %v4361 = vmin.f32 %v3337, 0.5
    %v4362 = vmin.f32 %v3338, 0.5
    %v4363 = vmin.f32 %v3339, 0.5
    %v4364 = vmin.f32 %v3340, 0.5
    %v4365 = vmin.f32 %v3341, 0.5
    %v4366 = vmin.f32 %v3342, 0.5
    %v4367 = vmin.f32 %v3343, 0.5
    %v4368 = vmin.f32 %v3344, 0.5
    %v4369 = vmin.f32 %v3345, 0.5
    %v4370 = vmin.f32 %v3346, 0.5
    %v4371 = vmin.f32 %v3347, 0.5
    %v4372 = vmin.f32 %v3348, 0.5
    %v4373 = vmin.f32 %v3349, 0.5
    %v4374 = vmin.f32 %v3350, 0.5
    %v4375 = vmin.f32 %v3351, 0.5
    %v4376 = vmin.f32 %v3352, 0.5
    %v4377 = vmin.f32 %v3353, 0.5
    %v4378 = vmin.f32 %v3354, 0.5
    %v4379 = vmin.f32 %v3355, 0.5
    %v4380 = vmin.f32 %v3356, 0.5
    %v4381 = vmin.f32 %v3357, 0.5
    %v4382 = vmin.f32 %v3358, 0.5
    %v4383 = vmin.f32 %v3359, 0.5
    %v4384 = vmin.f32 %v3360, 0.5
    %v4385 = vmin.f32 %v3361, 0.5
    %v4386 = vmin.f32 %v3362, 0.5
    %v4387 = vmin.f32 %v3363, 0.5
    %v4388 = vmin.f32 %v3364, 0.5
    %v4389 = vmin.f32 %v3365, 0.5
    %v4390 = vmin.f32 %v3366, 0.5
    %v4391 = vmin.f32 %v3367, 0.5
    %v4392 = vmin.f32 %v3368, 0.5
    %v4393 = vmin.f32 %v3369, 0.5
    %v4394 = vmin.f32 %v3370, 0.5
    %v4395 = vmin.f32 %v3371, 0.5
    %v4396 = vmin.f32 %v3372, 0.5
    %v4397 = vmin.f32 %v3373, 0.5
    %v4398 = vmin.f32 %v3374, 0.5
    %v4399 = vmin.f32 %v3375, 0.5
    %v4400 = vmin.f32 %v3376, 0.5
    %v4401 = vmin.f32 %v3377, 0.5
    %v4402 = vmin.f32 %v3378, 0.5
    %v4403 = vmin.f32 %v3379, 0.5
    %v4404 = vmin.f32 %v3380, 0.5
    %v4405 = vmin.f32 %v3381, 0.5
    %v4406 = vmin.f32 %v3382, 0.5
    %v4407 = vmin.f32 %v3383, 0.5
    %v4408 = vmin.f32 %v3384, 0.5
    %v4409 = vmin.f32 %v3385, 0.5
    %v4410 = vmin.f32 %v3386, 0.5
    %v4411 = vmin.f32 %v3387, 0.5
    %v4412 = vmin.f32 %v3388, 0.5
    %v4413 = vmin.f32 %v3389, 0.5
    %v4414 = vmin.f32 %v3390, 0.5
    %v4415 = vmin.f32 %v3391, 0.5
    %v4416 = vmin.f32 %v3392, 0.5
    %v4417 = vmin.f32 %v3393, 0.5
    %v4418 = vmin.f32 %v3394, 0.5
    %v4419 = vmin.f32 %v3395, 0.5
    %v4420 = vmin.f32 %v3396, 0.5
    %v4421 = vmin.f32 %v3397, 0.5
    %v4422 = vmin.f32 %v3398, 0.5
    %v4423 = vmin.f32 %v3399, 0.5
    %v4424 = vmin.f32 %v3400, 0.5
    %v4425 = vmin.f32 %v3401, 0.5
    %v4426 = vmin.f32 %v3402, 0.5
    %v4427 = vmin.f32 %v3403, 0.5
    %v4428 = vmin.f32 %v3404, 0.5
    %v4429 = vmin.f32 %v3405, 0.5
    %v4430 = vmin.f32 %v3406, 0.5
    %v4431 = vmin.f32 %v3407, 0.5
    %v4432 = vmin.f32 %v3408, 0.5
    %v4433 = vmin.f32 %v3409, 0.5
    %v4434 = vmin.f32 %v3410, 0.5
    %v4435 = vmin.f32 %v3411, 0.5
    %v4436 = vmin.f32 %v3412, 0.5
    %v4437 = vmin.f32 %v3413, 0.5
    %v4438 = vmin.f32 %v3414, 0.5
    %v4439 = vmin.f32 %v3415, 0.5
    %v4440 = vmin.f32 %v3416, 0.5
    %v4441 = vmin.f32 %v3417, 0.5
    %v4442 = vmin.f32 %v3418, 0.5
    %v4443 = vmin.f32 %v3419, 0.5
    %v4444 = vmin.f32 %v3420, 0.5
    %v4445 = vmin.f32 %v3421, 0.5
    %v4446 = vmin.f32 %v3422, 0.5
    %v4447 = vmin.f32 %v3423, 0.5
    %v4448 = vmin.f32 %v3424, 0.5
    %v4449 = vmin.f32 %v3425, 0.5
    %v4450 = vmin.f32 %v3426, 0.5
    %v4451 = vmin.f32 %v3427, 0.5
    %v4452 = vmin.f32 %v3428, 0.5
    %v4453 = vmin.f32 %v3429, 0.5
    %v4454 = vmin.f32 %v3430, 0.5
    %v4455 = vmin.f32 %v3431, 0.5
    %v4456 = vmin.f32 %v3432, 0.5
    %v4457 = vmin.f32 %v3433, 0.5
    %v4458 = vmin.f32 %v3434, 0.5
    %v4459 = vmin.f32 %v3435, 0.5
    %v4460 = vmin.f32 %v3436, 0.5
    %v4461 = vmin.f32 %v3437, 0.5
    %v4462 = vmin.f32 %v3438, 0.5
    %v4463 = vmin.f32 %v3439, 0.5
    %v4464 = vmin.f32 %v3440, 0.5
    %v4465 = vmin.f32 %v3441, 0.5
    %v4466 = vmin.f32 %v3442, 0.5
    %v4467 = vmin.f32 %v3443, 0.5
    %v4468 = vmin.f32 %v3444, 0.5
    %v4469 = vmin.f32 %v3445, 0.5
    %v4470 = vmin.f32 %v3446, 0.5
    %v4471 = vmin.f32 %v3447, 0.5
    %v4472 = vmin.f32 %v3448, 0.5
    %v4473 = vmin.f32 %v3449, 0.5
    %v4474 = vmin.f32 %v3450, 0.5
    %v4475 = vmin.f32 %v3451, 0.5
    %v4476 = vmin.f32 %v3452, 0.5
    %v4477 = vmin.f32 %v3453, 0.5
    %v4478 = vmin.f32 %v3454, 0.5
    %v4479 = vmin.f32 %v3455, 0.5
    %v4480 = vmin.f32 %v3456, 0.5
    %v4481 = vmin.f32 %v3457, 0.5
    %v4482 = vmin.f32 %v3458, 0.5
    %v4483 = vmin.f32 %v3459, 0.5
    %v4484 = vmin.f32 %v3460, 0.5
    %v4485 = vmin.f32 %v3461, 0.5
    %v4486 = vmin.f32 %v3462, 0.5
    %v4487 = vmin.f32 %v3463, 0.5
    %v4488 = vmin.f32 %v3464, 0.5
    %v4489 = vmin.f32 %v3465, 0.5
    %v4490 = vmin.f32 %v3466, 0.5
    %v4491 = vmin.f32 %v3467, 0.5
    %v4492 = vmin.f32 %v3468, 0.5
    %v4493 = vmin.f32 %v3469, 0.5
    %v4494 = vmin.f32 %v3470, 0.5
    %v4495 = vmin.f32 %v3471, 0.5
    %v4496 = vmin.f32 %v3472, 0.5
    %v4497 = vmin.f32 %v3473, 0.5
    %v4498 = vmin.f32 %v3474, 0.5
    %v4499 = vmin.f32 %v3475, 0.5
    %v4500 = vmin.f32 %v3476, 0.5
    %v4501 = vmin.f32 %v3477, 0.5
    %v4502 = vmin.f32 %v3478, 0.5
    %v4503 = vmin.f32 %v3479, 0.5
    %v4504 = vmin.f32 %v3480, 0.5
    %v4505 = vmin.f32 %v3481, 0.5
    %v4506 = vmin.f32 %v3482, 0.5
    %v4507 = vmin.f32 %v3483, 0.5
    %v4508 = vmin.f32 %v3484, 0.5
    %v4509 = vmin.f32 %v3485, 0.5
    %v4510 = vmin.f32 %v3486, 0.5
    %v4511 = vmin.f32 %v3487, 0.5
    %v4512 = vmin.f32 %v3488, 0.5
    %v4513 = vmin.f32 %v3489, 0.5
    %v4514 = vmin.f32 %v3490, 0.5
    %v4515 = vmin.f32 %v3491, 0.5
    %v4516 = vmin.f32 %v3492, 0.5
    %v4517 = vmin.f32 %v3493, 0.5
    %v4518 = vmin.f32 %v3494, 0.5
    %v4519 = vmin.f32 %v3495, 0.5
    %v4520 = vmin.f32 %v3496, 0.5
    %v4521 = vmin.f32 %v3497, 0.5
    %v4522 = vmin.f32 %v3498, 0.5
    %v4523 = vmin.f32 %v3499, 0.5
    %v4524 = vmin.f32 %v3500, 0.5
    %v4525 = vmin.f32 %v3501, 0.5
    %v4526 = vmin.f32 %v3502, 0.5
    %v4527 = vmin.f32 %v3503, 0.5
    %v4528 = vmin.f32 %v3504, 0.5
    %v4529 = vmin.f32 %v3505, 0.5
    %v4530 = vmin.f32 %v3506, 0.5
    %v4531 = vmin.f32 %v3507, 0.5
    %v4532 = vmin.f32 %v3508, 0.5
    %v4533 = vmin.f32 %v3509, 0.5
    %v4534 = vmin.f32 %v3510, 0.5
    %v4535 = vmin.f32 %v3511, 0.5
    %v4536 = vmin.f32 %v3512, 0.5
    %v4537 = vmin.f32 %v3513, 0.5
    %v4538 = vmin.f32 %v3514, 0.5
    %v4539 = vmin.f32 %v3515, 0.5
    %v4540 = vmin.f32 %v3516, 0.5
    %v4541 = vmin.f32 %v3517, 0.5
    %v4542 = vmin.f32 %v3518, 0.5
    %v4543 = vmin.f32 %v3519, 0.5
    %v4544 = vmin.f32 %v3520, 0.5
    %v4545 = vmin.f32 %v3521, 0.5
    %v4546 = vmin.f32 %v3522, 0.5
    %v4547 = vmin.f32 %v3523, 0.5
    %v4548 = vmin.f32 %v3524, 0.5
    %v4549 = vmin.f32 %v3525, 0.5
    %v4550 = vmin.f32 %v3526, 0.5
    %v4551 = vmin.f32 %v3527, 0.5
    %v4552 = vmin.f32 %v3528, 0.5
    %v4553 = vmin.f32 %v3529, 0.5
    %v4554 = vmin.f32 %v3530, 0.5
    %v4555 = vmin.f32 %v3531, 0.5
    %v4556 = vmin.f32 %v3532, 0.5
    %v4557 = vmin.f32 %v3533, 0.5
    %v4558 = vmin.f32 %v3534, 0.5
    %v4559 = vmin.f32 %v3535, 0.5
    %v4560 = vmin.f32 %v3536, 0.5
    %v4561 = vmin.f32 %v3537, 0.5
    %v4562 = vmin.f32 %v3538, 0.5
    %v4563 = vmin.f32 %v3539, 0.5
    %v4564 = vmin.f32 %v3540, 0.5
    %v4565 = vmin.f32 %v3541, 0.5
    %v4566 = vmin.f32 %v3542, 0.5
    %v4567 = vmin.f32 %v3543, 0.5
    %v4568 = vmin.f32 %v3544, 0.5
    %v4569 = vmin.f32 %v3545, 0.5
    %v4570 = vmin.f32 %v3546, 0.5
    %v4571 = vmin.f32 %v3547, 0.5
    %v4572 = vmin.f32 %v3548, 0.5
    %v4573 = vmin.f32 %v3549, 0.5
    %v4574 = vmin.f32 %v3550, 0.5
    %v4575 = vmin.f32 %v3551, 0.5
    %v4576 = vmin.f32 %v3552, 0.5
    %v4577 = vmin.f32 %v3553, 0.5
    %v4578 = vmin.f32 %v3554, 0.5
    %v4579 = vmin.f32 %v3555, 0.5
    %v4580 = vmin.f32 %v3556, 0.5
    %v4581 = vmin.f32 %v3557, 0.5
    %v4582 = vmin.f32 %v3558, 0.5
    %v4583 = vmin.f32 %v3559, 0.5
    %v4584 = vmin.f32 %v3560, 0.5
    %v4585 = vmin.f32 %v3561, 0.5
    %v4586 = vmin.f32 %v3562, 0.5
    %v4587 = vmin.f32 %v3563, 0.5
    %v4588 = vmin.f32 %v3564, 0.5
    %v4589 = vmin.f32 %v3565, 0.5
    %v4590 = vmin.f32 %v3566, 0.5
    %v4591 = vmin.f32 %v3567, 0.5
    %v4592 = vmin.f32 %v3568, 0.5
    %v4593 = vmin.f32 %v3569, 0.5
    %v4594 = vmin.f32 %v3570, 0.5
    %v4595 = vmin.f32 %v3571, 0.5
    %v4596 = vmin.f32 %v3572, 0.5
    %v4597 = vmin.f32 %v3573, 0.5
    %v4598 = vmin.f32 %v3574, 0.5
    %v4599 = vmin.f32 %v3575, 0.5
    %v4600 = vmin.f32 %v3576, 0.5
    %v4601 = vmin.f32 %v3577, 0.5
    %v4602 = vmin.f32 %v3578, 0.5
    %v4603 = vmin.f32 %v3579, 0.5
    %v4604 = vmin.f32 %v3580, 0.5
    %v4605 = vmin.f32 %v3581, 0.5
    %v4606 = vmin.f32 %v3582, 0.5
    %v4607 = vmin.f32 %v3583, 0.5
    %v4608 = vmin.f32 %v3584, 0.5
    %v4609 = vmin.f32 %v3585, 0.5
    %v4610 = vmin.f32 %v3586, 0.5
    %v4611 = vmin.f32 %v3587, 0.5
    %v4612 = vmin.f32 %v3588, 0.5
    %v4613 = vmin.f32 %v3589, 0.5
    %v4614 = vmin.f32 %v3590, 0.5
    %v4615 = vmin.f32 %v3591, 0.5
    %v4616 = vmin.f32 %v3592, 0.5
    %v4617 = vmin.f32 %v3593, 0.5
    %v4618 = vmin.f32 %v3594, 0.5
    %v4619 = vmin.f32 %v3595, 0.5
    %v4620 = vmin.f32 %v3596, 0.5
    %v4621 = vmin.f32 %v3597, 0.5
    %v4622 = vmin.f32 %v3598, 0.5
    %v4623 = vmin.f32 %v3599, 0.5
    %v4624 = vmin.f32 %v3600, 0.5
    %v4625 = vmin.f32 %v3601, 0.5
    %v4626 = vmin.f32 %v3602, 0.5
    %v4627 = vmin.f32 %v3603, 0.5
    %v4628 = vmin.f32 %v3604, 0.5
    %v4629 = vmin.f32 %v3605, 0.5
    %v4630 = vmin.f32 %v3606, 0.5
    %v4631 = vmin.f32 %v3607, 0.5
    %v4632 = vmin.f32 %v3608, 0.5
    %v4633 = vmin.f32 %v3609, 0.5
    %v4634 = vmin.f32 %v3610, 0.5
    %v4635 = vmin.f32 %v3611, 0.5
    %v4636 = vmin.f32 %v3612, 0.5
    %v4637 = vmin.f32 %v3613, 0.5
    %v4638 = vmin.f32 %v3614, 0.5
    %v4639 = vmin.f32 %v3615, 0.5
    %v4640 = vmin.f32 %v3616, 0.5
    %v4641 = vmin.f32 %v3617, 0.5
    %v4642 = vmin.f32 %v3618, 0.5
    %v4643 = vmin.f32 %v3619, 0.5
    %v4644 = vmin.f32 %v3620, 0.5
    %v4645 = vmin.f32 %v3621, 0.5
    %v4646 = vmin.f32 %v3622, 0.5
    %v4647 = vmin.f32 %v3623, 0.5
    %v4648 = vmin.f32 %v3624, 0.5
    %v4649 = vmin.f32 %v3625, 0.5
    %v4650 = vmin.f32 %v3626, 0.5
    %v4651 = vmin.f32 %v3627, 0.5
    %v4652 = vmin.f32 %v3628, 0.5
    %v4653 = vmin.f32 %v3629, 0.5
    %v4654 = vmin.f32 %v3630, 0.5
    %v4655 = vmin.f32 %v3631, 0.5
    %v4656 = vmin.f32 %v3632, 0.5
    %v4657 = vmin.f32 %v3633, 0.5
    %v4658 = vmin.f32 %v3634, 0.5
    %v4659 = vmin.f32 %v3635, 0.5
    %v4660 = vmin.f32 %v3636, 0.5
    %v4661 = vmin.f32 %v3637, 0.5
    %v4662 = vmin.f32 %v3638, 0.5
    %v4663 = vmin.f32 %v3639, 0.5
    %v4664 = vmin.f32 %v3640, 0.5
    %v4665 = vmin.f32 %v3641, 0.5
    %v4666 = vmin.f32 %v3642, 0.5
    %v4667 = vmin.f32 %v3643, 0.5
    %v4668 = vmin.f32 %v3644, 0.5
    %v4669 = vmin.f32 %v3645, 0.5
    %v4670 = vmin.f32 %v3646, 0.5
    %v4671 = vmin.f32 %v3647, 0.5
    %v4672 = vmin.f32 %v3648, 0.5
    %v4673 = vmin.f32 %v3649, 0.5
    %v4674 = vmin.f32 %v3650, 0.5
    %v4675 = vmin.f32 %v3651, 0.5
    %v4676 = vmin.f32 %v3652, 0.5
    %v4677 = vmin.f32 %v3653, 0.5
    %v4678 = vmin.f32 %v3654, 0.5
    %v4679 = vmin.f32 %v3655, 0.5
    %v4680 = vmin.f32 %v3656, 0.5
    %v4681 = vmin.f32 %v3657, 0.5
    %v4682 = vmin.f32 %v3658, 0.5
    %v4683 = vmin.f32 %v3659, 0.5
    %v4684 = vmin.f32 %v3660, 0.5
    %v4685 = vmin.f32 %v3661, 0.5
    %v4686 = vmin.f32 %v3662, 0.5
    %v4687 = vmin.f32 %v3663, 0.5
    %v4688 = vmin.f32 %v3664, 0.5
    %v4689 = vmin.f32 %v3665, 0.5
    %v4690 = vmin.f32 %v3666, 0.5
    %v4691 = vmin.f32 %v3667, 0.5
    %v4692 = vmin.f32 %v3668, 0.5
    %v4693 = vmin.f32 %v3669, 0.5
    %v4694 = vmin.f32 %v3670, 0.5
    %v4695 = vmin.f32 %v3671, 0.5
    %v4696 = vmin.f32 %v3672, 0.5
    %v4697 = vmin.f32 %v3673, 0.5
    %v4698 = vmin.f32 %v3674, 0.5
    %v4699 = vmin.f32 %v3675, 0.5
    %v4700 = vmin.f32 %v3676, 0.5
    %v4701 = vmin.f32 %v3677, 0.5
    %v4702 = vmin.f32 %v3678, 0.5
    %v4703 = vmin.f32 %v3679, 0.5
    %v4704 = vmin.f32 %v3680, 0.5
    %v4705 = vmin.f32 %v3681, 0.5
    %v4706 = vmin.f32 %v3682, 0.5
    %v4707 = vmin.f32 %v3683, 0.5
    %v4708 = vmin.f32 %v3684, 0.5
    %v4709 = vmin.f32 %v3685, 0.5
    %v4710 = vmin.f32 %v3686, 0.5
    %v4711 = vmin.f32 %v3687, 0.5
    %v4712 = vmin.f32 %v3688, 0.5
    %v4713 = vmin.f32 %v3689, 0.5
    %v4714 = vmin.f32 %v3690, 0.5
    %v4715 = vmin.f32 %v3691, 0.5
    %v4716 = vmin.f32 %v3692, 0.5
    %v4717 = vmin.f32 %v3693, 0.5
    %v4718 = vmin.f32 %v3694, 0.5
    %v4719 = vmin.f32 %v3695, 0.5
    %v4720 = vmin.f32 %v3696, 0.5
    %v4721 = vmin.f32 %v3697, 0.5
    %v4722 = vmin.f32 %v3698, 0.5
    %v4723 = vmin.f32 %v3699, 0.5
    %v4724 = vmin.f32 %v3700, 0.5
    %v4725 = vmin.f32 %v3701, 0.5
    %v4726 = vmin.f32 %v3702, 0.5
    %v4727 = vmin.f32 %v3703, 0.5
    %v4728 = vmin.f32 %v3704, 0.5
    %v4729 = vmin.f32 %v3705, 0.5
    %v4730 = vmin.f32 %v3706, 0.5
    %v4731 = vmin.f32 %v3707, 0.5
    %v4732 = vmin.f32 %v3708, 0.5
    %v4733 = vmin.f32 %v3709, 0.5
    %v4734 = vmin.f32 %v3710, 0.5
    %v4735 = vmin.f32 %v3711, 0.5
    %v4736 = vmin.f32 %v3712, 0.5
    %v4737 = vmin.f32 %v3713, 0.5
    %v4738 = vmin.f32 %v3714, 0.5
    %v4739 = vmin.f32 %v3715, 0.5
    %v4740 = vmin.f32 %v3716, 0.5
    %v4741 = vmin.f32 %v3717, 0.5
    %v4742 = vmin.f32 %v3718, 0.5
    %v4743 = vmin.f32 %v3719, 0.5
    %v4744 = vmin.f32 %v3720, 0.5
    %v4745 = vmin.f32 %v3721, 0.5
    %v4746 = vmin.f32 %v3722, 0.5
    %v4747 = vmin.f32 %v3723, 0.5
    %v4748 = vmin.f32 %v3724, 0.5
    %v4749 = vmin.f32 %v3725, 0.5
    %v4750 = vmin.f32 %v3726, 0.5
    %v4751 = vmin.f32 %v3727, 0.5
    %v4752 = vmin.f32 %v3728, 0.5
    %v4753 = vmin.f32 %v3729, 0.5
    %v4754 = vmin.f32 %v3730, 0.5
    %v4755 = vmin.f32 %v3731, 0.5
    %v4756 = vmin.f32 %v3732, 0.5
    %v4757 = vmin.f32 %v3733, 0.5
    %v4758 = vmin.f32 %v3734, 0.5
    %v4759 = vmin.f32 %v3735, 0.5
    %v4760 = vmin.f32 %v3736, 0.5
    %v4761 = vmin.f32 %v3737, 0.5
    %v4762 = vmin.f32 %v3738, 0.5
    %v4763 = vmin.f32 %v3739, 0.5
    %v4764 = vmin.f32 %v3740, 0.5
    %v4765 = vmin.f32 %v3741, 0.5
    %v4766 = vmin.f32 %v3742, 0.5
    %v4767 = vmin.f32 %v3743, 0.5
    %v4768 = vmin.f32 %v3744, 0.5
    %v4769 = vmin.f32 %v3745, 0.5
    %v4770 = vmin.f32 %v3746, 0.5
    %v4771 = vmin.f32 %v3747, 0.5
    %v4772 = vmin.f32 %v3748, 0.5
    %v4773 = vmin.f32 %v3749, 0.5
    %v4774 = vmin.f32 %v3750, 0.5
    %v4775 = vmin.f32 %v3751, 0.5
    %v4776 = vmin.f32 %v3752, 0.5
    %v4777 = vmin.f32 %v3753, 0.5
    %v4778 = vmin.f32 %v3754, 0.5
    %v4779 = vmin.f32 %v3755, 0.5
    %v4780 = vmin.f32 %v3756, 0.5
    %v4781 = vmin.f32 %v3757, 0.5
    %v4782 = vmin.f32 %v3758, 0.5
    %v4783 = vmin.f32 %v3759, 0.5
    %v4784 = vmin.f32 %v3760, 0.5
    %v4785 = vmin.f32 %v3761, 0.5
    %v4786 = vmin.f32 %v3762, 0.5
    %v4787 = vmin.f32 %v3763, 0.5
    %v4788 = vmin.f32 %v3764, 0.5
    %v4789 = vmin.f32 %v3765, 0.5
    %v4790 = vmin.f32 %v3766, 0.5
    %v4791 = vmin.f32 %v3767, 0.5
    %v4792 = vmin.f32 %v3768, 0.5
    %v4793 = vmin.f32 %v3769, 0.5
    %v4794 = vmin.f32 %v3770, 0.5
    %v4795 = vmin.f32 %v3771, 0.5
    %v4796 = vmin.f32 %v3772, 0.5
    %v4797 = vmin.f32 %v3773, 0.5
    %v4798 = vmin.f32 %v3774, 0.5
    %v4799 = vmin.f32 %v3775, 0.5
    %v4800 = vmin.f32 %v3776, 0.5
    %v4801 = vmin.f32 %v3777, 0.5
    %v4802 = vmin.f32 %v3778, 0.5
    %v4803 = vmin.f32 %v3779, 0.5
    %v4804 = vmin.f32 %v3780, 0.5
    %v4805 = vmin.f32 %v3781, 0.5
    %v4806 = vmin.f32 %v3782, 0.5
    %v4807 = vmin.f32 %v3783, 0.5
    %v4808 = vmin.f32 %v3784, 0.5
    %v4809 = vmin.f32 %v3785, 0.5
    %v4810 = vmin.f32 %v3786, 0.5
    %v4811 = vmin.f32 %v3787, 0.5
    %v4812 = vmin.f32 %v3788, 0.5
    %v4813 = vmin.f32 %v3789, 0.5
    %v4814 = vmin.f32 %v3790, 0.5
    %v4815 = vmin.f32 %v3791, 0.5
    %v4816 = vmin.f32 %v3792, 0.5
    %v4817 = vmin.f32 %v3793, 0.5
    %v4818 = vmin.f32 %v3794, 0.5
    %v4819 = vmin.f32 %v3795, 0.5
    %v4820 = vmin.f32 %v3796, 0.5
    %v4821 = vmin.f32 %v3797, 0.5
    %v4822 = vmin.f32 %v3798, 0.5
    %v4823 = vmin.f32 %v3799, 0.5
    %v4824 = vmin.f32 %v3800, 0.5
    %v4825 = vmin.f32 %v3801, 0.5
    %v4826 = vmin.f32 %v3802, 0.5
    %v4827 = vmin.f32 %v3803, 0.5
    %v4828 = vmin.f32 %v3804, 0.5
    %v4829 = vmin.f32 %v3805, 0.5
    %v4830 = vmin.f32 %v3806, 0.5
    %v4831 = vmin.f32 %v3807, 0.5
    %v4832 = vmin.f32 %v3808, 0.5
    %v4833 = vmin.f32 %v3809, 0.5
    %v4834 = vmin.f32 %v3810, 0.5
    %v4835 = vmin.f32 %v3811, 0.5
    %v4836 = vmin.f32 %v3812, 0.5
    %v4837 = vmin.f32 %v3813, 0.5
    %v4838 = vmin.f32 %v3814, 0.5
    %v4839 = vmin.f32 %v3815, 0.5
    %v4840 = vmin.f32 %v3816, 0.5
    %v4841 = vmin.f32 %v3817, 0.5
    %v4842 = vmin.f32 %v3818, 0.5
    %v4843 = vmin.f32 %v3819, 0.5
    %v4844 = vmin.f32 %v3820, 0.5
    %v4845 = vmin.f32 %v3821, 0.5
    %v4846 = vmin.f32 %v3822, 0.5
    %v4847 = vmin.f32 %v3823, 0.5
    %v4848 = vmin.f32 %v3824, 0.5
    %v4849 = vmin.f32 %v3825, 0.5
    %v4850 = vmin.f32 %v3826, 0.5
    %v4851 = vmin.f32 %v3827, 0.5
    %v4852 = vmin.f32 %v3828, 0.5
    %v4853 = vmin.f32 %v3829, 0.5
    %v4854 = vmin.f32 %v3830, 0.5
    %v4855 = vmin.f32 %v3831, 0.5
    %v4856 = vmin.f32 %v3832, 0.5
    %v4857 = vmin.f32 %v3833, 0.5
    %v4858 = vmin.f32 %v3834, 0.5
    %v4859 = vmin.f32 %v3835, 0.5
    %v4860 = vmin.f32 %v3836, 0.5
    %v4861 = vmin.f32 %v3837, 0.5
    %v4862 = vmin.f32 %v3838, 0.5
    %v4863 = vmin.f32 %v3839, 0.5
    %v4864 = vmin.f32 %v3840, 0.5
    %v4865 = vmin.f32 %v3841, 0.5
    %v4866 = vmin.f32 %v3842, 0.5
    %v4867 = vmin.f32 %v3843, 0.5
    %v4868 = vmin.f32 %v3844, 0.5
    %v4869 = vmin.f32 %v3845, 0.5
    %v4870 = vmin.f32 %v3846, 0.5
    %v4871 = vmin.f32 %v3847, 0.5
    %v4872 = vmin.f32 %v3848, 0.5
    %v4873 = vmin.f32 %v3849, 0.5
    %v4874 = vmin.f32 %v3850, 0.5
    %v4875 = vmin.f32 %v3851, 0.5
    %v4876 = vmin.f32 %v3852, 0.5
    %v4877 = vmin.f32 %v3853, 0.5
    %v4878 = vmin.f32 %v3854, 0.5
    %v4879 = vmin.f32 %v3855, 0.5
    %v4880 = vmin.f32 %v3856, 0.5
    %v4881 = vmin.f32 %v3857, 0.5
    %v4882 = vmin.f32 %v3858, 0.5
    %v4883 = vmin.f32 %v3859, 0.5
    %v4884 = vmin.f32 %v3860, 0.5
    %v4885 = vmin.f32 %v3861, 0.5
    %v4886 = vmin.f32 %v3862, 0.5
    %v4887 = vmin.f32 %v3863, 0.5
    %v4888 = vmin.f32 %v3864, 0.5
    %v4889 = vmin.f32 %v3865, 0.5
    %v4890 = vmin.f32 %v3866, 0.5
    %v4891 = vmin.f32 %v3867, 0.5
    %v4892 = vmin.f32 %v3868, 0.5
    %v4893 = vmin.f32 %v3869, 0.5
    %v4894 = vmin.f32 %v3870, 0.5
    %v4895 = vmin.f32 %v3871, 0.5
    %v4896 = vmin.f32 %v3872, 0.5
    %v4897 = vmin.f32 %v3873, 0.5
    %v4898 = vmin.f32 %v3874, 0.5
    %v4899 = vmin.f32 %v3875, 0.5
    %v4900 = vmin.f32 %v3876, 0.5
    %v4901 = vmin.f32 %v3877, 0.5
    %v4902 = vmin.f32 %v3878, 0.5
    %v4903 = vmin.f32 %v3879, 0.5
    %v4904 = vmin.f32 %v3880, 0.5
    %v4905 = vmin.f32 %v3881, 0.5
    %v4906 = vmin.f32 %v3882, 0.5
    %v4907 = vmin.f32 %v3883, 0.5
    %v4908 = vmin.f32 %v3884, 0.5
    %v4909 = vmin.f32 %v3885, 0.5
    %v4910 = vmin.f32 %v3886, 0.5
    %v4911 = vmin.f32 %v3887, 0.5
    %v4912 = vmin.f32 %v3888, 0.5
    %v4913 = vmin.f32 %v3889, 0.5
    %v4914 = vmin.f32 %v3890, 0.5
    %v4915 = vmin.f32 %v3891, 0.5
    %v4916 = vmin.f32 %v3892, 0.5
    %v4917 = vmin.f32 %v3893, 0.5
    %v4918 = vmin.f32 %v3894, 0.5
    %v4919 = vmin.f32 %v3895, 0.5
    %v4920 = vmin.f32 %v3896, 0.5
    %v4921 = vmin.f32 %v3897, 0.5
    %v4922 = vmin.f32 %v3898, 0.5
    %v4923 = vmin.f32 %v3899, 0.5
    %v4924 = vmin.f32 %v3900, 0.5
    %v4925 = vmin.f32 %v3901, 0.5
    %v4926 = vmin.f32 %v3902, 0.5
    %v4927 = vmin.f32 %v3903, 0.5
    %v4928 = vmin.f32 %v3904, 0.5
    %v4929 = vmin.f32 %v3905, 0.5
    %v4930 = vmin.f32 %v3906, 0.5
    %v4931 = vmin.f32 %v3907, 0.5
    %v4932 = vmin.f32 %v3908, 0.5
    %v4933 = vmin.f32 %v3909, 0.5
    %v4934 = vmin.f32 %v3910, 0.5
    %v4935 = vmin.f32 %v3911, 0.5
    %v4936 = vmin.f32 %v3912, 0.5
    %v4937 = vmin.f32 %v3913, 0.5
    %v4938 = vmin.f32 %v3914, 0.5
    %v4939 = vmin.f32 %v3915, 0.5
    %v4940 = vmin.f32 %v3916, 0.5
    %v4941 = vmin.f32 %v3917, 0.5
    %v4942 = vmin.f32 %v3918, 0.5
    %v4943 = vmin.f32 %v3919, 0.5
    %v4944 = vmin.f32 %v3920, 0.5
    %v4945 = vmin.f32 %v3921, 0.5
    %v4946 = vmin.f32 %v3922, 0.5
    %v4947 = vmin.f32 %v3923, 0.5
    %v4948 = vmin.f32 %v3924, 0.5
    %v4949 = vmin.f32 %v3925, 0.5
    %v4950 = vmin.f32 %v3926, 0.5
    %v4951 = vmin.f32 %v3927, 0.5
    %v4952 = vmin.f32 %v3928, 0.5
    %v4953 = vmin.f32 %v3929, 0.5
    %v4954 = vmin.f32 %v3930, 0.5
    %v4955 = vmin.f32 %v3931, 0.5
    %v4956 = vmin.f32 %v3932, 0.5
    %v4957 = vmin.f32 %v3933, 0.5
    %v4958 = vmin.f32 %v3934, 0.5
    %v4959 = vmin.f32 %v3935, 0.5
    %v4960 = vmin.f32 %v3936, 0.5
    %v4961 = vmin.f32 %v3937, 0.5
    %v4962 = vmin.f32 %v3938, 0.5
    %v4963 = vmin.f32 %v3939, 0.5
    %v4964 = vmin.f32 %v3940, 0.5
    %v4965 = vmin.f32 %v3941, 0.5
    %v4966 = vmin.f32 %v3942, 0.5
    %v4967 = vmin.f32 %v3943, 0.5
    %v4968 = vmin.f32 %v3944, 0.5
    %v4969 = vmin.f32 %v3945, 0.5
    %v4970 = vmin.f32 %v3946, 0.5
    %v4971 = vmin.f32 %v3947, 0.5
    %v4972 = vmin.f32 %v3948, 0.5
    %v4973 = vmin.f32 %v3949, 0.5
    %v4974 = vmin.f32 %v3950, 0.5
    %v4975 = vmin.f32 %v3951, 0.5
    %v4976 = vmin.f32 %v3952, 0.5
    %v4977 = vmin.f32 %v3953, 0.5
    %v4978 = vmin.f32 %v3954, 0.5
    %v4979 = vmin.f32 %v3955, 0.5
    %v4980 = vmin.f32 %v3956, 0.5
    %v4981 = vmin.f32 %v3957, 0.5
    %v4982 = vmin.f32 %v3958, 0.5
    %v4983 = vmin.f32 %v3959, 0.5
    %v4984 = vmin.f32 %v3960, 0.5
    %v4985 = vmin.f32 %v3961, 0.5
    %v4986 = vmin.f32 %v3962, 0.5
    %v4987 = vmin.f32 %v3963, 0.5
    %v4988 = vmin.f32 %v3964, 0.5
    %v4989 = vmin.f32 %v3965, 0.5
    %v4990 = vmin.f32 %v3966, 0.5
    %v4991 = vmin.f32 %v3967, 0.5
    %v4992 = vmin.f32 %v3968, 0.5
    %v4993 = vmin.f32 %v3969, 0.5
    %v4994 = vmin.f32 %v3970, 0.5
    %v4995 = vmin.f32 %v3971, 0.5
    %v4996 = vmin.f32 %v3972, 0.5
    %v4997 = vmin.f32 %v3973, 0.5
    %v4998 = vmin.f32 %v3974, 0.5
    %v4999 = vmin.f32 %v3975, 0.5
    %v5000 = vmin.f32 %v3976, 0.5
    %v5001 = vmin.f32 %v3977, 0.5
    %v5002 = vmin.f32 %v3978, 0.5
    %v5003 = vmin.f32 %v3979, 0.5
    %v5004 = vmin.f32 %v3980, 0.5
    %v5005 = vmin.f32 %v3981, 0.5
    %v5006 = vmin.f32 %v3982, 0.5
    %v5007 = vmin.f32 %v3983, 0.5
    %v5008 = vmin.f32 %v3984, 0.5
    %v5009 = vmin.f32 %v3985, 0.5
    %v5010 = vmin.f32 %v3986, 0.5
    %v5011 = vmin.f32 %v3987, 0.5
    %v5012 = vmin.f32 %v3988, 0.5
    %v5013 = vmin.f32 %v3989, 0.5
    %v5014 = vmin.f32 %v3990, 0.5
    %v5015 = vmin.f32 %v3991, 0.5
    %v5016 = vmin.f32 %v3992, 0.5
    %v5017 = vmin.f32 %v3993, 0.5
    %v5018 = vmin.f32 %v3994, 0.5
    %v5019 = vmin.f32 %v3995, 0.5
    %v5020 = vmin.f32 %v3996, 0.5
    %v5021 = vmin.f32 %v3997, 0.5
    %v5022 = vmin.f32 %v3998, 0.5
    %v5023 = vmin.f32 %v3999, 0.5
    %v5024 = vmin.f32 %v4000, 0.5
    %v5025 = vmin.f32 %v4001, 0.5
    %v5026 = vmin.f32 %v4002, 0.5
    %v5027 = vmin.f32 %v4003, 0.5
    %v5028 = vmin.f32 %v4004, 0.5
    %v5029 = vmin.f32 %v4005, 0.5
    %v5030 = vmin.f32 %v4006, 0.5
    %v5031 = vmin.f32 %v4007, 0.5
    %v5032 = vmin.f32 %v4008, 0.5
    %v5033 = vmin.f32 %v4009, 0.5
    %v5034 = vmin.f32 %v4010, 0.5
    %v5035 = vmin.f32 %v4011, 0.5
    %v5036 = vmin.f32 %v4012, 0.5
    %v5037 = vmin.f32 %v4013, 0.5
    %v5038 = vmin.f32 %v4014, 0.5
    %v5039 = vmin.f32 %v4015, 0.5
    %v5040 = vmin.f32 %v4016, 0.5
    %v5041 = vmin.f32 %v4017, 0.5
    %v5042 = vmin.f32 %v4018, 0.5
    %v5043 = vmin.f32 %v4019, 0.5
    %v5044 = vmin.f32 %v4020, 0.5
    %v5045 = vmin.f32 %v4021, 0.5
    %v5046 = vmin.f32 %v4022, 0.5
    %v5047 = vmin.f32 %v4023, 0.5
    %v5048 = vmin.f32 %v4024, 0.5
    %v5049 = vmin.f32 %v4025, 0.5
    %v5050 = vmin.f32 %v4026, 0.5
    %v5051 = vmin.f32 %v4027, 0.5
    %v5052 = vmin.f32 %v4028, 0.5
    %v5053 = vmin.f32 %v4029, 0.5
    %v5054 = vmin.f32 %v4030, 0.5
    %v5055 = vmin.f32 %v4031, 0.5
    %v5056 = vmin.f32 %v4032, 0.5
    %v5057 = vmin.f32 %v4033, 0.5
    %v5058 = vmin.f32 %v4034, 0.5
    %v5059 = vmin.f32 %v4035, 0.5
    %v5060 = vmin.f32 %v4036, 0.5
    %v5061 = vmin.f32 %v4037, 0.5
    %v5062 = vmin.f32 %v4038, 0.5
    %v5063 = vmin.f32 %v4039, 0.5
    %v5064 = vmin.f32 %v4040, 0.5
    %v5065 = vmin.f32 %v4041, 0.5
    %v5066 = vmin.f32 %v4042, 0.5
    %v5067 = vmin.f32 %v4043, 0.5
    %v5068 = vmin.f32 %v4044, 0.5
    %v5069 = vmin.f32 %v4045, 0.5
    %v5070 = vmin.f32 %v4046, 0.5
    %v5071 = vmin.f32 %v4047, 0.5
    %v5072 = vmin.f32 %v4048, 0.5
    %v5073 = vmin.f32 %v4049, 0.5
    %v5074 = vmin.f32 %v4050, 0.5
    %v5075 = vmin.f32 %v4051, 0.5
    %v5076 = vmin.f32 %v4052, 0.5
    %v5077 = vmin.f32 %v4053, 0.5
    %v5078 = vmin.f32 %v4054, 0.5
    %v5079 = vmin.f32 %v4055, 0.5
    %v5080 = vmin.f32 %v4056, 0.5
    %v5081 = vmin.f32 %v4057, 0.5
    %v5082 = vmin.f32 %v4058, 0.5
    %v5083 = vmin.f32 %v4059, 0.5
    %v5084 = vmin.f32 %v4060, 0.5
    %v5085 = vmin.f32 %v4061, 0.5
    %v5086 = vmin.f32 %v4062, 0.5
    %v5087 = vmin.f32 %v4063, 0.5
    %v5088 = vmin.f32 %v4064, 0.5
    %v5089 = vmin.f32 %v4065, 0.5
    %v5090 = vmin.f32 %v4066, 0.5
    %v5091 = vmin.f32 %v4067, 0.5
    %v5092 = vmin.f32 %v4068, 0.5
    %v5093 = vmin.f32 %v4069, 0.5
    %v5094 = vmin.f32 %v4070, 0.5
    %v5095 = vmin.f32 %v4071, 0.5
    %v5096 = vmin.f32 %v4072, 0.5
    %v5097 = vmin.f32 %v4073, 0.5
    %v5098 = vmin.f32 %v4074, 0.5
    %v5099 = vmin.f32 %v4075, 0.5
    %v5100 = vmin.f32 %v4076, 0.5
    %v5101 = vmin.f32 %v4077, 0.5
    %v5102 = vmin.f32 %v4078, 0.5
    %v5103 = vmin.f32 %v4079, 0.5
    %v5104 = vmin.f32 %v4080, 0.5
    %v5105 = vmin.f32 %v4081, 0.5
    %v5106 = vmin.f32 %v4082, 0.5
    %v5107 = vmin.f32 %v4083, 0.5
    %v5108 = vmin.f32 %v4084, 0.5
    %v5109 = vmin.f32 %v4085, 0.5
    %v5110 = vmin.f32 %v4086, 0.5
    %v5111 = vmin.f32 %v4087, 0.5
    %v5112 = vmin.f32 %v4088, 0.5
    %v5113 = vmin.f32 %v4089, 0.5
    %v5114 = vmin.f32 %v4090, 0.5
    %v5115 = vmin.f32 %v4091, 0.5
    %v5116 = vmin.f32 %v4092, 0.5
    %v5117 = vmin.f32 %v4093, 0.5
    %v5118 = vmin.f32 %v4094, 0.5
    %v5119 = vmin.f32 %v4095, 0.5
    %v5120 = vmin.f32 %v4096, 0.5
    %v5121 = vmin.f32 %v4097, 0.5
    %v5122 = vmin.f32 %v4098, 0.5
    %v5123 = vmin.f32 %v4099, 0.5
    %v5124 = vmin.f32 %v4100, 0.5
    %v5125 = vmin.f32 %v4101, 0.5
    %v5126 = vmin.f32 %v4102, 0.5
    %v5127 = vmin.f32 %v4103, 0.5
    %v5128 = vmin.f32 %v4104, 0.5
    %v5129 = vmin.f32 %v4105, 0.5
    %v5130 = vmin.f32 %v4106, 0.5
    %v5131 = vmin.f32 %v4107, 0.5
    %v5132 = vmin.f32 %v4108, 0.5
    %v5133 = vmin.f32 %v4109, 0.5
    %v5134 = vmin.f32 %v4110, 0.5
    %v5135 = vmin.f32 %v4111, 0.5
    %v5136 = vmin.f32 %v4112, 0.5
    %v5137 = vmin.f32 %v4113, 0.5
    %v5138 = vmin.f32 %v4114, 0.5
    %v5139 = vmin.f32 %v4115, 0.5
    %v5140 = vmin.f32 %v4116, 0.5
    %v5141 = vmin.f32 %v4117, 0.5
    %v5142 = vmin.f32 %v4118, 0.5
    %v5143 = vmin.f32 %v4119, 0.5
    %v5144 = vmin.f32 %v4120, 0.5
    %v5145 = vmin.f32 %v4121, 0.5
    %v5146 = vmin.f32 %v4122, 0.5
    %v5147 = vmin.f32 %v4123, 0.5
    %v5148 = vmin.f32 %v4124, 0.5
    %v5149 = vmin.f32 %v4125, 0.5
    %v5150 = vmin.f32 %v4126, 0.5
    %v5151 = vmin.f32 %v4127, 0.5
    %v5152 = vmin.f32 %v4128, 0.5
    %v5153 = vmin.f32 %v4129, 0.5
    %v5154 = vmin.f32 %v4130, 0.5
    %v5155 = vmin.f32 %v4131, 0.5
    %v5156 = vmin.f32 %v4132, 0.5
    %v5157 = vmin.f32 %v4133, 0.5
    %v5158 = vmin.f32 %v4134, 0.5
    %v5159 = vmin.f32 %v4135, 0.5
    %v5160 = vmin.f32 %v4136, 0.5
    %v5161 = vmin.f32 %v4137, 0.5
    %v5162 = vmin.f32 %v4138, 0.5
    %v5163 = vmin.f32 %v4139, 0.5
    %5164 = vst [vmem:[#allocation7] sm:$0xff] %v4140
    %5165 = vst [vmem:[#allocation7 + $0x8] sm:$0xff] %v4141
    %5166 = vst [vmem:[#allocation7 + $0x10] sm:$0xff] %v4142
    %5167 = vst [vmem:[#allocation7 + $0x18] sm:$0xff] %v4143
    %5168 = vst [vmem:[#allocation7 + $0x20] sm:$0xff] %v4144
    %5169 = vst [vmem:[#allocation7 + $0x28] sm:$0xff] %v4145
    %5170 = vst [vmem:[#allocation7 + $0x30] sm:$0xff] %v4146
    %5171 = vst [vmem:[#allocation7 + $0x38] sm:$0xff] %v4147
    %5172 = vst [vmem:[#allocation7 + $0x40] sm:$0xff] %v4148
    %5173 = vst [vmem:[#allocation7 + $0x48] sm:$0xff] %v4149
    %5174 = vst [vmem:[#allocation7 + $0x50] sm:$0xff] %v4150
    %5175 = vst [vmem:[#allocation7 + $0x58] sm:$0xff] %v4151
    %5176 = vst [vmem:[#allocation7 + $0x60] sm:$0xff] %v4152
    %5177 = vst [vmem:[#allocation7 + $0x68] sm:$0xff] %v4153
    %5178 = vst [vmem:[#allocation7 + $0x70] sm:$0xff] %v4154
    %5179 = vst [vmem:[#allocation7 + $0x78] sm:$0xff] %v4155
    %5180 = vst [vmem:[#allocation7 + $0x80] sm:$0xff] %v4156
    %5181 = vst [vmem:[#allocation7 + $0x88] sm:$0xff] %v4157
    %5182 = vst [vmem:[#allocation7 + $0x90] sm:$0xff] %v4158
    %5183 = vst [vmem:[#allocation7 + $0x98] sm:$0xff] %v4159
    %5184 = vst [vmem:[#allocation7 + $0xa0] sm:$0xff] %v4160
    %5185 = vst [vmem:[#allocation7 + $0xa8] sm:$0xff] %v4161
    %5186 = vst [vmem:[#allocation7 + $0xb0] sm:$0xff] %v4162
    %5187 = vst [vmem:[#allocation7 + $0xb8] sm:$0xff] %v4163
    %5188 = vst [vmem:[#allocation7 + $0xc0] sm:$0xff] %v4164
    %5189 = vst [vmem:[#allocation7 + $0xc8] sm:$0xff] %v4165
    %5190 = vst [vmem:[#allocation7 + $0xd0] sm:$0xff] %v4166
    %5191 = vst [vmem:[#allocation7 + $0xd8] sm:$0xff] %v4167
    %5192 = vst [vmem:[#allocation7 + $0xe0] sm:$0xff] %v4168
    %5193 = vst [vmem:[#allocation7 + $0xe8] sm:$0xff] %v4169
    %5194 = vst [vmem:[#allocation7 + $0xf0] sm:$0xff] %v4170
    %5195 = vst [vmem:[#allocation7 + $0xf8] sm:$0xff] %v4171
    %5196 = vst [vmem:[#allocation7 + $0x100] sm:$0xff] %v4172
    %5197 = vst [vmem:[#allocation7 + $0x108] sm:$0xff] %v4173
    %5198 = vst [vmem:[#allocation7 + $0x110] sm:$0xff] %v4174
    %5199 = vst [vmem:[#allocation7 + $0x118] sm:$0xff] %v4175
    %5200 = vst [vmem:[#allocation7 + $0x120] sm:$0xff] %v4176
    %5201 = vst [vmem:[#allocation7 + $0x128] sm:$0xff] %v4177
    %5202 = vst [vmem:[#allocation7 + $0x130] sm:$0xff] %v4178
    %5203 = vst [vmem:[#allocation7 + $0x138] sm:$0xff] %v4179
    %5204 = vst [vmem:[#allocation7 + $0x140] sm:$0xff] %v4180
    %5205 = vst [vmem:[#allocation7 + $0x148] sm:$0xff] %v4181
    %5206 = vst [vmem:[#allocation7 + $0x150] sm:$0xff] %v4182
    %5207 = vst [vmem:[#allocation7 + $0x158] sm:$0xff] %v4183
    %5208 = vst [vmem:[#allocation7 + $0x160] sm:$0xff] %v4184
    %5209 = vst [vmem:[#allocation7 + $0x168] sm:$0xff] %v4185
    %5210 = vst [vmem:[#allocation7 + $0x170] sm:$0xff] %v4186
    %5211 = vst [vmem:[#allocation7 + $0x178] sm:$0xff] %v4187
    %5212 = vst [vmem:[#allocation7 + $0x180] sm:$0xff] %v4188
    %5213 = vst [vmem:[#allocation7 + $0x188] sm:$0xff] %v4189
    %5214 = vst [vmem:[#allocation7 + $0x190] sm:$0xff] %v4190
    %5215 = vst [vmem:[#allocation7 + $0x198] sm:$0xff] %v4191
    %5216 = vst [vmem:[#allocation7 + $0x1a0] sm:$0xff] %v4192
    %5217 = vst [vmem:[#allocation7 + $0x1a8] sm:$0xff] %v4193
    %5218 = vst [vmem:[#allocation7 + $0x1b0] sm:$0xff] %v4194
    %5219 = vst [vmem:[#allocation7 + $0x1b8] sm:$0xff] %v4195
    %5220 = vst [vmem:[#allocation7 + $0x1c0] sm:$0xff] %v4196
    %5221 = vst [vmem:[#allocation7 + $0x1c8] sm:$0xff] %v4197
    %5222 = vst [vmem:[#allocation7 + $0x1d0] sm:$0xff] %v4198
    %5223 = vst [vmem:[#allocation7 + $0x1d8] sm:$0xff] %v4199
    %5224 = vst [vmem:[#allocation7 + $0x1e0] sm:$0xff] %v4200
    %5225 = vst [vmem:[#allocation7 + $0x1e8] sm:$0xff] %v4201
    %5226 = vst [vmem:[#allocation7 + $0x1f0] sm:$0xff] %v4202
    %5227 = vst [vmem:[#allocation7 + $0x1f8] sm:$0xff] %v4203
    %5228 = vst [vmem:[#allocation7 + $0x200] sm:$0xff] %v4204
    %5229 = vst [vmem:[#allocation7 + $0x208] sm:$0xff] %v4205
    %5230 = vst [vmem:[#allocation7 + $0x210] sm:$0xff] %v4206
    %5231 = vst [vmem:[#allocation7 + $0x218] sm:$0xff] %v4207
    %5232 = vst [vmem:[#allocation7 + $0x220] sm:$0xff] %v4208
    %5233 = vst [vmem:[#allocation7 + $0x228] sm:$0xff] %v4209
    %5234 = vst [vmem:[#allocation7 + $0x230] sm:$0xff] %v4210
    %5235 = vst [vmem:[#allocation7 + $0x238] sm:$0xff] %v4211
    %5236 = vst [vmem:[#allocation7 + $0x240] sm:$0xff] %v4212
    %5237 = vst [vmem:[#allocation7 + $0x248] sm:$0xff] %v4213
    %5238 = vst [vmem:[#allocation7 + $0x250] sm:$0xff] %v4214
    %5239 = vst [vmem:[#allocation7 + $0x258] sm:$0xff] %v4215
    %5240 = vst [vmem:[#allocation7 + $0x260] sm:$0xff] %v4216
    %5241 = vst [vmem:[#allocation7 + $0x268] sm:$0xff] %v4217
    %5242 = vst [vmem:[#allocation7 + $0x270] sm:$0xff] %v4218
    %5243 = vst [vmem:[#allocation7 + $0x278] sm:$0xff] %v4219
    %5244 = vst [vmem:[#allocation7 + $0x280] sm:$0xff] %v4220
    %5245 = vst [vmem:[#allocation7 + $0x288] sm:$0xff] %v4221
    %5246 = vst [vmem:[#allocation7 + $0x290] sm:$0xff] %v4222
    %5247 = vst [vmem:[#allocation7 + $0x298] sm:$0xff] %v4223
    %5248 = vst [vmem:[#allocation7 + $0x2a0] sm:$0xff] %v4224
    %5249 = vst [vmem:[#allocation7 + $0x2a8] sm:$0xff] %v4225
    %5250 = vst [vmem:[#allocation7 + $0x2b0] sm:$0xff] %v4226
    %5251 = vst [vmem:[#allocation7 + $0x2b8] sm:$0xff] %v4227
    %5252 = vst [vmem:[#allocation7 + $0x2c0] sm:$0xff] %v4228
    %5253 = vst [vmem:[#allocation7 + $0x2c8] sm:$0xff] %v4229
    %5254 = vst [vmem:[#allocation7 + $0x2d0] sm:$0xff] %v4230
    %5255 = vst [vmem:[#allocation7 + $0x2d8] sm:$0xff] %v4231
    %5256 = vst [vmem:[#allocation7 + $0x2e0] sm:$0xff] %v4232
    %5257 = vst [vmem:[#allocation7 + $0x2e8] sm:$0xff] %v4233
    %5258 = vst [vmem:[#allocation7 + $0x2f0] sm:$0xff] %v4234
    %5259 = vst [vmem:[#allocation7 + $0x2f8] sm:$0xff] %v4235
    %5260 = vst [vmem:[#allocation7 + $0x300] sm:$0xff] %v4236
    %5261 = vst [vmem:[#allocation7 + $0x308] sm:$0xff] %v4237
    %5262 = vst [vmem:[#allocation7 + $0x310] sm:$0xff] %v4238
    %5263 = vst [vmem:[#allocation7 + $0x318] sm:$0xff] %v4239
    %5264 = vst [vmem:[#allocation7 + $0x320] sm:$0xff] %v4240
    %5265 = vst [vmem:[#allocation7 + $0x328] sm:$0xff] %v4241
    %5266 = vst [vmem:[#allocation7 + $0x330] sm:$0xff] %v4242
    %5267 = vst [vmem:[#allocation7 + $0x338] sm:$0xff] %v4243
    %5268 = vst [vmem:[#allocation7 + $0x340] sm:$0xff] %v4244
    %5269 = vst [vmem:[#allocation7 + $0x348] sm:$0xff] %v4245
    %5270 = vst [vmem:[#allocation7 + $0x350] sm:$0xff] %v4246
    %5271 = vst [vmem:[#allocation7 + $0x358] sm:$0xff] %v4247
    %5272 = vst [vmem:[#allocation7 + $0x360] sm:$0xff] %v4248
    %5273 = vst [vmem:[#allocation7 + $0x368] sm:$0xff] %v4249
    %5274 = vst [vmem:[#allocation7 + $0x370] sm:$0xff] %v4250
    %5275 = vst [vmem:[#allocation7 + $0x378] sm:$0xff] %v4251
    %5276 = vst [vmem:[#allocation7 + $0x380] sm:$0xff] %v4252
    %5277 = vst [vmem:[#allocation7 + $0x388] sm:$0xff] %v4253
    %5278 = vst [vmem:[#allocation7 + $0x390] sm:$0xff] %v4254
    %5279 = vst [vmem:[#allocation7 + $0x398] sm:$0xff] %v4255
    %5280 = vst [vmem:[#allocation7 + $0x3a0] sm:$0xff] %v4256
    %5281 = vst [vmem:[#allocation7 + $0x3a8] sm:$0xff] %v4257
    %5282 = vst [vmem:[#allocation7 + $0x3b0] sm:$0xff] %v4258
    %5283 = vst [vmem:[#allocation7 + $0x3b8] sm:$0xff] %v4259
    %5284 = vst [vmem:[#allocation7 + $0x3c0] sm:$0xff] %v4260
    %5285 = vst [vmem:[#allocation7 + $0x3c8] sm:$0xff] %v4261
    %5286 = vst [vmem:[#allocation7 + $0x3d0] sm:$0xff] %v4262
    %5287 = vst [vmem:[#allocation7 + $0x3d8] sm:$0xff] %v4263
    %5288 = vst [vmem:[#allocation7 + $0x3e0] sm:$0xff] %v4264
    %5289 = vst [vmem:[#allocation7 + $0x3e8] sm:$0xff] %v4265
    %5290 = vst [vmem:[#allocation7 + $0x3f0] sm:$0xff] %v4266
    %5291 = vst [vmem:[#allocation7 + $0x3f8] sm:$0xff] %v4267
    %5292 = vst [vmem:[#allocation7 + $0x400] sm:$0xff] %v4268
    %5293 = vst [vmem:[#allocation7 + $0x408] sm:$0xff] %v4269
    %5294 = vst [vmem:[#allocation7 + $0x410] sm:$0xff] %v4270
    %5295 = vst [vmem:[#allocation7 + $0x418] sm:$0xff] %v4271
    %5296 = vst [vmem:[#allocation7 + $0x420] sm:$0xff] %v4272
    %5297 = vst [vmem:[#allocation7 + $0x428] sm:$0xff] %v4273
    %5298 = vst [vmem:[#allocation7 + $0x430] sm:$0xff] %v4274
    %5299 = vst [vmem:[#allocation7 + $0x438] sm:$0xff] %v4275
    %5300 = vst [vmem:[#allocation7 + $0x440] sm:$0xff] %v4276
    %5301 = vst [vmem:[#allocation7 + $0x448] sm:$0xff] %v4277
    %5302 = vst [vmem:[#allocation7 + $0x450] sm:$0xff] %v4278
    %5303 = vst [vmem:[#allocation7 + $0x458] sm:$0xff] %v4279
    %5304 = vst [vmem:[#allocation7 + $0x460] sm:$0xff] %v4280
    %5305 = vst [vmem:[#allocation7 + $0x468] sm:$0xff] %v4281
    %5306 = vst [vmem:[#allocation7 + $0x470] sm:$0xff] %v4282
    %5307 = vst [vmem:[#allocation7 + $0x478] sm:$0xff] %v4283
    %5308 = vst [vmem:[#allocation7 + $0x480] sm:$0xff] %v4284
    %5309 = vst [vmem:[#allocation7 + $0x488] sm:$0xff] %v4285
    %5310 = vst [vmem:[#allocation7 + $0x490] sm:$0xff] %v4286
    %5311 = vst [vmem:[#allocation7 + $0x498] sm:$0xff] %v4287
    %5312 = vst [vmem:[#allocation7 + $0x4a0] sm:$0xff] %v4288
    %5313 = vst [vmem:[#allocation7 + $0x4a8] sm:$0xff] %v4289
    %5314 = vst [vmem:[#allocation7 + $0x4b0] sm:$0xff] %v4290
    %5315 = vst [vmem:[#allocation7 + $0x4b8] sm:$0xff] %v4291
    %5316 = vst [vmem:[#allocation7 + $0x4c0] sm:$0xff] %v4292
    %5317 = vst [vmem:[#allocation7 + $0x4c8] sm:$0xff] %v4293
    %5318 = vst [vmem:[#allocation7 + $0x4d0] sm:$0xff] %v4294
    %5319 = vst [vmem:[#allocation7 + $0x4d8] sm:$0xff] %v4295
    %5320 = vst [vmem:[#allocation7 + $0x4e0] sm:$0xff] %v4296
    %5321 = vst [vmem:[#allocation7 + $0x4e8] sm:$0xff] %v4297
    %5322 = vst [vmem:[#allocation7 + $0x4f0] sm:$0xff] %v4298
    %5323 = vst [vmem:[#allocation7 + $0x4f8] sm:$0xff] %v4299
    %5324 = vst [vmem:[#allocation7 + $0x500] sm:$0xff] %v4300
    %5325 = vst [vmem:[#allocation7 + $0x508] sm:$0xff] %v4301
    %5326 = vst [vmem:[#allocation7 + $0x510] sm:$0xff] %v4302
    %5327 = vst [vmem:[#allocation7 + $0x518] sm:$0xff] %v4303
    %5328 = vst [vmem:[#allocation7 + $0x520] sm:$0xff] %v4304
    %5329 = vst [vmem:[#allocation7 + $0x528] sm:$0xff] %v4305
    %5330 = vst [vmem:[#allocation7 + $0x530] sm:$0xff] %v4306
    %5331 = vst [vmem:[#allocation7 + $0x538] sm:$0xff] %v4307
    %5332 = vst [vmem:[#allocation7 + $0x540] sm:$0xff] %v4308
    %5333 = vst [vmem:[#allocation7 + $0x548] sm:$0xff] %v4309
    %5334 = vst [vmem:[#allocation7 + $0x550] sm:$0xff] %v4310
    %5335 = vst [vmem:[#allocation7 + $0x558] sm:$0xff] %v4311
    %5336 = vst [vmem:[#allocation7 + $0x560] sm:$0xff] %v4312
    %5337 = vst [vmem:[#allocation7 + $0x568] sm:$0xff] %v4313
    %5338 = vst [vmem:[#allocation7 + $0x570] sm:$0xff] %v4314
    %5339 = vst [vmem:[#allocation7 + $0x578] sm:$0xff] %v4315
    %5340 = vst [vmem:[#allocation7 + $0x580] sm:$0xff] %v4316
    %5341 = vst [vmem:[#allocation7 + $0x588] sm:$0xff] %v4317
    %5342 = vst [vmem:[#allocation7 + $0x590] sm:$0xff] %v4318
    %5343 = vst [vmem:[#allocation7 + $0x598] sm:$0xff] %v4319
    %5344 = vst [vmem:[#allocation7 + $0x5a0] sm:$0xff] %v4320
    %5345 = vst [vmem:[#allocation7 + $0x5a8] sm:$0xff] %v4321
    %5346 = vst [vmem:[#allocation7 + $0x5b0] sm:$0xff] %v4322
    %5347 = vst [vmem:[#allocation7 + $0x5b8] sm:$0xff] %v4323
    %5348 = vst [vmem:[#allocation7 + $0x5c0] sm:$0xff] %v4324
    %5349 = vst [vmem:[#allocation7 + $0x5c8] sm:$0xff] %v4325
    %5350 = vst [vmem:[#allocation7 + $0x5d0] sm:$0xff] %v4326
    %5351 = vst [vmem:[#allocation7 + $0x5d8] sm:$0xff] %v4327
    %5352 = vst [vmem:[#allocation7 + $0x5e0] sm:$0xff] %v4328
    %5353 = vst [vmem:[#allocation7 + $0x5e8] sm:$0xff] %v4329
    %5354 = vst [vmem:[#allocation7 + $0x5f0] sm:$0xff] %v4330
    %5355 = vst [vmem:[#allocation7 + $0x5f8] sm:$0xff] %v4331
    %5356 = vst [vmem:[#allocation7 + $0x600] sm:$0xff] %v4332
    %5357 = vst [vmem:[#allocation7 + $0x608] sm:$0xff] %v4333
    %5358 = vst [vmem:[#allocation7 + $0x610] sm:$0xff] %v4334
    %5359 = vst [vmem:[#allocation7 + $0x618] sm:$0xff] %v4335
    %5360 = vst [vmem:[#allocation7 + $0x620] sm:$0xff] %v4336
    %5361 = vst [vmem:[#allocation7 + $0x628] sm:$0xff] %v4337
    %5362 = vst [vmem:[#allocation7 + $0x630] sm:$0xff] %v4338
    %5363 = vst [vmem:[#allocation7 + $0x638] sm:$0xff] %v4339
    %5364 = vst [vmem:[#allocation7 + $0x640] sm:$0xff] %v4340
    %5365 = vst [vmem:[#allocation7 + $0x648] sm:$0xff] %v4341
    %5366 = vst [vmem:[#allocation7 + $0x650] sm:$0xff] %v4342
    %5367 = vst [vmem:[#allocation7 + $0x658] sm:$0xff] %v4343
    %5368 = vst [vmem:[#allocation7 + $0x660] sm:$0xff] %v4344
    %5369 = vst [vmem:[#allocation7 + $0x668] sm:$0xff] %v4345
    %5370 = vst [vmem:[#allocation7 + $0x670] sm:$0xff] %v4346
    %5371 = vst [vmem:[#allocation7 + $0x678] sm:$0xff] %v4347
    %5372 = vst [vmem:[#allocation7 + $0x680] sm:$0xff] %v4348
    %5373 = vst [vmem:[#allocation7 + $0x688] sm:$0xff] %v4349
    %5374 = vst [vmem:[#allocation7 + $0x690] sm:$0xff] %v4350
    %5375 = vst [vmem:[#allocation7 + $0x698] sm:$0xff] %v4351
    %5376 = vst [vmem:[#allocation7 + $0x6a0] sm:$0xff] %v4352
    %5377 = vst [vmem:[#allocation7 + $0x6a8] sm:$0xff] %v4353
    %5378 = vst [vmem:[#allocation7 + $0x6b0] sm:$0xff] %v4354
    %5379 = vst [vmem:[#allocation7 + $0x6b8] sm:$0xff] %v4355
    %5380 = vst [vmem:[#allocation7 + $0x6c0] sm:$0xff] %v4356
    %5381 = vst [vmem:[#allocation7 + $0x6c8] sm:$0xff] %v4357
    %5382 = vst [vmem:[#allocation7 + $0x6d0] sm:$0xff] %v4358
    %5383 = vst [vmem:[#allocation7 + $0x6d8] sm:$0xff] %v4359
    %5384 = vst [vmem:[#allocation7 + $0x6e0] sm:$0xff] %v4360
    %5385 = vst [vmem:[#allocation7 + $0x6e8] sm:$0xff] %v4361
    %5386 = vst [vmem:[#allocation7 + $0x6f0] sm:$0xff] %v4362
    %5387 = vst [vmem:[#allocation7 + $0x6f8] sm:$0xff] %v4363
    %5388 = vst [vmem:[#allocation7 + $0x700] sm:$0xff] %v4364
    %5389 = vst [vmem:[#allocation7 + $0x708] sm:$0xff] %v4365
    %5390 = vst [vmem:[#allocation7 + $0x710] sm:$0xff] %v4366
    %5391 = vst [vmem:[#allocation7 + $0x718] sm:$0xff] %v4367
    %5392 = vst [vmem:[#allocation7 + $0x720] sm:$0xff] %v4368
    %5393 = vst [vmem:[#allocation7 + $0x728] sm:$0xff] %v4369
    %5394 = vst [vmem:[#allocation7 + $0x730] sm:$0xff] %v4370
    %5395 = vst [vmem:[#allocation7 + $0x738] sm:$0xff] %v4371
    %5396 = vst [vmem:[#allocation7 + $0x740] sm:$0xff] %v4372
    %5397 = vst [vmem:[#allocation7 + $0x748] sm:$0xff] %v4373
    %5398 = vst [vmem:[#allocation7 + $0x750] sm:$0xff] %v4374
    %5399 = vst [vmem:[#allocation7 + $0x758] sm:$0xff] %v4375
    %5400 = vst [vmem:[#allocation7 + $0x760] sm:$0xff] %v4376
    %5401 = vst [vmem:[#allocation7 + $0x768] sm:$0xff] %v4377
    %5402 = vst [vmem:[#allocation7 + $0x770] sm:$0xff] %v4378
    %5403 = vst [vmem:[#allocation7 + $0x778] sm:$0xff] %v4379
    %5404 = vst [vmem:[#allocation7 + $0x780] sm:$0xff] %v4380
    %5405 = vst [vmem:[#allocation7 + $0x788] sm:$0xff] %v4381
    %5406 = vst [vmem:[#allocation7 + $0x790] sm:$0xff] %v4382
    %5407 = vst [vmem:[#allocation7 + $0x798] sm:$0xff] %v4383
    %5408 = vst [vmem:[#allocation7 + $0x7a0] sm:$0xff] %v4384
    %5409 = vst [vmem:[#allocation7 + $0x7a8] sm:$0xff] %v4385
    %5410 = vst [vmem:[#allocation7 + $0x7b0] sm:$0xff] %v4386
    %5411 = vst [vmem:[#allocation7 + $0x7b8] sm:$0xff] %v4387
    %5412 = vst [vmem:[#allocation7 + $0x7c0] sm:$0xff] %v4388
    %5413 = vst [vmem:[#allocation7 + $0x7c8] sm:$0xff] %v4389
    %5414 = vst [vmem:[#allocation7 + $0x7d0] sm:$0xff] %v4390
    %5415 = vst [vmem:[#allocation7 + $0x7d8] sm:$0xff] %v4391
    %5416 = vst [vmem:[#allocation7 + $0x7e0] sm:$0xff] %v4392
    %5417 = vst [vmem:[#allocation7 + $0x7e8] sm:$0xff] %v4393
    %5418 = vst [vmem:[#allocation7 + $0x7f0] sm:$0xff] %v4394
    %5419 = vst [vmem:[#allocation7 + $0x7f8] sm:$0xff] %v4395
    %5420 = vst [vmem:[#allocation7 + $0x800] sm:$0xff] %v4396
    %5421 = vst [vmem:[#allocation7 + $0x808] sm:$0xff] %v4397
    %5422 = vst [vmem:[#allocation7 + $0x810] sm:$0xff] %v4398
    %5423 = vst [vmem:[#allocation7 + $0x818] sm:$0xff] %v4399
    %5424 = vst [vmem:[#allocation7 + $0x820] sm:$0xff] %v4400
    %5425 = vst [vmem:[#allocation7 + $0x828] sm:$0xff] %v4401
    %5426 = vst [vmem:[#allocation7 + $0x830] sm:$0xff] %v4402
    %5427 = vst [vmem:[#allocation7 + $0x838] sm:$0xff] %v4403
    %5428 = vst [vmem:[#allocation7 + $0x840] sm:$0xff] %v4404
    %5429 = vst [vmem:[#allocation7 + $0x848] sm:$0xff] %v4405
    %5430 = vst [vmem:[#allocation7 + $0x850] sm:$0xff] %v4406
    %5431 = vst [vmem:[#allocation7 + $0x858] sm:$0xff] %v4407
    %5432 = vst [vmem:[#allocation7 + $0x860] sm:$0xff] %v4408
    %5433 = vst [vmem:[#allocation7 + $0x868] sm:$0xff] %v4409
    %5434 = vst [vmem:[#allocation7 + $0x870] sm:$0xff] %v4410
    %5435 = vst [vmem:[#allocation7 + $0x878] sm:$0xff] %v4411
    %5436 = vst [vmem:[#allocation7 + $0x880] sm:$0xff] %v4412
    %5437 = vst [vmem:[#allocation7 + $0x888] sm:$0xff] %v4413
    %5438 = vst [vmem:[#allocation7 + $0x890] sm:$0xff] %v4414
    %5439 = vst [vmem:[#allocation7 + $0x898] sm:$0xff] %v4415
    %5440 = vst [vmem:[#allocation7 + $0x8a0] sm:$0xff] %v4416
    %5441 = vst [vmem:[#allocation7 + $0x8a8] sm:$0xff] %v4417
    %5442 = vst [vmem:[#allocation7 + $0x8b0] sm:$0xff] %v4418
    %5443 = vst [vmem:[#allocation7 + $0x8b8] sm:$0xff] %v4419
    %5444 = vst [vmem:[#allocation7 + $0x8c0] sm:$0xff] %v4420
    %5445 = vst [vmem:[#allocation7 + $0x8c8] sm:$0xff] %v4421
    %5446 = vst [vmem:[#allocation7 + $0x8d0] sm:$0xff] %v4422
    %5447 = vst [vmem:[#allocation7 + $0x8d8] sm:$0xff] %v4423
    %5448 = vst [vmem:[#allocation7 + $0x8e0] sm:$0xff] %v4424
    %5449 = vst [vmem:[#allocation7 + $0x8e8] sm:$0xff] %v4425
    %5450 = vst [vmem:[#allocation7 + $0x8f0] sm:$0xff] %v4426
    %5451 = vst [vmem:[#allocation7 + $0x8f8] sm:$0xff] %v4427
    %5452 = vst [vmem:[#allocation7 + $0x900] sm:$0xff] %v4428
    %5453 = vst [vmem:[#allocation7 + $0x908] sm:$0xff] %v4429
    %5454 = vst [vmem:[#allocation7 + $0x910] sm:$0xff] %v4430
    %5455 = vst [vmem:[#allocation7 + $0x918] sm:$0xff] %v4431
    %5456 = vst [vmem:[#allocation7 + $0x920] sm:$0xff] %v4432
    %5457 = vst [vmem:[#allocation7 + $0x928] sm:$0xff] %v4433
    %5458 = vst [vmem:[#allocation7 + $0x930] sm:$0xff] %v4434
    %5459 = vst [vmem:[#allocation7 + $0x938] sm:$0xff] %v4435
    %5460 = vst [vmem:[#allocation7 + $0x940] sm:$0xff] %v4436
    %5461 = vst [vmem:[#allocation7 + $0x948] sm:$0xff] %v4437
    %5462 = vst [vmem:[#allocation7 + $0x950] sm:$0xff] %v4438
    %5463 = vst [vmem:[#allocation7 + $0x958] sm:$0xff] %v4439
    %5464 = vst [vmem:[#allocation7 + $0x960] sm:$0xff] %v4440
    %5465 = vst [vmem:[#allocation7 + $0x968] sm:$0xff] %v4441
    %5466 = vst [vmem:[#allocation7 + $0x970] sm:$0xff] %v4442
    %5467 = vst [vmem:[#allocation7 + $0x978] sm:$0xff] %v4443
    %5468 = vst [vmem:[#allocation7 + $0x980] sm:$0xff] %v4444
    %5469 = vst [vmem:[#allocation7 + $0x988] sm:$0xff] %v4445
    %5470 = vst [vmem:[#allocation7 + $0x990] sm:$0xff] %v4446
    %5471 = vst [vmem:[#allocation7 + $0x998] sm:$0xff] %v4447
    %5472 = vst [vmem:[#allocation7 + $0x9a0] sm:$0xff] %v4448
    %5473 = vst [vmem:[#allocation7 + $0x9a8] sm:$0xff] %v4449
    %5474 = vst [vmem:[#allocation7 + $0x9b0] sm:$0xff] %v4450
    %5475 = vst [vmem:[#allocation7 + $0x9b8] sm:$0xff] %v4451
    %5476 = vst [vmem:[#allocation7 + $0x9c0] sm:$0xff] %v4452
    %5477 = vst [vmem:[#allocation7 + $0x9c8] sm:$0xff] %v4453
    %5478 = vst [vmem:[#allocation7 + $0x9d0] sm:$0xff] %v4454
    %5479 = vst [vmem:[#allocation7 + $0x9d8] sm:$0xff] %v4455
    %5480 = vst [vmem:[#allocation7 + $0x9e0] sm:$0xff] %v4456
    %5481 = vst [vmem:[#allocation7 + $0x9e8] sm:$0xff] %v4457
    %5482 = vst [vmem:[#allocation7 + $0x9f0] sm:$0xff] %v4458
    %5483 = vst [vmem:[#allocation7 + $0x9f8] sm:$0xff] %v4459
    %5484 = vst [vmem:[#allocation7 + $0xa00] sm:$0xff] %v4460
    %5485 = vst [vmem:[#allocation7 + $0xa08] sm:$0xff] %v4461
    %5486 = vst [vmem:[#allocation7 + $0xa10] sm:$0xff] %v4462
    %5487 = vst [vmem:[#allocation7 + $0xa18] sm:$0xff] %v4463
    %5488 = vst [vmem:[#allocation7 + $0xa20] sm:$0xff] %v4464
    %5489 = vst [vmem:[#allocation7 + $0xa28] sm:$0xff] %v4465
    %5490 = vst [vmem:[#allocation7 + $0xa30] sm:$0xff] %v4466
    %5491 = vst [vmem:[#allocation7 + $0xa38] sm:$0xff] %v4467
    %5492 = vst [vmem:[#allocation7 + $0xa40] sm:$0xff] %v4468
    %5493 = vst [vmem:[#allocation7 + $0xa48] sm:$0xff] %v4469
    %5494 = vst [vmem:[#allocation7 + $0xa50] sm:$0xff] %v4470
    %5495 = vst [vmem:[#allocation7 + $0xa58] sm:$0xff] %v4471
    %5496 = vst [vmem:[#allocation7 + $0xa60] sm:$0xff] %v4472
    %5497 = vst [vmem:[#allocation7 + $0xa68] sm:$0xff] %v4473
    %5498 = vst [vmem:[#allocation7 + $0xa70] sm:$0xff] %v4474
    %5499 = vst [vmem:[#allocation7 + $0xa78] sm:$0xff] %v4475
    %5500 = vst [vmem:[#allocation7 + $0xa80] sm:$0xff] %v4476
    %5501 = vst [vmem:[#allocation7 + $0xa88] sm:$0xff] %v4477
    %5502 = vst [vmem:[#allocation7 + $0xa90] sm:$0xff] %v4478
    %5503 = vst [vmem:[#allocation7 + $0xa98] sm:$0xff] %v4479
    %5504 = vst [vmem:[#allocation7 + $0xaa0] sm:$0xff] %v4480
    %5505 = vst [vmem:[#allocation7 + $0xaa8] sm:$0xff] %v4481
    %5506 = vst [vmem:[#allocation7 + $0xab0] sm:$0xff] %v4482
    %5507 = vst [vmem:[#allocation7 + $0xab8] sm:$0xff] %v4483
    %5508 = vst [vmem:[#allocation7 + $0xac0] sm:$0xff] %v4484
    %5509 = vst [vmem:[#allocation7 + $0xac8] sm:$0xff] %v4485
    %5510 = vst [vmem:[#allocation7 + $0xad0] sm:$0xff] %v4486
    %5511 = vst [vmem:[#allocation7 + $0xad8] sm:$0xff] %v4487
    %5512 = vst [vmem:[#allocation7 + $0xae0] sm:$0xff] %v4488
    %5513 = vst [vmem:[#allocation7 + $0xae8] sm:$0xff] %v4489
    %5514 = vst [vmem:[#allocation7 + $0xaf0] sm:$0xff] %v4490
    %5515 = vst [vmem:[#allocation7 + $0xaf8] sm:$0xff] %v4491
    %5516 = vst [vmem:[#allocation7 + $0xb00] sm:$0xff] %v4492
    %5517 = vst [vmem:[#allocation7 + $0xb08] sm:$0xff] %v4493
    %5518 = vst [vmem:[#allocation7 + $0xb10] sm:$0xff] %v4494
    %5519 = vst [vmem:[#allocation7 + $0xb18] sm:$0xff] %v4495
    %5520 = vst [vmem:[#allocation7 + $0xb20] sm:$0xff] %v4496
    %5521 = vst [vmem:[#allocation7 + $0xb28] sm:$0xff] %v4497
    %5522 = vst [vmem:[#allocation7 + $0xb30] sm:$0xff] %v4498
    %5523 = vst [vmem:[#allocation7 + $0xb38] sm:$0xff] %v4499
    %5524 = vst [vmem:[#allocation7 + $0xb40] sm:$0xff] %v4500
    %5525 = vst [vmem:[#allocation7 + $0xb48] sm:$0xff] %v4501
    %5526 = vst [vmem:[#allocation7 + $0xb50] sm:$0xff] %v4502
    %5527 = vst [vmem:[#allocation7 + $0xb58] sm:$0xff] %v4503
    %5528 = vst [vmem:[#allocation7 + $0xb60] sm:$0xff] %v4504
    %5529 = vst [vmem:[#allocation7 + $0xb68] sm:$0xff] %v4505
    %5530 = vst [vmem:[#allocation7 + $0xb70] sm:$0xff] %v4506
    %5531 = vst [vmem:[#allocation7 + $0xb78] sm:$0xff] %v4507
    %5532 = vst [vmem:[#allocation7 + $0xb80] sm:$0xff] %v4508
    %5533 = vst [vmem:[#allocation7 + $0xb88] sm:$0xff] %v4509
    %5534 = vst [vmem:[#allocation7 + $0xb90] sm:$0xff] %v4510
    %5535 = vst [vmem:[#allocation7 + $0xb98] sm:$0xff] %v4511
    %5536 = vst [vmem:[#allocation7 + $0xba0] sm:$0xff] %v4512
    %5537 = vst [vmem:[#allocation7 + $0xba8] sm:$0xff] %v4513
    %5538 = vst [vmem:[#allocation7 + $0xbb0] sm:$0xff] %v4514
    %5539 = vst [vmem:[#allocation7 + $0xbb8] sm:$0xff] %v4515
    %5540 = vst [vmem:[#allocation7 + $0xbc0] sm:$0xff] %v4516
    %5541 = vst [vmem:[#allocation7 + $0xbc8] sm:$0xff] %v4517
    %5542 = vst [vmem:[#allocation7 + $0xbd0] sm:$0xff] %v4518
    %5543 = vst [vmem:[#allocation7 + $0xbd8] sm:$0xff] %v4519
    %5544 = vst [vmem:[#allocation7 + $0xbe0] sm:$0xff] %v4520
    %5545 = vst [vmem:[#allocation7 + $0xbe8] sm:$0xff] %v4521
    %5546 = vst [vmem:[#allocation7 + $0xbf0] sm:$0xff] %v4522
    %5547 = vst [vmem:[#allocation7 + $0xbf8] sm:$0xff] %v4523
    %5548 = vst [vmem:[#allocation7 + $0xc00] sm:$0xff] %v4524
    %5549 = vst [vmem:[#allocation7 + $0xc08] sm:$0xff] %v4525
    %5550 = vst [vmem:[#allocation7 + $0xc10] sm:$0xff] %v4526
    %5551 = vst [vmem:[#allocation7 + $0xc18] sm:$0xff] %v4527
    %5552 = vst [vmem:[#allocation7 + $0xc20] sm:$0xff] %v4528
    %5553 = vst [vmem:[#allocation7 + $0xc28] sm:$0xff] %v4529
    %5554 = vst [vmem:[#allocation7 + $0xc30] sm:$0xff] %v4530
    %5555 = vst [vmem:[#allocation7 + $0xc38] sm:$0xff] %v4531
    %5556 = vst [vmem:[#allocation7 + $0xc40] sm:$0xff] %v4532
    %5557 = vst [vmem:[#allocation7 + $0xc48] sm:$0xff] %v4533
    %5558 = vst [vmem:[#allocation7 + $0xc50] sm:$0xff] %v4534
    %5559 = vst [vmem:[#allocation7 + $0xc58] sm:$0xff] %v4535
    %5560 = vst [vmem:[#allocation7 + $0xc60] sm:$0xff] %v4536
    %5561 = vst [vmem:[#allocation7 + $0xc68] sm:$0xff] %v4537
    %5562 = vst [vmem:[#allocation7 + $0xc70] sm:$0xff] %v4538
    %5563 = vst [vmem:[#allocation7 + $0xc78] sm:$0xff] %v4539
    %5564 = vst [vmem:[#allocation7 + $0xc80] sm:$0xff] %v4540
    %5565 = vst [vmem:[#allocation7 + $0xc88] sm:$0xff] %v4541
    %5566 = vst [vmem:[#allocation7 + $0xc90] sm:$0xff] %v4542
    %5567 = vst [vmem:[#allocation7 + $0xc98] sm:$0xff] %v4543
    %5568 = vst [vmem:[#allocation7 + $0xca0] sm:$0xff] %v4544
    %5569 = vst [vmem:[#allocation7 + $0xca8] sm:$0xff] %v4545
    %5570 = vst [vmem:[#allocation7 + $0xcb0] sm:$0xff] %v4546
    %5571 = vst [vmem:[#allocation7 + $0xcb8] sm:$0xff] %v4547
    %5572 = vst [vmem:[#allocation7 + $0xcc0] sm:$0xff] %v4548
    %5573 = vst [vmem:[#allocation7 + $0xcc8] sm:$0xff] %v4549
    %5574 = vst [vmem:[#allocation7 + $0xcd0] sm:$0xff] %v4550
    %5575 = vst [vmem:[#allocation7 + $0xcd8] sm:$0xff] %v4551
    %5576 = vst [vmem:[#allocation7 + $0xce0] sm:$0xff] %v4552
    %5577 = vst [vmem:[#allocation7 + $0xce8] sm:$0xff] %v4553
    %5578 = vst [vmem:[#allocation7 + $0xcf0] sm:$0xff] %v4554
    %5579 = vst [vmem:[#allocation7 + $0xcf8] sm:$0xff] %v4555
    %5580 = vst [vmem:[#allocation7 + $0xd00] sm:$0xff] %v4556
    %5581 = vst [vmem:[#allocation7 + $0xd08] sm:$0xff] %v4557
    %5582 = vst [vmem:[#allocation7 + $0xd10] sm:$0xff] %v4558
    %5583 = vst [vmem:[#allocation7 + $0xd18] sm:$0xff] %v4559
    %5584 = vst [vmem:[#allocation7 + $0xd20] sm:$0xff] %v4560
    %5585 = vst [vmem:[#allocation7 + $0xd28] sm:$0xff] %v4561
    %5586 = vst [vmem:[#allocation7 + $0xd30] sm:$0xff] %v4562
    %5587 = vst [vmem:[#allocation7 + $0xd38] sm:$0xff] %v4563
    %5588 = vst [vmem:[#allocation7 + $0xd40] sm:$0xff] %v4564
    %5589 = vst [vmem:[#allocation7 + $0xd48] sm:$0xff] %v4565
    %5590 = vst [vmem:[#allocation7 + $0xd50] sm:$0xff] %v4566
    %5591 = vst [vmem:[#allocation7 + $0xd58] sm:$0xff] %v4567
    %5592 = vst [vmem:[#allocation7 + $0xd60] sm:$0xff] %v4568
    %5593 = vst [vmem:[#allocation7 + $0xd68] sm:$0xff] %v4569
    %5594 = vst [vmem:[#allocation7 + $0xd70] sm:$0xff] %v4570
    %5595 = vst [vmem:[#allocation7 + $0xd78] sm:$0xff] %v4571
    %5596 = vst [vmem:[#allocation7 + $0xd80] sm:$0xff] %v4572
    %5597 = vst [vmem:[#allocation7 + $0xd88] sm:$0xff] %v4573
    %5598 = vst [vmem:[#allocation7 + $0xd90] sm:$0xff] %v4574
    %5599 = vst [vmem:[#allocation7 + $0xd98] sm:$0xff] %v4575
    %5600 = vst [vmem:[#allocation7 + $0xda0] sm:$0xff] %v4576
    %5601 = vst [vmem:[#allocation7 + $0xda8] sm:$0xff] %v4577
    %5602 = vst [vmem:[#allocation7 + $0xdb0] sm:$0xff] %v4578
    %5603 = vst [vmem:[#allocation7 + $0xdb8] sm:$0xff] %v4579
    %5604 = vst [vmem:[#allocation7 + $0xdc0] sm:$0xff] %v4580
    %5605 = vst [vmem:[#allocation7 + $0xdc8] sm:$0xff] %v4581
    %5606 = vst [vmem:[#allocation7 + $0xdd0] sm:$0xff] %v4582
    %5607 = vst [vmem:[#allocation7 + $0xdd8] sm:$0xff] %v4583
    %5608 = vst [vmem:[#allocation7 + $0xde0] sm:$0xff] %v4584
    %5609 = vst [vmem:[#allocation7 + $0xde8] sm:$0xff] %v4585
    %5610 = vst [vmem:[#allocation7 + $0xdf0] sm:$0xff] %v4586
    %5611 = vst [vmem:[#allocation7 + $0xdf8] sm:$0xff] %v4587
    %5612 = vst [vmem:[#allocation7 + $0xe00] sm:$0xff] %v4588
    %5613 = vst [vmem:[#allocation7 + $0xe08] sm:$0xff] %v4589
    %5614 = vst [vmem:[#allocation7 + $0xe10] sm:$0xff] %v4590
    %5615 = vst [vmem:[#allocation7 + $0xe18] sm:$0xff] %v4591
    %5616 = vst [vmem:[#allocation7 + $0xe20] sm:$0xff] %v4592
    %5617 = vst [vmem:[#allocation7 + $0xe28] sm:$0xff] %v4593
    %5618 = vst [vmem:[#allocation7 + $0xe30] sm:$0xff] %v4594
    %5619 = vst [vmem:[#allocation7 + $0xe38] sm:$0xff] %v4595
    %5620 = vst [vmem:[#allocation7 + $0xe40] sm:$0xff] %v4596
    %5621 = vst [vmem:[#allocation7 + $0xe48] sm:$0xff] %v4597
    %5622 = vst [vmem:[#allocation7 + $0xe50] sm:$0xff] %v4598
    %5623 = vst [vmem:[#allocation7 + $0xe58] sm:$0xff] %v4599
    %5624 = vst [vmem:[#allocation7 + $0xe60] sm:$0xff] %v4600
    %5625 = vst [vmem:[#allocation7 + $0xe68] sm:$0xff] %v4601
    %5626 = vst [vmem:[#allocation7 + $0xe70] sm:$0xff] %v4602
    %5627 = vst [vmem:[#allocation7 + $0xe78] sm:$0xff] %v4603
    %5628 = vst [vmem:[#allocation7 + $0xe80] sm:$0xff] %v4604
    %5629 = vst [vmem:[#allocation7 + $0xe88] sm:$0xff] %v4605
    %5630 = vst [vmem:[#allocation7 + $0xe90] sm:$0xff] %v4606
    %5631 = vst [vmem:[#allocation7 + $0xe98] sm:$0xff] %v4607
    %5632 = vst [vmem:[#allocation7 + $0xea0] sm:$0xff] %v4608
    %5633 = vst [vmem:[#allocation7 + $0xea8] sm:$0xff] %v4609
    %5634 = vst [vmem:[#allocation7 + $0xeb0] sm:$0xff] %v4610
    %5635 = vst [vmem:[#allocation7 + $0xeb8] sm:$0xff] %v4611
    %5636 = vst [vmem:[#allocation7 + $0xec0] sm:$0xff] %v4612
    %5637 = vst [vmem:[#allocation7 + $0xec8] sm:$0xff] %v4613
    %5638 = vst [vmem:[#allocation7 + $0xed0] sm:$0xff] %v4614
    %5639 = vst [vmem:[#allocation7 + $0xed8] sm:$0xff] %v4615
    %5640 = vst [vmem:[#allocation7 + $0xee0] sm:$0xff] %v4616
    %5641 = vst [vmem:[#allocation7 + $0xee8] sm:$0xff] %v4617
    %5642 = vst [vmem:[#allocation7 + $0xef0] sm:$0xff] %v4618
    %5643 = vst [vmem:[#allocation7 + $0xef8] sm:$0xff] %v4619
    %5644 = vst [vmem:[#allocation7 + $0xf00] sm:$0xff] %v4620
    %5645 = vst [vmem:[#allocation7 + $0xf08] sm:$0xff] %v4621
    %5646 = vst [vmem:[#allocation7 + $0xf10] sm:$0xff] %v4622
    %5647 = vst [vmem:[#allocation7 + $0xf18] sm:$0xff] %v4623
    %5648 = vst [vmem:[#allocation7 + $0xf20] sm:$0xff] %v4624
    %5649 = vst [vmem:[#allocation7 + $0xf28] sm:$0xff] %v4625
    %5650 = vst [vmem:[#allocation7 + $0xf30] sm:$0xff] %v4626
    %5651 = vst [vmem:[#allocation7 + $0xf38] sm:$0xff] %v4627
    %5652 = vst [vmem:[#allocation7 + $0xf40] sm:$0xff] %v4628
    %5653 = vst [vmem:[#allocation7 + $0xf48] sm:$0xff] %v4629
    %5654 = vst [vmem:[#allocation7 + $0xf50] sm:$0xff] %v4630
    %5655 = vst [vmem:[#allocation7 + $0xf58] sm:$0xff] %v4631
    %5656 = vst [vmem:[#allocation7 + $0xf60] sm:$0xff] %v4632
    %5657 = vst [vmem:[#allocation7 + $0xf68] sm:$0xff] %v4633
    %5658 = vst [vmem:[#allocation7 + $0xf70] sm:$0xff] %v4634
    %5659 = vst [vmem:[#allocation7 + $0xf78] sm:$0xff] %v4635
    %5660 = vst [vmem:[#allocation7 + $0xf80] sm:$0xff] %v4636
    %5661 = vst [vmem:[#allocation7 + $0xf88] sm:$0xff] %v4637
    %5662 = vst [vmem:[#allocation7 + $0xf90] sm:$0xff] %v4638
    %5663 = vst [vmem:[#allocation7 + $0xf98] sm:$0xff] %v4639
    %5664 = vst [vmem:[#allocation7 + $0xfa0] sm:$0xff] %v4640
    %5665 = vst [vmem:[#allocation7 + $0xfa8] sm:$0xff] %v4641
    %5666 = vst [vmem:[#allocation7 + $0xfb0] sm:$0xff] %v4642
    %5667 = vst [vmem:[#allocation7 + $0xfb8] sm:$0xff] %v4643
    %5668 = vst [vmem:[#allocation7 + $0xfc0] sm:$0xff] %v4644
    %5669 = vst [vmem:[#allocation7 + $0xfc8] sm:$0xff] %v4645
    %5670 = vst [vmem:[#allocation7 + $0xfd0] sm:$0xff] %v4646
    %5671 = vst [vmem:[#allocation7 + $0xfd8] sm:$0xff] %v4647
    %5672 = vst [vmem:[#allocation7 + $0xfe0] sm:$0xff] %v4648
    %5673 = vst [vmem:[#allocation7 + $0xfe8] sm:$0xff] %v4649
    %5674 = vst [vmem:[#allocation7 + $0xff0] sm:$0xff] %v4650
    %5675 = vst [vmem:[#allocation7 + $0xff8] sm:$0xff] %v4651
    %5676 = vst [vmem:[#allocation7 + $0x1000] sm:$0xff] %v4652
    %5677 = vst [vmem:[#allocation7 + $0x1008] sm:$0xff] %v4653
    %5678 = vst [vmem:[#allocation7 + $0x1010] sm:$0xff] %v4654
    %5679 = vst [vmem:[#allocation7 + $0x1018] sm:$0xff] %v4655
    %5680 = vst [vmem:[#allocation7 + $0x1020] sm:$0xff] %v4656
    %5681 = vst [vmem:[#allocation7 + $0x1028] sm:$0xff] %v4657
    %5682 = vst [vmem:[#allocation7 + $0x1030] sm:$0xff] %v4658
    %5683 = vst [vmem:[#allocation7 + $0x1038] sm:$0xff] %v4659
    %5684 = vst [vmem:[#allocation7 + $0x1040] sm:$0xff] %v4660
    %5685 = vst [vmem:[#allocation7 + $0x1048] sm:$0xff] %v4661
    %5686 = vst [vmem:[#allocation7 + $0x1050] sm:$0xff] %v4662
    %5687 = vst [vmem:[#allocation7 + $0x1058] sm:$0xff] %v4663
    %5688 = vst [vmem:[#allocation7 + $0x1060] sm:$0xff] %v4664
    %5689 = vst [vmem:[#allocation7 + $0x1068] sm:$0xff] %v4665
    %5690 = vst [vmem:[#allocation7 + $0x1070] sm:$0xff] %v4666
    %5691 = vst [vmem:[#allocation7 + $0x1078] sm:$0xff] %v4667
    %5692 = vst [vmem:[#allocation7 + $0x1080] sm:$0xff] %v4668
    %5693 = vst [vmem:[#allocation7 + $0x1088] sm:$0xff] %v4669
    %5694 = vst [vmem:[#allocation7 + $0x1090] sm:$0xff] %v4670
    %5695 = vst [vmem:[#allocation7 + $0x1098] sm:$0xff] %v4671
    %5696 = vst [vmem:[#allocation7 + $0x10a0] sm:$0xff] %v4672
    %5697 = vst [vmem:[#allocation7 + $0x10a8] sm:$0xff] %v4673
    %5698 = vst [vmem:[#allocation7 + $0x10b0] sm:$0xff] %v4674
    %5699 = vst [vmem:[#allocation7 + $0x10b8] sm:$0xff] %v4675
    %5700 = vst [vmem:[#allocation7 + $0x10c0] sm:$0xff] %v4676
    %5701 = vst [vmem:[#allocation7 + $0x10c8] sm:$0xff] %v4677
    %5702 = vst [vmem:[#allocation7 + $0x10d0] sm:$0xff] %v4678
    %5703 = vst [vmem:[#allocation7 + $0x10d8] sm:$0xff] %v4679
    %5704 = vst [vmem:[#allocation7 + $0x10e0] sm:$0xff] %v4680
    %5705 = vst [vmem:[#allocation7 + $0x10e8] sm:$0xff] %v4681
    %5706 = vst [vmem:[#allocation7 + $0x10f0] sm:$0xff] %v4682
    %5707 = vst [vmem:[#allocation7 + $0x10f8] sm:$0xff] %v4683
    %5708 = vst [vmem:[#allocation7 + $0x1100] sm:$0xff] %v4684
    %5709 = vst [vmem:[#allocation7 + $0x1108] sm:$0xff] %v4685
    %5710 = vst [vmem:[#allocation7 + $0x1110] sm:$0xff] %v4686
    %5711 = vst [vmem:[#allocation7 + $0x1118] sm:$0xff] %v4687
    %5712 = vst [vmem:[#allocation7 + $0x1120] sm:$0xff] %v4688
    %5713 = vst [vmem:[#allocation7 + $0x1128] sm:$0xff] %v4689
    %5714 = vst [vmem:[#allocation7 + $0x1130] sm:$0xff] %v4690
    %5715 = vst [vmem:[#allocation7 + $0x1138] sm:$0xff] %v4691
    %5716 = vst [vmem:[#allocation7 + $0x1140] sm:$0xff] %v4692
    %5717 = vst [vmem:[#allocation7 + $0x1148] sm:$0xff] %v4693
    %5718 = vst [vmem:[#allocation7 + $0x1150] sm:$0xff] %v4694
    %5719 = vst [vmem:[#allocation7 + $0x1158] sm:$0xff] %v4695
    %5720 = vst [vmem:[#allocation7 + $0x1160] sm:$0xff] %v4696
    %5721 = vst [vmem:[#allocation7 + $0x1168] sm:$0xff] %v4697
    %5722 = vst [vmem:[#allocation7 + $0x1170] sm:$0xff] %v4698
    %5723 = vst [vmem:[#allocation7 + $0x1178] sm:$0xff] %v4699
    %5724 = vst [vmem:[#allocation7 + $0x1180] sm:$0xff] %v4700
    %5725 = vst [vmem:[#allocation7 + $0x1188] sm:$0xff] %v4701
    %5726 = vst [vmem:[#allocation7 + $0x1190] sm:$0xff] %v4702
    %5727 = vst [vmem:[#allocation7 + $0x1198] sm:$0xff] %v4703
    %5728 = vst [vmem:[#allocation7 + $0x11a0] sm:$0xff] %v4704
    %5729 = vst [vmem:[#allocation7 + $0x11a8] sm:$0xff] %v4705
    %5730 = vst [vmem:[#allocation7 + $0x11b0] sm:$0xff] %v4706
    %5731 = vst [vmem:[#allocation7 + $0x11b8] sm:$0xff] %v4707
    %5732 = vst [vmem:[#allocation7 + $0x11c0] sm:$0xff] %v4708
    %5733 = vst [vmem:[#allocation7 + $0x11c8] sm:$0xff] %v4709
    %5734 = vst [vmem:[#allocation7 + $0x11d0] sm:$0xff] %v4710
    %5735 = vst [vmem:[#allocation7 + $0x11d8] sm:$0xff] %v4711
    %5736 = vst [vmem:[#allocation7 + $0x11e0] sm:$0xff] %v4712
    %5737 = vst [vmem:[#allocation7 + $0x11e8] sm:$0xff] %v4713
    %5738 = vst [vmem:[#allocation7 + $0x11f0] sm:$0xff] %v4714
    %5739 = vst [vmem:[#allocation7 + $0x11f8] sm:$0xff] %v4715
    %5740 = vst [vmem:[#allocation7 + $0x1200] sm:$0xff] %v4716
    %5741 = vst [vmem:[#allocation7 + $0x1208] sm:$0xff] %v4717
    %5742 = vst [vmem:[#allocation7 + $0x1210] sm:$0xff] %v4718
    %5743 = vst [vmem:[#allocation7 + $0x1218] sm:$0xff] %v4719
    %5744 = vst [vmem:[#allocation7 + $0x1220] sm:$0xff] %v4720
    %5745 = vst [vmem:[#allocation7 + $0x1228] sm:$0xff] %v4721
    %5746 = vst [vmem:[#allocation7 + $0x1230] sm:$0xff] %v4722
    %5747 = vst [vmem:[#allocation7 + $0x1238] sm:$0xff] %v4723
    %5748 = vst [vmem:[#allocation7 + $0x1240] sm:$0xff] %v4724
    %5749 = vst [vmem:[#allocation7 + $0x1248] sm:$0xff] %v4725
    %5750 = vst [vmem:[#allocation7 + $0x1250] sm:$0xff] %v4726
    %5751 = vst [vmem:[#allocation7 + $0x1258] sm:$0xff] %v4727
    %5752 = vst [vmem:[#allocation7 + $0x1260] sm:$0xff] %v4728
    %5753 = vst [vmem:[#allocation7 + $0x1268] sm:$0xff] %v4729
    %5754 = vst [vmem:[#allocation7 + $0x1270] sm:$0xff] %v4730
    %5755 = vst [vmem:[#allocation7 + $0x1278] sm:$0xff] %v4731
    %5756 = vst [vmem:[#allocation7 + $0x1280] sm:$0xff] %v4732
    %5757 = vst [vmem:[#allocation7 + $0x1288] sm:$0xff] %v4733
    %5758 = vst [vmem:[#allocation7 + $0x1290] sm:$0xff] %v4734
    %5759 = vst [vmem:[#allocation7 + $0x1298] sm:$0xff] %v4735
    %5760 = vst [vmem:[#allocation7 + $0x12a0] sm:$0xff] %v4736
    %5761 = vst [vmem:[#allocation7 + $0x12a8] sm:$0xff] %v4737
    %5762 = vst [vmem:[#allocation7 + $0x12b0] sm:$0xff] %v4738
    %5763 = vst [vmem:[#allocation7 + $0x12b8] sm:$0xff] %v4739
    %5764 = vst [vmem:[#allocation7 + $0x12c0] sm:$0xff] %v4740
    %5765 = vst [vmem:[#allocation7 + $0x12c8] sm:$0xff] %v4741
    %5766 = vst [vmem:[#allocation7 + $0x12d0] sm:$0xff] %v4742
    %5767 = vst [vmem:[#allocation7 + $0x12d8] sm:$0xff] %v4743
    %5768 = vst [vmem:[#allocation7 + $0x12e0] sm:$0xff] %v4744
    %5769 = vst [vmem:[#allocation7 + $0x12e8] sm:$0xff] %v4745
    %5770 = vst [vmem:[#allocation7 + $0x12f0] sm:$0xff] %v4746
    %5771 = vst [vmem:[#allocation7 + $0x12f8] sm:$0xff] %v4747
    %5772 = vst [vmem:[#allocation7 + $0x1300] sm:$0xff] %v4748
    %5773 = vst [vmem:[#allocation7 + $0x1308] sm:$0xff] %v4749
    %5774 = vst [vmem:[#allocation7 + $0x1310] sm:$0xff] %v4750
    %5775 = vst [vmem:[#allocation7 + $0x1318] sm:$0xff] %v4751
    %5776 = vst [vmem:[#allocation7 + $0x1320] sm:$0xff] %v4752
    %5777 = vst [vmem:[#allocation7 + $0x1328] sm:$0xff] %v4753
    %5778 = vst [vmem:[#allocation7 + $0x1330] sm:$0xff] %v4754
    %5779 = vst [vmem:[#allocation7 + $0x1338] sm:$0xff] %v4755
    %5780 = vst [vmem:[#allocation7 + $0x1340] sm:$0xff] %v4756
    %5781 = vst [vmem:[#allocation7 + $0x1348] sm:$0xff] %v4757
    %5782 = vst [vmem:[#allocation7 + $0x1350] sm:$0xff] %v4758
    %5783 = vst [vmem:[#allocation7 + $0x1358] sm:$0xff] %v4759
    %5784 = vst [vmem:[#allocation7 + $0x1360] sm:$0xff] %v4760
    %5785 = vst [vmem:[#allocation7 + $0x1368] sm:$0xff] %v4761
    %5786 = vst [vmem:[#allocation7 + $0x1370] sm:$0xff] %v4762
    %5787 = vst [vmem:[#allocation7 + $0x1378] sm:$0xff] %v4763
    %5788 = vst [vmem:[#allocation7 + $0x1380] sm:$0xff] %v4764
    %5789 = vst [vmem:[#allocation7 + $0x1388] sm:$0xff] %v4765
    %5790 = vst [vmem:[#allocation7 + $0x1390] sm:$0xff] %v4766
    %5791 = vst [vmem:[#allocation7 + $0x1398] sm:$0xff] %v4767
    %5792 = vst [vmem:[#allocation7 + $0x13a0] sm:$0xff] %v4768
    %5793 = vst [vmem:[#allocation7 + $0x13a8] sm:$0xff] %v4769
    %5794 = vst [vmem:[#allocation7 + $0x13b0] sm:$0xff] %v4770
    %5795 = vst [vmem:[#allocation7 + $0x13b8] sm:$0xff] %v4771
    %5796 = vst [vmem:[#allocation7 + $0x13c0] sm:$0xff] %v4772
    %5797 = vst [vmem:[#allocation7 + $0x13c8] sm:$0xff] %v4773
    %5798 = vst [vmem:[#allocation7 + $0x13d0] sm:$0xff] %v4774
    %5799 = vst [vmem:[#allocation7 + $0x13d8] sm:$0xff] %v4775
    %5800 = vst [vmem:[#allocation7 + $0x13e0] sm:$0xff] %v4776
    %5801 = vst [vmem:[#allocation7 + $0x13e8] sm:$0xff] %v4777
    %5802 = vst [vmem:[#allocation7 + $0x13f0] sm:$0xff] %v4778
    %5803 = vst [vmem:[#allocation7 + $0x13f8] sm:$0xff] %v4779
    %5804 = vst [vmem:[#allocation7 + $0x1400] sm:$0xff] %v4780
    %5805 = vst [vmem:[#allocation7 + $0x1408] sm:$0xff] %v4781
    %5806 = vst [vmem:[#allocation7 + $0x1410] sm:$0xff] %v4782
    %5807 = vst [vmem:[#allocation7 + $0x1418] sm:$0xff] %v4783
    %5808 = vst [vmem:[#allocation7 + $0x1420] sm:$0xff] %v4784
    %5809 = vst [vmem:[#allocation7 + $0x1428] sm:$0xff] %v4785
    %5810 = vst [vmem:[#allocation7 + $0x1430] sm:$0xff] %v4786
    %5811 = vst [vmem:[#allocation7 + $0x1438] sm:$0xff] %v4787
    %5812 = vst [vmem:[#allocation7 + $0x1440] sm:$0xff] %v4788
    %5813 = vst [vmem:[#allocation7 + $0x1448] sm:$0xff] %v4789
    %5814 = vst [vmem:[#allocation7 + $0x1450] sm:$0xff] %v4790
    %5815 = vst [vmem:[#allocation7 + $0x1458] sm:$0xff] %v4791
    %5816 = vst [vmem:[#allocation7 + $0x1460] sm:$0xff] %v4792
    %5817 = vst [vmem:[#allocation7 + $0x1468] sm:$0xff] %v4793
    %5818 = vst [vmem:[#allocation7 + $0x1470] sm:$0xff] %v4794
    %5819 = vst [vmem:[#allocation7 + $0x1478] sm:$0xff] %v4795
    %5820 = vst [vmem:[#allocation7 + $0x1480] sm:$0xff] %v4796
    %5821 = vst [vmem:[#allocation7 + $0x1488] sm:$0xff] %v4797
    %5822 = vst [vmem:[#allocation7 + $0x1490] sm:$0xff] %v4798
    %5823 = vst [vmem:[#allocation7 + $0x1498] sm:$0xff] %v4799
    %5824 = vst [vmem:[#allocation7 + $0x14a0] sm:$0xff] %v4800
    %5825 = vst [vmem:[#allocation7 + $0x14a8] sm:$0xff] %v4801
    %5826 = vst [vmem:[#allocation7 + $0x14b0] sm:$0xff] %v4802
    %5827 = vst [vmem:[#allocation7 + $0x14b8] sm:$0xff] %v4803
    %5828 = vst [vmem:[#allocation7 + $0x14c0] sm:$0xff] %v4804
    %5829 = vst [vmem:[#allocation7 + $0x14c8] sm:$0xff] %v4805
    %5830 = vst [vmem:[#allocation7 + $0x14d0] sm:$0xff] %v4806
    %5831 = vst [vmem:[#allocation7 + $0x14d8] sm:$0xff] %v4807
    %5832 = vst [vmem:[#allocation7 + $0x14e0] sm:$0xff] %v4808
    %5833 = vst [vmem:[#allocation7 + $0x14e8] sm:$0xff] %v4809
    %5834 = vst [vmem:[#allocation7 + $0x14f0] sm:$0xff] %v4810
    %5835 = vst [vmem:[#allocation7 + $0x14f8] sm:$0xff] %v4811
    %5836 = vst [vmem:[#allocation7 + $0x1500] sm:$0xff] %v4812
    %5837 = vst [vmem:[#allocation7 + $0x1508] sm:$0xff] %v4813
    %5838 = vst [vmem:[#allocation7 + $0x1510] sm:$0xff] %v4814
    %5839 = vst [vmem:[#allocation7 + $0x1518] sm:$0xff] %v4815
    %5840 = vst [vmem:[#allocation7 + $0x1520] sm:$0xff] %v4816
    %5841 = vst [vmem:[#allocation7 + $0x1528] sm:$0xff] %v4817
    %5842 = vst [vmem:[#allocation7 + $0x1530] sm:$0xff] %v4818
    %5843 = vst [vmem:[#allocation7 + $0x1538] sm:$0xff] %v4819
    %5844 = vst [vmem:[#allocation7 + $0x1540] sm:$0xff] %v4820
    %5845 = vst [vmem:[#allocation7 + $0x1548] sm:$0xff] %v4821
    %5846 = vst [vmem:[#allocation7 + $0x1550] sm:$0xff] %v4822
    %5847 = vst [vmem:[#allocation7 + $0x1558] sm:$0xff] %v4823
    %5848 = vst [vmem:[#allocation7 + $0x1560] sm:$0xff] %v4824
    %5849 = vst [vmem:[#allocation7 + $0x1568] sm:$0xff] %v4825
    %5850 = vst [vmem:[#allocation7 + $0x1570] sm:$0xff] %v4826
    %5851 = vst [vmem:[#allocation7 + $0x1578] sm:$0xff] %v4827
    %5852 = vst [vmem:[#allocation7 + $0x1580] sm:$0xff] %v4828
    %5853 = vst [vmem:[#allocation7 + $0x1588] sm:$0xff] %v4829
    %5854 = vst [vmem:[#allocation7 + $0x1590] sm:$0xff] %v4830
    %5855 = vst [vmem:[#allocation7 + $0x1598] sm:$0xff] %v4831
    %5856 = vst [vmem:[#allocation7 + $0x15a0] sm:$0xff] %v4832
    %5857 = vst [vmem:[#allocation7 + $0x15a8] sm:$0xff] %v4833
    %5858 = vst [vmem:[#allocation7 + $0x15b0] sm:$0xff] %v4834
    %5859 = vst [vmem:[#allocation7 + $0x15b8] sm:$0xff] %v4835
    %5860 = vst [vmem:[#allocation7 + $0x15c0] sm:$0xff] %v4836
    %5861 = vst [vmem:[#allocation7 + $0x15c8] sm:$0xff] %v4837
    %5862 = vst [vmem:[#allocation7 + $0x15d0] sm:$0xff] %v4838
    %5863 = vst [vmem:[#allocation7 + $0x15d8] sm:$0xff] %v4839
    %5864 = vst [vmem:[#allocation7 + $0x15e0] sm:$0xff] %v4840
    %5865 = vst [vmem:[#allocation7 + $0x15e8] sm:$0xff] %v4841
    %5866 = vst [vmem:[#allocation7 + $0x15f0] sm:$0xff] %v4842
    %5867 = vst [vmem:[#allocation7 + $0x15f8] sm:$0xff] %v4843
    %5868 = vst [vmem:[#allocation7 + $0x1600] sm:$0xff] %v4844
    %5869 = vst [vmem:[#allocation7 + $0x1608] sm:$0xff] %v4845
    %5870 = vst [vmem:[#allocation7 + $0x1610] sm:$0xff] %v4846
    %5871 = vst [vmem:[#allocation7 + $0x1618] sm:$0xff] %v4847
    %5872 = vst [vmem:[#allocation7 + $0x1620] sm:$0xff] %v4848
    %5873 = vst [vmem:[#allocation7 + $0x1628] sm:$0xff] %v4849
    %5874 = vst [vmem:[#allocation7 + $0x1630] sm:$0xff] %v4850
    %5875 = vst [vmem:[#allocation7 + $0x1638] sm:$0xff] %v4851
    %5876 = vst [vmem:[#allocation7 + $0x1640] sm:$0xff] %v4852
    %5877 = vst [vmem:[#allocation7 + $0x1648] sm:$0xff] %v4853
    %5878 = vst [vmem:[#allocation7 + $0x1650] sm:$0xff] %v4854
    %5879 = vst [vmem:[#allocation7 + $0x1658] sm:$0xff] %v4855
    %5880 = vst [vmem:[#allocation7 + $0x1660] sm:$0xff] %v4856
    %5881 = vst [vmem:[#allocation7 + $0x1668] sm:$0xff] %v4857
    %5882 = vst [vmem:[#allocation7 + $0x1670] sm:$0xff] %v4858
    %5883 = vst [vmem:[#allocation7 + $0x1678] sm:$0xff] %v4859
    %5884 = vst [vmem:[#allocation7 + $0x1680] sm:$0xff] %v4860
    %5885 = vst [vmem:[#allocation7 + $0x1688] sm:$0xff] %v4861
    %5886 = vst [vmem:[#allocation7 + $0x1690] sm:$0xff] %v4862
    %5887 = vst [vmem:[#allocation7 + $0x1698] sm:$0xff] %v4863
    %5888 = vst [vmem:[#allocation7 + $0x16a0] sm:$0xff] %v4864
    %5889 = vst [vmem:[#allocation7 + $0x16a8] sm:$0xff] %v4865
    %5890 = vst [vmem:[#allocation7 + $0x16b0] sm:$0xff] %v4866
    %5891 = vst [vmem:[#allocation7 + $0x16b8] sm:$0xff] %v4867
    %5892 = vst [vmem:[#allocation7 + $0x16c0] sm:$0xff] %v4868
    %5893 = vst [vmem:[#allocation7 + $0x16c8] sm:$0xff] %v4869
    %5894 = vst [vmem:[#allocation7 + $0x16d0] sm:$0xff] %v4870
    %5895 = vst [vmem:[#allocation7 + $0x16d8] sm:$0xff] %v4871
    %5896 = vst [vmem:[#allocation7 + $0x16e0] sm:$0xff] %v4872
    %5897 = vst [vmem:[#allocation7 + $0x16e8] sm:$0xff] %v4873
    %5898 = vst [vmem:[#allocation7 + $0x16f0] sm:$0xff] %v4874
    %5899 = vst [vmem:[#allocation7 + $0x16f8] sm:$0xff] %v4875
    %5900 = vst [vmem:[#allocation7 + $0x1700] sm:$0xff] %v4876
    %5901 = vst [vmem:[#allocation7 + $0x1708] sm:$0xff] %v4877
    %5902 = vst [vmem:[#allocation7 + $0x1710] sm:$0xff] %v4878
    %5903 = vst [vmem:[#allocation7 + $0x1718] sm:$0xff] %v4879
    %5904 = vst [vmem:[#allocation7 + $0x1720] sm:$0xff] %v4880
    %5905 = vst [vmem:[#allocation7 + $0x1728] sm:$0xff] %v4881
    %5906 = vst [vmem:[#allocation7 + $0x1730] sm:$0xff] %v4882
    %5907 = vst [vmem:[#allocation7 + $0x1738] sm:$0xff] %v4883
    %5908 = vst [vmem:[#allocation7 + $0x1740] sm:$0xff] %v4884
    %5909 = vst [vmem:[#allocation7 + $0x1748] sm:$0xff] %v4885
    %5910 = vst [vmem:[#allocation7 + $0x1750] sm:$0xff] %v4886
    %5911 = vst [vmem:[#allocation7 + $0x1758] sm:$0xff] %v4887
    %5912 = vst [vmem:[#allocation7 + $0x1760] sm:$0xff] %v4888
    %5913 = vst [vmem:[#allocation7 + $0x1768] sm:$0xff] %v4889
    %5914 = vst [vmem:[#allocation7 + $0x1770] sm:$0xff] %v4890
    %5915 = vst [vmem:[#allocation7 + $0x1778] sm:$0xff] %v4891
    %5916 = vst [vmem:[#allocation7 + $0x1780] sm:$0xff] %v4892
    %5917 = vst [vmem:[#allocation7 + $0x1788] sm:$0xff] %v4893
    %5918 = vst [vmem:[#allocation7 + $0x1790] sm:$0xff] %v4894
    %5919 = vst [vmem:[#allocation7 + $0x1798] sm:$0xff] %v4895
    %5920 = vst [vmem:[#allocation7 + $0x17a0] sm:$0xff] %v4896
    %5921 = vst [vmem:[#allocation7 + $0x17a8] sm:$0xff] %v4897
    %5922 = vst [vmem:[#allocation7 + $0x17b0] sm:$0xff] %v4898
    %5923 = vst [vmem:[#allocation7 + $0x17b8] sm:$0xff] %v4899
    %5924 = vst [vmem:[#allocation7 + $0x17c0] sm:$0xff] %v4900
    %5925 = vst [vmem:[#allocation7 + $0x17c8] sm:$0xff] %v4901
    %5926 = vst [vmem:[#allocation7 + $0x17d0] sm:$0xff] %v4902
    %5927 = vst [vmem:[#allocation7 + $0x17d8] sm:$0xff] %v4903
    %5928 = vst [vmem:[#allocation7 + $0x17e0] sm:$0xff] %v4904
    %5929 = vst [vmem:[#allocation7 + $0x17e8] sm:$0xff] %v4905
    %5930 = vst [vmem:[#allocation7 + $0x17f0] sm:$0xff] %v4906
    %5931 = vst [vmem:[#allocation7 + $0x17f8] sm:$0xff] %v4907
    %5932 = vst [vmem:[#allocation7 + $0x1800] sm:$0xff] %v4908
    %5933 = vst [vmem:[#allocation7 + $0x1808] sm:$0xff] %v4909
    %5934 = vst [vmem:[#allocation7 + $0x1810] sm:$0xff] %v4910
    %5935 = vst [vmem:[#allocation7 + $0x1818] sm:$0xff] %v4911
    %5936 = vst [vmem:[#allocation7 + $0x1820] sm:$0xff] %v4912
    %5937 = vst [vmem:[#allocation7 + $0x1828] sm:$0xff] %v4913
    %5938 = vst [vmem:[#allocation7 + $0x1830] sm:$0xff] %v4914
    %5939 = vst [vmem:[#allocation7 + $0x1838] sm:$0xff] %v4915
    %5940 = vst [vmem:[#allocation7 + $0x1840] sm:$0xff] %v4916
    %5941 = vst [vmem:[#allocation7 + $0x1848] sm:$0xff] %v4917
    %5942 = vst [vmem:[#allocation7 + $0x1850] sm:$0xff] %v4918
    %5943 = vst [vmem:[#allocation7 + $0x1858] sm:$0xff] %v4919
    %5944 = vst [vmem:[#allocation7 + $0x1860] sm:$0xff] %v4920
    %5945 = vst [vmem:[#allocation7 + $0x1868] sm:$0xff] %v4921
    %5946 = vst [vmem:[#allocation7 + $0x1870] sm:$0xff] %v4922
    %5947 = vst [vmem:[#allocation7 + $0x1878] sm:$0xff] %v4923
    %5948 = vst [vmem:[#allocation7 + $0x1880] sm:$0xff] %v4924
    %5949 = vst [vmem:[#allocation7 + $0x1888] sm:$0xff] %v4925
    %5950 = vst [vmem:[#allocation7 + $0x1890] sm:$0xff] %v4926
    %5951 = vst [vmem:[#allocation7 + $0x1898] sm:$0xff] %v4927
    %5952 = vst [vmem:[#allocation7 + $0x18a0] sm:$0xff] %v4928
    %5953 = vst [vmem:[#allocation7 + $0x18a8] sm:$0xff] %v4929
    %5954 = vst [vmem:[#allocation7 + $0x18b0] sm:$0xff] %v4930
    %5955 = vst [vmem:[#allocation7 + $0x18b8] sm:$0xff] %v4931
    %5956 = vst [vmem:[#allocation7 + $0x18c0] sm:$0xff] %v4932
    %5957 = vst [vmem:[#allocation7 + $0x18c8] sm:$0xff] %v4933
    %5958 = vst [vmem:[#allocation7 + $0x18d0] sm:$0xff] %v4934
    %5959 = vst [vmem:[#allocation7 + $0x18d8] sm:$0xff] %v4935
    %5960 = vst [vmem:[#allocation7 + $0x18e0] sm:$0xff] %v4936
    %5961 = vst [vmem:[#allocation7 + $0x18e8] sm:$0xff] %v4937
    %5962 = vst [vmem:[#allocation7 + $0x18f0] sm:$0xff] %v4938
    %5963 = vst [vmem:[#allocation7 + $0x18f8] sm:$0xff] %v4939
    %5964 = vst [vmem:[#allocation7 + $0x1900] sm:$0xff] %v4940
    %5965 = vst [vmem:[#allocation7 + $0x1908] sm:$0xff] %v4941
    %5966 = vst [vmem:[#allocation7 + $0x1910] sm:$0xff] %v4942
    %5967 = vst [vmem:[#allocation7 + $0x1918] sm:$0xff] %v4943
    %5968 = vst [vmem:[#allocation7 + $0x1920] sm:$0xff] %v4944
    %5969 = vst [vmem:[#allocation7 + $0x1928] sm:$0xff] %v4945
    %5970 = vst [vmem:[#allocation7 + $0x1930] sm:$0xff] %v4946
    %5971 = vst [vmem:[#allocation7 + $0x1938] sm:$0xff] %v4947
    %5972 = vst [vmem:[#allocation7 + $0x1940] sm:$0xff] %v4948
    %5973 = vst [vmem:[#allocation7 + $0x1948] sm:$0xff] %v4949
    %5974 = vst [vmem:[#allocation7 + $0x1950] sm:$0xff] %v4950
    %5975 = vst [vmem:[#allocation7 + $0x1958] sm:$0xff] %v4951
    %5976 = vst [vmem:[#allocation7 + $0x1960] sm:$0xff] %v4952
    %5977 = vst [vmem:[#allocation7 + $0x1968] sm:$0xff] %v4953
    %5978 = vst [vmem:[#allocation7 + $0x1970] sm:$0xff] %v4954
    %5979 = vst [vmem:[#allocation7 + $0x1978] sm:$0xff] %v4955
    %5980 = vst [vmem:[#allocation7 + $0x1980] sm:$0xff] %v4956
    %5981 = vst [vmem:[#allocation7 + $0x1988] sm:$0xff] %v4957
    %5982 = vst [vmem:[#allocation7 + $0x1990] sm:$0xff] %v4958
    %5983 = vst [vmem:[#allocation7 + $0x1998] sm:$0xff] %v4959
    %5984 = vst [vmem:[#allocation7 + $0x19a0] sm:$0xff] %v4960
    %5985 = vst [vmem:[#allocation7 + $0x19a8] sm:$0xff] %v4961
    %5986 = vst [vmem:[#allocation7 + $0x19b0] sm:$0xff] %v4962
    %5987 = vst [vmem:[#allocation7 + $0x19b8] sm:$0xff] %v4963
    %5988 = vst [vmem:[#allocation7 + $0x19c0] sm:$0xff] %v4964
    %5989 = vst [vmem:[#allocation7 + $0x19c8] sm:$0xff] %v4965
    %5990 = vst [vmem:[#allocation7 + $0x19d0] sm:$0xff] %v4966
    %5991 = vst [vmem:[#allocation7 + $0x19d8] sm:$0xff] %v4967
    %5992 = vst [vmem:[#allocation7 + $0x19e0] sm:$0xff] %v4968
    %5993 = vst [vmem:[#allocation7 + $0x19e8] sm:$0xff] %v4969
    %5994 = vst [vmem:[#allocation7 + $0x19f0] sm:$0xff] %v4970
    %5995 = vst [vmem:[#allocation7 + $0x19f8] sm:$0xff] %v4971
    %5996 = vst [vmem:[#allocation7 + $0x1a00] sm:$0xff] %v4972
    %5997 = vst [vmem:[#allocation7 + $0x1a08] sm:$0xff] %v4973
    %5998 = vst [vmem:[#allocation7 + $0x1a10] sm:$0xff] %v4974
    %5999 = vst [vmem:[#allocation7 + $0x1a18] sm:$0xff] %v4975
    %6000 = vst [vmem:[#allocation7 + $0x1a20] sm:$0xff] %v4976
    %6001 = vst [vmem:[#allocation7 + $0x1a28] sm:$0xff] %v4977
    %6002 = vst [vmem:[#allocation7 + $0x1a30] sm:$0xff] %v4978
    %6003 = vst [vmem:[#allocation7 + $0x1a38] sm:$0xff] %v4979
    %6004 = vst [vmem:[#allocation7 + $0x1a40] sm:$0xff] %v4980
    %6005 = vst [vmem:[#allocation7 + $0x1a48] sm:$0xff] %v4981
    %6006 = vst [vmem:[#allocation7 + $0x1a50] sm:$0xff] %v4982
    %6007 = vst [vmem:[#allocation7 + $0x1a58] sm:$0xff] %v4983
    %6008 = vst [vmem:[#allocation7 + $0x1a60] sm:$0xff] %v4984
    %6009 = vst [vmem:[#allocation7 + $0x1a68] sm:$0xff] %v4985
    %6010 = vst [vmem:[#allocation7 + $0x1a70] sm:$0xff] %v4986
    %6011 = vst [vmem:[#allocation7 + $0x1a78] sm:$0xff] %v4987
    %6012 = vst [vmem:[#allocation7 + $0x1a80] sm:$0xff] %v4988
    %6013 = vst [vmem:[#allocation7 + $0x1a88] sm:$0xff] %v4989
    %6014 = vst [vmem:[#allocation7 + $0x1a90] sm:$0xff] %v4990
    %6015 = vst [vmem:[#allocation7 + $0x1a98] sm:$0xff] %v4991
    %6016 = vst [vmem:[#allocation7 + $0x1aa0] sm:$0xff] %v4992
    %6017 = vst [vmem:[#allocation7 + $0x1aa8] sm:$0xff] %v4993
    %6018 = vst [vmem:[#allocation7 + $0x1ab0] sm:$0xff] %v4994
    %6019 = vst [vmem:[#allocation7 + $0x1ab8] sm:$0xff] %v4995
    %6020 = vst [vmem:[#allocation7 + $0x1ac0] sm:$0xff] %v4996
    %6021 = vst [vmem:[#allocation7 + $0x1ac8] sm:$0xff] %v4997
    %6022 = vst [vmem:[#allocation7 + $0x1ad0] sm:$0xff] %v4998
    %6023 = vst [vmem:[#allocation7 + $0x1ad8] sm:$0xff] %v4999
    %6024 = vst [vmem:[#allocation7 + $0x1ae0] sm:$0xff] %v5000
    %6025 = vst [vmem:[#allocation7 + $0x1ae8] sm:$0xff] %v5001
    %6026 = vst [vmem:[#allocation7 + $0x1af0] sm:$0xff] %v5002
    %6027 = vst [vmem:[#allocation7 + $0x1af8] sm:$0xff] %v5003
    %6028 = vst [vmem:[#allocation7 + $0x1b00] sm:$0xff] %v5004
    %6029 = vst [vmem:[#allocation7 + $0x1b08] sm:$0xff] %v5005
    %6030 = vst [vmem:[#allocation7 + $0x1b10] sm:$0xff] %v5006
    %6031 = vst [vmem:[#allocation7 + $0x1b18] sm:$0xff] %v5007
    %6032 = vst [vmem:[#allocation7 + $0x1b20] sm:$0xff] %v5008
    %6033 = vst [vmem:[#allocation7 + $0x1b28] sm:$0xff] %v5009
    %6034 = vst [vmem:[#allocation7 + $0x1b30] sm:$0xff] %v5010
    %6035 = vst [vmem:[#allocation7 + $0x1b38] sm:$0xff] %v5011
    %6036 = vst [vmem:[#allocation7 + $0x1b40] sm:$0xff] %v5012
    %6037 = vst [vmem:[#allocation7 + $0x1b48] sm:$0xff] %v5013
    %6038 = vst [vmem:[#allocation7 + $0x1b50] sm:$0xff] %v5014
    %6039 = vst [vmem:[#allocation7 + $0x1b58] sm:$0xff] %v5015
    %6040 = vst [vmem:[#allocation7 + $0x1b60] sm:$0xff] %v5016
    %6041 = vst [vmem:[#allocation7 + $0x1b68] sm:$0xff] %v5017
    %6042 = vst [vmem:[#allocation7 + $0x1b70] sm:$0xff] %v5018
    %6043 = vst [vmem:[#allocation7 + $0x1b78] sm:$0xff] %v5019
    %6044 = vst [vmem:[#allocation7 + $0x1b80] sm:$0xff] %v5020
    %6045 = vst [vmem:[#allocation7 + $0x1b88] sm:$0xff] %v5021
    %6046 = vst [vmem:[#allocation7 + $0x1b90] sm:$0xff] %v5022
    %6047 = vst [vmem:[#allocation7 + $0x1b98] sm:$0xff] %v5023
    %6048 = vst [vmem:[#allocation7 + $0x1ba0] sm:$0xff] %v5024
    %6049 = vst [vmem:[#allocation7 + $0x1ba8] sm:$0xff] %v5025
    %6050 = vst [vmem:[#allocation7 + $0x1bb0] sm:$0xff] %v5026
    %6051 = vst [vmem:[#allocation7 + $0x1bb8] sm:$0xff] %v5027
    %6052 = vst [vmem:[#allocation7 + $0x1bc0] sm:$0xff] %v5028
    %6053 = vst [vmem:[#allocation7 + $0x1bc8] sm:$0xff] %v5029
    %6054 = vst [vmem:[#allocation7 + $0x1bd0] sm:$0xff] %v5030
    %6055 = vst [vmem:[#allocation7 + $0x1bd8] sm:$0xff] %v5031
    %6056 = vst [vmem:[#allocation7 + $0x1be0] sm:$0xff] %v5032
    %6057 = vst [vmem:[#allocation7 + $0x1be8] sm:$0xff] %v5033
    %6058 = vst [vmem:[#allocation7 + $0x1bf0] sm:$0xff] %v5034
    %6059 = vst [vmem:[#allocation7 + $0x1bf8] sm:$0xff] %v5035
    %6060 = vst [vmem:[#allocation7 + $0x1c00] sm:$0xff] %v5036
    %6061 = vst [vmem:[#allocation7 + $0x1c08] sm:$0xff] %v5037
    %6062 = vst [vmem:[#allocation7 + $0x1c10] sm:$0xff] %v5038
    %6063 = vst [vmem:[#allocation7 + $0x1c18] sm:$0xff] %v5039
    %6064 = vst [vmem:[#allocation7 + $0x1c20] sm:$0xff] %v5040
    %6065 = vst [vmem:[#allocation7 + $0x1c28] sm:$0xff] %v5041
    %6066 = vst [vmem:[#allocation7 + $0x1c30] sm:$0xff] %v5042
    %6067 = vst [vmem:[#allocation7 + $0x1c38] sm:$0xff] %v5043
    %6068 = vst [vmem:[#allocation7 + $0x1c40] sm:$0xff] %v5044
    %6069 = vst [vmem:[#allocation7 + $0x1c48] sm:$0xff] %v5045
    %6070 = vst [vmem:[#allocation7 + $0x1c50] sm:$0xff] %v5046
    %6071 = vst [vmem:[#allocation7 + $0x1c58] sm:$0xff] %v5047
    %6072 = vst [vmem:[#allocation7 + $0x1c60] sm:$0xff] %v5048
    %6073 = vst [vmem:[#allocation7 + $0x1c68] sm:$0xff] %v5049
    %6074 = vst [vmem:[#allocation7 + $0x1c70] sm:$0xff] %v5050
    %6075 = vst [vmem:[#allocation7 + $0x1c78] sm:$0xff] %v5051
    %6076 = vst [vmem:[#allocation7 + $0x1c80] sm:$0xff] %v5052
    %6077 = vst [vmem:[#allocation7 + $0x1c88] sm:$0xff] %v5053
    %6078 = vst [vmem:[#allocation7 + $0x1c90] sm:$0xff] %v5054
    %6079 = vst [vmem:[#allocation7 + $0x1c98] sm:$0xff] %v5055
    %6080 = vst [vmem:[#allocation7 + $0x1ca0] sm:$0xff] %v5056
    %6081 = vst [vmem:[#allocation7 + $0x1ca8] sm:$0xff] %v5057
    %6082 = vst [vmem:[#allocation7 + $0x1cb0] sm:$0xff] %v5058
    %6083 = vst [vmem:[#allocation7 + $0x1cb8] sm:$0xff] %v5059
    %6084 = vst [vmem:[#allocation7 + $0x1cc0] sm:$0xff] %v5060
    %6085 = vst [vmem:[#allocation7 + $0x1cc8] sm:$0xff] %v5061
    %6086 = vst [vmem:[#allocation7 + $0x1cd0] sm:$0xff] %v5062
    %6087 = vst [vmem:[#allocation7 + $0x1cd8] sm:$0xff] %v5063
    %6088 = vst [vmem:[#allocation7 + $0x1ce0] sm:$0xff] %v5064
    %6089 = vst [vmem:[#allocation7 + $0x1ce8] sm:$0xff] %v5065
    %6090 = vst [vmem:[#allocation7 + $0x1cf0] sm:$0xff] %v5066
    %6091 = vst [vmem:[#allocation7 + $0x1cf8] sm:$0xff] %v5067
    %6092 = vst [vmem:[#allocation7 + $0x1d00] sm:$0xff] %v5068
    %6093 = vst [vmem:[#allocation7 + $0x1d08] sm:$0xff] %v5069
    %6094 = vst [vmem:[#allocation7 + $0x1d10] sm:$0xff] %v5070
    %6095 = vst [vmem:[#allocation7 + $0x1d18] sm:$0xff] %v5071
    %6096 = vst [vmem:[#allocation7 + $0x1d20] sm:$0xff] %v5072
    %6097 = vst [vmem:[#allocation7 + $0x1d28] sm:$0xff] %v5073
    %6098 = vst [vmem:[#allocation7 + $0x1d30] sm:$0xff] %v5074
    %6099 = vst [vmem:[#allocation7 + $0x1d38] sm:$0xff] %v5075
    %6100 = vst [vmem:[#allocation7 + $0x1d40] sm:$0xff] %v5076
    %6101 = vst [vmem:[#allocation7 + $0x1d48] sm:$0xff] %v5077
    %6102 = vst [vmem:[#allocation7 + $0x1d50] sm:$0xff] %v5078
    %6103 = vst [vmem:[#allocation7 + $0x1d58] sm:$0xff] %v5079
    %6104 = vst [vmem:[#allocation7 + $0x1d60] sm:$0xff] %v5080
    %6105 = vst [vmem:[#allocation7 + $0x1d68] sm:$0xff] %v5081
    %6106 = vst [vmem:[#allocation7 + $0x1d70] sm:$0xff] %v5082
    %6107 = vst [vmem:[#allocation7 + $0x1d78] sm:$0xff] %v5083
    %6108 = vst [vmem:[#allocation7 + $0x1d80] sm:$0xff] %v5084
    %6109 = vst [vmem:[#allocation7 + $0x1d88] sm:$0xff] %v5085
    %6110 = vst [vmem:[#allocation7 + $0x1d90] sm:$0xff] %v5086
    %6111 = vst [vmem:[#allocation7 + $0x1d98] sm:$0xff] %v5087
    %6112 = vst [vmem:[#allocation7 + $0x1da0] sm:$0xff] %v5088
    %6113 = vst [vmem:[#allocation7 + $0x1da8] sm:$0xff] %v5089
    %6114 = vst [vmem:[#allocation7 + $0x1db0] sm:$0xff] %v5090
    %6115 = vst [vmem:[#allocation7 + $0x1db8] sm:$0xff] %v5091
    %6116 = vst [vmem:[#allocation7 + $0x1dc0] sm:$0xff] %v5092
    %6117 = vst [vmem:[#allocation7 + $0x1dc8] sm:$0xff] %v5093
    %6118 = vst [vmem:[#allocation7 + $0x1dd0] sm:$0xff] %v5094
    %6119 = vst [vmem:[#allocation7 + $0x1dd8] sm:$0xff] %v5095
    %6120 = vst [vmem:[#allocation7 + $0x1de0] sm:$0xff] %v5096
    %6121 = vst [vmem:[#allocation7 + $0x1de8] sm:$0xff] %v5097
    %6122 = vst [vmem:[#allocation7 + $0x1df0] sm:$0xff] %v5098
    %6123 = vst [vmem:[#allocation7 + $0x1df8] sm:$0xff] %v5099
    %6124 = vst [vmem:[#allocation7 + $0x1e00] sm:$0xff] %v5100
    %6125 = vst [vmem:[#allocation7 + $0x1e08] sm:$0xff] %v5101
    %6126 = vst [vmem:[#allocation7 + $0x1e10] sm:$0xff] %v5102
    %6127 = vst [vmem:[#allocation7 + $0x1e18] sm:$0xff] %v5103
    %6128 = vst [vmem:[#allocation7 + $0x1e20] sm:$0xff] %v5104
    %6129 = vst [vmem:[#allocation7 + $0x1e28] sm:$0xff] %v5105
    %6130 = vst [vmem:[#allocation7 + $0x1e30] sm:$0xff] %v5106
    %6131 = vst [vmem:[#allocation7 + $0x1e38] sm:$0xff] %v5107
    %6132 = vst [vmem:[#allocation7 + $0x1e40] sm:$0xff] %v5108
    %6133 = vst [vmem:[#allocation7 + $0x1e48] sm:$0xff] %v5109
    %6134 = vst [vmem:[#allocation7 + $0x1e50] sm:$0xff] %v5110
    %6135 = vst [vmem:[#allocation7 + $0x1e58] sm:$0xff] %v5111
    %6136 = vst [vmem:[#allocation7 + $0x1e60] sm:$0xff] %v5112
    %6137 = vst [vmem:[#allocation7 + $0x1e68] sm:$0xff] %v5113
    %6138 = vst [vmem:[#allocation7 + $0x1e70] sm:$0xff] %v5114
    %6139 = vst [vmem:[#allocation7 + $0x1e78] sm:$0xff] %v5115
    %6140 = vst [vmem:[#allocation7 + $0x1e80] sm:$0xff] %v5116
    %6141 = vst [vmem:[#allocation7 + $0x1e88] sm:$0xff] %v5117
    %6142 = vst [vmem:[#allocation7 + $0x1e90] sm:$0xff] %v5118
    %6143 = vst [vmem:[#allocation7 + $0x1e98] sm:$0xff] %v5119
    %6144 = vst [vmem:[#allocation7 + $0x1ea0] sm:$0xff] %v5120
    %6145 = vst [vmem:[#allocation7 + $0x1ea8] sm:$0xff] %v5121
    %6146 = vst [vmem:[#allocation7 + $0x1eb0] sm:$0xff] %v5122
    %6147 = vst [vmem:[#allocation7 + $0x1eb8] sm:$0xff] %v5123
    %6148 = vst [vmem:[#allocation7 + $0x1ec0] sm:$0xff] %v5124
    %6149 = vst [vmem:[#allocation7 + $0x1ec8] sm:$0xff] %v5125
    %6150 = vst [vmem:[#allocation7 + $0x1ed0] sm:$0xff] %v5126
    %6151 = vst [vmem:[#allocation7 + $0x1ed8] sm:$0xff] %v5127
    %6152 = vst [vmem:[#allocation7 + $0x1ee0] sm:$0xff] %v5128
    %6153 = vst [vmem:[#allocation7 + $0x1ee8] sm:$0xff] %v5129
    %6154 = vst [vmem:[#allocation7 + $0x1ef0] sm:$0xff] %v5130
    %6155 = vst [vmem:[#allocation7 + $0x1ef8] sm:$0xff] %v5131
    %6156 = vst [vmem:[#allocation7 + $0x1f00] sm:$0xff] %v5132
    %6157 = vst [vmem:[#allocation7 + $0x1f08] sm:$0xff] %v5133
    %6158 = vst [vmem:[#allocation7 + $0x1f10] sm:$0xff] %v5134
    %6159 = vst [vmem:[#allocation7 + $0x1f18] sm:$0xff] %v5135
    %6160 = vst [vmem:[#allocation7 + $0x1f20] sm:$0xff] %v5136
    %6161 = vst [vmem:[#allocation7 + $0x1f28] sm:$0xff] %v5137
    %6162 = vst [vmem:[#allocation7 + $0x1f30] sm:$0xff] %v5138
    %6163 = vst [vmem:[#allocation7 + $0x1f38] sm:$0xff] %v5139
    %6164 = vst [vmem:[#allocation7 + $0x1f40] sm:$0xff] %v5140
    %6165 = vst [vmem:[#allocation7 + $0x1f48] sm:$0xff] %v5141
    %6166 = vst [vmem:[#allocation7 + $0x1f50] sm:$0xff] %v5142
    %6167 = vst [vmem:[#allocation7 + $0x1f58] sm:$0xff] %v5143
    %6168 = vst [vmem:[#allocation7 + $0x1f60] sm:$0xff] %v5144
    %6169 = vst [vmem:[#allocation7 + $0x1f68] sm:$0xff] %v5145
    %6170 = vst [vmem:[#allocation7 + $0x1f70] sm:$0xff] %v5146
    %6171 = vst [vmem:[#allocation7 + $0x1f78] sm:$0xff] %v5147
    %6172 = vst [vmem:[#allocation7 + $0x1f80] sm:$0xff] %v5148
    %6173 = vst [vmem:[#allocation7 + $0x1f88] sm:$0xff] %v5149
    %6174 = vst [vmem:[#allocation7 + $0x1f90] sm:$0xff] %v5150
    %6175 = vst [vmem:[#allocation7 + $0x1f98] sm:$0xff] %v5151
    %6176 = vst [vmem:[#allocation7 + $0x1fa0] sm:$0xff] %v5152
    %6177 = vst [vmem:[#allocation7 + $0x1fa8] sm:$0xff] %v5153
    %6178 = vst [vmem:[#allocation7 + $0x1fb0] sm:$0xff] %v5154
    %6179 = vst [vmem:[#allocation7 + $0x1fb8] sm:$0xff] %v5155
    %6180 = vst [vmem:[#allocation7 + $0x1fc0] sm:$0xff] %v5156
    %6181 = vst [vmem:[#allocation7 + $0x1fc8] sm:$0xff] %v5157
    %6182 = vst [vmem:[#allocation7 + $0x1fd0] sm:$0xff] %v5158
    %6183 = vst [vmem:[#allocation7 + $0x1fd8] sm:$0xff] %v5159
    %6184 = vst [vmem:[#allocation7 + $0x1fe0] sm:$0xff] %v5160
    %6185 = vst [vmem:[#allocation7 + $0x1fe8] sm:$0xff] %v5161
    %6186 = vst [vmem:[#allocation7 + $0x1ff0] sm:$0xff] %v5162
    %6187 = vst [vmem:[#allocation7 + $0x1ff8] sm:$0xff] %v5163
    // Predicated region
    $region18: #{tpu_custom_call.1} parent=1 // pred_check
      _
    $region19: #{tpu_custom_call.1} parent=1 // pred_check_branch
      %6189 = sbr.rel (0) target = $region21
    $region20: #{tpu_custom_call.1} parent=1 // pred_region
      %6191 = vsyncadd [#allocation4], 0
      %s6192 = sshll.u32 [#allocation7], 4
      %s6193 = int_to_ptr.vmem [resolvable:$true] %s6192
      %s6194 = sshll.u32 %s2, 4
      %s6195 = int_to_ptr.hbm [resolvable:$true] %s6194
      %6200 = dma.vmem_to_hbm [thread:$0]  %s6193, 131072, %s6195, [#allocation4], 512, 512, 32
    $region21: #{tpu_custom_call.1} parent=1 // pred_fallthru
      _
    // Predicated region
    $region22: #{tpu_custom_call.1} parent=1 // pred_check
      _
    $region23: #{tpu_custom_call.1} parent=1 // pred_check_branch
      %6202 = sbr.rel (0) target = $region25
    $region24: #{tpu_custom_call.1} parent=1 // pred_region
      %6204 = dma.done [#allocation4], 131072
    $region25: #{tpu_custom_call.1} parent=1 // pred_fallthru
      _
    %6205 = vsyncpa [#allocation3], 1
    %6206 = vsyncpa [#allocation6], 1
    %6207 = vsyncpa [#allocation4], 1

</llo_original>
